<compile_context>
chip_gen: v7x
topology: tpu7x:2x2x1
jax: 0.10.0
libtpu: 0.0.40
codegen_flags: <defaults>
</compile_context>

<pallas_src>
import jax
import jax.numpy as jnp
from jax.experimental import pallas as pl
from jax.experimental.pallas import tpu as pltpu

HID = 500                 # hid_dim is overridden to 500 in __init__
ACT = 3
K_FEAT = 3 * 144 * 256    # 110592 (fixed by the module: nn.Linear(3*144*256, 500))
TK = 6144                 # 110592 / 6144 = 18 K tiles (9 per core-split half)
N_SPLIT = 2               # leading parallel axis -> both TCs on v7x
EPS = 1e-5                # nn.LayerNorm default
SLOPE = 0.01              # F.leaky_relu default negative_slope
VMEM_LIMIT = 48 * 1024 * 1024   # fits double-buffered bf16 w1 tiles everywhere


def _leaky_relu(x):
    return jnp.where(x > 0, x, SLOPE * x)


def _layernorm(x, gamma, beta):
    mu = jnp.mean(x, axis=-1, keepdims=True)
    var = jnp.mean((x - mu) ** 2, axis=-1, keepdims=True)
    return (x - mu) * jax.lax.rsqrt(var + EPS) * gamma + beta


# --------------------------------------------------------------------------
# Kernel 1: fc1 partial matmul, K-tiled, accumulated in f32 VMEM scratch.
# Grid = (N_SPLIT, n_k // N_SPLIT); axis 0 is "parallel" (megacore split),
# axis 1 is the "arbitrary" reduction axis.
# --------------------------------------------------------------------------
def fc1_kernel(x_ref, w1_ref, part_ref, acc_ref):
    k = pl.program_id(1)

    @pl.when(k == 0)
    def _():
        acc_ref[...] = jnp.zeros_like(acc_ref)

    acc_ref[...] += jnp.dot(x_ref[...], w1_ref[...],
                            preferred_element_type=jnp.float32)

    @pl.when(k == pl.num_programs(1) - 1)
    def _():
        part_ref[...] = acc_ref[...]


# --------------------------------------------------------------------------
# Kernel 2: tiny epilogue (sum partials + bias + LN + LReLU + fc2 + LN +
# LReLU + fc3). Single invocation, everything resident in VMEM once.
# --------------------------------------------------------------------------
def epilogue_kernel(part_ref, b1_ref, g1_ref, be1_ref,
                    w2_ref, b2_ref, g2_ref, be2_ref,
                    w3_ref, b3_ref, out_ref):
    h = jnp.sum(part_ref[...], axis=0) + b1_ref[...]
    h = _leaky_relu(_layernorm(h, g1_ref[...], be1_ref[...]))
    h2 = jnp.dot(h, w2_ref[...], preferred_element_type=jnp.float32) + b2_ref[...]
    h2 = _leaky_relu(_layernorm(h2, g2_ref[...], be2_ref[...]))
    out = jnp.dot(h2, w3_ref[...], preferred_element_type=jnp.float32) + b3_ref[...]
    out_ref[...] = out.astype(out_ref.dtype)


def policy_forward(x, params):
    """x: (B, 3*144*256).  Weights are (in_features, out_features)."""
    (w1, b1, g1, be1, w2, b2, g2, be2, w3, b3) = params
    B = x.shape[0]
    assert x.shape[1] == K_FEAT

    # bf16 streams for the HBM-bound fc1 contraction (f32 accumulation).
    x_bf = x.astype(jnp.bfloat16)
    w1_bf = w1.astype(jnp.bfloat16)   # no-op if already stored in bf16

    n_k = K_FEAT // TK
    assert n_k % N_SPLIT == 0
    n_half = n_k // N_SPLIT

    partials = pl.pallas_call(
        fc1_kernel,
        out_shape=jax.ShapeDtypeStruct((N_SPLIT, B, HID), jnp.float32),
        grid_spec=pltpu.PrefetchScalarGridSpec(
            num_scalar_prefetch=0,
            grid=(N_SPLIT, n_half),
            in_specs=[
                # x tile: (B, TK) at K-offset (c*n_half + k)
                pl.BlockSpec((B, TK), lambda c, k: (0, c * n_half + k)),
                # w1 tile: (TK, HID)
                pl.BlockSpec((TK, HID), lambda c, k: (c * n_half + k, 0)),
            ],
            # one (B, HID) partial per split half
            out_specs=pl.BlockSpec((None, B, HID), lambda c, k: (c, 0, 0)),
            scratch_shapes=[pltpu.VMEM((B, HID), jnp.float32)],
        ),
        compiler_params=pltpu.CompilerParams(
            dimension_semantics=("parallel", "arbitrary"),
            vmem_limit_bytes=VMEM_LIMIT,
        ),
    )(x_bf, w1_bf)

    # Micro-call: all operands are tiny (<= 1 MB), no grid / no pipelining.
    out = pl.pallas_call(
        epilogue_kernel,
        out_shape=jax.ShapeDtypeStruct((B, ACT), jnp.float32),
    )(partials, b1, g1, be1, w2, b2, g2, be2, w3, b3)
    return out


def init_params(key):
    """Deterministic synthetic init matching the PyTorch shapes / init scheme.
    w1 is *stored* in bf16 (perf: halves the HBM weight stream)."""
    ks = jax.random.split(key, 6)
    a = SLOPE
    gain_lrelu = (2.0 / (1.0 + a * a)) ** 0.5

    # fc1: kaiming_normal_ fan_in, leaky_relu  (stored bf16)
    w1 = (jax.random.normal(ks[0], (K_FEAT, HID), jnp.float32)
          * (gain_lrelu / K_FEAT ** 0.5)).astype(jnp.bfloat16)
    b1 = jax.random.uniform(ks[1], (1, HID), jnp.float32,
                            -1.0 / K_FEAT ** 0.5, 1.0 / K_FEAT ** 0.5)
    # fc2: kaiming_normal_ fan_in, leaky_relu
    w2 = jax.random.normal(ks[2], (HID, HID), jnp.float32) * (gain_lrelu / HID ** 0.5)
    b2 = jax.random.uniform(ks[3], (1, HID), jnp.float32,
                            -1.0 / HID ** 0.5, 1.0 / HID ** 0.5)
    # fc3: kaiming_normal_ fan_in, linear (gain = 1)
    w3 = jax.random.normal(ks[4], (HID, ACT), jnp.float32) * (1.0 / HID ** 0.5)
    b3 = jax.random.uniform(ks[5], (1, ACT), jnp.float32,
                            -1.0 / HID ** 0.5, 1.0 / HID ** 0.5)
    # LayerNorm params: PyTorch default elementwise_affine init (ones / zeros)
    g1 = jnp.ones((1, HID), jnp.float32)
    be1 = jnp.zeros((1, HID), jnp.float32)
    g2 = jnp.ones((1, HID), jnp.float32)
    be2 = jnp.zeros((1, HID), jnp.float32)
    return (w1, b1, g1, be1, w2, b2, g2, be2, w3, b3)


def reference_forward(x, params):
    """Pure-JAX reference using the same (bf16) stored fc1 weight."""
    (w1, b1, g1, be1, w2, b2, g2, be2, w3, b3) = params
    xb = x.astype(jnp.bfloat16)
    h = jnp.dot(xb, w1.astype(jnp.bfloat16),
                preferred_element_type=jnp.float32) + b1
    h = _leaky_relu(_layernorm(h, g1, be1))
    h = jnp.dot(h, w2, preferred_element_type=jnp.float32) + b2
    h = _leaky_relu(_layernorm(h, g2, be2))
    # tanh=False default -> no tanh on the output
    return jnp.dot(h, w3, preferred_element_type=jnp.float32) + b3


if __name__ == "__main__":
    key = jax.random.PRNGKey(0)
    kx, kp = jax.random.split(key)

    B = 2
    # x corresponds to a flattened (B, 3, 144, 256) NCHW image batch.
    # (fc1's in_features = 110592 is fixed by the module, so it cannot shrink.)
    x = jax.random.normal(kx, (B, K_FEAT), jnp.float32)
    params = init_params(kp)

    out = jax.block_until_ready(policy_forward(x, params))

    ref = reference_forward(x, params)
    assert out.shape == (B, ACT), out.shape
    assert jnp.allclose(out, ref, rtol=1e-2, atol=1e-2), (out, ref)

    # TODO(synk): sample_action / log_probs (Gaussian head with log_std) are
    # not part of forward() and are left to plain JAX.
    print("KERNEL_OK")
</pallas_src>

<mosaic_0001>
module attributes {stable_mosaic.version = 11 : i64} {
  func.func @fc1_kernel(%arg0: i32, %arg1: i32, %arg2: memref<2x6144xbf16, #tpu.memory_space<vmem>>, %arg3: memref<6144x500xbf16, #tpu.memory_space<vmem>>, %arg4: memref<1x2x500xf32, #tpu.memory_space<vmem>>, %arg5: memref<2x500xf32, #tpu.memory_space<vmem>>) attributes {dimension_semantics = [#tpu.dimension_semantics<parallel>, #tpu.dimension_semantics<arbitrary>], iteration_bounds = array<i64: 2, 9>, scalar_prefetch = 0 : i64, scratch_operands = 1 : i64, tpu.core_type = #tpu.core_type<tc>, window_params = [{transform_indices = @transform_0, window_bounds = array<i64: 2, 6144>}, {transform_indices = @transform_1, window_bounds = array<i64: 6144, 500>}, {transform_indices = @transform_2, window_bounds = array<i64: 1, 2, 500>}]} {
    %c0_i32 = arith.constant 0 : i32
    %0 = arith.cmpi eq, %arg1, %c0_i32 : i32
    %1 = arith.extui %0 : i1 to i32
    %c0_i32_0 = arith.constant 0 : i32
    %2 = arith.cmpi ne, %1, %c0_i32_0 : i32
    scf.if %2 {
      %cst_9 = arith.constant 0.000000e+00 : f32
      %12 = vector.broadcast %cst_9 : f32 to vector<2x500xf32>
      %c0_10 = arith.constant 0 : index
      %c0_11 = arith.constant 0 : index
      %13 = vector.load %arg5[%c0_10, %c0_11] : memref<2x500xf32, #tpu.memory_space<vmem>>, vector<2x500xf32>
      tpu.vector_store %arg5[%c0_10, %c0_11], %12 {strides = array<i32>} : memref<2x500xf32, #tpu.memory_space<vmem>>, vector<2x500xf32>,
    } else {
    }
    %c0 = arith.constant 0 : index
    %c0_1 = arith.constant 0 : index
    %3 = vector.load %arg5[%c0, %c0_1] : memref<2x500xf32, #tpu.memory_space<vmem>>, vector<2x500xf32>
    %c0_2 = arith.constant 0 : index
    %c0_3 = arith.constant 0 : index
    %4 = vector.load %arg2[%c0_2, %c0_3] : memref<2x6144xbf16, #tpu.memory_space<vmem>>, vector<2x6144xbf16>
    %c0_4 = arith.constant 0 : index
    %c0_5 = arith.constant 0 : index
    %5 = vector.load %arg3[%c0_4, %c0_5] : memref<6144x500xbf16, #tpu.memory_space<vmem>>, vector<6144x500xbf16>
    %cst = arith.constant dense<0.000000e+00> : vector<2x500xf32>
    %6 = tpu.matmul %4, %5, %cst {dimension_numbers = #tpu.dot_dimension_numbers<[1], [0], [0], [1], [0, 0, 1, 1], [], []>} : vector<2x6144xbf16>, vector<6144x500xbf16>, vector<2x500xf32> -> vector<2x500xf32>
    %7 = arith.addf %3, %6 : vector<2x500xf32>
    %c0_6 = arith.constant 0 : index
    %c0_7 = arith.constant 0 : index
    %8 = vector.load %arg5[%c0_6, %c0_7] : memref<2x500xf32, #tpu.memory_space<vmem>>, vector<2x500xf32>
    tpu.vector_store %arg5[%c0_6, %c0_7], %7 {strides = array<i32>} : memref<2x500xf32, #tpu.memory_space<vmem>>, vector<2x500xf32>,
    %c8_i32 = arith.constant 8 : i32
    %9 = arith.cmpi eq, %arg1, %c8_i32 : i32
    %10 = arith.extui %9 : i1 to i32
    %c0_i32_8 = arith.constant 0 : i32
    %11 = arith.cmpi ne, %10, %c0_i32_8 : i32
    scf.if %11 {
      %c0_9 = arith.constant 0 : index
      %c0_10 = arith.constant 0 : index
      %12 = vector.load %arg5[%c0_9, %c0_10] : memref<2x500xf32, #tpu.memory_space<vmem>>, vector<2x500xf32>
      %c0_11 = arith.constant 0 : index
      %c0_12 = arith.constant 0 : index
      %c0_13 = arith.constant 0 : index
      %13 = vector.load %arg4[%c0_11, %c0_12, %c0_13] : memref<1x2x500xf32, #tpu.memory_space<vmem>>, vector<1x2x500xf32>
      %14 = vector.shape_cast %13 : vector<1x2x500xf32> to vector<2x500xf32>
      %15 = vector.shape_cast %12 : vector<2x500xf32> to vector<1x2x500xf32>
      tpu.vector_store %arg4[%c0_11, %c0_12, %c0_13], %15 {strides = array<i32>} : memref<1x2x500xf32, #tpu.memory_space<vmem>>, vector<1x2x500xf32>,
    } else {
    }
    return
  }
  func.func @transform_0(%arg0: i32, %arg1: i32) -> (i32, i32) {
    %c9_i32 = arith.constant 9 : i32
    %0 = arith.muli %arg0, %c9_i32 : i32
    %1 = arith.addi %0, %arg1 : i32
    %c0_i32 = arith.constant 0 : i32
    %c0_i32_0 = arith.constant 0 : i32
    return %c0_i32, %1 : i32, i32
  }
  func.func @transform_1(%arg0: i32, %arg1: i32) -> (i32, i32) {
    %c9_i32 = arith.constant 9 : i32
    %0 = arith.muli %arg0, %c9_i32 : i32
    %1 = arith.addi %0, %arg1 : i32
    %c0_i32 = arith.constant 0 : i32
    %c0_i32_0 = arith.constant 0 : i32
    return %1, %c0_i32 : i32, i32
  }
  func.func @transform_2(%arg0: i32, %arg1: i32) -> (i32, i32, i32) {
    %c0_i32 = arith.constant 0 : i32
    %c0_i32_0 = arith.constant 0 : i32
    %c0_i32_1 = arith.constant 0 : i32
    return %arg0, %c0_i32, %c0_i32_0 : i32, i32, i32
  }
}

</mosaic_0001>

<llo_original>
// kernel: tpu_custom_call.1
$region0: #{tpu_custom_call.1}
  #allocation0 [shape = 'u32[]', space=smem, size = 0x4, offset = 0x4, fixed_abs, tag = 'smem constant byte address 0x4 - core index']
  #allocation1 [shape = 'u32[144,128]{1,0:T(1,128)}', space=vmem, size = 0x12000, scoped, tag = 'internal scratch']
  #allocation2 [shape = 'f32[2,500]{1,0:T(2,128)}', space=vmem, size = 0x1000, scoped, tag = 'scratch operand']
  %s0 = inlined_call_operand.vmem [shape: bf16[2,110592], index: 0, kind: input, shape index: {}]
  %s1 = inlined_call_operand.hbm [shape: bf16[110592,500], index: 1, kind: input, shape index: {}]
  %s2 = inlined_call_operand.hbm [shape: f32[2,2,500], index: 2, kind: output, shape index: {}]
  %s3 = sld [smem:[#allocation0]]
  $region53: #{tpu_custom_call.1} parent=0
    _
  %s5 = ssub.s32 1, %s3
  %s6 = scalar_select 0, %s5, %s3
  $region1: #{tpu_custom_call.1} parent=0
    #allocation3 [shape = 'u8[12582912]{0}', space=vmem, size = 0xc00000, scoped, tag = 'input window, operand 1']
    #allocation4 [shape = 's32[2]{0}', space=sflag, size = 0x8, scoped, tag = 'scoped memory for tpu_custom_call.1']
    #allocation5 [shape = 's32[2]{0}', space=sflag, size = 0x8, scoped, tag = 'scoped memory for tpu_custom_call.1']
    #allocation6 [shape = 'u8[8192]{0}', space=vmem, size = 0x2000, scoped, tag = 'output window, operand 0']
    %7 = vsyncpa [#allocation4], 0
    %s8 = scalar_lea.sflag [#allocation4], 1
    %9 = vsyncpa %s8, 0
    %10 = vsyncpa [#allocation5], 0
    %s11 = scalar_lea.sflag [#allocation5], 1
    %12 = vsyncpa %s11, 0
    loop: start=0, step=1, limit=20
    $region2: #{tpu_custom_call.1} parent=1 // loop_pre_header
      _
    $region3: #{tpu_custom_call.1} parent=1 // loop_header
      %s14 = sphi 0, %s18
      %p15 = scmp.ge.s32.totalorder %s14, 20
      %s21 = sphi 0, %s33
      %s22 = sphi 0, %s29
      %s23 = sphi 0, %s21
      %s24 = sphi 0, %s22
      %s25 = sphi 0, %s23
      %s26 = sphi 0, %s24
      %s40 = sphi 0, %s42
      %s43 = sphi 0, %s40
      %s44 = sphi 0, %s43
      %s60 = sphi 0, %s44
      %s70 = sphi 0, %s72
      %s73 = sphi 0, %s70
      %s74 = sphi 0, %s73
      %s90 = sphi 0, %s74
      %s96 = sphi 0, %s98
      %s99 = sphi 0, %s96
      %s100 = sphi 0, %s99
      %s116 = sphi 0, %s100
    $region4: #{tpu_custom_call.1} parent=1 // loop_header_branch
      %17 = sbr.rel (%p15) target = $region8
    $region5: #{tpu_custom_call.1} parent=1 // loop_body
      %s19 = ssub.s32 %s14, 1
      %s20 = ssub.s32 %s14, 2
      %s27 = sadd.s32 1, %s22
      %p28 = scmp.ge.s32.totalorder %s27, 9
      %s29 = scalar_select %p28, 0, %s27
      %s30 = sadd.s32 1, %s21
      %s31 = scalar_select %p28, %s30, %s21
      %p32 = scmp.ge.s32.totalorder %s31, 2
      %s33 = scalar_select %p32, 0, %s31
      %s34 = smul.u32 %s21, 9
      %s35 = sadd.s32 %s34, %s22
      %s36 = smul.u32 %s33, 9
      %s37 = sadd.s32 %s36, %s29
      %s38 = ssub.s32 %s35, %s37
      %p39 = scmp.eq.s32.totalorder %s38, 0
      %s41 = sadd.s32 %s40, 1
      %s42 = scalar_select %p39, %s40, %s41
      %p45 = pneg %p39
      %p46 = scmp.eq.s32.totalorder %s14, 17
      %p47 = por %p45, %p46
      %p48 = scmp.ne.s32.totalorder %s40, %s43
      %p49 = scmp.eq.s32.totalorder %s14, 0
      %p50 = por %p48, %p49
      %p51 = scmp.ne.s32.totalorder %s40, %s43
      %p52 = scmp.eq.s32.totalorder %s19, 17
      %p53 = por %p51, %p52
      %p54 = scmp.ne.s32.totalorder %s43, %s44
      %p55 = scmp.eq.s32.totalorder %s19, 0
      %p56 = por %p54, %p55
      %p57 = scmp.ne.s32.totalorder %s43, %s44
      %p58 = scmp.eq.s32.totalorder %s20, 17
      %p59 = por %p57, %p58
      %p61 = scmp.ne.s32.totalorder %s44, %s60
      %p62 = scmp.eq.s32.totalorder %s20, 0
      %p63 = por %p61, %p62
      %s64 = smul.u32 %s21, 9
      %s65 = sadd.s32 %s64, %s22
      %s66 = smul.u32 %s33, 9
      %s67 = sadd.s32 %s66, %s29
      %s68 = ssub.s32 %s65, %s67
      %p69 = scmp.eq.s32.totalorder %s68, 0
      %s71 = sadd.s32 %s70, 1
      %s72 = scalar_select %p69, %s70, %s71
      %p75 = pneg %p69
      %p76 = scmp.eq.s32.totalorder %s14, 17
      %p77 = por %p75, %p76
      %p78 = scmp.ne.s32.totalorder %s70, %s73
      %p79 = scmp.eq.s32.totalorder %s14, 0
      %p80 = por %p78, %p79
      %p81 = scmp.ne.s32.totalorder %s70, %s73
      %p82 = scmp.eq.s32.totalorder %s19, 17
      %p83 = por %p81, %p82
      %p84 = scmp.ne.s32.totalorder %s73, %s74
      %p85 = scmp.eq.s32.totalorder %s19, 0
      %p86 = por %p84, %p85
      %p87 = scmp.ne.s32.totalorder %s73, %s74
      %p88 = scmp.eq.s32.totalorder %s20, 17
      %p89 = por %p87, %p88
      %p91 = scmp.ne.s32.totalorder %s74, %s90
      %p92 = scmp.eq.s32.totalorder %s20, 0
      %p93 = por %p91, %p92
      %s94 = ssub.s32 %s21, %s33
      %p95 = scmp.eq.s32.totalorder %s94, 0
      %s97 = sadd.s32 %s96, 1
      %s98 = scalar_select %p95, %s96, %s97
      %p101 = pneg %p95
      %p102 = scmp.eq.s32.totalorder %s14, 17
      %p103 = por %p101, %p102
      %p104 = scmp.ne.s32.totalorder %s96, %s99
      %p105 = scmp.eq.s32.totalorder %s14, 0
      %p106 = por %p104, %p105
      %p107 = scmp.ne.s32.totalorder %s96, %s99
      %p108 = scmp.eq.s32.totalorder %s19, 17
      %p109 = por %p107, %p108
      %p110 = scmp.ne.s32.totalorder %s99, %s100
      %p111 = scmp.eq.s32.totalorder %s19, 0
      %p112 = por %p110, %p111
      %p113 = scmp.ne.s32.totalorder %s99, %s100
      %p114 = scmp.eq.s32.totalorder %s20, 17
      %p115 = por %p113, %p114
      %p117 = scmp.ne.s32.totalorder %s100, %s116
      %p118 = scmp.eq.s32.totalorder %s20, 0
      %p119 = por %p117, %p118
      %p120 = scmp.le.s32.totalorder 1, %s14
      %p121 = scmp.lt.s32.totalorder %s14, 19
      %p122 = pnand %p120, %p121
      %p123 = pneg %p122
      // Predicated region
      $region9: #{tpu_custom_call.1} parent=5 // pred_check
        _
      $region10: #{tpu_custom_call.1} parent=5 // pred_check_branch
        %125 = sbr.rel (%p122) target = $region12
      $region11: #{tpu_custom_call.1} parent=5 // pred_region
        %s126 = ssub.s32 %s14, 1
      $region12: #{tpu_custom_call.1} parent=5 // pred_fallthru
        _
      %p127 = scmp.lt.s32.totalorder %s14, 18
      // Predicated region
      $region13: #{tpu_custom_call.1} parent=5 // pred_check
        %p128 = pneg %p127
      $region14: #{tpu_custom_call.1} parent=5 // pred_check_branch
        %130 = sbr.rel (%p128) target = $region16
      $region15: #{tpu_custom_call.1} parent=5 // pred_region
        // Predicated region
        $region17: #{tpu_custom_call.1} parent=15 // pred_check
          %p131 = pneg %p50
        $region18: #{tpu_custom_call.1} parent=15 // pred_check_branch
          %133 = sbr.rel (%p131) target = $region20
        $region19: #{tpu_custom_call.1} parent=15 // pred_region
          %s134 = smul.u32 %s21, 9
          %s135 = sadd.s32 %s134, %s22
          %s136 = smul.u32 48, %s135
          %p137 = scmp.lt.s32.totalorder %s136, 863
          %s138 = scalar_select %p137, %s136, 863
          %s139 = scalar_lea.vmem %s0, %s138
          %s140 = smul.u32 %s21, 9
          %s141 = sadd.s32 %s140, %s22
          %s142 = smul.u32 48, %s141
        $region20: #{tpu_custom_call.1} parent=15 // pred_fallthru
          _
        // Predicated region
        $region21: #{tpu_custom_call.1} parent=15 // pred_check
          %p143 = pneg %p80
        $region22: #{tpu_custom_call.1} parent=15 // pred_check_branch
          %145 = sbr.rel (%p143) target = $region24
        $region23: #{tpu_custom_call.1} parent=15 // pred_region
          %s146 = sand.u32 %s70, 1
          %s147 = scalar_lea.sflag [#allocation4], %s146
          %s148 = sand.u32 %s70, 1
          %s149 = smul.addr %s148, 12288
          %s150 = scalar_lea.vmem [#allocation3], %s149
          %s151 = smul.u32 %s21, 9
          %s152 = sadd.s32 %s151, %s22
          %s153 = smul.u32 768, %s152
          %s155 = ssub.s32 196608, 196608
          %156 = vsyncadd %s147, %s155
          %s157 = smul.addr %s153, 4
          %s158 = smul.addr %s157, 64
          %s159 = scalar_lea.hbm %s1, %s158
          %s160 = sshll.u32 %s150, 4
          %s161 = int_to_ptr.vmem [resolvable:$true] %s160
          %166 = dma.hbm_to_vmem [thread:$0]  %s159, 196608, %s161, %s147, 256, 256, 16
        $region24: #{tpu_custom_call.1} parent=15 // pred_fallthru
          _
      $region16: #{tpu_custom_call.1} parent=5 // pred_fallthru
        _
      %p167 = scmp.le.s32.totalorder 1, %s14
      %p168 = scmp.lt.s32.totalorder %s14, 19
      %p169 = pnand %p167, %p168
      %p170 = pneg %p169
      // Predicated region
      $region25: #{tpu_custom_call.1} parent=5 // pred_check
        _
      $region26: #{tpu_custom_call.1} parent=5 // pred_check_branch
        %172 = sbr.rel (%p169) target = $region28
      $region27: #{tpu_custom_call.1} parent=5 // pred_region
        %s173 = ssub.s32 %s14, 1
        %s174 = sand.u32 %s73, 1
        %s175 = scalar_lea.sflag [#allocation4], %s174
        %s176 = sand.u32 %s73, 1
        %s177 = smul.addr %s176, 12288
        %s178 = scalar_lea.vmem [#allocation3], %s177
        // Predicated region
        $region29: #{tpu_custom_call.1} parent=27 // pred_check
          %p179 = pneg %p86
        $region30: #{tpu_custom_call.1} parent=27 // pred_check_branch
          %181 = sbr.rel (%p179) target = $region32
        $region31: #{tpu_custom_call.1} parent=27 // pred_region
          %182 = dma.done %s175, 196608
        $region32: #{tpu_custom_call.1} parent=27 // pred_fallthru
          _
        %s183 = smul.u32 %s23, 9
        %s184 = sadd.s32 %s183, %s24
        %s185 = smul.u32 48, %s184
        %p186 = scmp.lt.s32.totalorder %s185, 863
        %s187 = scalar_select %p186, %s185, 863
        %s188 = scalar_lea.vmem %s0, %s187
        %p189 = pneg %p56
        %p190 = pneg %p53
        %s191 = sand.u32 %s73, 1
        %s192 = scalar_lea.sflag [#allocation4], %s191
        %s193 = sand.u32 %s73, 1
        %s194 = smul.addr %s193, 12288
        %s195 = scalar_lea.vmem [#allocation3], %s194
        %p196 = pneg %p86
        %p197 = pneg %p83
        %p198 = pneg %p112
        %p199 = pneg %p109
        %s200 = sand.u32 %s99, 1
        %s201 = scalar_lea.sflag [#allocation5], %s200
        %s202 = sand.u32 %s99, 1
        %s203 = smul.addr %s202, 8
        %s204 = scalar_lea.vmem [#allocation6], %s203
        %s205 = smul.u32 %s23, 9
        %s206 = sadd.s32 %s205, %s24
        %s207 = smul.u32 48, %s206
        %p208 = scmp.lt.s32.totalorder %s207, 863
        %s209 = scalar_select %p208, %s207, 863
        %s210 = scalar_lea.vmem %s0, %s209
        %s211 = smul.u32 %s23, 9
        %s212 = sadd.s32 %s211, %s24
        %s213 = smul.u32 48, %s212
        %s214 = smul.u32 %s23, 9
        %s215 = sadd.s32 %s214, %s24
        %s216 = smul.u32 768, %s215
        %p217 = scmp.eq.s32.totalorder %s24, 0
        // Predicated region
        $region33: #{tpu_custom_call.1} parent=27 // pred_check
          %p218 = pneg %p217
        $region34: #{tpu_custom_call.1} parent=27 // pred_check_branch
          %220 = sbr.rel (%p218) target = $region36
        $region35: #{tpu_custom_call.1} parent=27 // pred_region
          %vm221 = vcmask 1041408
          %vm222 = vcmask 1043458
          %vm223 = vmor %vm222, %vm221
          %vm224 = vcmask 1045508
          %vm225 = vmor %vm224, %vm223
          %vm226 = vcmask 949254
          %vm227 = vmor %vm226, %vm225
          %228 = vst.msk [vmem:[#allocation2] sm:$0xff] %vm227, 0.0
        $region36: #{tpu_custom_call.1} parent=27 // pred_fallthru
          _
        %v229 = vld [vmem:[#allocation2] sm:$0xff]
        %v230 = vld [vmem:[%s210] sm:$0xff]
        %v231 = vld [vmem:[%s210 + $0x8] sm:$0xff]
        %v232 = vld [vmem:[%s210 + $0x10] sm:$0xff]
        %v233 = vld [vmem:[%s210 + $0x18] sm:$0xff]
        %v234 = vld [vmem:[%s210 + $0x20] sm:$0xff]
        %v235 = vld [vmem:[%s210 + $0x28] sm:$0xff]
        %v236 = vld [vmem:[%s178] sm:$0xff]
        %v237 = vld [vmem:[%s178 + $0x8] sm:$0xff]
        %v238 = vld [vmem:[%s178 + $0x10] sm:$0xff]
        %v239 = vld [vmem:[%s178 + $0x18] sm:$0xff]
        %v240 = vld [vmem:[%s178 + $0x20] sm:$0xff]
        %v241 = vld [vmem:[%s178 + $0x28] sm:$0xff]
        %v242 = vld [vmem:[%s178 + $0x30] sm:$0xff]
        %v243 = vld [vmem:[%s178 + $0x38] sm:$0xff]
        %v244 = vld [vmem:[%s178 + $0x40] sm:$0xff]
        %v245 = vld [vmem:[%s178 + $0x48] sm:$0xff]
        %v246 = vld [vmem:[%s178 + $0x50] sm:$0xff]
        %v247 = vld [vmem:[%s178 + $0x58] sm:$0xff]
        %v248 = vld [vmem:[%s178 + $0x60] sm:$0xff]
        %v249 = vld [vmem:[%s178 + $0x68] sm:$0xff]
        %v250 = vld [vmem:[%s178 + $0x70] sm:$0xff]
        %v251 = vld [vmem:[%s178 + $0x78] sm:$0xff]
        %v252 = vld [vmem:[%s178 + $0x80] sm:$0xff]
        %v253 = vld [vmem:[%s178 + $0x88] sm:$0xff]
        %v254 = vld [vmem:[%s178 + $0x90] sm:$0xff]
        %v255 = vld [vmem:[%s178 + $0x98] sm:$0xff]
        %v256 = vld [vmem:[%s178 + $0xa0] sm:$0xff]
        %v257 = vld [vmem:[%s178 + $0xa8] sm:$0xff]
        %v258 = vld [vmem:[%s178 + $0xb0] sm:$0xff]
        %v259 = vld [vmem:[%s178 + $0xb8] sm:$0xff]
        %v260 = vld [vmem:[%s178 + $0xc0] sm:$0xff]
        %v261 = vld [vmem:[%s178 + $0xc8] sm:$0xff]
        %v262 = vld [vmem:[%s178 + $0xd0] sm:$0xff]
        %v263 = vld [vmem:[%s178 + $0xd8] sm:$0xff]
        %v264 = vld [vmem:[%s178 + $0xe0] sm:$0xff]
        %v265 = vld [vmem:[%s178 + $0xe8] sm:$0xff]
        %v266 = vld [vmem:[%s178 + $0xf0] sm:$0xff]
        %v267 = vld [vmem:[%s178 + $0xf8] sm:$0xff]
        %v268 = vld [vmem:[%s178 + $0x100] sm:$0xff]
        %v269 = vld [vmem:[%s178 + $0x108] sm:$0xff]
        %v270 = vld [vmem:[%s178 + $0x110] sm:$0xff]
        %v271 = vld [vmem:[%s178 + $0x118] sm:$0xff]
        %v272 = vld [vmem:[%s178 + $0x120] sm:$0xff]
        %v273 = vld [vmem:[%s178 + $0x128] sm:$0xff]
        %v274 = vld [vmem:[%s178 + $0x130] sm:$0xff]
        %v275 = vld [vmem:[%s178 + $0x138] sm:$0xff]
        %v276 = vld [vmem:[%s178 + $0x140] sm:$0xff]
        %v277 = vld [vmem:[%s178 + $0x148] sm:$0xff]
        %v278 = vld [vmem:[%s178 + $0x150] sm:$0xff]
        %v279 = vld [vmem:[%s178 + $0x158] sm:$0xff]
        %v280 = vld [vmem:[%s178 + $0x160] sm:$0xff]
        %v281 = vld [vmem:[%s178 + $0x168] sm:$0xff]
        %v282 = vld [vmem:[%s178 + $0x170] sm:$0xff]
        %v283 = vld [vmem:[%s178 + $0x178] sm:$0xff]
        %v284 = vld [vmem:[%s178 + $0x180] sm:$0xff]
        %v285 = vld [vmem:[%s178 + $0x188] sm:$0xff]
        %v286 = vld [vmem:[%s178 + $0x190] sm:$0xff]
        %v287 = vld [vmem:[%s178 + $0x198] sm:$0xff]
        %v288 = vld [vmem:[%s178 + $0x1a0] sm:$0xff]
        %v289 = vld [vmem:[%s178 + $0x1a8] sm:$0xff]
        %v290 = vld [vmem:[%s178 + $0x1b0] sm:$0xff]
        %v291 = vld [vmem:[%s178 + $0x1b8] sm:$0xff]
        %v292 = vld [vmem:[%s178 + $0x1c0] sm:$0xff]
        %v293 = vld [vmem:[%s178 + $0x1c8] sm:$0xff]
        %v294 = vld [vmem:[%s178 + $0x1d0] sm:$0xff]
        %v295 = vld [vmem:[%s178 + $0x1d8] sm:$0xff]
        %v296 = vld [vmem:[%s178 + $0x1e0] sm:$0xff]
        %v297 = vld [vmem:[%s178 + $0x1e8] sm:$0xff]
        %v298 = vld [vmem:[%s178 + $0x1f0] sm:$0xff]
        %v299 = vld [vmem:[%s178 + $0x1f8] sm:$0xff]
        %v300 = vld [vmem:[%s178 + $0x200] sm:$0xff]
        %v301 = vld [vmem:[%s178 + $0x208] sm:$0xff]
        %v302 = vld [vmem:[%s178 + $0x210] sm:$0xff]
        %v303 = vld [vmem:[%s178 + $0x218] sm:$0xff]
        %v304 = vld [vmem:[%s178 + $0x220] sm:$0xff]
        %v305 = vld [vmem:[%s178 + $0x228] sm:$0xff]
        %v306 = vld [vmem:[%s178 + $0x230] sm:$0xff]
        %v307 = vld [vmem:[%s178 + $0x238] sm:$0xff]
        %v308 = vld [vmem:[%s178 + $0x240] sm:$0xff]
        %v309 = vld [vmem:[%s178 + $0x248] sm:$0xff]
        %v310 = vld [vmem:[%s178 + $0x250] sm:$0xff]
        %v311 = vld [vmem:[%s178 + $0x258] sm:$0xff]
        %v312 = vld [vmem:[%s178 + $0x260] sm:$0xff]
        %v313 = vld [vmem:[%s178 + $0x268] sm:$0xff]
        %v314 = vld [vmem:[%s178 + $0x270] sm:$0xff]
        %v315 = vld [vmem:[%s178 + $0x278] sm:$0xff]
        %v316 = vld [vmem:[%s178 + $0x280] sm:$0xff]
        %v317 = vld [vmem:[%s178 + $0x288] sm:$0xff]
        %v318 = vld [vmem:[%s178 + $0x290] sm:$0xff]
        %v319 = vld [vmem:[%s178 + $0x298] sm:$0xff]
        %v320 = vld [vmem:[%s178 + $0x2a0] sm:$0xff]
        %v321 = vld [vmem:[%s178 + $0x2a8] sm:$0xff]
        %v322 = vld [vmem:[%s178 + $0x2b0] sm:$0xff]
        %v323 = vld [vmem:[%s178 + $0x2b8] sm:$0xff]
        %v324 = vld [vmem:[%s178 + $0x2c0] sm:$0xff]
        %v325 = vld [vmem:[%s178 + $0x2c8] sm:$0xff]
        %v326 = vld [vmem:[%s178 + $0x2d0] sm:$0xff]
        %v327 = vld [vmem:[%s178 + $0x2d8] sm:$0xff]
        %v328 = vld [vmem:[%s178 + $0x2e0] sm:$0xff]
        %v329 = vld [vmem:[%s178 + $0x2e8] sm:$0xff]
        %v330 = vld [vmem:[%s178 + $0x2f0] sm:$0xff]
        %v331 = vld [vmem:[%s178 + $0x2f8] sm:$0xff]
        %v332 = vld [vmem:[%s178 + $0x300] sm:$0xff]
        %v333 = vld [vmem:[%s178 + $0x308] sm:$0xff]
        %v334 = vld [vmem:[%s178 + $0x310] sm:$0xff]
        %v335 = vld [vmem:[%s178 + $0x318] sm:$0xff]
        %v336 = vld [vmem:[%s178 + $0x320] sm:$0xff]
        %v337 = vld [vmem:[%s178 + $0x328] sm:$0xff]
        %v338 = vld [vmem:[%s178 + $0x330] sm:$0xff]
        %v339 = vld [vmem:[%s178 + $0x338] sm:$0xff]
        %v340 = vld [vmem:[%s178 + $0x340] sm:$0xff]
        %v341 = vld [vmem:[%s178 + $0x348] sm:$0xff]
        %v342 = vld [vmem:[%s178 + $0x350] sm:$0xff]
        %v343 = vld [vmem:[%s178 + $0x358] sm:$0xff]
        %v344 = vld [vmem:[%s178 + $0x360] sm:$0xff]
        %v345 = vld [vmem:[%s178 + $0x368] sm:$0xff]
        %v346 = vld [vmem:[%s178 + $0x370] sm:$0xff]
        %v347 = vld [vmem:[%s178 + $0x378] sm:$0xff]
        %v348 = vld [vmem:[%s178 + $0x380] sm:$0xff]
        %v349 = vld [vmem:[%s178 + $0x388] sm:$0xff]
        %v350 = vld [vmem:[%s178 + $0x390] sm:$0xff]
        %v351 = vld [vmem:[%s178 + $0x398] sm:$0xff]
        %v352 = vld [vmem:[%s178 + $0x3a0] sm:$0xff]
        %v353 = vld [vmem:[%s178 + $0x3a8] sm:$0xff]
        %v354 = vld [vmem:[%s178 + $0x3b0] sm:$0xff]
        %v355 = vld [vmem:[%s178 + $0x3b8] sm:$0xff]
        %v356 = vld [vmem:[%s178 + $0x3c0] sm:$0xff]
        %v357 = vld [vmem:[%s178 + $0x3c8] sm:$0xff]
        %v358 = vld [vmem:[%s178 + $0x3d0] sm:$0xff]
        %v359 = vld [vmem:[%s178 + $0x3d8] sm:$0xff]
        %v360 = vld [vmem:[%s178 + $0x3e0] sm:$0xff]
        %v361 = vld [vmem:[%s178 + $0x3e8] sm:$0xff]
        %v362 = vld [vmem:[%s178 + $0x3f0] sm:$0xff]
        %v363 = vld [vmem:[%s178 + $0x3f8] sm:$0xff]
        %v364 = vld [vmem:[%s178 + $0x400] sm:$0xff]
        %v365 = vld [vmem:[%s178 + $0x408] sm:$0xff]
        %v366 = vld [vmem:[%s178 + $0x410] sm:$0xff]
        %v367 = vld [vmem:[%s178 + $0x418] sm:$0xff]
        %v368 = vld [vmem:[%s178 + $0x420] sm:$0xff]
        %v369 = vld [vmem:[%s178 + $0x428] sm:$0xff]
        %v370 = vld [vmem:[%s178 + $0x430] sm:$0xff]
        %v371 = vld [vmem:[%s178 + $0x438] sm:$0xff]
        %v372 = vld [vmem:[%s178 + $0x440] sm:$0xff]
        %v373 = vld [vmem:[%s178 + $0x448] sm:$0xff]
        %v374 = vld [vmem:[%s178 + $0x450] sm:$0xff]
        %v375 = vld [vmem:[%s178 + $0x458] sm:$0xff]
        %v376 = vld [vmem:[%s178 + $0x460] sm:$0xff]
        %v377 = vld [vmem:[%s178 + $0x468] sm:$0xff]
        %v378 = vld [vmem:[%s178 + $0x470] sm:$0xff]
        %v379 = vld [vmem:[%s178 + $0x478] sm:$0xff]
        %v380 = vld [vmem:[%s178 + $0x480] sm:$0xff]
        %v381 = vld [vmem:[%s178 + $0x488] sm:$0xff]
        %v382 = vld [vmem:[%s178 + $0x490] sm:$0xff]
        %v383 = vld [vmem:[%s178 + $0x498] sm:$0xff]
        %v384 = vld [vmem:[%s178 + $0x4a0] sm:$0xff]
        %v385 = vld [vmem:[%s178 + $0x4a8] sm:$0xff]
        %v386 = vld [vmem:[%s178 + $0x4b0] sm:$0xff]
        %v387 = vld [vmem:[%s178 + $0x4b8] sm:$0xff]
        %v388 = vld [vmem:[%s178 + $0x4c0] sm:$0xff]
        %v389 = vld [vmem:[%s178 + $0x4c8] sm:$0xff]
        %v390 = vld [vmem:[%s178 + $0x4d0] sm:$0xff]
        %v391 = vld [vmem:[%s178 + $0x4d8] sm:$0xff]
        %v392 = vld [vmem:[%s178 + $0x4e0] sm:$0xff]
        %v393 = vld [vmem:[%s178 + $0x4e8] sm:$0xff]
        %v394 = vld [vmem:[%s178 + $0x4f0] sm:$0xff]
        %v395 = vld [vmem:[%s178 + $0x4f8] sm:$0xff]
        %v396 = vld [vmem:[%s178 + $0x500] sm:$0xff]
        %v397 = vld [vmem:[%s178 + $0x508] sm:$0xff]
        %v398 = vld [vmem:[%s178 + $0x510] sm:$0xff]
        %v399 = vld [vmem:[%s178 + $0x518] sm:$0xff]
        %v400 = vld [vmem:[%s178 + $0x520] sm:$0xff]
        %v401 = vld [vmem:[%s178 + $0x528] sm:$0xff]
        %v402 = vld [vmem:[%s178 + $0x530] sm:$0xff]
        %v403 = vld [vmem:[%s178 + $0x538] sm:$0xff]
        %v404 = vld [vmem:[%s178 + $0x540] sm:$0xff]
        %v405 = vld [vmem:[%s178 + $0x548] sm:$0xff]
        %v406 = vld [vmem:[%s178 + $0x550] sm:$0xff]
        %v407 = vld [vmem:[%s178 + $0x558] sm:$0xff]
        %v408 = vld [vmem:[%s178 + $0x560] sm:$0xff]
        %v409 = vld [vmem:[%s178 + $0x568] sm:$0xff]
        %v410 = vld [vmem:[%s178 + $0x570] sm:$0xff]
        %v411 = vld [vmem:[%s178 + $0x578] sm:$0xff]
        %v412 = vld [vmem:[%s178 + $0x580] sm:$0xff]
        %v413 = vld [vmem:[%s178 + $0x588] sm:$0xff]
        %v414 = vld [vmem:[%s178 + $0x590] sm:$0xff]
        %v415 = vld [vmem:[%s178 + $0x598] sm:$0xff]
        %v416 = vld [vmem:[%s178 + $0x5a0] sm:$0xff]
        %v417 = vld [vmem:[%s178 + $0x5a8] sm:$0xff]
        %v418 = vld [vmem:[%s178 + $0x5b0] sm:$0xff]
        %v419 = vld [vmem:[%s178 + $0x5b8] sm:$0xff]
        %v420 = vld [vmem:[%s178 + $0x5c0] sm:$0xff]
        %v421 = vld [vmem:[%s178 + $0x5c8] sm:$0xff]
        %v422 = vld [vmem:[%s178 + $0x5d0] sm:$0xff]
        %v423 = vld [vmem:[%s178 + $0x5d8] sm:$0xff]
        %v424 = vld [vmem:[%s178 + $0x5e0] sm:$0xff]
        %v425 = vld [vmem:[%s178 + $0x5e8] sm:$0xff]
        %v426 = vld [vmem:[%s178 + $0x5f0] sm:$0xff]
        %v427 = vld [vmem:[%s178 + $0x5f8] sm:$0xff]
        %v428 = vld [vmem:[%s178 + $0x600] sm:$0xff]
        %v429 = vld [vmem:[%s178 + $0x608] sm:$0xff]
        %v430 = vld [vmem:[%s178 + $0x610] sm:$0xff]
        %v431 = vld [vmem:[%s178 + $0x618] sm:$0xff]
        %v432 = vld [vmem:[%s178 + $0x620] sm:$0xff]
        %v433 = vld [vmem:[%s178 + $0x628] sm:$0xff]
        %v434 = vld [vmem:[%s178 + $0x630] sm:$0xff]
        %v435 = vld [vmem:[%s178 + $0x638] sm:$0xff]
        %v436 = vld [vmem:[%s178 + $0x640] sm:$0xff]
        %v437 = vld [vmem:[%s178 + $0x648] sm:$0xff]
        %v438 = vld [vmem:[%s178 + $0x650] sm:$0xff]
        %v439 = vld [vmem:[%s178 + $0x658] sm:$0xff]
        %v440 = vld [vmem:[%s178 + $0x660] sm:$0xff]
        %v441 = vld [vmem:[%s178 + $0x668] sm:$0xff]
        %v442 = vld [vmem:[%s178 + $0x670] sm:$0xff]
        %v443 = vld [vmem:[%s178 + $0x678] sm:$0xff]
        %v444 = vld [vmem:[%s178 + $0x680] sm:$0xff]
        %v445 = vld [vmem:[%s178 + $0x688] sm:$0xff]
        %v446 = vld [vmem:[%s178 + $0x690] sm:$0xff]
        %v447 = vld [vmem:[%s178 + $0x698] sm:$0xff]
        %v448 = vld [vmem:[%s178 + $0x6a0] sm:$0xff]
        %v449 = vld [vmem:[%s178 + $0x6a8] sm:$0xff]
        %v450 = vld [vmem:[%s178 + $0x6b0] sm:$0xff]
        %v451 = vld [vmem:[%s178 + $0x6b8] sm:$0xff]
        %v452 = vld [vmem:[%s178 + $0x6c0] sm:$0xff]
        %v453 = vld [vmem:[%s178 + $0x6c8] sm:$0xff]
        %v454 = vld [vmem:[%s178 + $0x6d0] sm:$0xff]
        %v455 = vld [vmem:[%s178 + $0x6d8] sm:$0xff]
        %v456 = vld [vmem:[%s178 + $0x6e0] sm:$0xff]
        %v457 = vld [vmem:[%s178 + $0x6e8] sm:$0xff]
        %v458 = vld [vmem:[%s178 + $0x6f0] sm:$0xff]
        %v459 = vld [vmem:[%s178 + $0x6f8] sm:$0xff]
        %v460 = vld [vmem:[%s178 + $0x700] sm:$0xff]
        %v461 = vld [vmem:[%s178 + $0x708] sm:$0xff]
        %v462 = vld [vmem:[%s178 + $0x710] sm:$0xff]
        %v463 = vld [vmem:[%s178 + $0x718] sm:$0xff]
        %v464 = vld [vmem:[%s178 + $0x720] sm:$0xff]
        %v465 = vld [vmem:[%s178 + $0x728] sm:$0xff]
        %v466 = vld [vmem:[%s178 + $0x730] sm:$0xff]
        %v467 = vld [vmem:[%s178 + $0x738] sm:$0xff]
        %v468 = vld [vmem:[%s178 + $0x740] sm:$0xff]
        %v469 = vld [vmem:[%s178 + $0x748] sm:$0xff]
        %v470 = vld [vmem:[%s178 + $0x750] sm:$0xff]
        %v471 = vld [vmem:[%s178 + $0x758] sm:$0xff]
        %v472 = vld [vmem:[%s178 + $0x760] sm:$0xff]
        %v473 = vld [vmem:[%s178 + $0x768] sm:$0xff]
        %v474 = vld [vmem:[%s178 + $0x770] sm:$0xff]
        %v475 = vld [vmem:[%s178 + $0x778] sm:$0xff]
        %v476 = vld [vmem:[%s178 + $0x780] sm:$0xff]
        %v477 = vld [vmem:[%s178 + $0x788] sm:$0xff]
        %v478 = vld [vmem:[%s178 + $0x790] sm:$0xff]
        %v479 = vld [vmem:[%s178 + $0x798] sm:$0xff]
        %v480 = vld [vmem:[%s178 + $0x7a0] sm:$0xff]
        %v481 = vld [vmem:[%s178 + $0x7a8] sm:$0xff]
        %v482 = vld [vmem:[%s178 + $0x7b0] sm:$0xff]
        %v483 = vld [vmem:[%s178 + $0x7b8] sm:$0xff]
        %v484 = vld [vmem:[%s178 + $0x7c0] sm:$0xff]
        %v485 = vld [vmem:[%s178 + $0x7c8] sm:$0xff]
        %v486 = vld [vmem:[%s178 + $0x7d0] sm:$0xff]
        %v487 = vld [vmem:[%s178 + $0x7d8] sm:$0xff]
        %v488 = vld [vmem:[%s178 + $0x7e0] sm:$0xff]
        %v489 = vld [vmem:[%s178 + $0x7e8] sm:$0xff]
        %v490 = vld [vmem:[%s178 + $0x7f0] sm:$0xff]
        %v491 = vld [vmem:[%s178 + $0x7f8] sm:$0xff]
        %v492 = vld [vmem:[%s178 + $0x800] sm:$0xff]
        %v493 = vld [vmem:[%s178 + $0x808] sm:$0xff]
        %v494 = vld [vmem:[%s178 + $0x810] sm:$0xff]
        %v495 = vld [vmem:[%s178 + $0x818] sm:$0xff]
        %v496 = vld [vmem:[%s178 + $0x820] sm:$0xff]
        %v497 = vld [vmem:[%s178 + $0x828] sm:$0xff]
        %v498 = vld [vmem:[%s178 + $0x830] sm:$0xff]
        %v499 = vld [vmem:[%s178 + $0x838] sm:$0xff]
        %v500 = vld [vmem:[%s178 + $0x840] sm:$0xff]
        %v501 = vld [vmem:[%s178 + $0x848] sm:$0xff]
        %v502 = vld [vmem:[%s178 + $0x850] sm:$0xff]
        %v503 = vld [vmem:[%s178 + $0x858] sm:$0xff]
        %v504 = vld [vmem:[%s178 + $0x860] sm:$0xff]
        %v505 = vld [vmem:[%s178 + $0x868] sm:$0xff]
        %v506 = vld [vmem:[%s178 + $0x870] sm:$0xff]
        %v507 = vld [vmem:[%s178 + $0x878] sm:$0xff]
        %v508 = vld [vmem:[%s178 + $0x880] sm:$0xff]
        %v509 = vld [vmem:[%s178 + $0x888] sm:$0xff]
        %v510 = vld [vmem:[%s178 + $0x890] sm:$0xff]
        %v511 = vld [vmem:[%s178 + $0x898] sm:$0xff]
        %v512 = vld [vmem:[%s178 + $0x8a0] sm:$0xff]
        %v513 = vld [vmem:[%s178 + $0x8a8] sm:$0xff]
        %v514 = vld [vmem:[%s178 + $0x8b0] sm:$0xff]
        %v515 = vld [vmem:[%s178 + $0x8b8] sm:$0xff]
        %v516 = vld [vmem:[%s178 + $0x8c0] sm:$0xff]
        %v517 = vld [vmem:[%s178 + $0x8c8] sm:$0xff]
        %v518 = vld [vmem:[%s178 + $0x8d0] sm:$0xff]
        %v519 = vld [vmem:[%s178 + $0x8d8] sm:$0xff]
        %v520 = vld [vmem:[%s178 + $0x8e0] sm:$0xff]
        %v521 = vld [vmem:[%s178 + $0x8e8] sm:$0xff]
        %v522 = vld [vmem:[%s178 + $0x8f0] sm:$0xff]
        %v523 = vld [vmem:[%s178 + $0x8f8] sm:$0xff]
        %v524 = vld [vmem:[%s178 + $0x900] sm:$0xff]
        %v525 = vld [vmem:[%s178 + $0x908] sm:$0xff]
        %v526 = vld [vmem:[%s178 + $0x910] sm:$0xff]
        %v527 = vld [vmem:[%s178 + $0x918] sm:$0xff]
        %v528 = vld [vmem:[%s178 + $0x920] sm:$0xff]
        %v529 = vld [vmem:[%s178 + $0x928] sm:$0xff]
        %v530 = vld [vmem:[%s178 + $0x930] sm:$0xff]
        %v531 = vld [vmem:[%s178 + $0x938] sm:$0xff]
        %v532 = vld [vmem:[%s178 + $0x940] sm:$0xff]
        %v533 = vld [vmem:[%s178 + $0x948] sm:$0xff]
        %v534 = vld [vmem:[%s178 + $0x950] sm:$0xff]
        %v535 = vld [vmem:[%s178 + $0x958] sm:$0xff]
        %v536 = vld [vmem:[%s178 + $0x960] sm:$0xff]
        %v537 = vld [vmem:[%s178 + $0x968] sm:$0xff]
        %v538 = vld [vmem:[%s178 + $0x970] sm:$0xff]
        %v539 = vld [vmem:[%s178 + $0x978] sm:$0xff]
        %v540 = vld [vmem:[%s178 + $0x980] sm:$0xff]
        %v541 = vld [vmem:[%s178 + $0x988] sm:$0xff]
        %v542 = vld [vmem:[%s178 + $0x990] sm:$0xff]
        %v543 = vld [vmem:[%s178 + $0x998] sm:$0xff]
        %v544 = vld [vmem:[%s178 + $0x9a0] sm:$0xff]
        %v545 = vld [vmem:[%s178 + $0x9a8] sm:$0xff]
        %v546 = vld [vmem:[%s178 + $0x9b0] sm:$0xff]
        %v547 = vld [vmem:[%s178 + $0x9b8] sm:$0xff]
        %v548 = vld [vmem:[%s178 + $0x9c0] sm:$0xff]
        %v549 = vld [vmem:[%s178 + $0x9c8] sm:$0xff]
        %v550 = vld [vmem:[%s178 + $0x9d0] sm:$0xff]
        %v551 = vld [vmem:[%s178 + $0x9d8] sm:$0xff]
        %v552 = vld [vmem:[%s178 + $0x9e0] sm:$0xff]
        %v553 = vld [vmem:[%s178 + $0x9e8] sm:$0xff]
        %v554 = vld [vmem:[%s178 + $0x9f0] sm:$0xff]
        %v555 = vld [vmem:[%s178 + $0x9f8] sm:$0xff]
        %v556 = vld [vmem:[%s178 + $0xa00] sm:$0xff]
        %v557 = vld [vmem:[%s178 + $0xa08] sm:$0xff]
        %v558 = vld [vmem:[%s178 + $0xa10] sm:$0xff]
        %v559 = vld [vmem:[%s178 + $0xa18] sm:$0xff]
        %v560 = vld [vmem:[%s178 + $0xa20] sm:$0xff]
        %v561 = vld [vmem:[%s178 + $0xa28] sm:$0xff]
        %v562 = vld [vmem:[%s178 + $0xa30] sm:$0xff]
        %v563 = vld [vmem:[%s178 + $0xa38] sm:$0xff]
        %v564 = vld [vmem:[%s178 + $0xa40] sm:$0xff]
        %v565 = vld [vmem:[%s178 + $0xa48] sm:$0xff]
        %v566 = vld [vmem:[%s178 + $0xa50] sm:$0xff]
        %v567 = vld [vmem:[%s178 + $0xa58] sm:$0xff]
        %v568 = vld [vmem:[%s178 + $0xa60] sm:$0xff]
        %v569 = vld [vmem:[%s178 + $0xa68] sm:$0xff]
        %v570 = vld [vmem:[%s178 + $0xa70] sm:$0xff]
        %v571 = vld [vmem:[%s178 + $0xa78] sm:$0xff]
        %v572 = vld [vmem:[%s178 + $0xa80] sm:$0xff]
        %v573 = vld [vmem:[%s178 + $0xa88] sm:$0xff]
        %v574 = vld [vmem:[%s178 + $0xa90] sm:$0xff]
        %v575 = vld [vmem:[%s178 + $0xa98] sm:$0xff]
        %v576 = vld [vmem:[%s178 + $0xaa0] sm:$0xff]
        %v577 = vld [vmem:[%s178 + $0xaa8] sm:$0xff]
        %v578 = vld [vmem:[%s178 + $0xab0] sm:$0xff]
        %v579 = vld [vmem:[%s178 + $0xab8] sm:$0xff]
        %v580 = vld [vmem:[%s178 + $0xac0] sm:$0xff]
        %v581 = vld [vmem:[%s178 + $0xac8] sm:$0xff]
        %v582 = vld [vmem:[%s178 + $0xad0] sm:$0xff]
        %v583 = vld [vmem:[%s178 + $0xad8] sm:$0xff]
        %v584 = vld [vmem:[%s178 + $0xae0] sm:$0xff]
        %v585 = vld [vmem:[%s178 + $0xae8] sm:$0xff]
        %v586 = vld [vmem:[%s178 + $0xaf0] sm:$0xff]
        %v587 = vld [vmem:[%s178 + $0xaf8] sm:$0xff]
        %v588 = vld [vmem:[%s178 + $0xb00] sm:$0xff]
        %v589 = vld [vmem:[%s178 + $0xb08] sm:$0xff]
        %v590 = vld [vmem:[%s178 + $0xb10] sm:$0xff]
        %v591 = vld [vmem:[%s178 + $0xb18] sm:$0xff]
        %v592 = vld [vmem:[%s178 + $0xb20] sm:$0xff]
        %v593 = vld [vmem:[%s178 + $0xb28] sm:$0xff]
        %v594 = vld [vmem:[%s178 + $0xb30] sm:$0xff]
        %v595 = vld [vmem:[%s178 + $0xb38] sm:$0xff]
        %v596 = vld [vmem:[%s178 + $0xb40] sm:$0xff]
        %v597 = vld [vmem:[%s178 + $0xb48] sm:$0xff]
        %v598 = vld [vmem:[%s178 + $0xb50] sm:$0xff]
        %v599 = vld [vmem:[%s178 + $0xb58] sm:$0xff]
        %v600 = vld [vmem:[%s178 + $0xb60] sm:$0xff]
        %v601 = vld [vmem:[%s178 + $0xb68] sm:$0xff]
        %v602 = vld [vmem:[%s178 + $0xb70] sm:$0xff]
        %v603 = vld [vmem:[%s178 + $0xb78] sm:$0xff]
        %v604 = vld [vmem:[%s178 + $0xb80] sm:$0xff]
        %v605 = vld [vmem:[%s178 + $0xb88] sm:$0xff]
        %v606 = vld [vmem:[%s178 + $0xb90] sm:$0xff]
        %v607 = vld [vmem:[%s178 + $0xb98] sm:$0xff]
        %v608 = vld [vmem:[%s178 + $0xba0] sm:$0xff]
        %v609 = vld [vmem:[%s178 + $0xba8] sm:$0xff]
        %v610 = vld [vmem:[%s178 + $0xbb0] sm:$0xff]
        %v611 = vld [vmem:[%s178 + $0xbb8] sm:$0xff]
        %v612 = vld [vmem:[%s178 + $0xbc0] sm:$0xff]
        %v613 = vld [vmem:[%s178 + $0xbc8] sm:$0xff]
        %v614 = vld [vmem:[%s178 + $0xbd0] sm:$0xff]
        %v615 = vld [vmem:[%s178 + $0xbd8] sm:$0xff]
        %v616 = vld [vmem:[%s178 + $0xbe0] sm:$0xff]
        %v617 = vld [vmem:[%s178 + $0xbe8] sm:$0xff]
        %v618 = vld [vmem:[%s178 + $0xbf0] sm:$0xff]
        %v619 = vld [vmem:[%s178 + $0xbf8] sm:$0xff]
        %v620 = vld [vmem:[%s178 + $0xc00] sm:$0xff]
        %v621 = vld [vmem:[%s178 + $0xc08] sm:$0xff]
        %v622 = vld [vmem:[%s178 + $0xc10] sm:$0xff]
        %v623 = vld [vmem:[%s178 + $0xc18] sm:$0xff]
        %v624 = vld [vmem:[%s178 + $0xc20] sm:$0xff]
        %v625 = vld [vmem:[%s178 + $0xc28] sm:$0xff]
        %v626 = vld [vmem:[%s178 + $0xc30] sm:$0xff]
        %v627 = vld [vmem:[%s178 + $0xc38] sm:$0xff]
        %v628 = vld [vmem:[%s178 + $0xc40] sm:$0xff]
        %v629 = vld [vmem:[%s178 + $0xc48] sm:$0xff]
        %v630 = vld [vmem:[%s178 + $0xc50] sm:$0xff]
        %v631 = vld [vmem:[%s178 + $0xc58] sm:$0xff]
        %v632 = vld [vmem:[%s178 + $0xc60] sm:$0xff]
        %v633 = vld [vmem:[%s178 + $0xc68] sm:$0xff]
        %v634 = vld [vmem:[%s178 + $0xc70] sm:$0xff]
        %v635 = vld [vmem:[%s178 + $0xc78] sm:$0xff]
        %v636 = vld [vmem:[%s178 + $0xc80] sm:$0xff]
        %v637 = vld [vmem:[%s178 + $0xc88] sm:$0xff]
        %v638 = vld [vmem:[%s178 + $0xc90] sm:$0xff]
        %v639 = vld [vmem:[%s178 + $0xc98] sm:$0xff]
        %v640 = vld [vmem:[%s178 + $0xca0] sm:$0xff]
        %v641 = vld [vmem:[%s178 + $0xca8] sm:$0xff]
        %v642 = vld [vmem:[%s178 + $0xcb0] sm:$0xff]
        %v643 = vld [vmem:[%s178 + $0xcb8] sm:$0xff]
        %v644 = vld [vmem:[%s178 + $0xcc0] sm:$0xff]
        %v645 = vld [vmem:[%s178 + $0xcc8] sm:$0xff]
        %v646 = vld [vmem:[%s178 + $0xcd0] sm:$0xff]
        %v647 = vld [vmem:[%s178 + $0xcd8] sm:$0xff]
        %v648 = vld [vmem:[%s178 + $0xce0] sm:$0xff]
        %v649 = vld [vmem:[%s178 + $0xce8] sm:$0xff]
        %v650 = vld [vmem:[%s178 + $0xcf0] sm:$0xff]
        %v651 = vld [vmem:[%s178 + $0xcf8] sm:$0xff]
        %v652 = vld [vmem:[%s178 + $0xd00] sm:$0xff]
        %v653 = vld [vmem:[%s178 + $0xd08] sm:$0xff]
        %v654 = vld [vmem:[%s178 + $0xd10] sm:$0xff]
        %v655 = vld [vmem:[%s178 + $0xd18] sm:$0xff]
        %v656 = vld [vmem:[%s178 + $0xd20] sm:$0xff]
        %v657 = vld [vmem:[%s178 + $0xd28] sm:$0xff]
        %v658 = vld [vmem:[%s178 + $0xd30] sm:$0xff]
        %v659 = vld [vmem:[%s178 + $0xd38] sm:$0xff]
        %v660 = vld [vmem:[%s178 + $0xd40] sm:$0xff]
        %v661 = vld [vmem:[%s178 + $0xd48] sm:$0xff]
        %v662 = vld [vmem:[%s178 + $0xd50] sm:$0xff]
        %v663 = vld [vmem:[%s178 + $0xd58] sm:$0xff]
        %v664 = vld [vmem:[%s178 + $0xd60] sm:$0xff]
        %v665 = vld [vmem:[%s178 + $0xd68] sm:$0xff]
        %v666 = vld [vmem:[%s178 + $0xd70] sm:$0xff]
        %v667 = vld [vmem:[%s178 + $0xd78] sm:$0xff]
        %v668 = vld [vmem:[%s178 + $0xd80] sm:$0xff]
        %v669 = vld [vmem:[%s178 + $0xd88] sm:$0xff]
        %v670 = vld [vmem:[%s178 + $0xd90] sm:$0xff]
        %v671 = vld [vmem:[%s178 + $0xd98] sm:$0xff]
        %v672 = vld [vmem:[%s178 + $0xda0] sm:$0xff]
        %v673 = vld [vmem:[%s178 + $0xda8] sm:$0xff]
        %v674 = vld [vmem:[%s178 + $0xdb0] sm:$0xff]
        %v675 = vld [vmem:[%s178 + $0xdb8] sm:$0xff]
        %v676 = vld [vmem:[%s178 + $0xdc0] sm:$0xff]
        %v677 = vld [vmem:[%s178 + $0xdc8] sm:$0xff]
        %v678 = vld [vmem:[%s178 + $0xdd0] sm:$0xff]
        %v679 = vld [vmem:[%s178 + $0xdd8] sm:$0xff]
        %v680 = vld [vmem:[%s178 + $0xde0] sm:$0xff]
        %v681 = vld [vmem:[%s178 + $0xde8] sm:$0xff]
        %v682 = vld [vmem:[%s178 + $0xdf0] sm:$0xff]
        %v683 = vld [vmem:[%s178 + $0xdf8] sm:$0xff]
        %v684 = vld [vmem:[%s178 + $0xe00] sm:$0xff]
        %v685 = vld [vmem:[%s178 + $0xe08] sm:$0xff]
        %v686 = vld [vmem:[%s178 + $0xe10] sm:$0xff]
        %v687 = vld [vmem:[%s178 + $0xe18] sm:$0xff]
        %v688 = vld [vmem:[%s178 + $0xe20] sm:$0xff]
        %v689 = vld [vmem:[%s178 + $0xe28] sm:$0xff]
        %v690 = vld [vmem:[%s178 + $0xe30] sm:$0xff]
        %v691 = vld [vmem:[%s178 + $0xe38] sm:$0xff]
        %v692 = vld [vmem:[%s178 + $0xe40] sm:$0xff]
        %v693 = vld [vmem:[%s178 + $0xe48] sm:$0xff]
        %v694 = vld [vmem:[%s178 + $0xe50] sm:$0xff]
        %v695 = vld [vmem:[%s178 + $0xe58] sm:$0xff]
        %v696 = vld [vmem:[%s178 + $0xe60] sm:$0xff]
        %v697 = vld [vmem:[%s178 + $0xe68] sm:$0xff]
        %v698 = vld [vmem:[%s178 + $0xe70] sm:$0xff]
        %v699 = vld [vmem:[%s178 + $0xe78] sm:$0xff]
        %v700 = vld [vmem:[%s178 + $0xe80] sm:$0xff]
        %v701 = vld [vmem:[%s178 + $0xe88] sm:$0xff]
        %v702 = vld [vmem:[%s178 + $0xe90] sm:$0xff]
        %v703 = vld [vmem:[%s178 + $0xe98] sm:$0xff]
        %v704 = vld [vmem:[%s178 + $0xea0] sm:$0xff]
        %v705 = vld [vmem:[%s178 + $0xea8] sm:$0xff]
        %v706 = vld [vmem:[%s178 + $0xeb0] sm:$0xff]
        %v707 = vld [vmem:[%s178 + $0xeb8] sm:$0xff]
        %v708 = vld [vmem:[%s178 + $0xec0] sm:$0xff]
        %v709 = vld [vmem:[%s178 + $0xec8] sm:$0xff]
        %v710 = vld [vmem:[%s178 + $0xed0] sm:$0xff]
        %v711 = vld [vmem:[%s178 + $0xed8] sm:$0xff]
        %v712 = vld [vmem:[%s178 + $0xee0] sm:$0xff]
        %v713 = vld [vmem:[%s178 + $0xee8] sm:$0xff]
        %v714 = vld [vmem:[%s178 + $0xef0] sm:$0xff]
        %v715 = vld [vmem:[%s178 + $0xef8] sm:$0xff]
        %v716 = vld [vmem:[%s178 + $0xf00] sm:$0xff]
        %v717 = vld [vmem:[%s178 + $0xf08] sm:$0xff]
        %v718 = vld [vmem:[%s178 + $0xf10] sm:$0xff]
        %v719 = vld [vmem:[%s178 + $0xf18] sm:$0xff]
        %v720 = vld [vmem:[%s178 + $0xf20] sm:$0xff]
        %v721 = vld [vmem:[%s178 + $0xf28] sm:$0xff]
        %v722 = vld [vmem:[%s178 + $0xf30] sm:$0xff]
        %v723 = vld [vmem:[%s178 + $0xf38] sm:$0xff]
        %v724 = vld [vmem:[%s178 + $0xf40] sm:$0xff]
        %v725 = vld [vmem:[%s178 + $0xf48] sm:$0xff]
        %v726 = vld [vmem:[%s178 + $0xf50] sm:$0xff]
        %v727 = vld [vmem:[%s178 + $0xf58] sm:$0xff]
        %v728 = vld [vmem:[%s178 + $0xf60] sm:$0xff]
        %v729 = vld [vmem:[%s178 + $0xf68] sm:$0xff]
        %v730 = vld [vmem:[%s178 + $0xf70] sm:$0xff]
        %v731 = vld [vmem:[%s178 + $0xf78] sm:$0xff]
        %v732 = vld [vmem:[%s178 + $0xf80] sm:$0xff]
        %v733 = vld [vmem:[%s178 + $0xf88] sm:$0xff]
        %v734 = vld [vmem:[%s178 + $0xf90] sm:$0xff]
        %v735 = vld [vmem:[%s178 + $0xf98] sm:$0xff]
        %v736 = vld [vmem:[%s178 + $0xfa0] sm:$0xff]
        %v737 = vld [vmem:[%s178 + $0xfa8] sm:$0xff]
        %v738 = vld [vmem:[%s178 + $0xfb0] sm:$0xff]
        %v739 = vld [vmem:[%s178 + $0xfb8] sm:$0xff]
        %v740 = vld [vmem:[%s178 + $0xfc0] sm:$0xff]
        %v741 = vld [vmem:[%s178 + $0xfc8] sm:$0xff]
        %v742 = vld [vmem:[%s178 + $0xfd0] sm:$0xff]
        %v743 = vld [vmem:[%s178 + $0xfd8] sm:$0xff]
        %v744 = vld [vmem:[%s178 + $0xfe0] sm:$0xff]
        %v745 = vld [vmem:[%s178 + $0xfe8] sm:$0xff]
        %v746 = vld [vmem:[%s178 + $0xff0] sm:$0xff]
        %v747 = vld [vmem:[%s178 + $0xff8] sm:$0xff]
        %v748 = vld [vmem:[%s178 + $0x1000] sm:$0xff]
        %v749 = vld [vmem:[%s178 + $0x1008] sm:$0xff]
        %v750 = vld [vmem:[%s178 + $0x1010] sm:$0xff]
        %v751 = vld [vmem:[%s178 + $0x1018] sm:$0xff]
        %v752 = vld [vmem:[%s178 + $0x1020] sm:$0xff]
        %v753 = vld [vmem:[%s178 + $0x1028] sm:$0xff]
        %v754 = vld [vmem:[%s178 + $0x1030] sm:$0xff]
        %v755 = vld [vmem:[%s178 + $0x1038] sm:$0xff]
        %v756 = vld [vmem:[%s178 + $0x1040] sm:$0xff]
        %v757 = vld [vmem:[%s178 + $0x1048] sm:$0xff]
        %v758 = vld [vmem:[%s178 + $0x1050] sm:$0xff]
        %v759 = vld [vmem:[%s178 + $0x1058] sm:$0xff]
        %v760 = vld [vmem:[%s178 + $0x1060] sm:$0xff]
        %v761 = vld [vmem:[%s178 + $0x1068] sm:$0xff]
        %v762 = vld [vmem:[%s178 + $0x1070] sm:$0xff]
        %v763 = vld [vmem:[%s178 + $0x1078] sm:$0xff]
        %v764 = vld [vmem:[%s178 + $0x1080] sm:$0xff]
        %v765 = vld [vmem:[%s178 + $0x1088] sm:$0xff]
        %v766 = vld [vmem:[%s178 + $0x1090] sm:$0xff]
        %v767 = vld [vmem:[%s178 + $0x1098] sm:$0xff]
        %v768 = vld [vmem:[%s178 + $0x10a0] sm:$0xff]
        %v769 = vld [vmem:[%s178 + $0x10a8] sm:$0xff]
        %v770 = vld [vmem:[%s178 + $0x10b0] sm:$0xff]
        %v771 = vld [vmem:[%s178 + $0x10b8] sm:$0xff]
        %v772 = vld [vmem:[%s178 + $0x10c0] sm:$0xff]
        %v773 = vld [vmem:[%s178 + $0x10c8] sm:$0xff]
        %v774 = vld [vmem:[%s178 + $0x10d0] sm:$0xff]
        %v775 = vld [vmem:[%s178 + $0x10d8] sm:$0xff]
        %v776 = vld [vmem:[%s178 + $0x10e0] sm:$0xff]
        %v777 = vld [vmem:[%s178 + $0x10e8] sm:$0xff]
        %v778 = vld [vmem:[%s178 + $0x10f0] sm:$0xff]
        %v779 = vld [vmem:[%s178 + $0x10f8] sm:$0xff]
        %v780 = vld [vmem:[%s178 + $0x1100] sm:$0xff]
        %v781 = vld [vmem:[%s178 + $0x1108] sm:$0xff]
        %v782 = vld [vmem:[%s178 + $0x1110] sm:$0xff]
        %v783 = vld [vmem:[%s178 + $0x1118] sm:$0xff]
        %v784 = vld [vmem:[%s178 + $0x1120] sm:$0xff]
        %v785 = vld [vmem:[%s178 + $0x1128] sm:$0xff]
        %v786 = vld [vmem:[%s178 + $0x1130] sm:$0xff]
        %v787 = vld [vmem:[%s178 + $0x1138] sm:$0xff]
        %v788 = vld [vmem:[%s178 + $0x1140] sm:$0xff]
        %v789 = vld [vmem:[%s178 + $0x1148] sm:$0xff]
        %v790 = vld [vmem:[%s178 + $0x1150] sm:$0xff]
        %v791 = vld [vmem:[%s178 + $0x1158] sm:$0xff]
        %v792 = vld [vmem:[%s178 + $0x1160] sm:$0xff]
        %v793 = vld [vmem:[%s178 + $0x1168] sm:$0xff]
        %v794 = vld [vmem:[%s178 + $0x1170] sm:$0xff]
        %v795 = vld [vmem:[%s178 + $0x1178] sm:$0xff]
        %v796 = vld [vmem:[%s178 + $0x1180] sm:$0xff]
        %v797 = vld [vmem:[%s178 + $0x1188] sm:$0xff]
        %v798 = vld [vmem:[%s178 + $0x1190] sm:$0xff]
        %v799 = vld [vmem:[%s178 + $0x1198] sm:$0xff]
        %v800 = vld [vmem:[%s178 + $0x11a0] sm:$0xff]
        %v801 = vld [vmem:[%s178 + $0x11a8] sm:$0xff]
        %v802 = vld [vmem:[%s178 + $0x11b0] sm:$0xff]
        %v803 = vld [vmem:[%s178 + $0x11b8] sm:$0xff]
        %v804 = vld [vmem:[%s178 + $0x11c0] sm:$0xff]
        %v805 = vld [vmem:[%s178 + $0x11c8] sm:$0xff]
        %v806 = vld [vmem:[%s178 + $0x11d0] sm:$0xff]
        %v807 = vld [vmem:[%s178 + $0x11d8] sm:$0xff]
        %v808 = vld [vmem:[%s178 + $0x11e0] sm:$0xff]
        %v809 = vld [vmem:[%s178 + $0x11e8] sm:$0xff]
        %v810 = vld [vmem:[%s178 + $0x11f0] sm:$0xff]
        %v811 = vld [vmem:[%s178 + $0x11f8] sm:$0xff]
        %v812 = vld [vmem:[%s178 + $0x1200] sm:$0xff]
        %v813 = vld [vmem:[%s178 + $0x1208] sm:$0xff]
        %v814 = vld [vmem:[%s178 + $0x1210] sm:$0xff]
        %v815 = vld [vmem:[%s178 + $0x1218] sm:$0xff]
        %v816 = vld [vmem:[%s178 + $0x1220] sm:$0xff]
        %v817 = vld [vmem:[%s178 + $0x1228] sm:$0xff]
        %v818 = vld [vmem:[%s178 + $0x1230] sm:$0xff]
        %v819 = vld [vmem:[%s178 + $0x1238] sm:$0xff]
        %v820 = vld [vmem:[%s178 + $0x1240] sm:$0xff]
        %v821 = vld [vmem:[%s178 + $0x1248] sm:$0xff]
        %v822 = vld [vmem:[%s178 + $0x1250] sm:$0xff]
        %v823 = vld [vmem:[%s178 + $0x1258] sm:$0xff]
        %v824 = vld [vmem:[%s178 + $0x1260] sm:$0xff]
        %v825 = vld [vmem:[%s178 + $0x1268] sm:$0xff]
        %v826 = vld [vmem:[%s178 + $0x1270] sm:$0xff]
        %v827 = vld [vmem:[%s178 + $0x1278] sm:$0xff]
        %v828 = vld [vmem:[%s178 + $0x1280] sm:$0xff]
        %v829 = vld [vmem:[%s178 + $0x1288] sm:$0xff]
        %v830 = vld [vmem:[%s178 + $0x1290] sm:$0xff]
        %v831 = vld [vmem:[%s178 + $0x1298] sm:$0xff]
        %v832 = vld [vmem:[%s178 + $0x12a0] sm:$0xff]
        %v833 = vld [vmem:[%s178 + $0x12a8] sm:$0xff]
        %v834 = vld [vmem:[%s178 + $0x12b0] sm:$0xff]
        %v835 = vld [vmem:[%s178 + $0x12b8] sm:$0xff]
        %v836 = vld [vmem:[%s178 + $0x12c0] sm:$0xff]
        %v837 = vld [vmem:[%s178 + $0x12c8] sm:$0xff]
        %v838 = vld [vmem:[%s178 + $0x12d0] sm:$0xff]
        %v839 = vld [vmem:[%s178 + $0x12d8] sm:$0xff]
        %v840 = vld [vmem:[%s178 + $0x12e0] sm:$0xff]
        %v841 = vld [vmem:[%s178 + $0x12e8] sm:$0xff]
        %v842 = vld [vmem:[%s178 + $0x12f0] sm:$0xff]
        %v843 = vld [vmem:[%s178 + $0x12f8] sm:$0xff]
        %v844 = vld [vmem:[%s178 + $0x1300] sm:$0xff]
        %v845 = vld [vmem:[%s178 + $0x1308] sm:$0xff]
        %v846 = vld [vmem:[%s178 + $0x1310] sm:$0xff]
        %v847 = vld [vmem:[%s178 + $0x1318] sm:$0xff]
        %v848 = vld [vmem:[%s178 + $0x1320] sm:$0xff]
        %v849 = vld [vmem:[%s178 + $0x1328] sm:$0xff]
        %v850 = vld [vmem:[%s178 + $0x1330] sm:$0xff]
        %v851 = vld [vmem:[%s178 + $0x1338] sm:$0xff]
        %v852 = vld [vmem:[%s178 + $0x1340] sm:$0xff]
        %v853 = vld [vmem:[%s178 + $0x1348] sm:$0xff]
        %v854 = vld [vmem:[%s178 + $0x1350] sm:$0xff]
        %v855 = vld [vmem:[%s178 + $0x1358] sm:$0xff]
        %v856 = vld [vmem:[%s178 + $0x1360] sm:$0xff]
        %v857 = vld [vmem:[%s178 + $0x1368] sm:$0xff]
        %v858 = vld [vmem:[%s178 + $0x1370] sm:$0xff]
        %v859 = vld [vmem:[%s178 + $0x1378] sm:$0xff]
        %v860 = vld [vmem:[%s178 + $0x1380] sm:$0xff]
        %v861 = vld [vmem:[%s178 + $0x1388] sm:$0xff]
        %v862 = vld [vmem:[%s178 + $0x1390] sm:$0xff]
        %v863 = vld [vmem:[%s178 + $0x1398] sm:$0xff]
        %v864 = vld [vmem:[%s178 + $0x13a0] sm:$0xff]
        %v865 = vld [vmem:[%s178 + $0x13a8] sm:$0xff]
        %v866 = vld [vmem:[%s178 + $0x13b0] sm:$0xff]
        %v867 = vld [vmem:[%s178 + $0x13b8] sm:$0xff]
        %v868 = vld [vmem:[%s178 + $0x13c0] sm:$0xff]
        %v869 = vld [vmem:[%s178 + $0x13c8] sm:$0xff]
        %v870 = vld [vmem:[%s178 + $0x13d0] sm:$0xff]
        %v871 = vld [vmem:[%s178 + $0x13d8] sm:$0xff]
        %v872 = vld [vmem:[%s178 + $0x13e0] sm:$0xff]
        %v873 = vld [vmem:[%s178 + $0x13e8] sm:$0xff]
        %v874 = vld [vmem:[%s178 + $0x13f0] sm:$0xff]
        %v875 = vld [vmem:[%s178 + $0x13f8] sm:$0xff]
        %v876 = vld [vmem:[%s178 + $0x1400] sm:$0xff]
        %v877 = vld [vmem:[%s178 + $0x1408] sm:$0xff]
        %v878 = vld [vmem:[%s178 + $0x1410] sm:$0xff]
        %v879 = vld [vmem:[%s178 + $0x1418] sm:$0xff]
        %v880 = vld [vmem:[%s178 + $0x1420] sm:$0xff]
        %v881 = vld [vmem:[%s178 + $0x1428] sm:$0xff]
        %v882 = vld [vmem:[%s178 + $0x1430] sm:$0xff]
        %v883 = vld [vmem:[%s178 + $0x1438] sm:$0xff]
        %v884 = vld [vmem:[%s178 + $0x1440] sm:$0xff]
        %v885 = vld [vmem:[%s178 + $0x1448] sm:$0xff]
        %v886 = vld [vmem:[%s178 + $0x1450] sm:$0xff]
        %v887 = vld [vmem:[%s178 + $0x1458] sm:$0xff]
        %v888 = vld [vmem:[%s178 + $0x1460] sm:$0xff]
        %v889 = vld [vmem:[%s178 + $0x1468] sm:$0xff]
        %v890 = vld [vmem:[%s178 + $0x1470] sm:$0xff]
        %v891 = vld [vmem:[%s178 + $0x1478] sm:$0xff]
        %v892 = vld [vmem:[%s178 + $0x1480] sm:$0xff]
        %v893 = vld [vmem:[%s178 + $0x1488] sm:$0xff]
        %v894 = vld [vmem:[%s178 + $0x1490] sm:$0xff]
        %v895 = vld [vmem:[%s178 + $0x1498] sm:$0xff]
        %v896 = vld [vmem:[%s178 + $0x14a0] sm:$0xff]
        %v897 = vld [vmem:[%s178 + $0x14a8] sm:$0xff]
        %v898 = vld [vmem:[%s178 + $0x14b0] sm:$0xff]
        %v899 = vld [vmem:[%s178 + $0x14b8] sm:$0xff]
        %v900 = vld [vmem:[%s178 + $0x14c0] sm:$0xff]
        %v901 = vld [vmem:[%s178 + $0x14c8] sm:$0xff]
        %v902 = vld [vmem:[%s178 + $0x14d0] sm:$0xff]
        %v903 = vld [vmem:[%s178 + $0x14d8] sm:$0xff]
        %v904 = vld [vmem:[%s178 + $0x14e0] sm:$0xff]
        %v905 = vld [vmem:[%s178 + $0x14e8] sm:$0xff]
        %v906 = vld [vmem:[%s178 + $0x14f0] sm:$0xff]
        %v907 = vld [vmem:[%s178 + $0x14f8] sm:$0xff]
        %v908 = vld [vmem:[%s178 + $0x1500] sm:$0xff]
        %v909 = vld [vmem:[%s178 + $0x1508] sm:$0xff]
        %v910 = vld [vmem:[%s178 + $0x1510] sm:$0xff]
        %v911 = vld [vmem:[%s178 + $0x1518] sm:$0xff]
        %v912 = vld [vmem:[%s178 + $0x1520] sm:$0xff]
        %v913 = vld [vmem:[%s178 + $0x1528] sm:$0xff]
        %v914 = vld [vmem:[%s178 + $0x1530] sm:$0xff]
        %v915 = vld [vmem:[%s178 + $0x1538] sm:$0xff]
        %v916 = vld [vmem:[%s178 + $0x1540] sm:$0xff]
        %v917 = vld [vmem:[%s178 + $0x1548] sm:$0xff]
        %v918 = vld [vmem:[%s178 + $0x1550] sm:$0xff]
        %v919 = vld [vmem:[%s178 + $0x1558] sm:$0xff]
        %v920 = vld [vmem:[%s178 + $0x1560] sm:$0xff]
        %v921 = vld [vmem:[%s178 + $0x1568] sm:$0xff]
        %v922 = vld [vmem:[%s178 + $0x1570] sm:$0xff]
        %v923 = vld [vmem:[%s178 + $0x1578] sm:$0xff]
        %v924 = vld [vmem:[%s178 + $0x1580] sm:$0xff]
        %v925 = vld [vmem:[%s178 + $0x1588] sm:$0xff]
        %v926 = vld [vmem:[%s178 + $0x1590] sm:$0xff]
        %v927 = vld [vmem:[%s178 + $0x1598] sm:$0xff]
        %v928 = vld [vmem:[%s178 + $0x15a0] sm:$0xff]
        %v929 = vld [vmem:[%s178 + $0x15a8] sm:$0xff]
        %v930 = vld [vmem:[%s178 + $0x15b0] sm:$0xff]
        %v931 = vld [vmem:[%s178 + $0x15b8] sm:$0xff]
        %v932 = vld [vmem:[%s178 + $0x15c0] sm:$0xff]
        %v933 = vld [vmem:[%s178 + $0x15c8] sm:$0xff]
        %v934 = vld [vmem:[%s178 + $0x15d0] sm:$0xff]
        %v935 = vld [vmem:[%s178 + $0x15d8] sm:$0xff]
        %v936 = vld [vmem:[%s178 + $0x15e0] sm:$0xff]
        %v937 = vld [vmem:[%s178 + $0x15e8] sm:$0xff]
        %v938 = vld [vmem:[%s178 + $0x15f0] sm:$0xff]
        %v939 = vld [vmem:[%s178 + $0x15f8] sm:$0xff]
        %v940 = vld [vmem:[%s178 + $0x1600] sm:$0xff]
        %v941 = vld [vmem:[%s178 + $0x1608] sm:$0xff]
        %v942 = vld [vmem:[%s178 + $0x1610] sm:$0xff]
        %v943 = vld [vmem:[%s178 + $0x1618] sm:$0xff]
        %v944 = vld [vmem:[%s178 + $0x1620] sm:$0xff]
        %v945 = vld [vmem:[%s178 + $0x1628] sm:$0xff]
        %v946 = vld [vmem:[%s178 + $0x1630] sm:$0xff]
        %v947 = vld [vmem:[%s178 + $0x1638] sm:$0xff]
        %v948 = vld [vmem:[%s178 + $0x1640] sm:$0xff]
        %v949 = vld [vmem:[%s178 + $0x1648] sm:$0xff]
        %v950 = vld [vmem:[%s178 + $0x1650] sm:$0xff]
        %v951 = vld [vmem:[%s178 + $0x1658] sm:$0xff]
        %v952 = vld [vmem:[%s178 + $0x1660] sm:$0xff]
        %v953 = vld [vmem:[%s178 + $0x1668] sm:$0xff]
        %v954 = vld [vmem:[%s178 + $0x1670] sm:$0xff]
        %v955 = vld [vmem:[%s178 + $0x1678] sm:$0xff]
        %v956 = vld [vmem:[%s178 + $0x1680] sm:$0xff]
        %v957 = vld [vmem:[%s178 + $0x1688] sm:$0xff]
        %v958 = vld [vmem:[%s178 + $0x1690] sm:$0xff]
        %v959 = vld [vmem:[%s178 + $0x1698] sm:$0xff]
        %v960 = vld [vmem:[%s178 + $0x16a0] sm:$0xff]
        %v961 = vld [vmem:[%s178 + $0x16a8] sm:$0xff]
        %v962 = vld [vmem:[%s178 + $0x16b0] sm:$0xff]
        %v963 = vld [vmem:[%s178 + $0x16b8] sm:$0xff]
        %v964 = vld [vmem:[%s178 + $0x16c0] sm:$0xff]
        %v965 = vld [vmem:[%s178 + $0x16c8] sm:$0xff]
        %v966 = vld [vmem:[%s178 + $0x16d0] sm:$0xff]
        %v967 = vld [vmem:[%s178 + $0x16d8] sm:$0xff]
        %v968 = vld [vmem:[%s178 + $0x16e0] sm:$0xff]
        %v969 = vld [vmem:[%s178 + $0x16e8] sm:$0xff]
        %v970 = vld [vmem:[%s178 + $0x16f0] sm:$0xff]
        %v971 = vld [vmem:[%s178 + $0x16f8] sm:$0xff]
        %v972 = vld [vmem:[%s178 + $0x1700] sm:$0xff]
        %v973 = vld [vmem:[%s178 + $0x1708] sm:$0xff]
        %v974 = vld [vmem:[%s178 + $0x1710] sm:$0xff]
        %v975 = vld [vmem:[%s178 + $0x1718] sm:$0xff]
        %v976 = vld [vmem:[%s178 + $0x1720] sm:$0xff]
        %v977 = vld [vmem:[%s178 + $0x1728] sm:$0xff]
        %v978 = vld [vmem:[%s178 + $0x1730] sm:$0xff]
        %v979 = vld [vmem:[%s178 + $0x1738] sm:$0xff]
        %v980 = vld [vmem:[%s178 + $0x1740] sm:$0xff]
        %v981 = vld [vmem:[%s178 + $0x1748] sm:$0xff]
        %v982 = vld [vmem:[%s178 + $0x1750] sm:$0xff]
        %v983 = vld [vmem:[%s178 + $0x1758] sm:$0xff]
        %v984 = vld [vmem:[%s178 + $0x1760] sm:$0xff]
        %v985 = vld [vmem:[%s178 + $0x1768] sm:$0xff]
        %v986 = vld [vmem:[%s178 + $0x1770] sm:$0xff]
        %v987 = vld [vmem:[%s178 + $0x1778] sm:$0xff]
        %v988 = vld [vmem:[%s178 + $0x1780] sm:$0xff]
        %v989 = vld [vmem:[%s178 + $0x1788] sm:$0xff]
        %v990 = vld [vmem:[%s178 + $0x1790] sm:$0xff]
        %v991 = vld [vmem:[%s178 + $0x1798] sm:$0xff]
        %v992 = vld [vmem:[%s178 + $0x17a0] sm:$0xff]
        %v993 = vld [vmem:[%s178 + $0x17a8] sm:$0xff]
        %v994 = vld [vmem:[%s178 + $0x17b0] sm:$0xff]
        %v995 = vld [vmem:[%s178 + $0x17b8] sm:$0xff]
        %v996 = vld [vmem:[%s178 + $0x17c0] sm:$0xff]
        %v997 = vld [vmem:[%s178 + $0x17c8] sm:$0xff]
        %v998 = vld [vmem:[%s178 + $0x17d0] sm:$0xff]
        %v999 = vld [vmem:[%s178 + $0x17d8] sm:$0xff]
        %v1000 = vld [vmem:[%s178 + $0x17e0] sm:$0xff]
        %v1001 = vld [vmem:[%s178 + $0x17e8] sm:$0xff]
        %v1002 = vld [vmem:[%s178 + $0x17f0] sm:$0xff]
        %v1003 = vld [vmem:[%s178 + $0x17f8] sm:$0xff]
        %v1004 = vld [vmem:[%s178 + $0x1800] sm:$0xff]
        %v1005 = vld [vmem:[%s178 + $0x1808] sm:$0xff]
        %v1006 = vld [vmem:[%s178 + $0x1810] sm:$0xff]
        %v1007 = vld [vmem:[%s178 + $0x1818] sm:$0xff]
        %v1008 = vld [vmem:[%s178 + $0x1820] sm:$0xff]
        %v1009 = vld [vmem:[%s178 + $0x1828] sm:$0xff]
        %v1010 = vld [vmem:[%s178 + $0x1830] sm:$0xff]
        %v1011 = vld [vmem:[%s178 + $0x1838] sm:$0xff]
        %v1012 = vld [vmem:[%s178 + $0x1840] sm:$0xff]
        %v1013 = vld [vmem:[%s178 + $0x1848] sm:$0xff]
        %v1014 = vld [vmem:[%s178 + $0x1850] sm:$0xff]
        %v1015 = vld [vmem:[%s178 + $0x1858] sm:$0xff]
        %v1016 = vld [vmem:[%s178 + $0x1860] sm:$0xff]
        %v1017 = vld [vmem:[%s178 + $0x1868] sm:$0xff]
        %v1018 = vld [vmem:[%s178 + $0x1870] sm:$0xff]
        %v1019 = vld [vmem:[%s178 + $0x1878] sm:$0xff]
        %v1020 = vld [vmem:[%s178 + $0x1880] sm:$0xff]
        %v1021 = vld [vmem:[%s178 + $0x1888] sm:$0xff]
        %v1022 = vld [vmem:[%s178 + $0x1890] sm:$0xff]
        %v1023 = vld [vmem:[%s178 + $0x1898] sm:$0xff]
        %v1024 = vld [vmem:[%s178 + $0x18a0] sm:$0xff]
        %v1025 = vld [vmem:[%s178 + $0x18a8] sm:$0xff]
        %v1026 = vld [vmem:[%s178 + $0x18b0] sm:$0xff]
        %v1027 = vld [vmem:[%s178 + $0x18b8] sm:$0xff]
        %v1028 = vld [vmem:[%s178 + $0x18c0] sm:$0xff]
        %v1029 = vld [vmem:[%s178 + $0x18c8] sm:$0xff]
        %v1030 = vld [vmem:[%s178 + $0x18d0] sm:$0xff]
        %v1031 = vld [vmem:[%s178 + $0x18d8] sm:$0xff]
        %v1032 = vld [vmem:[%s178 + $0x18e0] sm:$0xff]
        %v1033 = vld [vmem:[%s178 + $0x18e8] sm:$0xff]
        %v1034 = vld [vmem:[%s178 + $0x18f0] sm:$0xff]
        %v1035 = vld [vmem:[%s178 + $0x18f8] sm:$0xff]
        %v1036 = vld [vmem:[%s178 + $0x1900] sm:$0xff]
        %v1037 = vld [vmem:[%s178 + $0x1908] sm:$0xff]
        %v1038 = vld [vmem:[%s178 + $0x1910] sm:$0xff]
        %v1039 = vld [vmem:[%s178 + $0x1918] sm:$0xff]
        %v1040 = vld [vmem:[%s178 + $0x1920] sm:$0xff]
        %v1041 = vld [vmem:[%s178 + $0x1928] sm:$0xff]
        %v1042 = vld [vmem:[%s178 + $0x1930] sm:$0xff]
        %v1043 = vld [vmem:[%s178 + $0x1938] sm:$0xff]
        %v1044 = vld [vmem:[%s178 + $0x1940] sm:$0xff]
        %v1045 = vld [vmem:[%s178 + $0x1948] sm:$0xff]
        %v1046 = vld [vmem:[%s178 + $0x1950] sm:$0xff]
        %v1047 = vld [vmem:[%s178 + $0x1958] sm:$0xff]
        %v1048 = vld [vmem:[%s178 + $0x1960] sm:$0xff]
        %v1049 = vld [vmem:[%s178 + $0x1968] sm:$0xff]
        %v1050 = vld [vmem:[%s178 + $0x1970] sm:$0xff]
        %v1051 = vld [vmem:[%s178 + $0x1978] sm:$0xff]
        %v1052 = vld [vmem:[%s178 + $0x1980] sm:$0xff]
        %v1053 = vld [vmem:[%s178 + $0x1988] sm:$0xff]
        %v1054 = vld [vmem:[%s178 + $0x1990] sm:$0xff]
        %v1055 = vld [vmem:[%s178 + $0x1998] sm:$0xff]
        %v1056 = vld [vmem:[%s178 + $0x19a0] sm:$0xff]
        %v1057 = vld [vmem:[%s178 + $0x19a8] sm:$0xff]
        %v1058 = vld [vmem:[%s178 + $0x19b0] sm:$0xff]
        %v1059 = vld [vmem:[%s178 + $0x19b8] sm:$0xff]
        %v1060 = vld [vmem:[%s178 + $0x19c0] sm:$0xff]
        %v1061 = vld [vmem:[%s178 + $0x19c8] sm:$0xff]
        %v1062 = vld [vmem:[%s178 + $0x19d0] sm:$0xff]
        %v1063 = vld [vmem:[%s178 + $0x19d8] sm:$0xff]
        %v1064 = vld [vmem:[%s178 + $0x19e0] sm:$0xff]
        %v1065 = vld [vmem:[%s178 + $0x19e8] sm:$0xff]
        %v1066 = vld [vmem:[%s178 + $0x19f0] sm:$0xff]
        %v1067 = vld [vmem:[%s178 + $0x19f8] sm:$0xff]
        %v1068 = vld [vmem:[%s178 + $0x1a00] sm:$0xff]
        %v1069 = vld [vmem:[%s178 + $0x1a08] sm:$0xff]
        %v1070 = vld [vmem:[%s178 + $0x1a10] sm:$0xff]
        %v1071 = vld [vmem:[%s178 + $0x1a18] sm:$0xff]
        %v1072 = vld [vmem:[%s178 + $0x1a20] sm:$0xff]
        %v1073 = vld [vmem:[%s178 + $0x1a28] sm:$0xff]
        %v1074 = vld [vmem:[%s178 + $0x1a30] sm:$0xff]
        %v1075 = vld [vmem:[%s178 + $0x1a38] sm:$0xff]
        %v1076 = vld [vmem:[%s178 + $0x1a40] sm:$0xff]
        %v1077 = vld [vmem:[%s178 + $0x1a48] sm:$0xff]
        %v1078 = vld [vmem:[%s178 + $0x1a50] sm:$0xff]
        %v1079 = vld [vmem:[%s178 + $0x1a58] sm:$0xff]
        %v1080 = vld [vmem:[%s178 + $0x1a60] sm:$0xff]
        %v1081 = vld [vmem:[%s178 + $0x1a68] sm:$0xff]
        %v1082 = vld [vmem:[%s178 + $0x1a70] sm:$0xff]
        %v1083 = vld [vmem:[%s178 + $0x1a78] sm:$0xff]
        %v1084 = vld [vmem:[%s178 + $0x1a80] sm:$0xff]
        %v1085 = vld [vmem:[%s178 + $0x1a88] sm:$0xff]
        %v1086 = vld [vmem:[%s178 + $0x1a90] sm:$0xff]
        %v1087 = vld [vmem:[%s178 + $0x1a98] sm:$0xff]
        %v1088 = vld [vmem:[%s178 + $0x1aa0] sm:$0xff]
        %v1089 = vld [vmem:[%s178 + $0x1aa8] sm:$0xff]
        %v1090 = vld [vmem:[%s178 + $0x1ab0] sm:$0xff]
        %v1091 = vld [vmem:[%s178 + $0x1ab8] sm:$0xff]
        %v1092 = vld [vmem:[%s178 + $0x1ac0] sm:$0xff]
        %v1093 = vld [vmem:[%s178 + $0x1ac8] sm:$0xff]
        %v1094 = vld [vmem:[%s178 + $0x1ad0] sm:$0xff]
        %v1095 = vld [vmem:[%s178 + $0x1ad8] sm:$0xff]
        %v1096 = vld [vmem:[%s178 + $0x1ae0] sm:$0xff]
        %v1097 = vld [vmem:[%s178 + $0x1ae8] sm:$0xff]
        %v1098 = vld [vmem:[%s178 + $0x1af0] sm:$0xff]
        %v1099 = vld [vmem:[%s178 + $0x1af8] sm:$0xff]
        %v1100 = vld [vmem:[%s178 + $0x1b00] sm:$0xff]
        %v1101 = vld [vmem:[%s178 + $0x1b08] sm:$0xff]
        %v1102 = vld [vmem:[%s178 + $0x1b10] sm:$0xff]
        %v1103 = vld [vmem:[%s178 + $0x1b18] sm:$0xff]
        %v1104 = vld [vmem:[%s178 + $0x1b20] sm:$0xff]
        %v1105 = vld [vmem:[%s178 + $0x1b28] sm:$0xff]
        %v1106 = vld [vmem:[%s178 + $0x1b30] sm:$0xff]
        %v1107 = vld [vmem:[%s178 + $0x1b38] sm:$0xff]
        %v1108 = vld [vmem:[%s178 + $0x1b40] sm:$0xff]
        %v1109 = vld [vmem:[%s178 + $0x1b48] sm:$0xff]
        %v1110 = vld [vmem:[%s178 + $0x1b50] sm:$0xff]
        %v1111 = vld [vmem:[%s178 + $0x1b58] sm:$0xff]
        %v1112 = vld [vmem:[%s178 + $0x1b60] sm:$0xff]
        %v1113 = vld [vmem:[%s178 + $0x1b68] sm:$0xff]
        %v1114 = vld [vmem:[%s178 + $0x1b70] sm:$0xff]
        %v1115 = vld [vmem:[%s178 + $0x1b78] sm:$0xff]
        %v1116 = vld [vmem:[%s178 + $0x1b80] sm:$0xff]
        %v1117 = vld [vmem:[%s178 + $0x1b88] sm:$0xff]
        %v1118 = vld [vmem:[%s178 + $0x1b90] sm:$0xff]
        %v1119 = vld [vmem:[%s178 + $0x1b98] sm:$0xff]
        %v1120 = vld [vmem:[%s178 + $0x1ba0] sm:$0xff]
        %v1121 = vld [vmem:[%s178 + $0x1ba8] sm:$0xff]
        %v1122 = vld [vmem:[%s178 + $0x1bb0] sm:$0xff]
        %v1123 = vld [vmem:[%s178 + $0x1bb8] sm:$0xff]
        %v1124 = vld [vmem:[%s178 + $0x1bc0] sm:$0xff]
        %v1125 = vld [vmem:[%s178 + $0x1bc8] sm:$0xff]
        %v1126 = vld [vmem:[%s178 + $0x1bd0] sm:$0xff]
        %v1127 = vld [vmem:[%s178 + $0x1bd8] sm:$0xff]
        %v1128 = vld [vmem:[%s178 + $0x1be0] sm:$0xff]
        %v1129 = vld [vmem:[%s178 + $0x1be8] sm:$0xff]
        %v1130 = vld [vmem:[%s178 + $0x1bf0] sm:$0xff]
        %v1131 = vld [vmem:[%s178 + $0x1bf8] sm:$0xff]
        %v1132 = vld [vmem:[%s178 + $0x1c00] sm:$0xff]
        %v1133 = vld [vmem:[%s178 + $0x1c08] sm:$0xff]
        %v1134 = vld [vmem:[%s178 + $0x1c10] sm:$0xff]
        %v1135 = vld [vmem:[%s178 + $0x1c18] sm:$0xff]
        %v1136 = vld [vmem:[%s178 + $0x1c20] sm:$0xff]
        %v1137 = vld [vmem:[%s178 + $0x1c28] sm:$0xff]
        %v1138 = vld [vmem:[%s178 + $0x1c30] sm:$0xff]
        %v1139 = vld [vmem:[%s178 + $0x1c38] sm:$0xff]
        %v1140 = vld [vmem:[%s178 + $0x1c40] sm:$0xff]
        %v1141 = vld [vmem:[%s178 + $0x1c48] sm:$0xff]
        %v1142 = vld [vmem:[%s178 + $0x1c50] sm:$0xff]
        %v1143 = vld [vmem:[%s178 + $0x1c58] sm:$0xff]
        %v1144 = vld [vmem:[%s178 + $0x1c60] sm:$0xff]
        %v1145 = vld [vmem:[%s178 + $0x1c68] sm:$0xff]
        %v1146 = vld [vmem:[%s178 + $0x1c70] sm:$0xff]
        %v1147 = vld [vmem:[%s178 + $0x1c78] sm:$0xff]
        %v1148 = vld [vmem:[%s178 + $0x1c80] sm:$0xff]
        %v1149 = vld [vmem:[%s178 + $0x1c88] sm:$0xff]
        %v1150 = vld [vmem:[%s178 + $0x1c90] sm:$0xff]
        %v1151 = vld [vmem:[%s178 + $0x1c98] sm:$0xff]
        %v1152 = vld [vmem:[%s178 + $0x1ca0] sm:$0xff]
        %v1153 = vld [vmem:[%s178 + $0x1ca8] sm:$0xff]
        %v1154 = vld [vmem:[%s178 + $0x1cb0] sm:$0xff]
        %v1155 = vld [vmem:[%s178 + $0x1cb8] sm:$0xff]
        %v1156 = vld [vmem:[%s178 + $0x1cc0] sm:$0xff]
        %v1157 = vld [vmem:[%s178 + $0x1cc8] sm:$0xff]
        %v1158 = vld [vmem:[%s178 + $0x1cd0] sm:$0xff]
        %v1159 = vld [vmem:[%s178 + $0x1cd8] sm:$0xff]
        %v1160 = vld [vmem:[%s178 + $0x1ce0] sm:$0xff]
        %v1161 = vld [vmem:[%s178 + $0x1ce8] sm:$0xff]
        %v1162 = vld [vmem:[%s178 + $0x1cf0] sm:$0xff]
        %v1163 = vld [vmem:[%s178 + $0x1cf8] sm:$0xff]
        %v1164 = vld [vmem:[%s178 + $0x1d00] sm:$0xff]
        %v1165 = vld [vmem:[%s178 + $0x1d08] sm:$0xff]
        %v1166 = vld [vmem:[%s178 + $0x1d10] sm:$0xff]
        %v1167 = vld [vmem:[%s178 + $0x1d18] sm:$0xff]
        %v1168 = vld [vmem:[%s178 + $0x1d20] sm:$0xff]
        %v1169 = vld [vmem:[%s178 + $0x1d28] sm:$0xff]
        %v1170 = vld [vmem:[%s178 + $0x1d30] sm:$0xff]
        %v1171 = vld [vmem:[%s178 + $0x1d38] sm:$0xff]
        %v1172 = vld [vmem:[%s178 + $0x1d40] sm:$0xff]
        %v1173 = vld [vmem:[%s178 + $0x1d48] sm:$0xff]
        %v1174 = vld [vmem:[%s178 + $0x1d50] sm:$0xff]
        %v1175 = vld [vmem:[%s178 + $0x1d58] sm:$0xff]
        %v1176 = vld [vmem:[%s178 + $0x1d60] sm:$0xff]
        %v1177 = vld [vmem:[%s178 + $0x1d68] sm:$0xff]
        %v1178 = vld [vmem:[%s178 + $0x1d70] sm:$0xff]
        %v1179 = vld [vmem:[%s178 + $0x1d78] sm:$0xff]
        %v1180 = vld [vmem:[%s178 + $0x1d80] sm:$0xff]
        %v1181 = vld [vmem:[%s178 + $0x1d88] sm:$0xff]
        %v1182 = vld [vmem:[%s178 + $0x1d90] sm:$0xff]
        %v1183 = vld [vmem:[%s178 + $0x1d98] sm:$0xff]
        %v1184 = vld [vmem:[%s178 + $0x1da0] sm:$0xff]
        %v1185 = vld [vmem:[%s178 + $0x1da8] sm:$0xff]
        %v1186 = vld [vmem:[%s178 + $0x1db0] sm:$0xff]
        %v1187 = vld [vmem:[%s178 + $0x1db8] sm:$0xff]
        %v1188 = vld [vmem:[%s178 + $0x1dc0] sm:$0xff]
        %v1189 = vld [vmem:[%s178 + $0x1dc8] sm:$0xff]
        %v1190 = vld [vmem:[%s178 + $0x1dd0] sm:$0xff]
        %v1191 = vld [vmem:[%s178 + $0x1dd8] sm:$0xff]
        %v1192 = vld [vmem:[%s178 + $0x1de0] sm:$0xff]
        %v1193 = vld [vmem:[%s178 + $0x1de8] sm:$0xff]
        %v1194 = vld [vmem:[%s178 + $0x1df0] sm:$0xff]
        %v1195 = vld [vmem:[%s178 + $0x1df8] sm:$0xff]
        %v1196 = vld [vmem:[%s178 + $0x1e00] sm:$0xff]
        %v1197 = vld [vmem:[%s178 + $0x1e08] sm:$0xff]
        %v1198 = vld [vmem:[%s178 + $0x1e10] sm:$0xff]
        %v1199 = vld [vmem:[%s178 + $0x1e18] sm:$0xff]
        %v1200 = vld [vmem:[%s178 + $0x1e20] sm:$0xff]
        %v1201 = vld [vmem:[%s178 + $0x1e28] sm:$0xff]
        %v1202 = vld [vmem:[%s178 + $0x1e30] sm:$0xff]
        %v1203 = vld [vmem:[%s178 + $0x1e38] sm:$0xff]
        %v1204 = vld [vmem:[%s178 + $0x1e40] sm:$0xff]
        %v1205 = vld [vmem:[%s178 + $0x1e48] sm:$0xff]
        %v1206 = vld [vmem:[%s178 + $0x1e50] sm:$0xff]
        %v1207 = vld [vmem:[%s178 + $0x1e58] sm:$0xff]
        %v1208 = vld [vmem:[%s178 + $0x1e60] sm:$0xff]
        %v1209 = vld [vmem:[%s178 + $0x1e68] sm:$0xff]
        %v1210 = vld [vmem:[%s178 + $0x1e70] sm:$0xff]
        %v1211 = vld [vmem:[%s178 + $0x1e78] sm:$0xff]
        %v1212 = vld [vmem:[%s178 + $0x1e80] sm:$0xff]
        %v1213 = vld [vmem:[%s178 + $0x1e88] sm:$0xff]
        %v1214 = vld [vmem:[%s178 + $0x1e90] sm:$0xff]
        %v1215 = vld [vmem:[%s178 + $0x1e98] sm:$0xff]
        %v1216 = vld [vmem:[%s178 + $0x1ea0] sm:$0xff]
        %v1217 = vld [vmem:[%s178 + $0x1ea8] sm:$0xff]
        %v1218 = vld [vmem:[%s178 + $0x1eb0] sm:$0xff]
        %v1219 = vld [vmem:[%s178 + $0x1eb8] sm:$0xff]
        %v1220 = vld [vmem:[%s178 + $0x1ec0] sm:$0xff]
        %v1221 = vld [vmem:[%s178 + $0x1ec8] sm:$0xff]
        %v1222 = vld [vmem:[%s178 + $0x1ed0] sm:$0xff]
        %v1223 = vld [vmem:[%s178 + $0x1ed8] sm:$0xff]
        %v1224 = vld [vmem:[%s178 + $0x1ee0] sm:$0xff]
        %v1225 = vld [vmem:[%s178 + $0x1ee8] sm:$0xff]
        %v1226 = vld [vmem:[%s178 + $0x1ef0] sm:$0xff]
        %v1227 = vld [vmem:[%s178 + $0x1ef8] sm:$0xff]
        %v1228 = vld [vmem:[%s178 + $0x1f00] sm:$0xff]
        %v1229 = vld [vmem:[%s178 + $0x1f08] sm:$0xff]
        %v1230 = vld [vmem:[%s178 + $0x1f10] sm:$0xff]
        %v1231 = vld [vmem:[%s178 + $0x1f18] sm:$0xff]
        %v1232 = vld [vmem:[%s178 + $0x1f20] sm:$0xff]
        %v1233 = vld [vmem:[%s178 + $0x1f28] sm:$0xff]
        %v1234 = vld [vmem:[%s178 + $0x1f30] sm:$0xff]
        %v1235 = vld [vmem:[%s178 + $0x1f38] sm:$0xff]
        %v1236 = vld [vmem:[%s178 + $0x1f40] sm:$0xff]
        %v1237 = vld [vmem:[%s178 + $0x1f48] sm:$0xff]
        %v1238 = vld [vmem:[%s178 + $0x1f50] sm:$0xff]
        %v1239 = vld [vmem:[%s178 + $0x1f58] sm:$0xff]
        %v1240 = vld [vmem:[%s178 + $0x1f60] sm:$0xff]
        %v1241 = vld [vmem:[%s178 + $0x1f68] sm:$0xff]
        %v1242 = vld [vmem:[%s178 + $0x1f70] sm:$0xff]
        %v1243 = vld [vmem:[%s178 + $0x1f78] sm:$0xff]
        %v1244 = vld [vmem:[%s178 + $0x1f80] sm:$0xff]
        %v1245 = vld [vmem:[%s178 + $0x1f88] sm:$0xff]
        %v1246 = vld [vmem:[%s178 + $0x1f90] sm:$0xff]
        %v1247 = vld [vmem:[%s178 + $0x1f98] sm:$0xff]
        %v1248 = vld [vmem:[%s178 + $0x1fa0] sm:$0xff]
        %v1249 = vld [vmem:[%s178 + $0x1fa8] sm:$0xff]
        %v1250 = vld [vmem:[%s178 + $0x1fb0] sm:$0xff]
        %v1251 = vld [vmem:[%s178 + $0x1fb8] sm:$0xff]
        %v1252 = vld [vmem:[%s178 + $0x1fc0] sm:$0xff]
        %v1253 = vld [vmem:[%s178 + $0x1fc8] sm:$0xff]
        %v1254 = vld [vmem:[%s178 + $0x1fd0] sm:$0xff]
        %v1255 = vld [vmem:[%s178 + $0x1fd8] sm:$0xff]
        %v1256 = vld [vmem:[%s178 + $0x1fe0] sm:$0xff]
        %v1257 = vld [vmem:[%s178 + $0x1fe8] sm:$0xff]
        %v1258 = vld [vmem:[%s178 + $0x1ff0] sm:$0xff]
        %v1259 = vld [vmem:[%s178 + $0x1ff8] sm:$0xff]
        %v1260 = vld [vmem:[%s178 + $0x2000] sm:$0xff]
        %v1261 = vld [vmem:[%s178 + $0x2008] sm:$0xff]
        %v1262 = vld [vmem:[%s178 + $0x2010] sm:$0xff]
        %v1263 = vld [vmem:[%s178 + $0x2018] sm:$0xff]
        %v1264 = vld [vmem:[%s178 + $0x2020] sm:$0xff]
        %v1265 = vld [vmem:[%s178 + $0x2028] sm:$0xff]
        %v1266 = vld [vmem:[%s178 + $0x2030] sm:$0xff]
        %v1267 = vld [vmem:[%s178 + $0x2038] sm:$0xff]
        %v1268 = vld [vmem:[%s178 + $0x2040] sm:$0xff]
        %v1269 = vld [vmem:[%s178 + $0x2048] sm:$0xff]
        %v1270 = vld [vmem:[%s178 + $0x2050] sm:$0xff]
        %v1271 = vld [vmem:[%s178 + $0x2058] sm:$0xff]
        %v1272 = vld [vmem:[%s178 + $0x2060] sm:$0xff]
        %v1273 = vld [vmem:[%s178 + $0x2068] sm:$0xff]
        %v1274 = vld [vmem:[%s178 + $0x2070] sm:$0xff]
        %v1275 = vld [vmem:[%s178 + $0x2078] sm:$0xff]
        %v1276 = vld [vmem:[%s178 + $0x2080] sm:$0xff]
        %v1277 = vld [vmem:[%s178 + $0x2088] sm:$0xff]
        %v1278 = vld [vmem:[%s178 + $0x2090] sm:$0xff]
        %v1279 = vld [vmem:[%s178 + $0x2098] sm:$0xff]
        %v1280 = vld [vmem:[%s178 + $0x20a0] sm:$0xff]
        %v1281 = vld [vmem:[%s178 + $0x20a8] sm:$0xff]
        %v1282 = vld [vmem:[%s178 + $0x20b0] sm:$0xff]
        %v1283 = vld [vmem:[%s178 + $0x20b8] sm:$0xff]
        %v1284 = vld [vmem:[%s178 + $0x20c0] sm:$0xff]
        %v1285 = vld [vmem:[%s178 + $0x20c8] sm:$0xff]
        %v1286 = vld [vmem:[%s178 + $0x20d0] sm:$0xff]
        %v1287 = vld [vmem:[%s178 + $0x20d8] sm:$0xff]
        %v1288 = vld [vmem:[%s178 + $0x20e0] sm:$0xff]
        %v1289 = vld [vmem:[%s178 + $0x20e8] sm:$0xff]
        %v1290 = vld [vmem:[%s178 + $0x20f0] sm:$0xff]
        %v1291 = vld [vmem:[%s178 + $0x20f8] sm:$0xff]
        %v1292 = vld [vmem:[%s178 + $0x2100] sm:$0xff]
        %v1293 = vld [vmem:[%s178 + $0x2108] sm:$0xff]
        %v1294 = vld [vmem:[%s178 + $0x2110] sm:$0xff]
        %v1295 = vld [vmem:[%s178 + $0x2118] sm:$0xff]
        %v1296 = vld [vmem:[%s178 + $0x2120] sm:$0xff]
        %v1297 = vld [vmem:[%s178 + $0x2128] sm:$0xff]
        %v1298 = vld [vmem:[%s178 + $0x2130] sm:$0xff]
        %v1299 = vld [vmem:[%s178 + $0x2138] sm:$0xff]
        %v1300 = vld [vmem:[%s178 + $0x2140] sm:$0xff]
        %v1301 = vld [vmem:[%s178 + $0x2148] sm:$0xff]
        %v1302 = vld [vmem:[%s178 + $0x2150] sm:$0xff]
        %v1303 = vld [vmem:[%s178 + $0x2158] sm:$0xff]
        %v1304 = vld [vmem:[%s178 + $0x2160] sm:$0xff]
        %v1305 = vld [vmem:[%s178 + $0x2168] sm:$0xff]
        %v1306 = vld [vmem:[%s178 + $0x2170] sm:$0xff]
        %v1307 = vld [vmem:[%s178 + $0x2178] sm:$0xff]
        %v1308 = vld [vmem:[%s178 + $0x2180] sm:$0xff]
        %v1309 = vld [vmem:[%s178 + $0x2188] sm:$0xff]
        %v1310 = vld [vmem:[%s178 + $0x2190] sm:$0xff]
        %v1311 = vld [vmem:[%s178 + $0x2198] sm:$0xff]
        %v1312 = vld [vmem:[%s178 + $0x21a0] sm:$0xff]
        %v1313 = vld [vmem:[%s178 + $0x21a8] sm:$0xff]
        %v1314 = vld [vmem:[%s178 + $0x21b0] sm:$0xff]
        %v1315 = vld [vmem:[%s178 + $0x21b8] sm:$0xff]
        %v1316 = vld [vmem:[%s178 + $0x21c0] sm:$0xff]
        %v1317 = vld [vmem:[%s178 + $0x21c8] sm:$0xff]
        %v1318 = vld [vmem:[%s178 + $0x21d0] sm:$0xff]
        %v1319 = vld [vmem:[%s178 + $0x21d8] sm:$0xff]
        %v1320 = vld [vmem:[%s178 + $0x21e0] sm:$0xff]
        %v1321 = vld [vmem:[%s178 + $0x21e8] sm:$0xff]
        %v1322 = vld [vmem:[%s178 + $0x21f0] sm:$0xff]
        %v1323 = vld [vmem:[%s178 + $0x21f8] sm:$0xff]
        %v1324 = vld [vmem:[%s178 + $0x2200] sm:$0xff]
        %v1325 = vld [vmem:[%s178 + $0x2208] sm:$0xff]
        %v1326 = vld [vmem:[%s178 + $0x2210] sm:$0xff]
        %v1327 = vld [vmem:[%s178 + $0x2218] sm:$0xff]
        %v1328 = vld [vmem:[%s178 + $0x2220] sm:$0xff]
        %v1329 = vld [vmem:[%s178 + $0x2228] sm:$0xff]
        %v1330 = vld [vmem:[%s178 + $0x2230] sm:$0xff]
        %v1331 = vld [vmem:[%s178 + $0x2238] sm:$0xff]
        %v1332 = vld [vmem:[%s178 + $0x2240] sm:$0xff]
        %v1333 = vld [vmem:[%s178 + $0x2248] sm:$0xff]
        %v1334 = vld [vmem:[%s178 + $0x2250] sm:$0xff]
        %v1335 = vld [vmem:[%s178 + $0x2258] sm:$0xff]
        %v1336 = vld [vmem:[%s178 + $0x2260] sm:$0xff]
        %v1337 = vld [vmem:[%s178 + $0x2268] sm:$0xff]
        %v1338 = vld [vmem:[%s178 + $0x2270] sm:$0xff]
        %v1339 = vld [vmem:[%s178 + $0x2278] sm:$0xff]
        %v1340 = vld [vmem:[%s178 + $0x2280] sm:$0xff]
        %v1341 = vld [vmem:[%s178 + $0x2288] sm:$0xff]
        %v1342 = vld [vmem:[%s178 + $0x2290] sm:$0xff]
        %v1343 = vld [vmem:[%s178 + $0x2298] sm:$0xff]
        %v1344 = vld [vmem:[%s178 + $0x22a0] sm:$0xff]
        %v1345 = vld [vmem:[%s178 + $0x22a8] sm:$0xff]
        %v1346 = vld [vmem:[%s178 + $0x22b0] sm:$0xff]
        %v1347 = vld [vmem:[%s178 + $0x22b8] sm:$0xff]
        %v1348 = vld [vmem:[%s178 + $0x22c0] sm:$0xff]
        %v1349 = vld [vmem:[%s178 + $0x22c8] sm:$0xff]
        %v1350 = vld [vmem:[%s178 + $0x22d0] sm:$0xff]
        %v1351 = vld [vmem:[%s178 + $0x22d8] sm:$0xff]
        %v1352 = vld [vmem:[%s178 + $0x22e0] sm:$0xff]
        %v1353 = vld [vmem:[%s178 + $0x22e8] sm:$0xff]
        %v1354 = vld [vmem:[%s178 + $0x22f0] sm:$0xff]
        %v1355 = vld [vmem:[%s178 + $0x22f8] sm:$0xff]
        %v1356 = vld [vmem:[%s178 + $0x2300] sm:$0xff]
        %v1357 = vld [vmem:[%s178 + $0x2308] sm:$0xff]
        %v1358 = vld [vmem:[%s178 + $0x2310] sm:$0xff]
        %v1359 = vld [vmem:[%s178 + $0x2318] sm:$0xff]
        %v1360 = vld [vmem:[%s178 + $0x2320] sm:$0xff]
        %v1361 = vld [vmem:[%s178 + $0x2328] sm:$0xff]
        %v1362 = vld [vmem:[%s178 + $0x2330] sm:$0xff]
        %v1363 = vld [vmem:[%s178 + $0x2338] sm:$0xff]
        %v1364 = vld [vmem:[%s178 + $0x2340] sm:$0xff]
        %v1365 = vld [vmem:[%s178 + $0x2348] sm:$0xff]
        %v1366 = vld [vmem:[%s178 + $0x2350] sm:$0xff]
        %v1367 = vld [vmem:[%s178 + $0x2358] sm:$0xff]
        %v1368 = vld [vmem:[%s178 + $0x2360] sm:$0xff]
        %v1369 = vld [vmem:[%s178 + $0x2368] sm:$0xff]
        %v1370 = vld [vmem:[%s178 + $0x2370] sm:$0xff]
        %v1371 = vld [vmem:[%s178 + $0x2378] sm:$0xff]
        %v1372 = vld [vmem:[%s178 + $0x2380] sm:$0xff]
        %v1373 = vld [vmem:[%s178 + $0x2388] sm:$0xff]
        %v1374 = vld [vmem:[%s178 + $0x2390] sm:$0xff]
        %v1375 = vld [vmem:[%s178 + $0x2398] sm:$0xff]
        %v1376 = vld [vmem:[%s178 + $0x23a0] sm:$0xff]
        %v1377 = vld [vmem:[%s178 + $0x23a8] sm:$0xff]
        %v1378 = vld [vmem:[%s178 + $0x23b0] sm:$0xff]
        %v1379 = vld [vmem:[%s178 + $0x23b8] sm:$0xff]
        %v1380 = vld [vmem:[%s178 + $0x23c0] sm:$0xff]
        %v1381 = vld [vmem:[%s178 + $0x23c8] sm:$0xff]
        %v1382 = vld [vmem:[%s178 + $0x23d0] sm:$0xff]
        %v1383 = vld [vmem:[%s178 + $0x23d8] sm:$0xff]
        %v1384 = vld [vmem:[%s178 + $0x23e0] sm:$0xff]
        %v1385 = vld [vmem:[%s178 + $0x23e8] sm:$0xff]
        %v1386 = vld [vmem:[%s178 + $0x23f0] sm:$0xff]
        %v1387 = vld [vmem:[%s178 + $0x23f8] sm:$0xff]
        %v1388 = vld [vmem:[%s178 + $0x2400] sm:$0xff]
        %v1389 = vld [vmem:[%s178 + $0x2408] sm:$0xff]
        %v1390 = vld [vmem:[%s178 + $0x2410] sm:$0xff]
        %v1391 = vld [vmem:[%s178 + $0x2418] sm:$0xff]
        %v1392 = vld [vmem:[%s178 + $0x2420] sm:$0xff]
        %v1393 = vld [vmem:[%s178 + $0x2428] sm:$0xff]
        %v1394 = vld [vmem:[%s178 + $0x2430] sm:$0xff]
        %v1395 = vld [vmem:[%s178 + $0x2438] sm:$0xff]
        %v1396 = vld [vmem:[%s178 + $0x2440] sm:$0xff]
        %v1397 = vld [vmem:[%s178 + $0x2448] sm:$0xff]
        %v1398 = vld [vmem:[%s178 + $0x2450] sm:$0xff]
        %v1399 = vld [vmem:[%s178 + $0x2458] sm:$0xff]
        %v1400 = vld [vmem:[%s178 + $0x2460] sm:$0xff]
        %v1401 = vld [vmem:[%s178 + $0x2468] sm:$0xff]
        %v1402 = vld [vmem:[%s178 + $0x2470] sm:$0xff]
        %v1403 = vld [vmem:[%s178 + $0x2478] sm:$0xff]
        %v1404 = vld [vmem:[%s178 + $0x2480] sm:$0xff]
        %v1405 = vld [vmem:[%s178 + $0x2488] sm:$0xff]
        %v1406 = vld [vmem:[%s178 + $0x2490] sm:$0xff]
        %v1407 = vld [vmem:[%s178 + $0x2498] sm:$0xff]
        %v1408 = vld [vmem:[%s178 + $0x24a0] sm:$0xff]
        %v1409 = vld [vmem:[%s178 + $0x24a8] sm:$0xff]
        %v1410 = vld [vmem:[%s178 + $0x24b0] sm:$0xff]
        %v1411 = vld [vmem:[%s178 + $0x24b8] sm:$0xff]
        %v1412 = vld [vmem:[%s178 + $0x24c0] sm:$0xff]
        %v1413 = vld [vmem:[%s178 + $0x24c8] sm:$0xff]
        %v1414 = vld [vmem:[%s178 + $0x24d0] sm:$0xff]
        %v1415 = vld [vmem:[%s178 + $0x24d8] sm:$0xff]
        %v1416 = vld [vmem:[%s178 + $0x24e0] sm:$0xff]
        %v1417 = vld [vmem:[%s178 + $0x24e8] sm:$0xff]
        %v1418 = vld [vmem:[%s178 + $0x24f0] sm:$0xff]
        %v1419 = vld [vmem:[%s178 + $0x24f8] sm:$0xff]
        %v1420 = vld [vmem:[%s178 + $0x2500] sm:$0xff]
        %v1421 = vld [vmem:[%s178 + $0x2508] sm:$0xff]
        %v1422 = vld [vmem:[%s178 + $0x2510] sm:$0xff]
        %v1423 = vld [vmem:[%s178 + $0x2518] sm:$0xff]
        %v1424 = vld [vmem:[%s178 + $0x2520] sm:$0xff]
        %v1425 = vld [vmem:[%s178 + $0x2528] sm:$0xff]
        %v1426 = vld [vmem:[%s178 + $0x2530] sm:$0xff]
        %v1427 = vld [vmem:[%s178 + $0x2538] sm:$0xff]
        %v1428 = vld [vmem:[%s178 + $0x2540] sm:$0xff]
        %v1429 = vld [vmem:[%s178 + $0x2548] sm:$0xff]
        %v1430 = vld [vmem:[%s178 + $0x2550] sm:$0xff]
        %v1431 = vld [vmem:[%s178 + $0x2558] sm:$0xff]
        %v1432 = vld [vmem:[%s178 + $0x2560] sm:$0xff]
        %v1433 = vld [vmem:[%s178 + $0x2568] sm:$0xff]
        %v1434 = vld [vmem:[%s178 + $0x2570] sm:$0xff]
        %v1435 = vld [vmem:[%s178 + $0x2578] sm:$0xff]
        %v1436 = vld [vmem:[%s178 + $0x2580] sm:$0xff]
        %v1437 = vld [vmem:[%s178 + $0x2588] sm:$0xff]
        %v1438 = vld [vmem:[%s178 + $0x2590] sm:$0xff]
        %v1439 = vld [vmem:[%s178 + $0x2598] sm:$0xff]
        %v1440 = vld [vmem:[%s178 + $0x25a0] sm:$0xff]
        %v1441 = vld [vmem:[%s178 + $0x25a8] sm:$0xff]
        %v1442 = vld [vmem:[%s178 + $0x25b0] sm:$0xff]
        %v1443 = vld [vmem:[%s178 + $0x25b8] sm:$0xff]
        %v1444 = vld [vmem:[%s178 + $0x25c0] sm:$0xff]
        %v1445 = vld [vmem:[%s178 + $0x25c8] sm:$0xff]
        %v1446 = vld [vmem:[%s178 + $0x25d0] sm:$0xff]
        %v1447 = vld [vmem:[%s178 + $0x25d8] sm:$0xff]
        %v1448 = vld [vmem:[%s178 + $0x25e0] sm:$0xff]
        %v1449 = vld [vmem:[%s178 + $0x25e8] sm:$0xff]
        %v1450 = vld [vmem:[%s178 + $0x25f0] sm:$0xff]
        %v1451 = vld [vmem:[%s178 + $0x25f8] sm:$0xff]
        %v1452 = vld [vmem:[%s178 + $0x2600] sm:$0xff]
        %v1453 = vld [vmem:[%s178 + $0x2608] sm:$0xff]
        %v1454 = vld [vmem:[%s178 + $0x2610] sm:$0xff]
        %v1455 = vld [vmem:[%s178 + $0x2618] sm:$0xff]
        %v1456 = vld [vmem:[%s178 + $0x2620] sm:$0xff]
        %v1457 = vld [vmem:[%s178 + $0x2628] sm:$0xff]
        %v1458 = vld [vmem:[%s178 + $0x2630] sm:$0xff]
        %v1459 = vld [vmem:[%s178 + $0x2638] sm:$0xff]
        %v1460 = vld [vmem:[%s178 + $0x2640] sm:$0xff]
        %v1461 = vld [vmem:[%s178 + $0x2648] sm:$0xff]
        %v1462 = vld [vmem:[%s178 + $0x2650] sm:$0xff]
        %v1463 = vld [vmem:[%s178 + $0x2658] sm:$0xff]
        %v1464 = vld [vmem:[%s178 + $0x2660] sm:$0xff]
        %v1465 = vld [vmem:[%s178 + $0x2668] sm:$0xff]
        %v1466 = vld [vmem:[%s178 + $0x2670] sm:$0xff]
        %v1467 = vld [vmem:[%s178 + $0x2678] sm:$0xff]
        %v1468 = vld [vmem:[%s178 + $0x2680] sm:$0xff]
        %v1469 = vld [vmem:[%s178 + $0x2688] sm:$0xff]
        %v1470 = vld [vmem:[%s178 + $0x2690] sm:$0xff]
        %v1471 = vld [vmem:[%s178 + $0x2698] sm:$0xff]
        %v1472 = vld [vmem:[%s178 + $0x26a0] sm:$0xff]
        %v1473 = vld [vmem:[%s178 + $0x26a8] sm:$0xff]
        %v1474 = vld [vmem:[%s178 + $0x26b0] sm:$0xff]
        %v1475 = vld [vmem:[%s178 + $0x26b8] sm:$0xff]
        %v1476 = vld [vmem:[%s178 + $0x26c0] sm:$0xff]
        %v1477 = vld [vmem:[%s178 + $0x26c8] sm:$0xff]
        %v1478 = vld [vmem:[%s178 + $0x26d0] sm:$0xff]
        %v1479 = vld [vmem:[%s178 + $0x26d8] sm:$0xff]
        %v1480 = vld [vmem:[%s178 + $0x26e0] sm:$0xff]
        %v1481 = vld [vmem:[%s178 + $0x26e8] sm:$0xff]
        %v1482 = vld [vmem:[%s178 + $0x26f0] sm:$0xff]
        %v1483 = vld [vmem:[%s178 + $0x26f8] sm:$0xff]
        %v1484 = vld [vmem:[%s178 + $0x2700] sm:$0xff]
        %v1485 = vld [vmem:[%s178 + $0x2708] sm:$0xff]
        %v1486 = vld [vmem:[%s178 + $0x2710] sm:$0xff]
        %v1487 = vld [vmem:[%s178 + $0x2718] sm:$0xff]
        %v1488 = vld [vmem:[%s178 + $0x2720] sm:$0xff]
        %v1489 = vld [vmem:[%s178 + $0x2728] sm:$0xff]
        %v1490 = vld [vmem:[%s178 + $0x2730] sm:$0xff]
        %v1491 = vld [vmem:[%s178 + $0x2738] sm:$0xff]
        %v1492 = vld [vmem:[%s178 + $0x2740] sm:$0xff]
        %v1493 = vld [vmem:[%s178 + $0x2748] sm:$0xff]
        %v1494 = vld [vmem:[%s178 + $0x2750] sm:$0xff]
        %v1495 = vld [vmem:[%s178 + $0x2758] sm:$0xff]
        %v1496 = vld [vmem:[%s178 + $0x2760] sm:$0xff]
        %v1497 = vld [vmem:[%s178 + $0x2768] sm:$0xff]
        %v1498 = vld [vmem:[%s178 + $0x2770] sm:$0xff]
        %v1499 = vld [vmem:[%s178 + $0x2778] sm:$0xff]
        %v1500 = vld [vmem:[%s178 + $0x2780] sm:$0xff]
        %v1501 = vld [vmem:[%s178 + $0x2788] sm:$0xff]
        %v1502 = vld [vmem:[%s178 + $0x2790] sm:$0xff]
        %v1503 = vld [vmem:[%s178 + $0x2798] sm:$0xff]
        %v1504 = vld [vmem:[%s178 + $0x27a0] sm:$0xff]
        %v1505 = vld [vmem:[%s178 + $0x27a8] sm:$0xff]
        %v1506 = vld [vmem:[%s178 + $0x27b0] sm:$0xff]
        %v1507 = vld [vmem:[%s178 + $0x27b8] sm:$0xff]
        %v1508 = vld [vmem:[%s178 + $0x27c0] sm:$0xff]
        %v1509 = vld [vmem:[%s178 + $0x27c8] sm:$0xff]
        %v1510 = vld [vmem:[%s178 + $0x27d0] sm:$0xff]
        %v1511 = vld [vmem:[%s178 + $0x27d8] sm:$0xff]
        %v1512 = vld [vmem:[%s178 + $0x27e0] sm:$0xff]
        %v1513 = vld [vmem:[%s178 + $0x27e8] sm:$0xff]
        %v1514 = vld [vmem:[%s178 + $0x27f0] sm:$0xff]
        %v1515 = vld [vmem:[%s178 + $0x27f8] sm:$0xff]
        %v1516 = vld [vmem:[%s178 + $0x2800] sm:$0xff]
        %v1517 = vld [vmem:[%s178 + $0x2808] sm:$0xff]
        %v1518 = vld [vmem:[%s178 + $0x2810] sm:$0xff]
        %v1519 = vld [vmem:[%s178 + $0x2818] sm:$0xff]
        %v1520 = vld [vmem:[%s178 + $0x2820] sm:$0xff]
        %v1521 = vld [vmem:[%s178 + $0x2828] sm:$0xff]
        %v1522 = vld [vmem:[%s178 + $0x2830] sm:$0xff]
        %v1523 = vld [vmem:[%s178 + $0x2838] sm:$0xff]
        %v1524 = vld [vmem:[%s178 + $0x2840] sm:$0xff]
        %v1525 = vld [vmem:[%s178 + $0x2848] sm:$0xff]
        %v1526 = vld [vmem:[%s178 + $0x2850] sm:$0xff]
        %v1527 = vld [vmem:[%s178 + $0x2858] sm:$0xff]
        %v1528 = vld [vmem:[%s178 + $0x2860] sm:$0xff]
        %v1529 = vld [vmem:[%s178 + $0x2868] sm:$0xff]
        %v1530 = vld [vmem:[%s178 + $0x2870] sm:$0xff]
        %v1531 = vld [vmem:[%s178 + $0x2878] sm:$0xff]
        %v1532 = vld [vmem:[%s178 + $0x2880] sm:$0xff]
        %v1533 = vld [vmem:[%s178 + $0x2888] sm:$0xff]
        %v1534 = vld [vmem:[%s178 + $0x2890] sm:$0xff]
        %v1535 = vld [vmem:[%s178 + $0x2898] sm:$0xff]
        %v1536 = vld [vmem:[%s178 + $0x28a0] sm:$0xff]
        %v1537 = vld [vmem:[%s178 + $0x28a8] sm:$0xff]
        %v1538 = vld [vmem:[%s178 + $0x28b0] sm:$0xff]
        %v1539 = vld [vmem:[%s178 + $0x28b8] sm:$0xff]
        %v1540 = vld [vmem:[%s178 + $0x28c0] sm:$0xff]
        %v1541 = vld [vmem:[%s178 + $0x28c8] sm:$0xff]
        %v1542 = vld [vmem:[%s178 + $0x28d0] sm:$0xff]
        %v1543 = vld [vmem:[%s178 + $0x28d8] sm:$0xff]
        %v1544 = vld [vmem:[%s178 + $0x28e0] sm:$0xff]
        %v1545 = vld [vmem:[%s178 + $0x28e8] sm:$0xff]
        %v1546 = vld [vmem:[%s178 + $0x28f0] sm:$0xff]
        %v1547 = vld [vmem:[%s178 + $0x28f8] sm:$0xff]
        %v1548 = vld [vmem:[%s178 + $0x2900] sm:$0xff]
        %v1549 = vld [vmem:[%s178 + $0x2908] sm:$0xff]
        %v1550 = vld [vmem:[%s178 + $0x2910] sm:$0xff]
        %v1551 = vld [vmem:[%s178 + $0x2918] sm:$0xff]
        %v1552 = vld [vmem:[%s178 + $0x2920] sm:$0xff]
        %v1553 = vld [vmem:[%s178 + $0x2928] sm:$0xff]
        %v1554 = vld [vmem:[%s178 + $0x2930] sm:$0xff]
        %v1555 = vld [vmem:[%s178 + $0x2938] sm:$0xff]
        %v1556 = vld [vmem:[%s178 + $0x2940] sm:$0xff]
        %v1557 = vld [vmem:[%s178 + $0x2948] sm:$0xff]
        %v1558 = vld [vmem:[%s178 + $0x2950] sm:$0xff]
        %v1559 = vld [vmem:[%s178 + $0x2958] sm:$0xff]
        %v1560 = vld [vmem:[%s178 + $0x2960] sm:$0xff]
        %v1561 = vld [vmem:[%s178 + $0x2968] sm:$0xff]
        %v1562 = vld [vmem:[%s178 + $0x2970] sm:$0xff]
        %v1563 = vld [vmem:[%s178 + $0x2978] sm:$0xff]
        %v1564 = vld [vmem:[%s178 + $0x2980] sm:$0xff]
        %v1565 = vld [vmem:[%s178 + $0x2988] sm:$0xff]
        %v1566 = vld [vmem:[%s178 + $0x2990] sm:$0xff]
        %v1567 = vld [vmem:[%s178 + $0x2998] sm:$0xff]
        %v1568 = vld [vmem:[%s178 + $0x29a0] sm:$0xff]
        %v1569 = vld [vmem:[%s178 + $0x29a8] sm:$0xff]
        %v1570 = vld [vmem:[%s178 + $0x29b0] sm:$0xff]
        %v1571 = vld [vmem:[%s178 + $0x29b8] sm:$0xff]
        %v1572 = vld [vmem:[%s178 + $0x29c0] sm:$0xff]
        %v1573 = vld [vmem:[%s178 + $0x29c8] sm:$0xff]
        %v1574 = vld [vmem:[%s178 + $0x29d0] sm:$0xff]
        %v1575 = vld [vmem:[%s178 + $0x29d8] sm:$0xff]
        %v1576 = vld [vmem:[%s178 + $0x29e0] sm:$0xff]
        %v1577 = vld [vmem:[%s178 + $0x29e8] sm:$0xff]
        %v1578 = vld [vmem:[%s178 + $0x29f0] sm:$0xff]
        %v1579 = vld [vmem:[%s178 + $0x29f8] sm:$0xff]
        %v1580 = vld [vmem:[%s178 + $0x2a00] sm:$0xff]
        %v1581 = vld [vmem:[%s178 + $0x2a08] sm:$0xff]
        %v1582 = vld [vmem:[%s178 + $0x2a10] sm:$0xff]
        %v1583 = vld [vmem:[%s178 + $0x2a18] sm:$0xff]
        %v1584 = vld [vmem:[%s178 + $0x2a20] sm:$0xff]
        %v1585 = vld [vmem:[%s178 + $0x2a28] sm:$0xff]
        %v1586 = vld [vmem:[%s178 + $0x2a30] sm:$0xff]
        %v1587 = vld [vmem:[%s178 + $0x2a38] sm:$0xff]
        %v1588 = vld [vmem:[%s178 + $0x2a40] sm:$0xff]
        %v1589 = vld [vmem:[%s178 + $0x2a48] sm:$0xff]
        %v1590 = vld [vmem:[%s178 + $0x2a50] sm:$0xff]
        %v1591 = vld [vmem:[%s178 + $0x2a58] sm:$0xff]
        %v1592 = vld [vmem:[%s178 + $0x2a60] sm:$0xff]
        %v1593 = vld [vmem:[%s178 + $0x2a68] sm:$0xff]
        %v1594 = vld [vmem:[%s178 + $0x2a70] sm:$0xff]
        %v1595 = vld [vmem:[%s178 + $0x2a78] sm:$0xff]
        %v1596 = vld [vmem:[%s178 + $0x2a80] sm:$0xff]
        %v1597 = vld [vmem:[%s178 + $0x2a88] sm:$0xff]
        %v1598 = vld [vmem:[%s178 + $0x2a90] sm:$0xff]
        %v1599 = vld [vmem:[%s178 + $0x2a98] sm:$0xff]
        %v1600 = vld [vmem:[%s178 + $0x2aa0] sm:$0xff]
        %v1601 = vld [vmem:[%s178 + $0x2aa8] sm:$0xff]
        %v1602 = vld [vmem:[%s178 + $0x2ab0] sm:$0xff]
        %v1603 = vld [vmem:[%s178 + $0x2ab8] sm:$0xff]
        %v1604 = vld [vmem:[%s178 + $0x2ac0] sm:$0xff]
        %v1605 = vld [vmem:[%s178 + $0x2ac8] sm:$0xff]
        %v1606 = vld [vmem:[%s178 + $0x2ad0] sm:$0xff]
        %v1607 = vld [vmem:[%s178 + $0x2ad8] sm:$0xff]
        %v1608 = vld [vmem:[%s178 + $0x2ae0] sm:$0xff]
        %v1609 = vld [vmem:[%s178 + $0x2ae8] sm:$0xff]
        %v1610 = vld [vmem:[%s178 + $0x2af0] sm:$0xff]
        %v1611 = vld [vmem:[%s178 + $0x2af8] sm:$0xff]
        %v1612 = vld [vmem:[%s178 + $0x2b00] sm:$0xff]
        %v1613 = vld [vmem:[%s178 + $0x2b08] sm:$0xff]
        %v1614 = vld [vmem:[%s178 + $0x2b10] sm:$0xff]
        %v1615 = vld [vmem:[%s178 + $0x2b18] sm:$0xff]
        %v1616 = vld [vmem:[%s178 + $0x2b20] sm:$0xff]
        %v1617 = vld [vmem:[%s178 + $0x2b28] sm:$0xff]
        %v1618 = vld [vmem:[%s178 + $0x2b30] sm:$0xff]
        %v1619 = vld [vmem:[%s178 + $0x2b38] sm:$0xff]
        %v1620 = vld [vmem:[%s178 + $0x2b40] sm:$0xff]
        %v1621 = vld [vmem:[%s178 + $0x2b48] sm:$0xff]
        %v1622 = vld [vmem:[%s178 + $0x2b50] sm:$0xff]
        %v1623 = vld [vmem:[%s178 + $0x2b58] sm:$0xff]
        %v1624 = vld [vmem:[%s178 + $0x2b60] sm:$0xff]
        %v1625 = vld [vmem:[%s178 + $0x2b68] sm:$0xff]
        %v1626 = vld [vmem:[%s178 + $0x2b70] sm:$0xff]
        %v1627 = vld [vmem:[%s178 + $0x2b78] sm:$0xff]
        %v1628 = vld [vmem:[%s178 + $0x2b80] sm:$0xff]
        %v1629 = vld [vmem:[%s178 + $0x2b88] sm:$0xff]
        %v1630 = vld [vmem:[%s178 + $0x2b90] sm:$0xff]
        %v1631 = vld [vmem:[%s178 + $0x2b98] sm:$0xff]
        %v1632 = vld [vmem:[%s178 + $0x2ba0] sm:$0xff]
        %v1633 = vld [vmem:[%s178 + $0x2ba8] sm:$0xff]
        %v1634 = vld [vmem:[%s178 + $0x2bb0] sm:$0xff]
        %v1635 = vld [vmem:[%s178 + $0x2bb8] sm:$0xff]
        %v1636 = vld [vmem:[%s178 + $0x2bc0] sm:$0xff]
        %v1637 = vld [vmem:[%s178 + $0x2bc8] sm:$0xff]
        %v1638 = vld [vmem:[%s178 + $0x2bd0] sm:$0xff]
        %v1639 = vld [vmem:[%s178 + $0x2bd8] sm:$0xff]
        %v1640 = vld [vmem:[%s178 + $0x2be0] sm:$0xff]
        %v1641 = vld [vmem:[%s178 + $0x2be8] sm:$0xff]
        %v1642 = vld [vmem:[%s178 + $0x2bf0] sm:$0xff]
        %v1643 = vld [vmem:[%s178 + $0x2bf8] sm:$0xff]
        %v1644 = vld [vmem:[%s178 + $0x2c00] sm:$0xff]
        %v1645 = vld [vmem:[%s178 + $0x2c08] sm:$0xff]
        %v1646 = vld [vmem:[%s178 + $0x2c10] sm:$0xff]
        %v1647 = vld [vmem:[%s178 + $0x2c18] sm:$0xff]
        %v1648 = vld [vmem:[%s178 + $0x2c20] sm:$0xff]
        %v1649 = vld [vmem:[%s178 + $0x2c28] sm:$0xff]
        %v1650 = vld [vmem:[%s178 + $0x2c30] sm:$0xff]
        %v1651 = vld [vmem:[%s178 + $0x2c38] sm:$0xff]
        %v1652 = vld [vmem:[%s178 + $0x2c40] sm:$0xff]
        %v1653 = vld [vmem:[%s178 + $0x2c48] sm:$0xff]
        %v1654 = vld [vmem:[%s178 + $0x2c50] sm:$0xff]
        %v1655 = vld [vmem:[%s178 + $0x2c58] sm:$0xff]
        %v1656 = vld [vmem:[%s178 + $0x2c60] sm:$0xff]
        %v1657 = vld [vmem:[%s178 + $0x2c68] sm:$0xff]
        %v1658 = vld [vmem:[%s178 + $0x2c70] sm:$0xff]
        %v1659 = vld [vmem:[%s178 + $0x2c78] sm:$0xff]
        %v1660 = vld [vmem:[%s178 + $0x2c80] sm:$0xff]
        %v1661 = vld [vmem:[%s178 + $0x2c88] sm:$0xff]
        %v1662 = vld [vmem:[%s178 + $0x2c90] sm:$0xff]
        %v1663 = vld [vmem:[%s178 + $0x2c98] sm:$0xff]
        %v1664 = vld [vmem:[%s178 + $0x2ca0] sm:$0xff]
        %v1665 = vld [vmem:[%s178 + $0x2ca8] sm:$0xff]
        %v1666 = vld [vmem:[%s178 + $0x2cb0] sm:$0xff]
        %v1667 = vld [vmem:[%s178 + $0x2cb8] sm:$0xff]
        %v1668 = vld [vmem:[%s178 + $0x2cc0] sm:$0xff]
        %v1669 = vld [vmem:[%s178 + $0x2cc8] sm:$0xff]
        %v1670 = vld [vmem:[%s178 + $0x2cd0] sm:$0xff]
        %v1671 = vld [vmem:[%s178 + $0x2cd8] sm:$0xff]
        %v1672 = vld [vmem:[%s178 + $0x2ce0] sm:$0xff]
        %v1673 = vld [vmem:[%s178 + $0x2ce8] sm:$0xff]
        %v1674 = vld [vmem:[%s178 + $0x2cf0] sm:$0xff]
        %v1675 = vld [vmem:[%s178 + $0x2cf8] sm:$0xff]
        %v1676 = vld [vmem:[%s178 + $0x2d00] sm:$0xff]
        %v1677 = vld [vmem:[%s178 + $0x2d08] sm:$0xff]
        %v1678 = vld [vmem:[%s178 + $0x2d10] sm:$0xff]
        %v1679 = vld [vmem:[%s178 + $0x2d18] sm:$0xff]
        %v1680 = vld [vmem:[%s178 + $0x2d20] sm:$0xff]
        %v1681 = vld [vmem:[%s178 + $0x2d28] sm:$0xff]
        %v1682 = vld [vmem:[%s178 + $0x2d30] sm:$0xff]
        %v1683 = vld [vmem:[%s178 + $0x2d38] sm:$0xff]
        %v1684 = vld [vmem:[%s178 + $0x2d40] sm:$0xff]
        %v1685 = vld [vmem:[%s178 + $0x2d48] sm:$0xff]
        %v1686 = vld [vmem:[%s178 + $0x2d50] sm:$0xff]
        %v1687 = vld [vmem:[%s178 + $0x2d58] sm:$0xff]
        %v1688 = vld [vmem:[%s178 + $0x2d60] sm:$0xff]
        %v1689 = vld [vmem:[%s178 + $0x2d68] sm:$0xff]
        %v1690 = vld [vmem:[%s178 + $0x2d70] sm:$0xff]
        %v1691 = vld [vmem:[%s178 + $0x2d78] sm:$0xff]
        %v1692 = vld [vmem:[%s178 + $0x2d80] sm:$0xff]
        %v1693 = vld [vmem:[%s178 + $0x2d88] sm:$0xff]
        %v1694 = vld [vmem:[%s178 + $0x2d90] sm:$0xff]
        %v1695 = vld [vmem:[%s178 + $0x2d98] sm:$0xff]
        %v1696 = vld [vmem:[%s178 + $0x2da0] sm:$0xff]
        %v1697 = vld [vmem:[%s178 + $0x2da8] sm:$0xff]
        %v1698 = vld [vmem:[%s178 + $0x2db0] sm:$0xff]
        %v1699 = vld [vmem:[%s178 + $0x2db8] sm:$0xff]
        %v1700 = vld [vmem:[%s178 + $0x2dc0] sm:$0xff]
        %v1701 = vld [vmem:[%s178 + $0x2dc8] sm:$0xff]
        %v1702 = vld [vmem:[%s178 + $0x2dd0] sm:$0xff]
        %v1703 = vld [vmem:[%s178 + $0x2dd8] sm:$0xff]
        %v1704 = vld [vmem:[%s178 + $0x2de0] sm:$0xff]
        %v1705 = vld [vmem:[%s178 + $0x2de8] sm:$0xff]
        %v1706 = vld [vmem:[%s178 + $0x2df0] sm:$0xff]
        %v1707 = vld [vmem:[%s178 + $0x2df8] sm:$0xff]
        %v1708 = vld [vmem:[%s178 + $0x2e00] sm:$0xff]
        %v1709 = vld [vmem:[%s178 + $0x2e08] sm:$0xff]
        %v1710 = vld [vmem:[%s178 + $0x2e10] sm:$0xff]
        %v1711 = vld [vmem:[%s178 + $0x2e18] sm:$0xff]
        %v1712 = vld [vmem:[%s178 + $0x2e20] sm:$0xff]
        %v1713 = vld [vmem:[%s178 + $0x2e28] sm:$0xff]
        %v1714 = vld [vmem:[%s178 + $0x2e30] sm:$0xff]
        %v1715 = vld [vmem:[%s178 + $0x2e38] sm:$0xff]
        %v1716 = vld [vmem:[%s178 + $0x2e40] sm:$0xff]
        %v1717 = vld [vmem:[%s178 + $0x2e48] sm:$0xff]
        %v1718 = vld [vmem:[%s178 + $0x2e50] sm:$0xff]
        %v1719 = vld [vmem:[%s178 + $0x2e58] sm:$0xff]
        %v1720 = vld [vmem:[%s178 + $0x2e60] sm:$0xff]
        %v1721 = vld [vmem:[%s178 + $0x2e68] sm:$0xff]
        %v1722 = vld [vmem:[%s178 + $0x2e70] sm:$0xff]
        %v1723 = vld [vmem:[%s178 + $0x2e78] sm:$0xff]
        %v1724 = vld [vmem:[%s178 + $0x2e80] sm:$0xff]
        %v1725 = vld [vmem:[%s178 + $0x2e88] sm:$0xff]
        %v1726 = vld [vmem:[%s178 + $0x2e90] sm:$0xff]
        %v1727 = vld [vmem:[%s178 + $0x2e98] sm:$0xff]
        %v1728 = vld [vmem:[%s178 + $0x2ea0] sm:$0xff]
        %v1729 = vld [vmem:[%s178 + $0x2ea8] sm:$0xff]
        %v1730 = vld [vmem:[%s178 + $0x2eb0] sm:$0xff]
        %v1731 = vld [vmem:[%s178 + $0x2eb8] sm:$0xff]
        %v1732 = vld [vmem:[%s178 + $0x2ec0] sm:$0xff]
        %v1733 = vld [vmem:[%s178 + $0x2ec8] sm:$0xff]
        %v1734 = vld [vmem:[%s178 + $0x2ed0] sm:$0xff]
        %v1735 = vld [vmem:[%s178 + $0x2ed8] sm:$0xff]
        %v1736 = vld [vmem:[%s178 + $0x2ee0] sm:$0xff]
        %v1737 = vld [vmem:[%s178 + $0x2ee8] sm:$0xff]
        %v1738 = vld [vmem:[%s178 + $0x2ef0] sm:$0xff]
        %v1739 = vld [vmem:[%s178 + $0x2ef8] sm:$0xff]
        %v1740 = vld [vmem:[%s178 + $0x2f00] sm:$0xff]
        %v1741 = vld [vmem:[%s178 + $0x2f08] sm:$0xff]
        %v1742 = vld [vmem:[%s178 + $0x2f10] sm:$0xff]
        %v1743 = vld [vmem:[%s178 + $0x2f18] sm:$0xff]
        %v1744 = vld [vmem:[%s178 + $0x2f20] sm:$0xff]
        %v1745 = vld [vmem:[%s178 + $0x2f28] sm:$0xff]
        %v1746 = vld [vmem:[%s178 + $0x2f30] sm:$0xff]
        %v1747 = vld [vmem:[%s178 + $0x2f38] sm:$0xff]
        %v1748 = vld [vmem:[%s178 + $0x2f40] sm:$0xff]
        %v1749 = vld [vmem:[%s178 + $0x2f48] sm:$0xff]
        %v1750 = vld [vmem:[%s178 + $0x2f50] sm:$0xff]
        %v1751 = vld [vmem:[%s178 + $0x2f58] sm:$0xff]
        %v1752 = vld [vmem:[%s178 + $0x2f60] sm:$0xff]
        %v1753 = vld [vmem:[%s178 + $0x2f68] sm:$0xff]
        %v1754 = vld [vmem:[%s178 + $0x2f70] sm:$0xff]
        %v1755 = vld [vmem:[%s178 + $0x2f78] sm:$0xff]
        %v1756 = vld [vmem:[%s178 + $0x2f80] sm:$0xff]
        %v1757 = vld [vmem:[%s178 + $0x2f88] sm:$0xff]
        %v1758 = vld [vmem:[%s178 + $0x2f90] sm:$0xff]
        %v1759 = vld [vmem:[%s178 + $0x2f98] sm:$0xff]
        %v1760 = vld [vmem:[%s178 + $0x2fa0] sm:$0xff]
        %v1761 = vld [vmem:[%s178 + $0x2fa8] sm:$0xff]
        %v1762 = vld [vmem:[%s178 + $0x2fb0] sm:$0xff]
        %v1763 = vld [vmem:[%s178 + $0x2fb8] sm:$0xff]
        %v1764 = vld [vmem:[%s178 + $0x2fc0] sm:$0xff]
        %v1765 = vld [vmem:[%s178 + $0x2fc8] sm:$0xff]
        %v1766 = vld [vmem:[%s178 + $0x2fd0] sm:$0xff]
        %v1767 = vld [vmem:[%s178 + $0x2fd8] sm:$0xff]
        %v1768 = vld [vmem:[%s178 + $0x2fe0] sm:$0xff]
        %v1769 = vld [vmem:[%s178 + $0x2fe8] sm:$0xff]
        %v1770 = vld [vmem:[%s178 + $0x2ff0] sm:$0xff]
        %v1771 = vld [vmem:[%s178 + $0x2ff8] sm:$0xff]
        %v1778 = vcombine.high %v230, %v230
        %v1780 = vunpack.c.l.s4 1966171168
        %v1781 = vunpack.c.0.s8 %v1780
        %v1782 = vlaneseq
        %v1783 = vshrl.u32 %v1782, 7
        %v1784 = vsub.s32 %v1781, %v1783
        %v1785 = vrot.slane %v230, %v1784
        %v1787 = vunpack.c.l.s4 1966171168
        %v1788 = vunpack.c.0.s8 %v1787
        %v1789 = vlaneseq
        %v1790 = vshrl.u32 %v1789, 7
        %v1791 = vsub.s32 %v1788, %v1790
        %v1792 = vrot.slane %v1778, %v1791
        %v1793 = vcombine.high %v1785, %v1785
        %v1794 = vcombine.high %v1792, %v1792
        %v1796 = vunpack.c.l.s4 1966171168
        %v1797 = vunpack.c.0.s8 %v1796
        %v1798 = vlaneseq
        %v1799 = vshrl.u32 %v1798, 7
        %v1800 = vsub.s32 %v1797, %v1799
        %v1801 = vrot.slane %v1785, %v1800
        %v1803 = vunpack.c.l.s4 1966171168
        %v1804 = vunpack.c.0.s8 %v1803
        %v1805 = vlaneseq
        %v1806 = vshrl.u32 %v1805, 7
        %v1807 = vsub.s32 %v1804, %v1806
        %v1808 = vrot.slane %v1792, %v1807
        %v1810 = vunpack.c.l.s4 1966171168
        %v1811 = vunpack.c.0.s8 %v1810
        %v1812 = vlaneseq
        %v1813 = vshrl.u32 %v1812, 7
        %v1814 = vsub.s32 %v1811, %v1813
        %v1815 = vrot.slane %v1793, %v1814
        %v1817 = vunpack.c.l.s4 1966171168
        %v1818 = vunpack.c.0.s8 %v1817
        %v1819 = vlaneseq
        %v1820 = vshrl.u32 %v1819, 7
        %v1821 = vsub.s32 %v1818, %v1820
        %v1822 = vrot.slane %v1794, %v1821
        %v1823 = vcombine.high %v1801, %v1801
        %v1824 = vcombine.high %v1808, %v1808
        %v1825 = vcombine.high %v1815, %v1815
        %v1826 = vcombine.high %v1822, %v1822
        %v1827 = vcombine.high %v231, %v231
        %v1829 = vunpack.c.l.s4 1966171168
        %v1830 = vunpack.c.0.s8 %v1829
        %v1831 = vlaneseq
        %v1832 = vshrl.u32 %v1831, 7
        %v1833 = vsub.s32 %v1830, %v1832
        %v1834 = vrot.slane %v231, %v1833
        %v1836 = vunpack.c.l.s4 1966171168
        %v1837 = vunpack.c.0.s8 %v1836
        %v1838 = vlaneseq
        %v1839 = vshrl.u32 %v1838, 7
        %v1840 = vsub.s32 %v1837, %v1839
        %v1841 = vrot.slane %v1827, %v1840
        %v1842 = vcombine.high %v1834, %v1834
        %v1843 = vcombine.high %v1841, %v1841
        %v1845 = vunpack.c.l.s4 1966171168
        %v1846 = vunpack.c.0.s8 %v1845
        %v1847 = vlaneseq
        %v1848 = vshrl.u32 %v1847, 7
        %v1849 = vsub.s32 %v1846, %v1848
        %v1850 = vrot.slane %v1834, %v1849
        %v1852 = vunpack.c.l.s4 1966171168
        %v1853 = vunpack.c.0.s8 %v1852
        %v1854 = vlaneseq
        %v1855 = vshrl.u32 %v1854, 7
        %v1856 = vsub.s32 %v1853, %v1855
        %v1857 = vrot.slane %v1841, %v1856
        %v1859 = vunpack.c.l.s4 1966171168
        %v1860 = vunpack.c.0.s8 %v1859
        %v1861 = vlaneseq
        %v1862 = vshrl.u32 %v1861, 7
        %v1863 = vsub.s32 %v1860, %v1862
        %v1864 = vrot.slane %v1842, %v1863
        %v1866 = vunpack.c.l.s4 1966171168
        %v1867 = vunpack.c.0.s8 %v1866
        %v1868 = vlaneseq
        %v1869 = vshrl.u32 %v1868, 7
        %v1870 = vsub.s32 %v1867, %v1869
        %v1871 = vrot.slane %v1843, %v1870
        %v1872 = vcombine.high %v1850, %v1850
        %v1873 = vcombine.high %v1857, %v1857
        %v1874 = vcombine.high %v1864, %v1864
        %v1875 = vcombine.high %v1871, %v1871
        %v1876 = vcombine.high %v232, %v232
        %v1878 = vunpack.c.l.s4 1966171168
        %v1879 = vunpack.c.0.s8 %v1878
        %v1880 = vlaneseq
        %v1881 = vshrl.u32 %v1880, 7
        %v1882 = vsub.s32 %v1879, %v1881
        %v1883 = vrot.slane %v232, %v1882
        %v1885 = vunpack.c.l.s4 1966171168
        %v1886 = vunpack.c.0.s8 %v1885
        %v1887 = vlaneseq
        %v1888 = vshrl.u32 %v1887, 7
        %v1889 = vsub.s32 %v1886, %v1888
        %v1890 = vrot.slane %v1876, %v1889
        %v1891 = vcombine.high %v1883, %v1883
        %v1892 = vcombine.high %v1890, %v1890
        %v1894 = vunpack.c.l.s4 1966171168
        %v1895 = vunpack.c.0.s8 %v1894
        %v1896 = vlaneseq
        %v1897 = vshrl.u32 %v1896, 7
        %v1898 = vsub.s32 %v1895, %v1897
        %v1899 = vrot.slane %v1883, %v1898
        %v1901 = vunpack.c.l.s4 1966171168
        %v1902 = vunpack.c.0.s8 %v1901
        %v1903 = vlaneseq
        %v1904 = vshrl.u32 %v1903, 7
        %v1905 = vsub.s32 %v1902, %v1904
        %v1906 = vrot.slane %v1890, %v1905
        %v1908 = vunpack.c.l.s4 1966171168
        %v1909 = vunpack.c.0.s8 %v1908
        %v1910 = vlaneseq
        %v1911 = vshrl.u32 %v1910, 7
        %v1912 = vsub.s32 %v1909, %v1911
        %v1913 = vrot.slane %v1891, %v1912
        %v1915 = vunpack.c.l.s4 1966171168
        %v1916 = vunpack.c.0.s8 %v1915
        %v1917 = vlaneseq
        %v1918 = vshrl.u32 %v1917, 7
        %v1919 = vsub.s32 %v1916, %v1918
        %v1920 = vrot.slane %v1892, %v1919
        %v1921 = vcombine.high %v1899, %v1899
        %v1922 = vcombine.high %v1906, %v1906
        %v1923 = vcombine.high %v1913, %v1913
        %v1924 = vcombine.high %v1920, %v1920
        %v1925 = vcombine.high %v233, %v233
        %v1927 = vunpack.c.l.s4 1966171168
        %v1928 = vunpack.c.0.s8 %v1927
        %v1929 = vlaneseq
        %v1930 = vshrl.u32 %v1929, 7
        %v1931 = vsub.s32 %v1928, %v1930
        %v1932 = vrot.slane %v233, %v1931
        %v1934 = vunpack.c.l.s4 1966171168
        %v1935 = vunpack.c.0.s8 %v1934
        %v1936 = vlaneseq
        %v1937 = vshrl.u32 %v1936, 7
        %v1938 = vsub.s32 %v1935, %v1937
        %v1939 = vrot.slane %v1925, %v1938
        %v1940 = vcombine.high %v1932, %v1932
        %v1941 = vcombine.high %v1939, %v1939
        %v1943 = vunpack.c.l.s4 1966171168
        %v1944 = vunpack.c.0.s8 %v1943
        %v1945 = vlaneseq
        %v1946 = vshrl.u32 %v1945, 7
        %v1947 = vsub.s32 %v1944, %v1946
        %v1948 = vrot.slane %v1932, %v1947
        %v1950 = vunpack.c.l.s4 1966171168
        %v1951 = vunpack.c.0.s8 %v1950
        %v1952 = vlaneseq
        %v1953 = vshrl.u32 %v1952, 7
        %v1954 = vsub.s32 %v1951, %v1953
        %v1955 = vrot.slane %v1939, %v1954
        %v1957 = vunpack.c.l.s4 1966171168
        %v1958 = vunpack.c.0.s8 %v1957
        %v1959 = vlaneseq
        %v1960 = vshrl.u32 %v1959, 7
        %v1961 = vsub.s32 %v1958, %v1960
        %v1962 = vrot.slane %v1940, %v1961
        %v1964 = vunpack.c.l.s4 1966171168
        %v1965 = vunpack.c.0.s8 %v1964
        %v1966 = vlaneseq
        %v1967 = vshrl.u32 %v1966, 7
        %v1968 = vsub.s32 %v1965, %v1967
        %v1969 = vrot.slane %v1941, %v1968
        %v1970 = vcombine.high %v1948, %v1948
        %v1971 = vcombine.high %v1955, %v1955
        %v1972 = vcombine.high %v1962, %v1962
        %v1973 = vcombine.high %v1969, %v1969
        %v1974 = vcombine.high %v234, %v234
        %v1976 = vunpack.c.l.s4 1966171168
        %v1977 = vunpack.c.0.s8 %v1976
        %v1978 = vlaneseq
        %v1979 = vshrl.u32 %v1978, 7
        %v1980 = vsub.s32 %v1977, %v1979
        %v1981 = vrot.slane %v234, %v1980
        %v1983 = vunpack.c.l.s4 1966171168
        %v1984 = vunpack.c.0.s8 %v1983
        %v1985 = vlaneseq
        %v1986 = vshrl.u32 %v1985, 7
        %v1987 = vsub.s32 %v1984, %v1986
        %v1988 = vrot.slane %v1974, %v1987
        %v1989 = vcombine.high %v1981, %v1981
        %v1990 = vcombine.high %v1988, %v1988
        %v1992 = vunpack.c.l.s4 1966171168
        %v1993 = vunpack.c.0.s8 %v1992
        %v1994 = vlaneseq
        %v1995 = vshrl.u32 %v1994, 7
        %v1996 = vsub.s32 %v1993, %v1995
        %v1997 = vrot.slane %v1981, %v1996
        %v1999 = vunpack.c.l.s4 1966171168
        %v2000 = vunpack.c.0.s8 %v1999
        %v2001 = vlaneseq
        %v2002 = vshrl.u32 %v2001, 7
        %v2003 = vsub.s32 %v2000, %v2002
        %v2004 = vrot.slane %v1988, %v2003
        %v2006 = vunpack.c.l.s4 1966171168
        %v2007 = vunpack.c.0.s8 %v2006
        %v2008 = vlaneseq
        %v2009 = vshrl.u32 %v2008, 7
        %v2010 = vsub.s32 %v2007, %v2009
        %v2011 = vrot.slane %v1989, %v2010
        %v2013 = vunpack.c.l.s4 1966171168
        %v2014 = vunpack.c.0.s8 %v2013
        %v2015 = vlaneseq
        %v2016 = vshrl.u32 %v2015, 7
        %v2017 = vsub.s32 %v2014, %v2016
        %v2018 = vrot.slane %v1990, %v2017
        %v2019 = vcombine.high %v1997, %v1997
        %v2020 = vcombine.high %v2004, %v2004
        %v2021 = vcombine.high %v2011, %v2011
        %v2022 = vcombine.high %v2018, %v2018
        %v2023 = vcombine.high %v235, %v235
        %v2025 = vunpack.c.l.s4 1966171168
        %v2026 = vunpack.c.0.s8 %v2025
        %v2027 = vlaneseq
        %v2028 = vshrl.u32 %v2027, 7
        %v2029 = vsub.s32 %v2026, %v2028
        %v2030 = vrot.slane %v235, %v2029
        %v2032 = vunpack.c.l.s4 1966171168
        %v2033 = vunpack.c.0.s8 %v2032
        %v2034 = vlaneseq
        %v2035 = vshrl.u32 %v2034, 7
        %v2036 = vsub.s32 %v2033, %v2035
        %v2037 = vrot.slane %v2023, %v2036
        %v2038 = vcombine.high %v2030, %v2030
        %v2039 = vcombine.high %v2037, %v2037
        %v2041 = vunpack.c.l.s4 1966171168
        %v2042 = vunpack.c.0.s8 %v2041
        %v2043 = vlaneseq
        %v2044 = vshrl.u32 %v2043, 7
        %v2045 = vsub.s32 %v2042, %v2044
        %v2046 = vrot.slane %v2030, %v2045
        %v2048 = vunpack.c.l.s4 1966171168
        %v2049 = vunpack.c.0.s8 %v2048
        %v2050 = vlaneseq
        %v2051 = vshrl.u32 %v2050, 7
        %v2052 = vsub.s32 %v2049, %v2051
        %v2053 = vrot.slane %v2037, %v2052
        %v2055 = vunpack.c.l.s4 1966171168
        %v2056 = vunpack.c.0.s8 %v2055
        %v2057 = vlaneseq
        %v2058 = vshrl.u32 %v2057, 7
        %v2059 = vsub.s32 %v2056, %v2058
        %v2060 = vrot.slane %v2038, %v2059
        %v2062 = vunpack.c.l.s4 1966171168
        %v2063 = vunpack.c.0.s8 %v2062
        %v2064 = vlaneseq
        %v2065 = vshrl.u32 %v2064, 7
        %v2066 = vsub.s32 %v2063, %v2065
        %v2067 = vrot.slane %v2039, %v2066
        %v2068 = vcombine.high %v2046, %v2046
        %v2069 = vcombine.high %v2053, %v2053
        %v2070 = vcombine.high %v2060, %v2060
        %v2071 = vcombine.high %v2067, %v2067
        %v3656 = vunpack.c.l.b16 %v236
        %v3657 = vunpack.c.h.b16 %v236
        %v3658 = vunpack.c.l.b16 %v237
        %v3659 = vunpack.c.h.b16 %v237
        %v3660 = vunpack.c.l.b16 %v238
        %v3661 = vunpack.c.h.b16 %v238
        %v3662 = vunpack.c.l.b16 %v239
        %v3663 = vunpack.c.h.b16 %v239
        %v3664 = vunpack.c.l.b16 %v240
        %v3665 = vunpack.c.h.b16 %v240
        %v3666 = vunpack.c.l.b16 %v241
        %v3667 = vunpack.c.h.b16 %v241
        %v3668 = vunpack.c.l.b16 %v242
        %v3669 = vunpack.c.h.b16 %v242
        %v3670 = vunpack.c.l.b16 %v243
        %v3671 = vunpack.c.h.b16 %v243
        %v3672 = vunpack.c.l.b16 %v244
        %v3673 = vunpack.c.h.b16 %v244
        %v3674 = vunpack.c.l.b16 %v245
        %v3675 = vunpack.c.h.b16 %v245
        %v3676 = vunpack.c.l.b16 %v246
        %v3677 = vunpack.c.h.b16 %v246
        %v3678 = vunpack.c.l.b16 %v247
        %v3679 = vunpack.c.h.b16 %v247
        %v3680 = vunpack.c.l.b16 %v248
        %v3681 = vunpack.c.h.b16 %v248
        %v3682 = vunpack.c.l.b16 %v249
        %v3683 = vunpack.c.h.b16 %v249
        %v3684 = vunpack.c.l.b16 %v250
        %v3685 = vunpack.c.h.b16 %v250
        %v3686 = vunpack.c.l.b16 %v251
        %v3687 = vunpack.c.h.b16 %v251
        %v3688 = vunpack.c.l.b16 %v252
        %v3689 = vunpack.c.h.b16 %v252
        %v3690 = vunpack.c.l.b16 %v253
        %v3691 = vunpack.c.h.b16 %v253
        %v3692 = vunpack.c.l.b16 %v254
        %v3693 = vunpack.c.h.b16 %v254
        %v3694 = vunpack.c.l.b16 %v255
        %v3695 = vunpack.c.h.b16 %v255
        %v3696 = vunpack.c.l.b16 %v256
        %v3697 = vunpack.c.h.b16 %v256
        %v3698 = vunpack.c.l.b16 %v257
        %v3699 = vunpack.c.h.b16 %v257
        %v3700 = vunpack.c.l.b16 %v258
        %v3701 = vunpack.c.h.b16 %v258
        %v3702 = vunpack.c.l.b16 %v259
        %v3703 = vunpack.c.h.b16 %v259
        %v3704 = vunpack.c.l.b16 %v260
        %v3705 = vunpack.c.h.b16 %v260
        %v3706 = vunpack.c.l.b16 %v261
        %v3707 = vunpack.c.h.b16 %v261
        %v3708 = vunpack.c.l.b16 %v262
        %v3709 = vunpack.c.h.b16 %v262
        %v3710 = vunpack.c.l.b16 %v263
        %v3711 = vunpack.c.h.b16 %v263
        %v3712 = vunpack.c.l.b16 %v264
        %v3713 = vunpack.c.h.b16 %v264
        %v3714 = vunpack.c.l.b16 %v265
        %v3715 = vunpack.c.h.b16 %v265
        %v3716 = vunpack.c.l.b16 %v266
        %v3717 = vunpack.c.h.b16 %v266
        %v3718 = vunpack.c.l.b16 %v267
        %v3719 = vunpack.c.h.b16 %v267
        %v3720 = vunpack.c.l.b16 %v268
        %v3721 = vunpack.c.h.b16 %v268
        %v3722 = vunpack.c.l.b16 %v269
        %v3723 = vunpack.c.h.b16 %v269
        %v3724 = vunpack.c.l.b16 %v270
        %v3725 = vunpack.c.h.b16 %v270
        %v3726 = vunpack.c.l.b16 %v271
        %v3727 = vunpack.c.h.b16 %v271
        %v3728 = vunpack.c.l.b16 %v272
        %v3729 = vunpack.c.h.b16 %v272
        %v3730 = vunpack.c.l.b16 %v273
        %v3731 = vunpack.c.h.b16 %v273
        %v3732 = vunpack.c.l.b16 %v274
        %v3733 = vunpack.c.h.b16 %v274
        %v3734 = vunpack.c.l.b16 %v275
        %v3735 = vunpack.c.h.b16 %v275
        %v3736 = vunpack.c.l.b16 %v276
        %v3737 = vunpack.c.h.b16 %v276
        %v3738 = vunpack.c.l.b16 %v277
        %v3739 = vunpack.c.h.b16 %v277
        %v3740 = vunpack.c.l.b16 %v278
        %v3741 = vunpack.c.h.b16 %v278
        %v3742 = vunpack.c.l.b16 %v279
        %v3743 = vunpack.c.h.b16 %v279
        %v3744 = vunpack.c.l.b16 %v280
        %v3745 = vunpack.c.h.b16 %v280
        %v3746 = vunpack.c.l.b16 %v281
        %v3747 = vunpack.c.h.b16 %v281
        %v3748 = vunpack.c.l.b16 %v282
        %v3749 = vunpack.c.h.b16 %v282
        %v3750 = vunpack.c.l.b16 %v283
        %v3751 = vunpack.c.h.b16 %v283
        %v3752 = vunpack.c.l.b16 %v284
        %v3753 = vunpack.c.h.b16 %v284
        %v3754 = vunpack.c.l.b16 %v285
        %v3755 = vunpack.c.h.b16 %v285
        %v3756 = vunpack.c.l.b16 %v286
        %v3757 = vunpack.c.h.b16 %v286
        %v3758 = vunpack.c.l.b16 %v287
        %v3759 = vunpack.c.h.b16 %v287
        %v3760 = vunpack.c.l.b16 %v288
        %v3761 = vunpack.c.h.b16 %v288
        %v3762 = vunpack.c.l.b16 %v289
        %v3763 = vunpack.c.h.b16 %v289
        %v3764 = vunpack.c.l.b16 %v290
        %v3765 = vunpack.c.h.b16 %v290
        %v3766 = vunpack.c.l.b16 %v291
        %v3767 = vunpack.c.h.b16 %v291
        %v3768 = vunpack.c.l.b16 %v292
        %v3769 = vunpack.c.h.b16 %v292
        %v3770 = vunpack.c.l.b16 %v293
        %v3771 = vunpack.c.h.b16 %v293
        %v3772 = vunpack.c.l.b16 %v294
        %v3773 = vunpack.c.h.b16 %v294
        %v3774 = vunpack.c.l.b16 %v295
        %v3775 = vunpack.c.h.b16 %v295
        %v3776 = vunpack.c.l.b16 %v296
        %v3777 = vunpack.c.h.b16 %v296
        %v3778 = vunpack.c.l.b16 %v297
        %v3779 = vunpack.c.h.b16 %v297
        %v3780 = vunpack.c.l.b16 %v298
        %v3781 = vunpack.c.h.b16 %v298
        %v3782 = vunpack.c.l.b16 %v299
        %v3783 = vunpack.c.h.b16 %v299
        %v3784 = vunpack.c.l.b16 %v300
        %v3785 = vunpack.c.h.b16 %v300
        %v3786 = vunpack.c.l.b16 %v301
        %v3787 = vunpack.c.h.b16 %v301
        %v3788 = vunpack.c.l.b16 %v302
        %v3789 = vunpack.c.h.b16 %v302
        %v3790 = vunpack.c.l.b16 %v303
        %v3791 = vunpack.c.h.b16 %v303
        %v3792 = vunpack.c.l.b16 %v304
        %v3793 = vunpack.c.h.b16 %v304
        %v3794 = vunpack.c.l.b16 %v305
        %v3795 = vunpack.c.h.b16 %v305
        %v3796 = vunpack.c.l.b16 %v306
        %v3797 = vunpack.c.h.b16 %v306
        %v3798 = vunpack.c.l.b16 %v307
        %v3799 = vunpack.c.h.b16 %v307
        %v3800 = vunpack.c.l.b16 %v308
        %v3801 = vunpack.c.h.b16 %v308
        %v3802 = vunpack.c.l.b16 %v309
        %v3803 = vunpack.c.h.b16 %v309
        %v3804 = vunpack.c.l.b16 %v310
        %v3805 = vunpack.c.h.b16 %v310
        %v3806 = vunpack.c.l.b16 %v311
        %v3807 = vunpack.c.h.b16 %v311
        %v3808 = vunpack.c.l.b16 %v312
        %v3809 = vunpack.c.h.b16 %v312
        %v3810 = vunpack.c.l.b16 %v313
        %v3811 = vunpack.c.h.b16 %v313
        %v3812 = vunpack.c.l.b16 %v314
        %v3813 = vunpack.c.h.b16 %v314
        %v3814 = vunpack.c.l.b16 %v315
        %v3815 = vunpack.c.h.b16 %v315
        %v3816 = vunpack.c.l.b16 %v316
        %v3817 = vunpack.c.h.b16 %v316
        %v3818 = vunpack.c.l.b16 %v317
        %v3819 = vunpack.c.h.b16 %v317
        %v3820 = vunpack.c.l.b16 %v318
        %v3821 = vunpack.c.h.b16 %v318
        %v3822 = vunpack.c.l.b16 %v319
        %v3823 = vunpack.c.h.b16 %v319
        %v3824 = vunpack.c.l.b16 %v320
        %v3825 = vunpack.c.h.b16 %v320
        %v3826 = vunpack.c.l.b16 %v321
        %v3827 = vunpack.c.h.b16 %v321
        %v3828 = vunpack.c.l.b16 %v322
        %v3829 = vunpack.c.h.b16 %v322
        %v3830 = vunpack.c.l.b16 %v323
        %v3831 = vunpack.c.h.b16 %v323
        %v3832 = vunpack.c.l.b16 %v324
        %v3833 = vunpack.c.h.b16 %v324
        %v3834 = vunpack.c.l.b16 %v325
        %v3835 = vunpack.c.h.b16 %v325
        %v3836 = vunpack.c.l.b16 %v326
        %v3837 = vunpack.c.h.b16 %v326
        %v3838 = vunpack.c.l.b16 %v327
        %v3839 = vunpack.c.h.b16 %v327
        %v3840 = vunpack.c.l.b16 %v328
        %v3841 = vunpack.c.h.b16 %v328
        %v3842 = vunpack.c.l.b16 %v329
        %v3843 = vunpack.c.h.b16 %v329
        %v3844 = vunpack.c.l.b16 %v330
        %v3845 = vunpack.c.h.b16 %v330
        %v3846 = vunpack.c.l.b16 %v331
        %v3847 = vunpack.c.h.b16 %v331
        %v3848 = vunpack.c.l.b16 %v332
        %v3849 = vunpack.c.h.b16 %v332
        %v3850 = vunpack.c.l.b16 %v333
        %v3851 = vunpack.c.h.b16 %v333
        %v3852 = vunpack.c.l.b16 %v334
        %v3853 = vunpack.c.h.b16 %v334
        %v3854 = vunpack.c.l.b16 %v335
        %v3855 = vunpack.c.h.b16 %v335
        %v3856 = vunpack.c.l.b16 %v336
        %v3857 = vunpack.c.h.b16 %v336
        %v3858 = vunpack.c.l.b16 %v337
        %v3859 = vunpack.c.h.b16 %v337
        %v3860 = vunpack.c.l.b16 %v338
        %v3861 = vunpack.c.h.b16 %v338
        %v3862 = vunpack.c.l.b16 %v339
        %v3863 = vunpack.c.h.b16 %v339
        %v3864 = vunpack.c.l.b16 %v340
        %v3865 = vunpack.c.h.b16 %v340
        %v3866 = vunpack.c.l.b16 %v341
        %v3867 = vunpack.c.h.b16 %v341
        %v3868 = vunpack.c.l.b16 %v342
        %v3869 = vunpack.c.h.b16 %v342
        %v3870 = vunpack.c.l.b16 %v343
        %v3871 = vunpack.c.h.b16 %v343
        %v3872 = vunpack.c.l.b16 %v344
        %v3873 = vunpack.c.h.b16 %v344
        %v3874 = vunpack.c.l.b16 %v345
        %v3875 = vunpack.c.h.b16 %v345
        %v3876 = vunpack.c.l.b16 %v346
        %v3877 = vunpack.c.h.b16 %v346
        %v3878 = vunpack.c.l.b16 %v347
        %v3879 = vunpack.c.h.b16 %v347
        %v3880 = vunpack.c.l.b16 %v348
        %v3881 = vunpack.c.h.b16 %v348
        %v3882 = vunpack.c.l.b16 %v349
        %v3883 = vunpack.c.h.b16 %v349
        %v3884 = vunpack.c.l.b16 %v350
        %v3885 = vunpack.c.h.b16 %v350
        %v3886 = vunpack.c.l.b16 %v351
        %v3887 = vunpack.c.h.b16 %v351
        %v3888 = vunpack.c.l.b16 %v352
        %v3889 = vunpack.c.h.b16 %v352
        %v3890 = vunpack.c.l.b16 %v353
        %v3891 = vunpack.c.h.b16 %v353
        %v3892 = vunpack.c.l.b16 %v354
        %v3893 = vunpack.c.h.b16 %v354
        %v3894 = vunpack.c.l.b16 %v355
        %v3895 = vunpack.c.h.b16 %v355
        %v3896 = vunpack.c.l.b16 %v356
        %v3897 = vunpack.c.h.b16 %v356
        %v3898 = vunpack.c.l.b16 %v357
        %v3899 = vunpack.c.h.b16 %v357
        %v3900 = vunpack.c.l.b16 %v358
        %v3901 = vunpack.c.h.b16 %v358
        %v3902 = vunpack.c.l.b16 %v359
        %v3903 = vunpack.c.h.b16 %v359
        %v3904 = vunpack.c.l.b16 %v360
        %v3905 = vunpack.c.h.b16 %v360
        %v3906 = vunpack.c.l.b16 %v361
        %v3907 = vunpack.c.h.b16 %v361
        %v3908 = vunpack.c.l.b16 %v362
        %v3909 = vunpack.c.h.b16 %v362
        %v3910 = vunpack.c.l.b16 %v363
        %v3911 = vunpack.c.h.b16 %v363
        %v3912 = vunpack.c.l.b16 %v364
        %v3913 = vunpack.c.h.b16 %v364
        %v3914 = vunpack.c.l.b16 %v365
        %v3915 = vunpack.c.h.b16 %v365
        %v3916 = vunpack.c.l.b16 %v366
        %v3917 = vunpack.c.h.b16 %v366
        %v3918 = vunpack.c.l.b16 %v367
        %v3919 = vunpack.c.h.b16 %v367
        %v3920 = vunpack.c.l.b16 %v368
        %v3921 = vunpack.c.h.b16 %v368
        %v3922 = vunpack.c.l.b16 %v369
        %v3923 = vunpack.c.h.b16 %v369
        %v3924 = vunpack.c.l.b16 %v370
        %v3925 = vunpack.c.h.b16 %v370
        %v3926 = vunpack.c.l.b16 %v371
        %v3927 = vunpack.c.h.b16 %v371
        %v3928 = vunpack.c.l.b16 %v372
        %v3929 = vunpack.c.h.b16 %v372
        %v3930 = vunpack.c.l.b16 %v373
        %v3931 = vunpack.c.h.b16 %v373
        %v3932 = vunpack.c.l.b16 %v374
        %v3933 = vunpack.c.h.b16 %v374
        %v3934 = vunpack.c.l.b16 %v375
        %v3935 = vunpack.c.h.b16 %v375
        %v3936 = vunpack.c.l.b16 %v376
        %v3937 = vunpack.c.h.b16 %v376
        %v3938 = vunpack.c.l.b16 %v377
        %v3939 = vunpack.c.h.b16 %v377
        %v3940 = vunpack.c.l.b16 %v378
        %v3941 = vunpack.c.h.b16 %v378
        %v3942 = vunpack.c.l.b16 %v379
        %v3943 = vunpack.c.h.b16 %v379
        %v3944 = vunpack.c.l.b16 %v380
        %v3945 = vunpack.c.h.b16 %v380
        %v3946 = vunpack.c.l.b16 %v381
        %v3947 = vunpack.c.h.b16 %v381
        %v3948 = vunpack.c.l.b16 %v382
        %v3949 = vunpack.c.h.b16 %v382
        %v3950 = vunpack.c.l.b16 %v383
        %v3951 = vunpack.c.h.b16 %v383
        %v3952 = vunpack.c.l.b16 %v384
        %v3953 = vunpack.c.h.b16 %v384
        %v3954 = vunpack.c.l.b16 %v385
        %v3955 = vunpack.c.h.b16 %v385
        %v3956 = vunpack.c.l.b16 %v386
        %v3957 = vunpack.c.h.b16 %v386
        %v3958 = vunpack.c.l.b16 %v387
        %v3959 = vunpack.c.h.b16 %v387
        %v3960 = vunpack.c.l.b16 %v388
        %v3961 = vunpack.c.h.b16 %v388
        %v3962 = vunpack.c.l.b16 %v389
        %v3963 = vunpack.c.h.b16 %v389
        %v3964 = vunpack.c.l.b16 %v390
        %v3965 = vunpack.c.h.b16 %v390
        %v3966 = vunpack.c.l.b16 %v391
        %v3967 = vunpack.c.h.b16 %v391
        %v3968 = vunpack.c.l.b16 %v392
        %v3969 = vunpack.c.h.b16 %v392
        %v3970 = vunpack.c.l.b16 %v393
        %v3971 = vunpack.c.h.b16 %v393
        %v3972 = vunpack.c.l.b16 %v394
        %v3973 = vunpack.c.h.b16 %v394
        %v3974 = vunpack.c.l.b16 %v395
        %v3975 = vunpack.c.h.b16 %v395
        %v3976 = vunpack.c.l.b16 %v396
        %v3977 = vunpack.c.h.b16 %v396
        %v3978 = vunpack.c.l.b16 %v397
        %v3979 = vunpack.c.h.b16 %v397
        %v3980 = vunpack.c.l.b16 %v398
        %v3981 = vunpack.c.h.b16 %v398
        %v3982 = vunpack.c.l.b16 %v399
        %v3983 = vunpack.c.h.b16 %v399
        %v3984 = vunpack.c.l.b16 %v400
        %v3985 = vunpack.c.h.b16 %v400
        %v3986 = vunpack.c.l.b16 %v401
        %v3987 = vunpack.c.h.b16 %v401
        %v3988 = vunpack.c.l.b16 %v402
        %v3989 = vunpack.c.h.b16 %v402
        %v3990 = vunpack.c.l.b16 %v403
        %v3991 = vunpack.c.h.b16 %v403
        %v3992 = vunpack.c.l.b16 %v404
        %v3993 = vunpack.c.h.b16 %v404
        %v3994 = vunpack.c.l.b16 %v405
        %v3995 = vunpack.c.h.b16 %v405
        %v3996 = vunpack.c.l.b16 %v406
        %v3997 = vunpack.c.h.b16 %v406
        %v3998 = vunpack.c.l.b16 %v407
        %v3999 = vunpack.c.h.b16 %v407
        %v4000 = vunpack.c.l.b16 %v408
        %v4001 = vunpack.c.h.b16 %v408
        %v4002 = vunpack.c.l.b16 %v409
        %v4003 = vunpack.c.h.b16 %v409
        %v4004 = vunpack.c.l.b16 %v410
        %v4005 = vunpack.c.h.b16 %v410
        %v4006 = vunpack.c.l.b16 %v411
        %v4007 = vunpack.c.h.b16 %v411
        %v4008 = vunpack.c.l.b16 %v412
        %v4009 = vunpack.c.h.b16 %v412
        %v4010 = vunpack.c.l.b16 %v413
        %v4011 = vunpack.c.h.b16 %v413
        %v4012 = vunpack.c.l.b16 %v414
        %v4013 = vunpack.c.h.b16 %v414
        %v4014 = vunpack.c.l.b16 %v415
        %v4015 = vunpack.c.h.b16 %v415
        %v4016 = vunpack.c.l.b16 %v416
        %v4017 = vunpack.c.h.b16 %v416
        %v4018 = vunpack.c.l.b16 %v417
        %v4019 = vunpack.c.h.b16 %v417
        %v4020 = vunpack.c.l.b16 %v418
        %v4021 = vunpack.c.h.b16 %v418
        %v4022 = vunpack.c.l.b16 %v419
        %v4023 = vunpack.c.h.b16 %v419
        %v4024 = vunpack.c.l.b16 %v420
        %v4025 = vunpack.c.h.b16 %v420
        %v4026 = vunpack.c.l.b16 %v421
        %v4027 = vunpack.c.h.b16 %v421
        %v4028 = vunpack.c.l.b16 %v422
        %v4029 = vunpack.c.h.b16 %v422
        %v4030 = vunpack.c.l.b16 %v423
        %v4031 = vunpack.c.h.b16 %v423
        %v4032 = vunpack.c.l.b16 %v424
        %v4033 = vunpack.c.h.b16 %v424
        %v4034 = vunpack.c.l.b16 %v425
        %v4035 = vunpack.c.h.b16 %v425
        %v4036 = vunpack.c.l.b16 %v426
        %v4037 = vunpack.c.h.b16 %v426
        %v4038 = vunpack.c.l.b16 %v427
        %v4039 = vunpack.c.h.b16 %v427
        %v4040 = vunpack.c.l.b16 %v428
        %v4041 = vunpack.c.h.b16 %v428
        %v4042 = vunpack.c.l.b16 %v429
        %v4043 = vunpack.c.h.b16 %v429
        %v4044 = vunpack.c.l.b16 %v430
        %v4045 = vunpack.c.h.b16 %v430
        %v4046 = vunpack.c.l.b16 %v431
        %v4047 = vunpack.c.h.b16 %v431
        %v4048 = vunpack.c.l.b16 %v432
        %v4049 = vunpack.c.h.b16 %v432
        %v4050 = vunpack.c.l.b16 %v433
        %v4051 = vunpack.c.h.b16 %v433
        %v4052 = vunpack.c.l.b16 %v434
        %v4053 = vunpack.c.h.b16 %v434
        %v4054 = vunpack.c.l.b16 %v435
        %v4055 = vunpack.c.h.b16 %v435
        %v4056 = vunpack.c.l.b16 %v436
        %v4057 = vunpack.c.h.b16 %v436
        %v4058 = vunpack.c.l.b16 %v437
        %v4059 = vunpack.c.h.b16 %v437
        %v4060 = vunpack.c.l.b16 %v438
        %v4061 = vunpack.c.h.b16 %v438
        %v4062 = vunpack.c.l.b16 %v439
        %v4063 = vunpack.c.h.b16 %v439
        %v4064 = vunpack.c.l.b16 %v440
        %v4065 = vunpack.c.h.b16 %v440
        %v4066 = vunpack.c.l.b16 %v441
        %v4067 = vunpack.c.h.b16 %v441
        %v4068 = vunpack.c.l.b16 %v442
        %v4069 = vunpack.c.h.b16 %v442
        %v4070 = vunpack.c.l.b16 %v443
        %v4071 = vunpack.c.h.b16 %v443
        %v4072 = vunpack.c.l.b16 %v444
        %v4073 = vunpack.c.h.b16 %v444
        %v4074 = vunpack.c.l.b16 %v445
        %v4075 = vunpack.c.h.b16 %v445
        %v4076 = vunpack.c.l.b16 %v446
        %v4077 = vunpack.c.h.b16 %v446
        %v4078 = vunpack.c.l.b16 %v447
        %v4079 = vunpack.c.h.b16 %v447
        %v4080 = vunpack.c.l.b16 %v448
        %v4081 = vunpack.c.h.b16 %v448
        %v4082 = vunpack.c.l.b16 %v449
        %v4083 = vunpack.c.h.b16 %v449
        %v4084 = vunpack.c.l.b16 %v450
        %v4085 = vunpack.c.h.b16 %v450
        %v4086 = vunpack.c.l.b16 %v451
        %v4087 = vunpack.c.h.b16 %v451
        %v4088 = vunpack.c.l.b16 %v452
        %v4089 = vunpack.c.h.b16 %v452
        %v4090 = vunpack.c.l.b16 %v453
        %v4091 = vunpack.c.h.b16 %v453
        %v4092 = vunpack.c.l.b16 %v454
        %v4093 = vunpack.c.h.b16 %v454
        %v4094 = vunpack.c.l.b16 %v455
        %v4095 = vunpack.c.h.b16 %v455
        %v4096 = vunpack.c.l.b16 %v456
        %v4097 = vunpack.c.h.b16 %v456
        %v4098 = vunpack.c.l.b16 %v457
        %v4099 = vunpack.c.h.b16 %v457
        %v4100 = vunpack.c.l.b16 %v458
        %v4101 = vunpack.c.h.b16 %v458
        %v4102 = vunpack.c.l.b16 %v459
        %v4103 = vunpack.c.h.b16 %v459
        %v4104 = vunpack.c.l.b16 %v460
        %v4105 = vunpack.c.h.b16 %v460
        %v4106 = vunpack.c.l.b16 %v461
        %v4107 = vunpack.c.h.b16 %v461
        %v4108 = vunpack.c.l.b16 %v462
        %v4109 = vunpack.c.h.b16 %v462
        %v4110 = vunpack.c.l.b16 %v463
        %v4111 = vunpack.c.h.b16 %v463
        %v4112 = vunpack.c.l.b16 %v464
        %v4113 = vunpack.c.h.b16 %v464
        %v4114 = vunpack.c.l.b16 %v465
        %v4115 = vunpack.c.h.b16 %v465
        %v4116 = vunpack.c.l.b16 %v466
        %v4117 = vunpack.c.h.b16 %v466
        %v4118 = vunpack.c.l.b16 %v467
        %v4119 = vunpack.c.h.b16 %v467
        %v4120 = vunpack.c.l.b16 %v468
        %v4121 = vunpack.c.h.b16 %v468
        %v4122 = vunpack.c.l.b16 %v469
        %v4123 = vunpack.c.h.b16 %v469
        %v4124 = vunpack.c.l.b16 %v470
        %v4125 = vunpack.c.h.b16 %v470
        %v4126 = vunpack.c.l.b16 %v471
        %v4127 = vunpack.c.h.b16 %v471
        %v4128 = vunpack.c.l.b16 %v472
        %v4129 = vunpack.c.h.b16 %v472
        %v4130 = vunpack.c.l.b16 %v473
        %v4131 = vunpack.c.h.b16 %v473
        %v4132 = vunpack.c.l.b16 %v474
        %v4133 = vunpack.c.h.b16 %v474
        %v4134 = vunpack.c.l.b16 %v475
        %v4135 = vunpack.c.h.b16 %v475
        %v4136 = vunpack.c.l.b16 %v476
        %v4137 = vunpack.c.h.b16 %v476
        %v4138 = vunpack.c.l.b16 %v477
        %v4139 = vunpack.c.h.b16 %v477
        %v4140 = vunpack.c.l.b16 %v478
        %v4141 = vunpack.c.h.b16 %v478
        %v4142 = vunpack.c.l.b16 %v479
        %v4143 = vunpack.c.h.b16 %v479
        %v4144 = vunpack.c.l.b16 %v480
        %v4145 = vunpack.c.h.b16 %v480
        %v4146 = vunpack.c.l.b16 %v481
        %v4147 = vunpack.c.h.b16 %v481
        %v4148 = vunpack.c.l.b16 %v482
        %v4149 = vunpack.c.h.b16 %v482
        %v4150 = vunpack.c.l.b16 %v483
        %v4151 = vunpack.c.h.b16 %v483
        %v4152 = vunpack.c.l.b16 %v484
        %v4153 = vunpack.c.h.b16 %v484
        %v4154 = vunpack.c.l.b16 %v485
        %v4155 = vunpack.c.h.b16 %v485
        %v4156 = vunpack.c.l.b16 %v486
        %v4157 = vunpack.c.h.b16 %v486
        %v4158 = vunpack.c.l.b16 %v487
        %v4159 = vunpack.c.h.b16 %v487
        %v4160 = vunpack.c.l.b16 %v488
        %v4161 = vunpack.c.h.b16 %v488
        %v4162 = vunpack.c.l.b16 %v489
        %v4163 = vunpack.c.h.b16 %v489
        %v4164 = vunpack.c.l.b16 %v490
        %v4165 = vunpack.c.h.b16 %v490
        %v4166 = vunpack.c.l.b16 %v491
        %v4167 = vunpack.c.h.b16 %v491
        %v4168 = vunpack.c.l.b16 %v492
        %v4169 = vunpack.c.h.b16 %v492
        %v4170 = vunpack.c.l.b16 %v493
        %v4171 = vunpack.c.h.b16 %v493
        %v4172 = vunpack.c.l.b16 %v494
        %v4173 = vunpack.c.h.b16 %v494
        %v4174 = vunpack.c.l.b16 %v495
        %v4175 = vunpack.c.h.b16 %v495
        %v4176 = vunpack.c.l.b16 %v496
        %v4177 = vunpack.c.h.b16 %v496
        %v4178 = vunpack.c.l.b16 %v497
        %v4179 = vunpack.c.h.b16 %v497
        %v4180 = vunpack.c.l.b16 %v498
        %v4181 = vunpack.c.h.b16 %v498
        %v4182 = vunpack.c.l.b16 %v499
        %v4183 = vunpack.c.h.b16 %v499
        %v4184 = vunpack.c.l.b16 %v500
        %v4185 = vunpack.c.h.b16 %v500
        %v4186 = vunpack.c.l.b16 %v501
        %v4187 = vunpack.c.h.b16 %v501
        %v4188 = vunpack.c.l.b16 %v502
        %v4189 = vunpack.c.h.b16 %v502
        %v4190 = vunpack.c.l.b16 %v503
        %v4191 = vunpack.c.h.b16 %v503
        %v4192 = vunpack.c.l.b16 %v504
        %v4193 = vunpack.c.h.b16 %v504
        %v4194 = vunpack.c.l.b16 %v505
        %v4195 = vunpack.c.h.b16 %v505
        %v4196 = vunpack.c.l.b16 %v506
        %v4197 = vunpack.c.h.b16 %v506
        %v4198 = vunpack.c.l.b16 %v507
        %v4199 = vunpack.c.h.b16 %v507
        %v4200 = vunpack.c.l.b16 %v508
        %v4201 = vunpack.c.h.b16 %v508
        %v4202 = vunpack.c.l.b16 %v509
        %v4203 = vunpack.c.h.b16 %v509
        %v4204 = vunpack.c.l.b16 %v510
        %v4205 = vunpack.c.h.b16 %v510
        %v4206 = vunpack.c.l.b16 %v511
        %v4207 = vunpack.c.h.b16 %v511
        %v4208 = vunpack.c.l.b16 %v512
        %v4209 = vunpack.c.h.b16 %v512
        %v4210 = vunpack.c.l.b16 %v513
        %v4211 = vunpack.c.h.b16 %v513
        %v4212 = vunpack.c.l.b16 %v514
        %v4213 = vunpack.c.h.b16 %v514
        %v4214 = vunpack.c.l.b16 %v515
        %v4215 = vunpack.c.h.b16 %v515
        %v4216 = vunpack.c.l.b16 %v516
        %v4217 = vunpack.c.h.b16 %v516
        %v4218 = vunpack.c.l.b16 %v517
        %v4219 = vunpack.c.h.b16 %v517
        %v4220 = vunpack.c.l.b16 %v518
        %v4221 = vunpack.c.h.b16 %v518
        %v4222 = vunpack.c.l.b16 %v519
        %v4223 = vunpack.c.h.b16 %v519
        %v4224 = vunpack.c.l.b16 %v520
        %v4225 = vunpack.c.h.b16 %v520
        %v4226 = vunpack.c.l.b16 %v521
        %v4227 = vunpack.c.h.b16 %v521
        %v4228 = vunpack.c.l.b16 %v522
        %v4229 = vunpack.c.h.b16 %v522
        %v4230 = vunpack.c.l.b16 %v523
        %v4231 = vunpack.c.h.b16 %v523
        %v4232 = vunpack.c.l.b16 %v524
        %v4233 = vunpack.c.h.b16 %v524
        %v4234 = vunpack.c.l.b16 %v525
        %v4235 = vunpack.c.h.b16 %v525
        %v4236 = vunpack.c.l.b16 %v526
        %v4237 = vunpack.c.h.b16 %v526
        %v4238 = vunpack.c.l.b16 %v527
        %v4239 = vunpack.c.h.b16 %v527
        %v4240 = vunpack.c.l.b16 %v528
        %v4241 = vunpack.c.h.b16 %v528
        %v4242 = vunpack.c.l.b16 %v529
        %v4243 = vunpack.c.h.b16 %v529
        %v4244 = vunpack.c.l.b16 %v530
        %v4245 = vunpack.c.h.b16 %v530
        %v4246 = vunpack.c.l.b16 %v531
        %v4247 = vunpack.c.h.b16 %v531
        %v4248 = vunpack.c.l.b16 %v532
        %v4249 = vunpack.c.h.b16 %v532
        %v4250 = vunpack.c.l.b16 %v533
        %v4251 = vunpack.c.h.b16 %v533
        %v4252 = vunpack.c.l.b16 %v534
        %v4253 = vunpack.c.h.b16 %v534
        %v4254 = vunpack.c.l.b16 %v535
        %v4255 = vunpack.c.h.b16 %v535
        %v4256 = vunpack.c.l.b16 %v536
        %v4257 = vunpack.c.h.b16 %v536
        %v4258 = vunpack.c.l.b16 %v537
        %v4259 = vunpack.c.h.b16 %v537
        %v4260 = vunpack.c.l.b16 %v538
        %v4261 = vunpack.c.h.b16 %v538
        %v4262 = vunpack.c.l.b16 %v539
        %v4263 = vunpack.c.h.b16 %v539
        %v4264 = vunpack.c.l.b16 %v540
        %v4265 = vunpack.c.h.b16 %v540
        %v4266 = vunpack.c.l.b16 %v541
        %v4267 = vunpack.c.h.b16 %v541
        %v4268 = vunpack.c.l.b16 %v542
        %v4269 = vunpack.c.h.b16 %v542
        %v4270 = vunpack.c.l.b16 %v543
        %v4271 = vunpack.c.h.b16 %v543
        %v4272 = vunpack.c.l.b16 %v544
        %v4273 = vunpack.c.h.b16 %v544
        %v4274 = vunpack.c.l.b16 %v545
        %v4275 = vunpack.c.h.b16 %v545
        %v4276 = vunpack.c.l.b16 %v546
        %v4277 = vunpack.c.h.b16 %v546
        %v4278 = vunpack.c.l.b16 %v547
        %v4279 = vunpack.c.h.b16 %v547
        %v4280 = vunpack.c.l.b16 %v548
        %v4281 = vunpack.c.h.b16 %v548
        %v4282 = vunpack.c.l.b16 %v549
        %v4283 = vunpack.c.h.b16 %v549
        %v4284 = vunpack.c.l.b16 %v550
        %v4285 = vunpack.c.h.b16 %v550
        %v4286 = vunpack.c.l.b16 %v551
        %v4287 = vunpack.c.h.b16 %v551
        %v4288 = vunpack.c.l.b16 %v552
        %v4289 = vunpack.c.h.b16 %v552
        %v4290 = vunpack.c.l.b16 %v553
        %v4291 = vunpack.c.h.b16 %v553
        %v4292 = vunpack.c.l.b16 %v554
        %v4293 = vunpack.c.h.b16 %v554
        %v4294 = vunpack.c.l.b16 %v555
        %v4295 = vunpack.c.h.b16 %v555
        %v4296 = vunpack.c.l.b16 %v556
        %v4297 = vunpack.c.h.b16 %v556
        %v4298 = vunpack.c.l.b16 %v557
        %v4299 = vunpack.c.h.b16 %v557
        %v4300 = vunpack.c.l.b16 %v558
        %v4301 = vunpack.c.h.b16 %v558
        %v4302 = vunpack.c.l.b16 %v559
        %v4303 = vunpack.c.h.b16 %v559
        %v4304 = vunpack.c.l.b16 %v560
        %v4305 = vunpack.c.h.b16 %v560
        %v4306 = vunpack.c.l.b16 %v561
        %v4307 = vunpack.c.h.b16 %v561
        %v4308 = vunpack.c.l.b16 %v562
        %v4309 = vunpack.c.h.b16 %v562
        %v4310 = vunpack.c.l.b16 %v563
        %v4311 = vunpack.c.h.b16 %v563
        %v4312 = vunpack.c.l.b16 %v564
        %v4313 = vunpack.c.h.b16 %v564
        %v4314 = vunpack.c.l.b16 %v565
        %v4315 = vunpack.c.h.b16 %v565
        %v4316 = vunpack.c.l.b16 %v566
        %v4317 = vunpack.c.h.b16 %v566
        %v4318 = vunpack.c.l.b16 %v567
        %v4319 = vunpack.c.h.b16 %v567
        %v4320 = vunpack.c.l.b16 %v568
        %v4321 = vunpack.c.h.b16 %v568
        %v4322 = vunpack.c.l.b16 %v569
        %v4323 = vunpack.c.h.b16 %v569
        %v4324 = vunpack.c.l.b16 %v570
        %v4325 = vunpack.c.h.b16 %v570
        %v4326 = vunpack.c.l.b16 %v571
        %v4327 = vunpack.c.h.b16 %v571
        %v4328 = vunpack.c.l.b16 %v572
        %v4329 = vunpack.c.h.b16 %v572
        %v4330 = vunpack.c.l.b16 %v573
        %v4331 = vunpack.c.h.b16 %v573
        %v4332 = vunpack.c.l.b16 %v574
        %v4333 = vunpack.c.h.b16 %v574
        %v4334 = vunpack.c.l.b16 %v575
        %v4335 = vunpack.c.h.b16 %v575
        %v4336 = vunpack.c.l.b16 %v576
        %v4337 = vunpack.c.h.b16 %v576
        %v4338 = vunpack.c.l.b16 %v577
        %v4339 = vunpack.c.h.b16 %v577
        %v4340 = vunpack.c.l.b16 %v578
        %v4341 = vunpack.c.h.b16 %v578
        %v4342 = vunpack.c.l.b16 %v579
        %v4343 = vunpack.c.h.b16 %v579
        %v4344 = vunpack.c.l.b16 %v580
        %v4345 = vunpack.c.h.b16 %v580
        %v4346 = vunpack.c.l.b16 %v581
        %v4347 = vunpack.c.h.b16 %v581
        %v4348 = vunpack.c.l.b16 %v582
        %v4349 = vunpack.c.h.b16 %v582
        %v4350 = vunpack.c.l.b16 %v583
        %v4351 = vunpack.c.h.b16 %v583
        %v4352 = vunpack.c.l.b16 %v584
        %v4353 = vunpack.c.h.b16 %v584
        %v4354 = vunpack.c.l.b16 %v585
        %v4355 = vunpack.c.h.b16 %v585
        %v4356 = vunpack.c.l.b16 %v586
        %v4357 = vunpack.c.h.b16 %v586
        %v4358 = vunpack.c.l.b16 %v587
        %v4359 = vunpack.c.h.b16 %v587
        %v4360 = vunpack.c.l.b16 %v588
        %v4361 = vunpack.c.h.b16 %v588
        %v4362 = vunpack.c.l.b16 %v589
        %v4363 = vunpack.c.h.b16 %v589
        %v4364 = vunpack.c.l.b16 %v590
        %v4365 = vunpack.c.h.b16 %v590
        %v4366 = vunpack.c.l.b16 %v591
        %v4367 = vunpack.c.h.b16 %v591
        %v4368 = vunpack.c.l.b16 %v592
        %v4369 = vunpack.c.h.b16 %v592
        %v4370 = vunpack.c.l.b16 %v593
        %v4371 = vunpack.c.h.b16 %v593
        %v4372 = vunpack.c.l.b16 %v594
        %v4373 = vunpack.c.h.b16 %v594
        %v4374 = vunpack.c.l.b16 %v595
        %v4375 = vunpack.c.h.b16 %v595
        %v4376 = vunpack.c.l.b16 %v596
        %v4377 = vunpack.c.h.b16 %v596
        %v4378 = vunpack.c.l.b16 %v597
        %v4379 = vunpack.c.h.b16 %v597
        %v4380 = vunpack.c.l.b16 %v598
        %v4381 = vunpack.c.h.b16 %v598
        %v4382 = vunpack.c.l.b16 %v599
        %v4383 = vunpack.c.h.b16 %v599
        %v4384 = vunpack.c.l.b16 %v600
        %v4385 = vunpack.c.h.b16 %v600
        %v4386 = vunpack.c.l.b16 %v601
        %v4387 = vunpack.c.h.b16 %v601
        %v4388 = vunpack.c.l.b16 %v602
        %v4389 = vunpack.c.h.b16 %v602
        %v4390 = vunpack.c.l.b16 %v603
        %v4391 = vunpack.c.h.b16 %v603
        %v4392 = vunpack.c.l.b16 %v604
        %v4393 = vunpack.c.h.b16 %v604
        %v4394 = vunpack.c.l.b16 %v605
        %v4395 = vunpack.c.h.b16 %v605
        %v4396 = vunpack.c.l.b16 %v606
        %v4397 = vunpack.c.h.b16 %v606
        %v4398 = vunpack.c.l.b16 %v607
        %v4399 = vunpack.c.h.b16 %v607
        %v4400 = vunpack.c.l.b16 %v608
        %v4401 = vunpack.c.h.b16 %v608
        %v4402 = vunpack.c.l.b16 %v609
        %v4403 = vunpack.c.h.b16 %v609
        %v4404 = vunpack.c.l.b16 %v610
        %v4405 = vunpack.c.h.b16 %v610
        %v4406 = vunpack.c.l.b16 %v611
        %v4407 = vunpack.c.h.b16 %v611
        %v4408 = vunpack.c.l.b16 %v612
        %v4409 = vunpack.c.h.b16 %v612
        %v4410 = vunpack.c.l.b16 %v613
        %v4411 = vunpack.c.h.b16 %v613
        %v4412 = vunpack.c.l.b16 %v614
        %v4413 = vunpack.c.h.b16 %v614
        %v4414 = vunpack.c.l.b16 %v615
        %v4415 = vunpack.c.h.b16 %v615
        %v4416 = vunpack.c.l.b16 %v616
        %v4417 = vunpack.c.h.b16 %v616
        %v4418 = vunpack.c.l.b16 %v617
        %v4419 = vunpack.c.h.b16 %v617
        %v4420 = vunpack.c.l.b16 %v618
        %v4421 = vunpack.c.h.b16 %v618
        %v4422 = vunpack.c.l.b16 %v619
        %v4423 = vunpack.c.h.b16 %v619
        %v4424 = vunpack.c.l.b16 %v620
        %v4425 = vunpack.c.h.b16 %v620
        %v4426 = vunpack.c.l.b16 %v621
        %v4427 = vunpack.c.h.b16 %v621
        %v4428 = vunpack.c.l.b16 %v622
        %v4429 = vunpack.c.h.b16 %v622
        %v4430 = vunpack.c.l.b16 %v623
        %v4431 = vunpack.c.h.b16 %v623
        %v4432 = vunpack.c.l.b16 %v624
        %v4433 = vunpack.c.h.b16 %v624
        %v4434 = vunpack.c.l.b16 %v625
        %v4435 = vunpack.c.h.b16 %v625
        %v4436 = vunpack.c.l.b16 %v626
        %v4437 = vunpack.c.h.b16 %v626
        %v4438 = vunpack.c.l.b16 %v627
        %v4439 = vunpack.c.h.b16 %v627
        %v4440 = vunpack.c.l.b16 %v628
        %v4441 = vunpack.c.h.b16 %v628
        %v4442 = vunpack.c.l.b16 %v629
        %v4443 = vunpack.c.h.b16 %v629
        %v4444 = vunpack.c.l.b16 %v630
        %v4445 = vunpack.c.h.b16 %v630
        %v4446 = vunpack.c.l.b16 %v631
        %v4447 = vunpack.c.h.b16 %v631
        %v4448 = vunpack.c.l.b16 %v632
        %v4449 = vunpack.c.h.b16 %v632
        %v4450 = vunpack.c.l.b16 %v633
        %v4451 = vunpack.c.h.b16 %v633
        %v4452 = vunpack.c.l.b16 %v634
        %v4453 = vunpack.c.h.b16 %v634
        %v4454 = vunpack.c.l.b16 %v635
        %v4455 = vunpack.c.h.b16 %v635
        %v4456 = vunpack.c.l.b16 %v636
        %v4457 = vunpack.c.h.b16 %v636
        %v4458 = vunpack.c.l.b16 %v637
        %v4459 = vunpack.c.h.b16 %v637
        %v4460 = vunpack.c.l.b16 %v638
        %v4461 = vunpack.c.h.b16 %v638
        %v4462 = vunpack.c.l.b16 %v639
        %v4463 = vunpack.c.h.b16 %v639
        %v4464 = vunpack.c.l.b16 %v640
        %v4465 = vunpack.c.h.b16 %v640
        %v4466 = vunpack.c.l.b16 %v641
        %v4467 = vunpack.c.h.b16 %v641
        %v4468 = vunpack.c.l.b16 %v642
        %v4469 = vunpack.c.h.b16 %v642
        %v4470 = vunpack.c.l.b16 %v643
        %v4471 = vunpack.c.h.b16 %v643
        %v4472 = vunpack.c.l.b16 %v644
        %v4473 = vunpack.c.h.b16 %v644
        %v4474 = vunpack.c.l.b16 %v645
        %v4475 = vunpack.c.h.b16 %v645
        %v4476 = vunpack.c.l.b16 %v646
        %v4477 = vunpack.c.h.b16 %v646
        %v4478 = vunpack.c.l.b16 %v647
        %v4479 = vunpack.c.h.b16 %v647
        %v4480 = vunpack.c.l.b16 %v648
        %v4481 = vunpack.c.h.b16 %v648
        %v4482 = vunpack.c.l.b16 %v649
        %v4483 = vunpack.c.h.b16 %v649
        %v4484 = vunpack.c.l.b16 %v650
        %v4485 = vunpack.c.h.b16 %v650
        %v4486 = vunpack.c.l.b16 %v651
        %v4487 = vunpack.c.h.b16 %v651
        %v4488 = vunpack.c.l.b16 %v652
        %v4489 = vunpack.c.h.b16 %v652
        %v4490 = vunpack.c.l.b16 %v653
        %v4491 = vunpack.c.h.b16 %v653
        %v4492 = vunpack.c.l.b16 %v654
        %v4493 = vunpack.c.h.b16 %v654
        %v4494 = vunpack.c.l.b16 %v655
        %v4495 = vunpack.c.h.b16 %v655
        %v4496 = vunpack.c.l.b16 %v656
        %v4497 = vunpack.c.h.b16 %v656
        %v4498 = vunpack.c.l.b16 %v657
        %v4499 = vunpack.c.h.b16 %v657
        %v4500 = vunpack.c.l.b16 %v658
        %v4501 = vunpack.c.h.b16 %v658
        %v4502 = vunpack.c.l.b16 %v659
        %v4503 = vunpack.c.h.b16 %v659
        %v4504 = vunpack.c.l.b16 %v660
        %v4505 = vunpack.c.h.b16 %v660
        %v4506 = vunpack.c.l.b16 %v661
        %v4507 = vunpack.c.h.b16 %v661
        %v4508 = vunpack.c.l.b16 %v662
        %v4509 = vunpack.c.h.b16 %v662
        %v4510 = vunpack.c.l.b16 %v663
        %v4511 = vunpack.c.h.b16 %v663
        %v4512 = vunpack.c.l.b16 %v664
        %v4513 = vunpack.c.h.b16 %v664
        %v4514 = vunpack.c.l.b16 %v665
        %v4515 = vunpack.c.h.b16 %v665
        %v4516 = vunpack.c.l.b16 %v666
        %v4517 = vunpack.c.h.b16 %v666
        %v4518 = vunpack.c.l.b16 %v667
        %v4519 = vunpack.c.h.b16 %v667
        %v4520 = vunpack.c.l.b16 %v668
        %v4521 = vunpack.c.h.b16 %v668
        %v4522 = vunpack.c.l.b16 %v669
        %v4523 = vunpack.c.h.b16 %v669
        %v4524 = vunpack.c.l.b16 %v670
        %v4525 = vunpack.c.h.b16 %v670
        %v4526 = vunpack.c.l.b16 %v671
        %v4527 = vunpack.c.h.b16 %v671
        %v4528 = vunpack.c.l.b16 %v672
        %v4529 = vunpack.c.h.b16 %v672
        %v4530 = vunpack.c.l.b16 %v673
        %v4531 = vunpack.c.h.b16 %v673
        %v4532 = vunpack.c.l.b16 %v674
        %v4533 = vunpack.c.h.b16 %v674
        %v4534 = vunpack.c.l.b16 %v675
        %v4535 = vunpack.c.h.b16 %v675
        %v4536 = vunpack.c.l.b16 %v676
        %v4537 = vunpack.c.h.b16 %v676
        %v4538 = vunpack.c.l.b16 %v677
        %v4539 = vunpack.c.h.b16 %v677
        %v4540 = vunpack.c.l.b16 %v678
        %v4541 = vunpack.c.h.b16 %v678
        %v4542 = vunpack.c.l.b16 %v679
        %v4543 = vunpack.c.h.b16 %v679
        %v4544 = vunpack.c.l.b16 %v680
        %v4545 = vunpack.c.h.b16 %v680
        %v4546 = vunpack.c.l.b16 %v681
        %v4547 = vunpack.c.h.b16 %v681
        %v4548 = vunpack.c.l.b16 %v682
        %v4549 = vunpack.c.h.b16 %v682
        %v4550 = vunpack.c.l.b16 %v683
        %v4551 = vunpack.c.h.b16 %v683
        %v4552 = vunpack.c.l.b16 %v684
        %v4553 = vunpack.c.h.b16 %v684
        %v4554 = vunpack.c.l.b16 %v685
        %v4555 = vunpack.c.h.b16 %v685
        %v4556 = vunpack.c.l.b16 %v686
        %v4557 = vunpack.c.h.b16 %v686
        %v4558 = vunpack.c.l.b16 %v687
        %v4559 = vunpack.c.h.b16 %v687
        %v4560 = vunpack.c.l.b16 %v688
        %v4561 = vunpack.c.h.b16 %v688
        %v4562 = vunpack.c.l.b16 %v689
        %v4563 = vunpack.c.h.b16 %v689
        %v4564 = vunpack.c.l.b16 %v690
        %v4565 = vunpack.c.h.b16 %v690
        %v4566 = vunpack.c.l.b16 %v691
        %v4567 = vunpack.c.h.b16 %v691
        %v4568 = vunpack.c.l.b16 %v692
        %v4569 = vunpack.c.h.b16 %v692
        %v4570 = vunpack.c.l.b16 %v693
        %v4571 = vunpack.c.h.b16 %v693
        %v4572 = vunpack.c.l.b16 %v694
        %v4573 = vunpack.c.h.b16 %v694
        %v4574 = vunpack.c.l.b16 %v695
        %v4575 = vunpack.c.h.b16 %v695
        %v4576 = vunpack.c.l.b16 %v696
        %v4577 = vunpack.c.h.b16 %v696
        %v4578 = vunpack.c.l.b16 %v697
        %v4579 = vunpack.c.h.b16 %v697
        %v4580 = vunpack.c.l.b16 %v698
        %v4581 = vunpack.c.h.b16 %v698
        %v4582 = vunpack.c.l.b16 %v699
        %v4583 = vunpack.c.h.b16 %v699
        %v4584 = vunpack.c.l.b16 %v700
        %v4585 = vunpack.c.h.b16 %v700
        %v4586 = vunpack.c.l.b16 %v701
        %v4587 = vunpack.c.h.b16 %v701
        %v4588 = vunpack.c.l.b16 %v702
        %v4589 = vunpack.c.h.b16 %v702
        %v4590 = vunpack.c.l.b16 %v703
        %v4591 = vunpack.c.h.b16 %v703
        %v4592 = vunpack.c.l.b16 %v704
        %v4593 = vunpack.c.h.b16 %v704
        %v4594 = vunpack.c.l.b16 %v705
        %v4595 = vunpack.c.h.b16 %v705
        %v4596 = vunpack.c.l.b16 %v706
        %v4597 = vunpack.c.h.b16 %v706
        %v4598 = vunpack.c.l.b16 %v707
        %v4599 = vunpack.c.h.b16 %v707
        %v4600 = vunpack.c.l.b16 %v708
        %v4601 = vunpack.c.h.b16 %v708
        %v4602 = vunpack.c.l.b16 %v709
        %v4603 = vunpack.c.h.b16 %v709
        %v4604 = vunpack.c.l.b16 %v710
        %v4605 = vunpack.c.h.b16 %v710
        %v4606 = vunpack.c.l.b16 %v711
        %v4607 = vunpack.c.h.b16 %v711
        %v4608 = vunpack.c.l.b16 %v712
        %v4609 = vunpack.c.h.b16 %v712
        %v4610 = vunpack.c.l.b16 %v713
        %v4611 = vunpack.c.h.b16 %v713
        %v4612 = vunpack.c.l.b16 %v714
        %v4613 = vunpack.c.h.b16 %v714
        %v4614 = vunpack.c.l.b16 %v715
        %v4615 = vunpack.c.h.b16 %v715
        %v4616 = vunpack.c.l.b16 %v716
        %v4617 = vunpack.c.h.b16 %v716
        %v4618 = vunpack.c.l.b16 %v717
        %v4619 = vunpack.c.h.b16 %v717
        %v4620 = vunpack.c.l.b16 %v718
        %v4621 = vunpack.c.h.b16 %v718
        %v4622 = vunpack.c.l.b16 %v719
        %v4623 = vunpack.c.h.b16 %v719
        %v4624 = vunpack.c.l.b16 %v720
        %v4625 = vunpack.c.h.b16 %v720
        %v4626 = vunpack.c.l.b16 %v721
        %v4627 = vunpack.c.h.b16 %v721
        %v4628 = vunpack.c.l.b16 %v722
        %v4629 = vunpack.c.h.b16 %v722
        %v4630 = vunpack.c.l.b16 %v723
        %v4631 = vunpack.c.h.b16 %v723
        %v4632 = vunpack.c.l.b16 %v724
        %v4633 = vunpack.c.h.b16 %v724
        %v4634 = vunpack.c.l.b16 %v725
        %v4635 = vunpack.c.h.b16 %v725
        %v4636 = vunpack.c.l.b16 %v726
        %v4637 = vunpack.c.h.b16 %v726
        %v4638 = vunpack.c.l.b16 %v727
        %v4639 = vunpack.c.h.b16 %v727
        %v4640 = vunpack.c.l.b16 %v728
        %v4641 = vunpack.c.h.b16 %v728
        %v4642 = vunpack.c.l.b16 %v729
        %v4643 = vunpack.c.h.b16 %v729
        %v4644 = vunpack.c.l.b16 %v730
        %v4645 = vunpack.c.h.b16 %v730
        %v4646 = vunpack.c.l.b16 %v731
        %v4647 = vunpack.c.h.b16 %v731
        %v4648 = vunpack.c.l.b16 %v732
        %v4649 = vunpack.c.h.b16 %v732
        %v4650 = vunpack.c.l.b16 %v733
        %v4651 = vunpack.c.h.b16 %v733
        %v4652 = vunpack.c.l.b16 %v734
        %v4653 = vunpack.c.h.b16 %v734
        %v4654 = vunpack.c.l.b16 %v735
        %v4655 = vunpack.c.h.b16 %v735
        %v4656 = vunpack.c.l.b16 %v736
        %v4657 = vunpack.c.h.b16 %v736
        %v4658 = vunpack.c.l.b16 %v737
        %v4659 = vunpack.c.h.b16 %v737
        %v4660 = vunpack.c.l.b16 %v738
        %v4661 = vunpack.c.h.b16 %v738
        %v4662 = vunpack.c.l.b16 %v739
        %v4663 = vunpack.c.h.b16 %v739
        %v4664 = vunpack.c.l.b16 %v740
        %v4665 = vunpack.c.h.b16 %v740
        %v4666 = vunpack.c.l.b16 %v741
        %v4667 = vunpack.c.h.b16 %v741
        %v4668 = vunpack.c.l.b16 %v742
        %v4669 = vunpack.c.h.b16 %v742
        %v4670 = vunpack.c.l.b16 %v743
        %v4671 = vunpack.c.h.b16 %v743
        %v4672 = vunpack.c.l.b16 %v744
        %v4673 = vunpack.c.h.b16 %v744
        %v4674 = vunpack.c.l.b16 %v745
        %v4675 = vunpack.c.h.b16 %v745
        %v4676 = vunpack.c.l.b16 %v746
        %v4677 = vunpack.c.h.b16 %v746
        %v4678 = vunpack.c.l.b16 %v747
        %v4679 = vunpack.c.h.b16 %v747
        %v4680 = vunpack.c.l.b16 %v748
        %v4681 = vunpack.c.h.b16 %v748
        %v4682 = vunpack.c.l.b16 %v749
        %v4683 = vunpack.c.h.b16 %v749
        %v4684 = vunpack.c.l.b16 %v750
        %v4685 = vunpack.c.h.b16 %v750
        %v4686 = vunpack.c.l.b16 %v751
        %v4687 = vunpack.c.h.b16 %v751
        %v4688 = vunpack.c.l.b16 %v752
        %v4689 = vunpack.c.h.b16 %v752
        %v4690 = vunpack.c.l.b16 %v753
        %v4691 = vunpack.c.h.b16 %v753
        %v4692 = vunpack.c.l.b16 %v754
        %v4693 = vunpack.c.h.b16 %v754
        %v4694 = vunpack.c.l.b16 %v755
        %v4695 = vunpack.c.h.b16 %v755
        %v4696 = vunpack.c.l.b16 %v756
        %v4697 = vunpack.c.h.b16 %v756
        %v4698 = vunpack.c.l.b16 %v757
        %v4699 = vunpack.c.h.b16 %v757
        %v4700 = vunpack.c.l.b16 %v758
        %v4701 = vunpack.c.h.b16 %v758
        %v4702 = vunpack.c.l.b16 %v759
        %v4703 = vunpack.c.h.b16 %v759
        %v4704 = vunpack.c.l.b16 %v760
        %v4705 = vunpack.c.h.b16 %v760
        %v4706 = vunpack.c.l.b16 %v761
        %v4707 = vunpack.c.h.b16 %v761
        %v4708 = vunpack.c.l.b16 %v762
        %v4709 = vunpack.c.h.b16 %v762
        %v4710 = vunpack.c.l.b16 %v763
        %v4711 = vunpack.c.h.b16 %v763
        %v4712 = vunpack.c.l.b16 %v764
        %v4713 = vunpack.c.h.b16 %v764
        %v4714 = vunpack.c.l.b16 %v765
        %v4715 = vunpack.c.h.b16 %v765
        %v4716 = vunpack.c.l.b16 %v766
        %v4717 = vunpack.c.h.b16 %v766
        %v4718 = vunpack.c.l.b16 %v767
        %v4719 = vunpack.c.h.b16 %v767
        %v4720 = vunpack.c.l.b16 %v768
        %v4721 = vunpack.c.h.b16 %v768
        %v4722 = vunpack.c.l.b16 %v769
        %v4723 = vunpack.c.h.b16 %v769
        %v4724 = vunpack.c.l.b16 %v770
        %v4725 = vunpack.c.h.b16 %v770
        %v4726 = vunpack.c.l.b16 %v771
        %v4727 = vunpack.c.h.b16 %v771
        %v4728 = vunpack.c.l.b16 %v772
        %v4729 = vunpack.c.h.b16 %v772
        %v4730 = vunpack.c.l.b16 %v773
        %v4731 = vunpack.c.h.b16 %v773
        %v4732 = vunpack.c.l.b16 %v774
        %v4733 = vunpack.c.h.b16 %v774
        %v4734 = vunpack.c.l.b16 %v775
        %v4735 = vunpack.c.h.b16 %v775
        %v4736 = vunpack.c.l.b16 %v776
        %v4737 = vunpack.c.h.b16 %v776
        %v4738 = vunpack.c.l.b16 %v777
        %v4739 = vunpack.c.h.b16 %v777
        %v4740 = vunpack.c.l.b16 %v778
        %v4741 = vunpack.c.h.b16 %v778
        %v4742 = vunpack.c.l.b16 %v779
        %v4743 = vunpack.c.h.b16 %v779
        %v4744 = vunpack.c.l.b16 %v780
        %v4745 = vunpack.c.h.b16 %v780
        %v4746 = vunpack.c.l.b16 %v781
        %v4747 = vunpack.c.h.b16 %v781
        %v4748 = vunpack.c.l.b16 %v782
        %v4749 = vunpack.c.h.b16 %v782
        %v4750 = vunpack.c.l.b16 %v783
        %v4751 = vunpack.c.h.b16 %v783
        %v4752 = vunpack.c.l.b16 %v784
        %v4753 = vunpack.c.h.b16 %v784
        %v4754 = vunpack.c.l.b16 %v785
        %v4755 = vunpack.c.h.b16 %v785
        %v4756 = vunpack.c.l.b16 %v786
        %v4757 = vunpack.c.h.b16 %v786
        %v4758 = vunpack.c.l.b16 %v787
        %v4759 = vunpack.c.h.b16 %v787
        %v4760 = vunpack.c.l.b16 %v788
        %v4761 = vunpack.c.h.b16 %v788
        %v4762 = vunpack.c.l.b16 %v789
        %v4763 = vunpack.c.h.b16 %v789
        %v4764 = vunpack.c.l.b16 %v790
        %v4765 = vunpack.c.h.b16 %v790
        %v4766 = vunpack.c.l.b16 %v791
        %v4767 = vunpack.c.h.b16 %v791
        %v4768 = vunpack.c.l.b16 %v792
        %v4769 = vunpack.c.h.b16 %v792
        %v4770 = vunpack.c.l.b16 %v793
        %v4771 = vunpack.c.h.b16 %v793
        %v4772 = vunpack.c.l.b16 %v794
        %v4773 = vunpack.c.h.b16 %v794
        %v4774 = vunpack.c.l.b16 %v795
        %v4775 = vunpack.c.h.b16 %v795
        %v4776 = vunpack.c.l.b16 %v796
        %v4777 = vunpack.c.h.b16 %v796
        %v4778 = vunpack.c.l.b16 %v797
        %v4779 = vunpack.c.h.b16 %v797
        %v4780 = vunpack.c.l.b16 %v798
        %v4781 = vunpack.c.h.b16 %v798
        %v4782 = vunpack.c.l.b16 %v799
        %v4783 = vunpack.c.h.b16 %v799
        %v4784 = vunpack.c.l.b16 %v800
        %v4785 = vunpack.c.h.b16 %v800
        %v4786 = vunpack.c.l.b16 %v801
        %v4787 = vunpack.c.h.b16 %v801
        %v4788 = vunpack.c.l.b16 %v802
        %v4789 = vunpack.c.h.b16 %v802
        %v4790 = vunpack.c.l.b16 %v803
        %v4791 = vunpack.c.h.b16 %v803
        %v4792 = vunpack.c.l.b16 %v804
        %v4793 = vunpack.c.h.b16 %v804
        %v4794 = vunpack.c.l.b16 %v805
        %v4795 = vunpack.c.h.b16 %v805
        %v4796 = vunpack.c.l.b16 %v806
        %v4797 = vunpack.c.h.b16 %v806
        %v4798 = vunpack.c.l.b16 %v807
        %v4799 = vunpack.c.h.b16 %v807
        %v4800 = vunpack.c.l.b16 %v808
        %v4801 = vunpack.c.h.b16 %v808
        %v4802 = vunpack.c.l.b16 %v809
        %v4803 = vunpack.c.h.b16 %v809
        %v4804 = vunpack.c.l.b16 %v810
        %v4805 = vunpack.c.h.b16 %v810
        %v4806 = vunpack.c.l.b16 %v811
        %v4807 = vunpack.c.h.b16 %v811
        %v4808 = vunpack.c.l.b16 %v812
        %v4809 = vunpack.c.h.b16 %v812
        %v4810 = vunpack.c.l.b16 %v813
        %v4811 = vunpack.c.h.b16 %v813
        %v4812 = vunpack.c.l.b16 %v814
        %v4813 = vunpack.c.h.b16 %v814
        %v4814 = vunpack.c.l.b16 %v815
        %v4815 = vunpack.c.h.b16 %v815
        %v4816 = vunpack.c.l.b16 %v816
        %v4817 = vunpack.c.h.b16 %v816
        %v4818 = vunpack.c.l.b16 %v817
        %v4819 = vunpack.c.h.b16 %v817
        %v4820 = vunpack.c.l.b16 %v818
        %v4821 = vunpack.c.h.b16 %v818
        %v4822 = vunpack.c.l.b16 %v819
        %v4823 = vunpack.c.h.b16 %v819
        %v4824 = vunpack.c.l.b16 %v820
        %v4825 = vunpack.c.h.b16 %v820
        %v4826 = vunpack.c.l.b16 %v821
        %v4827 = vunpack.c.h.b16 %v821
        %v4828 = vunpack.c.l.b16 %v822
        %v4829 = vunpack.c.h.b16 %v822
        %v4830 = vunpack.c.l.b16 %v823
        %v4831 = vunpack.c.h.b16 %v823
        %v4832 = vunpack.c.l.b16 %v824
        %v4833 = vunpack.c.h.b16 %v824
        %v4834 = vunpack.c.l.b16 %v825
        %v4835 = vunpack.c.h.b16 %v825
        %v4836 = vunpack.c.l.b16 %v826
        %v4837 = vunpack.c.h.b16 %v826
        %v4838 = vunpack.c.l.b16 %v827
        %v4839 = vunpack.c.h.b16 %v827
        %v4840 = vunpack.c.l.b16 %v828
        %v4841 = vunpack.c.h.b16 %v828
        %v4842 = vunpack.c.l.b16 %v829
        %v4843 = vunpack.c.h.b16 %v829
        %v4844 = vunpack.c.l.b16 %v830
        %v4845 = vunpack.c.h.b16 %v830
        %v4846 = vunpack.c.l.b16 %v831
        %v4847 = vunpack.c.h.b16 %v831
        %v4848 = vunpack.c.l.b16 %v832
        %v4849 = vunpack.c.h.b16 %v832
        %v4850 = vunpack.c.l.b16 %v833
        %v4851 = vunpack.c.h.b16 %v833
        %v4852 = vunpack.c.l.b16 %v834
        %v4853 = vunpack.c.h.b16 %v834
        %v4854 = vunpack.c.l.b16 %v835
        %v4855 = vunpack.c.h.b16 %v835
        %v4856 = vunpack.c.l.b16 %v836
        %v4857 = vunpack.c.h.b16 %v836
        %v4858 = vunpack.c.l.b16 %v837
        %v4859 = vunpack.c.h.b16 %v837
        %v4860 = vunpack.c.l.b16 %v838
        %v4861 = vunpack.c.h.b16 %v838
        %v4862 = vunpack.c.l.b16 %v839
        %v4863 = vunpack.c.h.b16 %v839
        %v4864 = vunpack.c.l.b16 %v840
        %v4865 = vunpack.c.h.b16 %v840
        %v4866 = vunpack.c.l.b16 %v841
        %v4867 = vunpack.c.h.b16 %v841
        %v4868 = vunpack.c.l.b16 %v842
        %v4869 = vunpack.c.h.b16 %v842
        %v4870 = vunpack.c.l.b16 %v843
        %v4871 = vunpack.c.h.b16 %v843
        %v4872 = vunpack.c.l.b16 %v844
        %v4873 = vunpack.c.h.b16 %v844
        %v4874 = vunpack.c.l.b16 %v845
        %v4875 = vunpack.c.h.b16 %v845
        %v4876 = vunpack.c.l.b16 %v846
        %v4877 = vunpack.c.h.b16 %v846
        %v4878 = vunpack.c.l.b16 %v847
        %v4879 = vunpack.c.h.b16 %v847
        %v4880 = vunpack.c.l.b16 %v848
        %v4881 = vunpack.c.h.b16 %v848
        %v4882 = vunpack.c.l.b16 %v849
        %v4883 = vunpack.c.h.b16 %v849
        %v4884 = vunpack.c.l.b16 %v850
        %v4885 = vunpack.c.h.b16 %v850
        %v4886 = vunpack.c.l.b16 %v851
        %v4887 = vunpack.c.h.b16 %v851
        %v4888 = vunpack.c.l.b16 %v852
        %v4889 = vunpack.c.h.b16 %v852
        %v4890 = vunpack.c.l.b16 %v853
        %v4891 = vunpack.c.h.b16 %v853
        %v4892 = vunpack.c.l.b16 %v854
        %v4893 = vunpack.c.h.b16 %v854
        %v4894 = vunpack.c.l.b16 %v855
        %v4895 = vunpack.c.h.b16 %v855
        %v4896 = vunpack.c.l.b16 %v856
        %v4897 = vunpack.c.h.b16 %v856
        %v4898 = vunpack.c.l.b16 %v857
        %v4899 = vunpack.c.h.b16 %v857
        %v4900 = vunpack.c.l.b16 %v858
        %v4901 = vunpack.c.h.b16 %v858
        %v4902 = vunpack.c.l.b16 %v859
        %v4903 = vunpack.c.h.b16 %v859
        %v4904 = vunpack.c.l.b16 %v860
        %v4905 = vunpack.c.h.b16 %v860
        %v4906 = vunpack.c.l.b16 %v861
        %v4907 = vunpack.c.h.b16 %v861
        %v4908 = vunpack.c.l.b16 %v862
        %v4909 = vunpack.c.h.b16 %v862
        %v4910 = vunpack.c.l.b16 %v863
        %v4911 = vunpack.c.h.b16 %v863
        %v4912 = vunpack.c.l.b16 %v864
        %v4913 = vunpack.c.h.b16 %v864
        %v4914 = vunpack.c.l.b16 %v865
        %v4915 = vunpack.c.h.b16 %v865
        %v4916 = vunpack.c.l.b16 %v866
        %v4917 = vunpack.c.h.b16 %v866
        %v4918 = vunpack.c.l.b16 %v867
        %v4919 = vunpack.c.h.b16 %v867
        %v4920 = vunpack.c.l.b16 %v868
        %v4921 = vunpack.c.h.b16 %v868
        %v4922 = vunpack.c.l.b16 %v869
        %v4923 = vunpack.c.h.b16 %v869
        %v4924 = vunpack.c.l.b16 %v870
        %v4925 = vunpack.c.h.b16 %v870
        %v4926 = vunpack.c.l.b16 %v871
        %v4927 = vunpack.c.h.b16 %v871
        %v4928 = vunpack.c.l.b16 %v872
        %v4929 = vunpack.c.h.b16 %v872
        %v4930 = vunpack.c.l.b16 %v873
        %v4931 = vunpack.c.h.b16 %v873
        %v4932 = vunpack.c.l.b16 %v874
        %v4933 = vunpack.c.h.b16 %v874
        %v4934 = vunpack.c.l.b16 %v875
        %v4935 = vunpack.c.h.b16 %v875
        %v4936 = vunpack.c.l.b16 %v876
        %v4937 = vunpack.c.h.b16 %v876
        %v4938 = vunpack.c.l.b16 %v877
        %v4939 = vunpack.c.h.b16 %v877
        %v4940 = vunpack.c.l.b16 %v878
        %v4941 = vunpack.c.h.b16 %v878
        %v4942 = vunpack.c.l.b16 %v879
        %v4943 = vunpack.c.h.b16 %v879
        %v4944 = vunpack.c.l.b16 %v880
        %v4945 = vunpack.c.h.b16 %v880
        %v4946 = vunpack.c.l.b16 %v881
        %v4947 = vunpack.c.h.b16 %v881
        %v4948 = vunpack.c.l.b16 %v882
        %v4949 = vunpack.c.h.b16 %v882
        %v4950 = vunpack.c.l.b16 %v883
        %v4951 = vunpack.c.h.b16 %v883
        %v4952 = vunpack.c.l.b16 %v884
        %v4953 = vunpack.c.h.b16 %v884
        %v4954 = vunpack.c.l.b16 %v885
        %v4955 = vunpack.c.h.b16 %v885
        %v4956 = vunpack.c.l.b16 %v886
        %v4957 = vunpack.c.h.b16 %v886
        %v4958 = vunpack.c.l.b16 %v887
        %v4959 = vunpack.c.h.b16 %v887
        %v4960 = vunpack.c.l.b16 %v888
        %v4961 = vunpack.c.h.b16 %v888
        %v4962 = vunpack.c.l.b16 %v889
        %v4963 = vunpack.c.h.b16 %v889
        %v4964 = vunpack.c.l.b16 %v890
        %v4965 = vunpack.c.h.b16 %v890
        %v4966 = vunpack.c.l.b16 %v891
        %v4967 = vunpack.c.h.b16 %v891
        %v4968 = vunpack.c.l.b16 %v892
        %v4969 = vunpack.c.h.b16 %v892
        %v4970 = vunpack.c.l.b16 %v893
        %v4971 = vunpack.c.h.b16 %v893
        %v4972 = vunpack.c.l.b16 %v894
        %v4973 = vunpack.c.h.b16 %v894
        %v4974 = vunpack.c.l.b16 %v895
        %v4975 = vunpack.c.h.b16 %v895
        %v4976 = vunpack.c.l.b16 %v896
        %v4977 = vunpack.c.h.b16 %v896
        %v4978 = vunpack.c.l.b16 %v897
        %v4979 = vunpack.c.h.b16 %v897
        %v4980 = vunpack.c.l.b16 %v898
        %v4981 = vunpack.c.h.b16 %v898
        %v4982 = vunpack.c.l.b16 %v899
        %v4983 = vunpack.c.h.b16 %v899
        %v4984 = vunpack.c.l.b16 %v900
        %v4985 = vunpack.c.h.b16 %v900
        %v4986 = vunpack.c.l.b16 %v901
        %v4987 = vunpack.c.h.b16 %v901
        %v4988 = vunpack.c.l.b16 %v902
        %v4989 = vunpack.c.h.b16 %v902
        %v4990 = vunpack.c.l.b16 %v903
        %v4991 = vunpack.c.h.b16 %v903
        %v4992 = vunpack.c.l.b16 %v904
        %v4993 = vunpack.c.h.b16 %v904
        %v4994 = vunpack.c.l.b16 %v905
        %v4995 = vunpack.c.h.b16 %v905
        %v4996 = vunpack.c.l.b16 %v906
        %v4997 = vunpack.c.h.b16 %v906
        %v4998 = vunpack.c.l.b16 %v907
        %v4999 = vunpack.c.h.b16 %v907
        %v5000 = vunpack.c.l.b16 %v908
        %v5001 = vunpack.c.h.b16 %v908
        %v5002 = vunpack.c.l.b16 %v909
        %v5003 = vunpack.c.h.b16 %v909
        %v5004 = vunpack.c.l.b16 %v910
        %v5005 = vunpack.c.h.b16 %v910
        %v5006 = vunpack.c.l.b16 %v911
        %v5007 = vunpack.c.h.b16 %v911
        %v5008 = vunpack.c.l.b16 %v912
        %v5009 = vunpack.c.h.b16 %v912
        %v5010 = vunpack.c.l.b16 %v913
        %v5011 = vunpack.c.h.b16 %v913
        %v5012 = vunpack.c.l.b16 %v914
        %v5013 = vunpack.c.h.b16 %v914
        %v5014 = vunpack.c.l.b16 %v915
        %v5015 = vunpack.c.h.b16 %v915
        %v5016 = vunpack.c.l.b16 %v916
        %v5017 = vunpack.c.h.b16 %v916
        %v5018 = vunpack.c.l.b16 %v917
        %v5019 = vunpack.c.h.b16 %v917
        %v5020 = vunpack.c.l.b16 %v918
        %v5021 = vunpack.c.h.b16 %v918
        %v5022 = vunpack.c.l.b16 %v919
        %v5023 = vunpack.c.h.b16 %v919
        %v5024 = vunpack.c.l.b16 %v920
        %v5025 = vunpack.c.h.b16 %v920
        %v5026 = vunpack.c.l.b16 %v921
        %v5027 = vunpack.c.h.b16 %v921
        %v5028 = vunpack.c.l.b16 %v922
        %v5029 = vunpack.c.h.b16 %v922
        %v5030 = vunpack.c.l.b16 %v923
        %v5031 = vunpack.c.h.b16 %v923
        %v5032 = vunpack.c.l.b16 %v924
        %v5033 = vunpack.c.h.b16 %v924
        %v5034 = vunpack.c.l.b16 %v925
        %v5035 = vunpack.c.h.b16 %v925
        %v5036 = vunpack.c.l.b16 %v926
        %v5037 = vunpack.c.h.b16 %v926
        %v5038 = vunpack.c.l.b16 %v927
        %v5039 = vunpack.c.h.b16 %v927
        %v5040 = vunpack.c.l.b16 %v928
        %v5041 = vunpack.c.h.b16 %v928
        %v5042 = vunpack.c.l.b16 %v929
        %v5043 = vunpack.c.h.b16 %v929
        %v5044 = vunpack.c.l.b16 %v930
        %v5045 = vunpack.c.h.b16 %v930
        %v5046 = vunpack.c.l.b16 %v931
        %v5047 = vunpack.c.h.b16 %v931
        %v5048 = vunpack.c.l.b16 %v932
        %v5049 = vunpack.c.h.b16 %v932
        %v5050 = vunpack.c.l.b16 %v933
        %v5051 = vunpack.c.h.b16 %v933
        %v5052 = vunpack.c.l.b16 %v934
        %v5053 = vunpack.c.h.b16 %v934
        %v5054 = vunpack.c.l.b16 %v935
        %v5055 = vunpack.c.h.b16 %v935
        %v5056 = vunpack.c.l.b16 %v936
        %v5057 = vunpack.c.h.b16 %v936
        %v5058 = vunpack.c.l.b16 %v937
        %v5059 = vunpack.c.h.b16 %v937
        %v5060 = vunpack.c.l.b16 %v938
        %v5061 = vunpack.c.h.b16 %v938
        %v5062 = vunpack.c.l.b16 %v939
        %v5063 = vunpack.c.h.b16 %v939
        %v5064 = vunpack.c.l.b16 %v940
        %v5065 = vunpack.c.h.b16 %v940
        %v5066 = vunpack.c.l.b16 %v941
        %v5067 = vunpack.c.h.b16 %v941
        %v5068 = vunpack.c.l.b16 %v942
        %v5069 = vunpack.c.h.b16 %v942
        %v5070 = vunpack.c.l.b16 %v943
        %v5071 = vunpack.c.h.b16 %v943
        %v5072 = vunpack.c.l.b16 %v944
        %v5073 = vunpack.c.h.b16 %v944
        %v5074 = vunpack.c.l.b16 %v945
        %v5075 = vunpack.c.h.b16 %v945
        %v5076 = vunpack.c.l.b16 %v946
        %v5077 = vunpack.c.h.b16 %v946
        %v5078 = vunpack.c.l.b16 %v947
        %v5079 = vunpack.c.h.b16 %v947
        %v5080 = vunpack.c.l.b16 %v948
        %v5081 = vunpack.c.h.b16 %v948
        %v5082 = vunpack.c.l.b16 %v949
        %v5083 = vunpack.c.h.b16 %v949
        %v5084 = vunpack.c.l.b16 %v950
        %v5085 = vunpack.c.h.b16 %v950
        %v5086 = vunpack.c.l.b16 %v951
        %v5087 = vunpack.c.h.b16 %v951
        %v5088 = vunpack.c.l.b16 %v952
        %v5089 = vunpack.c.h.b16 %v952
        %v5090 = vunpack.c.l.b16 %v953
        %v5091 = vunpack.c.h.b16 %v953
        %v5092 = vunpack.c.l.b16 %v954
        %v5093 = vunpack.c.h.b16 %v954
        %v5094 = vunpack.c.l.b16 %v955
        %v5095 = vunpack.c.h.b16 %v955
        %v5096 = vunpack.c.l.b16 %v956
        %v5097 = vunpack.c.h.b16 %v956
        %v5098 = vunpack.c.l.b16 %v957
        %v5099 = vunpack.c.h.b16 %v957
        %v5100 = vunpack.c.l.b16 %v958
        %v5101 = vunpack.c.h.b16 %v958
        %v5102 = vunpack.c.l.b16 %v959
        %v5103 = vunpack.c.h.b16 %v959
        %v5104 = vunpack.c.l.b16 %v960
        %v5105 = vunpack.c.h.b16 %v960
        %v5106 = vunpack.c.l.b16 %v961
        %v5107 = vunpack.c.h.b16 %v961
        %v5108 = vunpack.c.l.b16 %v962
        %v5109 = vunpack.c.h.b16 %v962
        %v5110 = vunpack.c.l.b16 %v963
        %v5111 = vunpack.c.h.b16 %v963
        %v5112 = vunpack.c.l.b16 %v964
        %v5113 = vunpack.c.h.b16 %v964
        %v5114 = vunpack.c.l.b16 %v965
        %v5115 = vunpack.c.h.b16 %v965
        %v5116 = vunpack.c.l.b16 %v966
        %v5117 = vunpack.c.h.b16 %v966
        %v5118 = vunpack.c.l.b16 %v967
        %v5119 = vunpack.c.h.b16 %v967
        %v5120 = vunpack.c.l.b16 %v968
        %v5121 = vunpack.c.h.b16 %v968
        %v5122 = vunpack.c.l.b16 %v969
        %v5123 = vunpack.c.h.b16 %v969
        %v5124 = vunpack.c.l.b16 %v970
        %v5125 = vunpack.c.h.b16 %v970
        %v5126 = vunpack.c.l.b16 %v971
        %v5127 = vunpack.c.h.b16 %v971
        %v5128 = vunpack.c.l.b16 %v972
        %v5129 = vunpack.c.h.b16 %v972
        %v5130 = vunpack.c.l.b16 %v973
        %v5131 = vunpack.c.h.b16 %v973
        %v5132 = vunpack.c.l.b16 %v974
        %v5133 = vunpack.c.h.b16 %v974
        %v5134 = vunpack.c.l.b16 %v975
        %v5135 = vunpack.c.h.b16 %v975
        %v5136 = vunpack.c.l.b16 %v976
        %v5137 = vunpack.c.h.b16 %v976
        %v5138 = vunpack.c.l.b16 %v977
        %v5139 = vunpack.c.h.b16 %v977
        %v5140 = vunpack.c.l.b16 %v978
        %v5141 = vunpack.c.h.b16 %v978
        %v5142 = vunpack.c.l.b16 %v979
        %v5143 = vunpack.c.h.b16 %v979
        %v5144 = vunpack.c.l.b16 %v980
        %v5145 = vunpack.c.h.b16 %v980
        %v5146 = vunpack.c.l.b16 %v981
        %v5147 = vunpack.c.h.b16 %v981
        %v5148 = vunpack.c.l.b16 %v982
        %v5149 = vunpack.c.h.b16 %v982
        %v5150 = vunpack.c.l.b16 %v983
        %v5151 = vunpack.c.h.b16 %v983
        %v5152 = vunpack.c.l.b16 %v984
        %v5153 = vunpack.c.h.b16 %v984
        %v5154 = vunpack.c.l.b16 %v985
        %v5155 = vunpack.c.h.b16 %v985
        %v5156 = vunpack.c.l.b16 %v986
        %v5157 = vunpack.c.h.b16 %v986
        %v5158 = vunpack.c.l.b16 %v987
        %v5159 = vunpack.c.h.b16 %v987
        %v5160 = vunpack.c.l.b16 %v988
        %v5161 = vunpack.c.h.b16 %v988
        %v5162 = vunpack.c.l.b16 %v989
        %v5163 = vunpack.c.h.b16 %v989
        %v5164 = vunpack.c.l.b16 %v990
        %v5165 = vunpack.c.h.b16 %v990
        %v5166 = vunpack.c.l.b16 %v991
        %v5167 = vunpack.c.h.b16 %v991
        %v5168 = vunpack.c.l.b16 %v992
        %v5169 = vunpack.c.h.b16 %v992
        %v5170 = vunpack.c.l.b16 %v993
        %v5171 = vunpack.c.h.b16 %v993
        %v5172 = vunpack.c.l.b16 %v994
        %v5173 = vunpack.c.h.b16 %v994
        %v5174 = vunpack.c.l.b16 %v995
        %v5175 = vunpack.c.h.b16 %v995
        %v5176 = vunpack.c.l.b16 %v996
        %v5177 = vunpack.c.h.b16 %v996
        %v5178 = vunpack.c.l.b16 %v997
        %v5179 = vunpack.c.h.b16 %v997
        %v5180 = vunpack.c.l.b16 %v998
        %v5181 = vunpack.c.h.b16 %v998
        %v5182 = vunpack.c.l.b16 %v999
        %v5183 = vunpack.c.h.b16 %v999
        %v5184 = vunpack.c.l.b16 %v1000
        %v5185 = vunpack.c.h.b16 %v1000
        %v5186 = vunpack.c.l.b16 %v1001
        %v5187 = vunpack.c.h.b16 %v1001
        %v5188 = vunpack.c.l.b16 %v1002
        %v5189 = vunpack.c.h.b16 %v1002
        %v5190 = vunpack.c.l.b16 %v1003
        %v5191 = vunpack.c.h.b16 %v1003
        %v5192 = vunpack.c.l.b16 %v1004
        %v5193 = vunpack.c.h.b16 %v1004
        %v5194 = vunpack.c.l.b16 %v1005
        %v5195 = vunpack.c.h.b16 %v1005
        %v5196 = vunpack.c.l.b16 %v1006
        %v5197 = vunpack.c.h.b16 %v1006
        %v5198 = vunpack.c.l.b16 %v1007
        %v5199 = vunpack.c.h.b16 %v1007
        %v5200 = vunpack.c.l.b16 %v1008
        %v5201 = vunpack.c.h.b16 %v1008
        %v5202 = vunpack.c.l.b16 %v1009
        %v5203 = vunpack.c.h.b16 %v1009
        %v5204 = vunpack.c.l.b16 %v1010
        %v5205 = vunpack.c.h.b16 %v1010
        %v5206 = vunpack.c.l.b16 %v1011
        %v5207 = vunpack.c.h.b16 %v1011
        %v5208 = vunpack.c.l.b16 %v1012
        %v5209 = vunpack.c.h.b16 %v1012
        %v5210 = vunpack.c.l.b16 %v1013
        %v5211 = vunpack.c.h.b16 %v1013
        %v5212 = vunpack.c.l.b16 %v1014
        %v5213 = vunpack.c.h.b16 %v1014
        %v5214 = vunpack.c.l.b16 %v1015
        %v5215 = vunpack.c.h.b16 %v1015
        %v5216 = vunpack.c.l.b16 %v1016
        %v5217 = vunpack.c.h.b16 %v1016
        %v5218 = vunpack.c.l.b16 %v1017
        %v5219 = vunpack.c.h.b16 %v1017
        %v5220 = vunpack.c.l.b16 %v1018
        %v5221 = vunpack.c.h.b16 %v1018
        %v5222 = vunpack.c.l.b16 %v1019
        %v5223 = vunpack.c.h.b16 %v1019
        %v5224 = vunpack.c.l.b16 %v1020
        %v5225 = vunpack.c.h.b16 %v1020
        %v5226 = vunpack.c.l.b16 %v1021
        %v5227 = vunpack.c.h.b16 %v1021
        %v5228 = vunpack.c.l.b16 %v1022
        %v5229 = vunpack.c.h.b16 %v1022
        %v5230 = vunpack.c.l.b16 %v1023
        %v5231 = vunpack.c.h.b16 %v1023
        %v5232 = vunpack.c.l.b16 %v1024
        %v5233 = vunpack.c.h.b16 %v1024
        %v5234 = vunpack.c.l.b16 %v1025
        %v5235 = vunpack.c.h.b16 %v1025
        %v5236 = vunpack.c.l.b16 %v1026
        %v5237 = vunpack.c.h.b16 %v1026
        %v5238 = vunpack.c.l.b16 %v1027
        %v5239 = vunpack.c.h.b16 %v1027
        %v5240 = vunpack.c.l.b16 %v1028
        %v5241 = vunpack.c.h.b16 %v1028
        %v5242 = vunpack.c.l.b16 %v1029
        %v5243 = vunpack.c.h.b16 %v1029
        %v5244 = vunpack.c.l.b16 %v1030
        %v5245 = vunpack.c.h.b16 %v1030
        %v5246 = vunpack.c.l.b16 %v1031
        %v5247 = vunpack.c.h.b16 %v1031
        %v5248 = vunpack.c.l.b16 %v1032
        %v5249 = vunpack.c.h.b16 %v1032
        %v5250 = vunpack.c.l.b16 %v1033
        %v5251 = vunpack.c.h.b16 %v1033
        %v5252 = vunpack.c.l.b16 %v1034
        %v5253 = vunpack.c.h.b16 %v1034
        %v5254 = vunpack.c.l.b16 %v1035
        %v5255 = vunpack.c.h.b16 %v1035
        %v5256 = vunpack.c.l.b16 %v1036
        %v5257 = vunpack.c.h.b16 %v1036
        %v5258 = vunpack.c.l.b16 %v1037
        %v5259 = vunpack.c.h.b16 %v1037
        %v5260 = vunpack.c.l.b16 %v1038
        %v5261 = vunpack.c.h.b16 %v1038
        %v5262 = vunpack.c.l.b16 %v1039
        %v5263 = vunpack.c.h.b16 %v1039
        %v5264 = vunpack.c.l.b16 %v1040
        %v5265 = vunpack.c.h.b16 %v1040
        %v5266 = vunpack.c.l.b16 %v1041
        %v5267 = vunpack.c.h.b16 %v1041
        %v5268 = vunpack.c.l.b16 %v1042
        %v5269 = vunpack.c.h.b16 %v1042
        %v5270 = vunpack.c.l.b16 %v1043
        %v5271 = vunpack.c.h.b16 %v1043
        %v5272 = vunpack.c.l.b16 %v1044
        %v5273 = vunpack.c.h.b16 %v1044
        %v5274 = vunpack.c.l.b16 %v1045
        %v5275 = vunpack.c.h.b16 %v1045
        %v5276 = vunpack.c.l.b16 %v1046
        %v5277 = vunpack.c.h.b16 %v1046
        %v5278 = vunpack.c.l.b16 %v1047
        %v5279 = vunpack.c.h.b16 %v1047
        %v5280 = vunpack.c.l.b16 %v1048
        %v5281 = vunpack.c.h.b16 %v1048
        %v5282 = vunpack.c.l.b16 %v1049
        %v5283 = vunpack.c.h.b16 %v1049
        %v5284 = vunpack.c.l.b16 %v1050
        %v5285 = vunpack.c.h.b16 %v1050
        %v5286 = vunpack.c.l.b16 %v1051
        %v5287 = vunpack.c.h.b16 %v1051
        %v5288 = vunpack.c.l.b16 %v1052
        %v5289 = vunpack.c.h.b16 %v1052
        %v5290 = vunpack.c.l.b16 %v1053
        %v5291 = vunpack.c.h.b16 %v1053
        %v5292 = vunpack.c.l.b16 %v1054
        %v5293 = vunpack.c.h.b16 %v1054
        %v5294 = vunpack.c.l.b16 %v1055
        %v5295 = vunpack.c.h.b16 %v1055
        %v5296 = vunpack.c.l.b16 %v1056
        %v5297 = vunpack.c.h.b16 %v1056
        %v5298 = vunpack.c.l.b16 %v1057
        %v5299 = vunpack.c.h.b16 %v1057
        %v5300 = vunpack.c.l.b16 %v1058
        %v5301 = vunpack.c.h.b16 %v1058
        %v5302 = vunpack.c.l.b16 %v1059
        %v5303 = vunpack.c.h.b16 %v1059
        %v5304 = vunpack.c.l.b16 %v1060
        %v5305 = vunpack.c.h.b16 %v1060
        %v5306 = vunpack.c.l.b16 %v1061
        %v5307 = vunpack.c.h.b16 %v1061
        %v5308 = vunpack.c.l.b16 %v1062
        %v5309 = vunpack.c.h.b16 %v1062
        %v5310 = vunpack.c.l.b16 %v1063
        %v5311 = vunpack.c.h.b16 %v1063
        %v5312 = vunpack.c.l.b16 %v1064
        %v5313 = vunpack.c.h.b16 %v1064
        %v5314 = vunpack.c.l.b16 %v1065
        %v5315 = vunpack.c.h.b16 %v1065
        %v5316 = vunpack.c.l.b16 %v1066
        %v5317 = vunpack.c.h.b16 %v1066
        %v5318 = vunpack.c.l.b16 %v1067
        %v5319 = vunpack.c.h.b16 %v1067
        %v5320 = vunpack.c.l.b16 %v1068
        %v5321 = vunpack.c.h.b16 %v1068
        %v5322 = vunpack.c.l.b16 %v1069
        %v5323 = vunpack.c.h.b16 %v1069
        %v5324 = vunpack.c.l.b16 %v1070
        %v5325 = vunpack.c.h.b16 %v1070
        %v5326 = vunpack.c.l.b16 %v1071
        %v5327 = vunpack.c.h.b16 %v1071
        %v5328 = vunpack.c.l.b16 %v1072
        %v5329 = vunpack.c.h.b16 %v1072
        %v5330 = vunpack.c.l.b16 %v1073
        %v5331 = vunpack.c.h.b16 %v1073
        %v5332 = vunpack.c.l.b16 %v1074
        %v5333 = vunpack.c.h.b16 %v1074
        %v5334 = vunpack.c.l.b16 %v1075
        %v5335 = vunpack.c.h.b16 %v1075
        %v5336 = vunpack.c.l.b16 %v1076
        %v5337 = vunpack.c.h.b16 %v1076
        %v5338 = vunpack.c.l.b16 %v1077
        %v5339 = vunpack.c.h.b16 %v1077
        %v5340 = vunpack.c.l.b16 %v1078
        %v5341 = vunpack.c.h.b16 %v1078
        %v5342 = vunpack.c.l.b16 %v1079
        %v5343 = vunpack.c.h.b16 %v1079
        %v5344 = vunpack.c.l.b16 %v1080
        %v5345 = vunpack.c.h.b16 %v1080
        %v5346 = vunpack.c.l.b16 %v1081
        %v5347 = vunpack.c.h.b16 %v1081
        %v5348 = vunpack.c.l.b16 %v1082
        %v5349 = vunpack.c.h.b16 %v1082
        %v5350 = vunpack.c.l.b16 %v1083
        %v5351 = vunpack.c.h.b16 %v1083
        %v5352 = vunpack.c.l.b16 %v1084
        %v5353 = vunpack.c.h.b16 %v1084
        %v5354 = vunpack.c.l.b16 %v1085
        %v5355 = vunpack.c.h.b16 %v1085
        %v5356 = vunpack.c.l.b16 %v1086
        %v5357 = vunpack.c.h.b16 %v1086
        %v5358 = vunpack.c.l.b16 %v1087
        %v5359 = vunpack.c.h.b16 %v1087
        %v5360 = vunpack.c.l.b16 %v1088
        %v5361 = vunpack.c.h.b16 %v1088
        %v5362 = vunpack.c.l.b16 %v1089
        %v5363 = vunpack.c.h.b16 %v1089
        %v5364 = vunpack.c.l.b16 %v1090
        %v5365 = vunpack.c.h.b16 %v1090
        %v5366 = vunpack.c.l.b16 %v1091
        %v5367 = vunpack.c.h.b16 %v1091
        %v5368 = vunpack.c.l.b16 %v1092
        %v5369 = vunpack.c.h.b16 %v1092
        %v5370 = vunpack.c.l.b16 %v1093
        %v5371 = vunpack.c.h.b16 %v1093
        %v5372 = vunpack.c.l.b16 %v1094
        %v5373 = vunpack.c.h.b16 %v1094
        %v5374 = vunpack.c.l.b16 %v1095
        %v5375 = vunpack.c.h.b16 %v1095
        %v5376 = vunpack.c.l.b16 %v1096
        %v5377 = vunpack.c.h.b16 %v1096
        %v5378 = vunpack.c.l.b16 %v1097
        %v5379 = vunpack.c.h.b16 %v1097
        %v5380 = vunpack.c.l.b16 %v1098
        %v5381 = vunpack.c.h.b16 %v1098
        %v5382 = vunpack.c.l.b16 %v1099
        %v5383 = vunpack.c.h.b16 %v1099
        %v5384 = vunpack.c.l.b16 %v1100
        %v5385 = vunpack.c.h.b16 %v1100
        %v5386 = vunpack.c.l.b16 %v1101
        %v5387 = vunpack.c.h.b16 %v1101
        %v5388 = vunpack.c.l.b16 %v1102
        %v5389 = vunpack.c.h.b16 %v1102
        %v5390 = vunpack.c.l.b16 %v1103
        %v5391 = vunpack.c.h.b16 %v1103
        %v5392 = vunpack.c.l.b16 %v1104
        %v5393 = vunpack.c.h.b16 %v1104
        %v5394 = vunpack.c.l.b16 %v1105
        %v5395 = vunpack.c.h.b16 %v1105
        %v5396 = vunpack.c.l.b16 %v1106
        %v5397 = vunpack.c.h.b16 %v1106
        %v5398 = vunpack.c.l.b16 %v1107
        %v5399 = vunpack.c.h.b16 %v1107
        %v5400 = vunpack.c.l.b16 %v1108
        %v5401 = vunpack.c.h.b16 %v1108
        %v5402 = vunpack.c.l.b16 %v1109
        %v5403 = vunpack.c.h.b16 %v1109
        %v5404 = vunpack.c.l.b16 %v1110
        %v5405 = vunpack.c.h.b16 %v1110
        %v5406 = vunpack.c.l.b16 %v1111
        %v5407 = vunpack.c.h.b16 %v1111
        %v5408 = vunpack.c.l.b16 %v1112
        %v5409 = vunpack.c.h.b16 %v1112
        %v5410 = vunpack.c.l.b16 %v1113
        %v5411 = vunpack.c.h.b16 %v1113
        %v5412 = vunpack.c.l.b16 %v1114
        %v5413 = vunpack.c.h.b16 %v1114
        %v5414 = vunpack.c.l.b16 %v1115
        %v5415 = vunpack.c.h.b16 %v1115
        %v5416 = vunpack.c.l.b16 %v1116
        %v5417 = vunpack.c.h.b16 %v1116
        %v5418 = vunpack.c.l.b16 %v1117
        %v5419 = vunpack.c.h.b16 %v1117
        %v5420 = vunpack.c.l.b16 %v1118
        %v5421 = vunpack.c.h.b16 %v1118
        %v5422 = vunpack.c.l.b16 %v1119
        %v5423 = vunpack.c.h.b16 %v1119
        %v5424 = vunpack.c.l.b16 %v1120
        %v5425 = vunpack.c.h.b16 %v1120
        %v5426 = vunpack.c.l.b16 %v1121
        %v5427 = vunpack.c.h.b16 %v1121
        %v5428 = vunpack.c.l.b16 %v1122
        %v5429 = vunpack.c.h.b16 %v1122
        %v5430 = vunpack.c.l.b16 %v1123
        %v5431 = vunpack.c.h.b16 %v1123
        %v5432 = vunpack.c.l.b16 %v1124
        %v5433 = vunpack.c.h.b16 %v1124
        %v5434 = vunpack.c.l.b16 %v1125
        %v5435 = vunpack.c.h.b16 %v1125
        %v5436 = vunpack.c.l.b16 %v1126
        %v5437 = vunpack.c.h.b16 %v1126
        %v5438 = vunpack.c.l.b16 %v1127
        %v5439 = vunpack.c.h.b16 %v1127
        %v5440 = vunpack.c.l.b16 %v1128
        %v5441 = vunpack.c.h.b16 %v1128
        %v5442 = vunpack.c.l.b16 %v1129
        %v5443 = vunpack.c.h.b16 %v1129
        %v5444 = vunpack.c.l.b16 %v1130
        %v5445 = vunpack.c.h.b16 %v1130
        %v5446 = vunpack.c.l.b16 %v1131
        %v5447 = vunpack.c.h.b16 %v1131
        %v5448 = vunpack.c.l.b16 %v1132
        %v5449 = vunpack.c.h.b16 %v1132
        %v5450 = vunpack.c.l.b16 %v1133
        %v5451 = vunpack.c.h.b16 %v1133
        %v5452 = vunpack.c.l.b16 %v1134
        %v5453 = vunpack.c.h.b16 %v1134
        %v5454 = vunpack.c.l.b16 %v1135
        %v5455 = vunpack.c.h.b16 %v1135
        %v5456 = vunpack.c.l.b16 %v1136
        %v5457 = vunpack.c.h.b16 %v1136
        %v5458 = vunpack.c.l.b16 %v1137
        %v5459 = vunpack.c.h.b16 %v1137
        %v5460 = vunpack.c.l.b16 %v1138
        %v5461 = vunpack.c.h.b16 %v1138
        %v5462 = vunpack.c.l.b16 %v1139
        %v5463 = vunpack.c.h.b16 %v1139
        %v5464 = vunpack.c.l.b16 %v1140
        %v5465 = vunpack.c.h.b16 %v1140
        %v5466 = vunpack.c.l.b16 %v1141
        %v5467 = vunpack.c.h.b16 %v1141
        %v5468 = vunpack.c.l.b16 %v1142
        %v5469 = vunpack.c.h.b16 %v1142
        %v5470 = vunpack.c.l.b16 %v1143
        %v5471 = vunpack.c.h.b16 %v1143
        %v5472 = vunpack.c.l.b16 %v1144
        %v5473 = vunpack.c.h.b16 %v1144
        %v5474 = vunpack.c.l.b16 %v1145
        %v5475 = vunpack.c.h.b16 %v1145
        %v5476 = vunpack.c.l.b16 %v1146
        %v5477 = vunpack.c.h.b16 %v1146
        %v5478 = vunpack.c.l.b16 %v1147
        %v5479 = vunpack.c.h.b16 %v1147
        %v5480 = vunpack.c.l.b16 %v1148
        %v5481 = vunpack.c.h.b16 %v1148
        %v5482 = vunpack.c.l.b16 %v1149
        %v5483 = vunpack.c.h.b16 %v1149
        %v5484 = vunpack.c.l.b16 %v1150
        %v5485 = vunpack.c.h.b16 %v1150
        %v5486 = vunpack.c.l.b16 %v1151
        %v5487 = vunpack.c.h.b16 %v1151
        %v5488 = vunpack.c.l.b16 %v1152
        %v5489 = vunpack.c.h.b16 %v1152
        %v5490 = vunpack.c.l.b16 %v1153
        %v5491 = vunpack.c.h.b16 %v1153
        %v5492 = vunpack.c.l.b16 %v1154
        %v5493 = vunpack.c.h.b16 %v1154
        %v5494 = vunpack.c.l.b16 %v1155
        %v5495 = vunpack.c.h.b16 %v1155
        %v5496 = vunpack.c.l.b16 %v1156
        %v5497 = vunpack.c.h.b16 %v1156
        %v5498 = vunpack.c.l.b16 %v1157
        %v5499 = vunpack.c.h.b16 %v1157
        %v5500 = vunpack.c.l.b16 %v1158
        %v5501 = vunpack.c.h.b16 %v1158
        %v5502 = vunpack.c.l.b16 %v1159
        %v5503 = vunpack.c.h.b16 %v1159
        %v5504 = vunpack.c.l.b16 %v1160
        %v5505 = vunpack.c.h.b16 %v1160
        %v5506 = vunpack.c.l.b16 %v1161
        %v5507 = vunpack.c.h.b16 %v1161
        %v5508 = vunpack.c.l.b16 %v1162
        %v5509 = vunpack.c.h.b16 %v1162
        %v5510 = vunpack.c.l.b16 %v1163
        %v5511 = vunpack.c.h.b16 %v1163
        %v5512 = vunpack.c.l.b16 %v1164
        %v5513 = vunpack.c.h.b16 %v1164
        %v5514 = vunpack.c.l.b16 %v1165
        %v5515 = vunpack.c.h.b16 %v1165
        %v5516 = vunpack.c.l.b16 %v1166
        %v5517 = vunpack.c.h.b16 %v1166
        %v5518 = vunpack.c.l.b16 %v1167
        %v5519 = vunpack.c.h.b16 %v1167
        %v5520 = vunpack.c.l.b16 %v1168
        %v5521 = vunpack.c.h.b16 %v1168
        %v5522 = vunpack.c.l.b16 %v1169
        %v5523 = vunpack.c.h.b16 %v1169
        %v5524 = vunpack.c.l.b16 %v1170
        %v5525 = vunpack.c.h.b16 %v1170
        %v5526 = vunpack.c.l.b16 %v1171
        %v5527 = vunpack.c.h.b16 %v1171
        %v5528 = vunpack.c.l.b16 %v1172
        %v5529 = vunpack.c.h.b16 %v1172
        %v5530 = vunpack.c.l.b16 %v1173
        %v5531 = vunpack.c.h.b16 %v1173
        %v5532 = vunpack.c.l.b16 %v1174
        %v5533 = vunpack.c.h.b16 %v1174
        %v5534 = vunpack.c.l.b16 %v1175
        %v5535 = vunpack.c.h.b16 %v1175
        %v5536 = vunpack.c.l.b16 %v1176
        %v5537 = vunpack.c.h.b16 %v1176
        %v5538 = vunpack.c.l.b16 %v1177
        %v5539 = vunpack.c.h.b16 %v1177
        %v5540 = vunpack.c.l.b16 %v1178
        %v5541 = vunpack.c.h.b16 %v1178
        %v5542 = vunpack.c.l.b16 %v1179
        %v5543 = vunpack.c.h.b16 %v1179
        %v5544 = vunpack.c.l.b16 %v1180
        %v5545 = vunpack.c.h.b16 %v1180
        %v5546 = vunpack.c.l.b16 %v1181
        %v5547 = vunpack.c.h.b16 %v1181
        %v5548 = vunpack.c.l.b16 %v1182
        %v5549 = vunpack.c.h.b16 %v1182
        %v5550 = vunpack.c.l.b16 %v1183
        %v5551 = vunpack.c.h.b16 %v1183
        %v5552 = vunpack.c.l.b16 %v1184
        %v5553 = vunpack.c.h.b16 %v1184
        %v5554 = vunpack.c.l.b16 %v1185
        %v5555 = vunpack.c.h.b16 %v1185
        %v5556 = vunpack.c.l.b16 %v1186
        %v5557 = vunpack.c.h.b16 %v1186
        %v5558 = vunpack.c.l.b16 %v1187
        %v5559 = vunpack.c.h.b16 %v1187
        %v5560 = vunpack.c.l.b16 %v1188
        %v5561 = vunpack.c.h.b16 %v1188
        %v5562 = vunpack.c.l.b16 %v1189
        %v5563 = vunpack.c.h.b16 %v1189
        %v5564 = vunpack.c.l.b16 %v1190
        %v5565 = vunpack.c.h.b16 %v1190
        %v5566 = vunpack.c.l.b16 %v1191
        %v5567 = vunpack.c.h.b16 %v1191
        %v5568 = vunpack.c.l.b16 %v1192
        %v5569 = vunpack.c.h.b16 %v1192
        %v5570 = vunpack.c.l.b16 %v1193
        %v5571 = vunpack.c.h.b16 %v1193
        %v5572 = vunpack.c.l.b16 %v1194
        %v5573 = vunpack.c.h.b16 %v1194
        %v5574 = vunpack.c.l.b16 %v1195
        %v5575 = vunpack.c.h.b16 %v1195
        %v5576 = vunpack.c.l.b16 %v1196
        %v5577 = vunpack.c.h.b16 %v1196
        %v5578 = vunpack.c.l.b16 %v1197
        %v5579 = vunpack.c.h.b16 %v1197
        %v5580 = vunpack.c.l.b16 %v1198
        %v5581 = vunpack.c.h.b16 %v1198
        %v5582 = vunpack.c.l.b16 %v1199
        %v5583 = vunpack.c.h.b16 %v1199
        %v5584 = vunpack.c.l.b16 %v1200
        %v5585 = vunpack.c.h.b16 %v1200
        %v5586 = vunpack.c.l.b16 %v1201
        %v5587 = vunpack.c.h.b16 %v1201
        %v5588 = vunpack.c.l.b16 %v1202
        %v5589 = vunpack.c.h.b16 %v1202
        %v5590 = vunpack.c.l.b16 %v1203
        %v5591 = vunpack.c.h.b16 %v1203
        %v5592 = vunpack.c.l.b16 %v1204
        %v5593 = vunpack.c.h.b16 %v1204
        %v5594 = vunpack.c.l.b16 %v1205
        %v5595 = vunpack.c.h.b16 %v1205
        %v5596 = vunpack.c.l.b16 %v1206
        %v5597 = vunpack.c.h.b16 %v1206
        %v5598 = vunpack.c.l.b16 %v1207
        %v5599 = vunpack.c.h.b16 %v1207
        %v5600 = vunpack.c.l.b16 %v1208
        %v5601 = vunpack.c.h.b16 %v1208
        %v5602 = vunpack.c.l.b16 %v1209
        %v5603 = vunpack.c.h.b16 %v1209
        %v5604 = vunpack.c.l.b16 %v1210
        %v5605 = vunpack.c.h.b16 %v1210
        %v5606 = vunpack.c.l.b16 %v1211
        %v5607 = vunpack.c.h.b16 %v1211
        %v5608 = vunpack.c.l.b16 %v1212
        %v5609 = vunpack.c.h.b16 %v1212
        %v5610 = vunpack.c.l.b16 %v1213
        %v5611 = vunpack.c.h.b16 %v1213
        %v5612 = vunpack.c.l.b16 %v1214
        %v5613 = vunpack.c.h.b16 %v1214
        %v5614 = vunpack.c.l.b16 %v1215
        %v5615 = vunpack.c.h.b16 %v1215
        %v5616 = vunpack.c.l.b16 %v1216
        %v5617 = vunpack.c.h.b16 %v1216
        %v5618 = vunpack.c.l.b16 %v1217
        %v5619 = vunpack.c.h.b16 %v1217
        %v5620 = vunpack.c.l.b16 %v1218
        %v5621 = vunpack.c.h.b16 %v1218
        %v5622 = vunpack.c.l.b16 %v1219
        %v5623 = vunpack.c.h.b16 %v1219
        %v5624 = vunpack.c.l.b16 %v1220
        %v5625 = vunpack.c.h.b16 %v1220
        %v5626 = vunpack.c.l.b16 %v1221
        %v5627 = vunpack.c.h.b16 %v1221
        %v5628 = vunpack.c.l.b16 %v1222
        %v5629 = vunpack.c.h.b16 %v1222
        %v5630 = vunpack.c.l.b16 %v1223
        %v5631 = vunpack.c.h.b16 %v1223
        %v5632 = vunpack.c.l.b16 %v1224
        %v5633 = vunpack.c.h.b16 %v1224
        %v5634 = vunpack.c.l.b16 %v1225
        %v5635 = vunpack.c.h.b16 %v1225
        %v5636 = vunpack.c.l.b16 %v1226
        %v5637 = vunpack.c.h.b16 %v1226
        %v5638 = vunpack.c.l.b16 %v1227
        %v5639 = vunpack.c.h.b16 %v1227
        %v5640 = vunpack.c.l.b16 %v1228
        %v5641 = vunpack.c.h.b16 %v1228
        %v5642 = vunpack.c.l.b16 %v1229
        %v5643 = vunpack.c.h.b16 %v1229
        %v5644 = vunpack.c.l.b16 %v1230
        %v5645 = vunpack.c.h.b16 %v1230
        %v5646 = vunpack.c.l.b16 %v1231
        %v5647 = vunpack.c.h.b16 %v1231
        %v5648 = vunpack.c.l.b16 %v1232
        %v5649 = vunpack.c.h.b16 %v1232
        %v5650 = vunpack.c.l.b16 %v1233
        %v5651 = vunpack.c.h.b16 %v1233
        %v5652 = vunpack.c.l.b16 %v1234
        %v5653 = vunpack.c.h.b16 %v1234
        %v5654 = vunpack.c.l.b16 %v1235
        %v5655 = vunpack.c.h.b16 %v1235
        %v5656 = vunpack.c.l.b16 %v1236
        %v5657 = vunpack.c.h.b16 %v1236
        %v5658 = vunpack.c.l.b16 %v1237
        %v5659 = vunpack.c.h.b16 %v1237
        %v5660 = vunpack.c.l.b16 %v1238
        %v5661 = vunpack.c.h.b16 %v1238
        %v5662 = vunpack.c.l.b16 %v1239
        %v5663 = vunpack.c.h.b16 %v1239
        %v5664 = vunpack.c.l.b16 %v1240
        %v5665 = vunpack.c.h.b16 %v1240
        %v5666 = vunpack.c.l.b16 %v1241
        %v5667 = vunpack.c.h.b16 %v1241
        %v5668 = vunpack.c.l.b16 %v1242
        %v5669 = vunpack.c.h.b16 %v1242
        %v5670 = vunpack.c.l.b16 %v1243
        %v5671 = vunpack.c.h.b16 %v1243
        %v5672 = vunpack.c.l.b16 %v1244
        %v5673 = vunpack.c.h.b16 %v1244
        %v5674 = vunpack.c.l.b16 %v1245
        %v5675 = vunpack.c.h.b16 %v1245
        %v5676 = vunpack.c.l.b16 %v1246
        %v5677 = vunpack.c.h.b16 %v1246
        %v5678 = vunpack.c.l.b16 %v1247
        %v5679 = vunpack.c.h.b16 %v1247
        %v5680 = vunpack.c.l.b16 %v1248
        %v5681 = vunpack.c.h.b16 %v1248
        %v5682 = vunpack.c.l.b16 %v1249
        %v5683 = vunpack.c.h.b16 %v1249
        %v5684 = vunpack.c.l.b16 %v1250
        %v5685 = vunpack.c.h.b16 %v1250
        %v5686 = vunpack.c.l.b16 %v1251
        %v5687 = vunpack.c.h.b16 %v1251
        %v5688 = vunpack.c.l.b16 %v1252
        %v5689 = vunpack.c.h.b16 %v1252
        %v5690 = vunpack.c.l.b16 %v1253
        %v5691 = vunpack.c.h.b16 %v1253
        %v5692 = vunpack.c.l.b16 %v1254
        %v5693 = vunpack.c.h.b16 %v1254
        %v5694 = vunpack.c.l.b16 %v1255
        %v5695 = vunpack.c.h.b16 %v1255
        %v5696 = vunpack.c.l.b16 %v1256
        %v5697 = vunpack.c.h.b16 %v1256
        %v5698 = vunpack.c.l.b16 %v1257
        %v5699 = vunpack.c.h.b16 %v1257
        %v5700 = vunpack.c.l.b16 %v1258
        %v5701 = vunpack.c.h.b16 %v1258
        %v5702 = vunpack.c.l.b16 %v1259
        %v5703 = vunpack.c.h.b16 %v1259
        %v5704 = vunpack.c.l.b16 %v1260
        %v5705 = vunpack.c.h.b16 %v1260
        %v5706 = vunpack.c.l.b16 %v1261
        %v5707 = vunpack.c.h.b16 %v1261
        %v5708 = vunpack.c.l.b16 %v1262
        %v5709 = vunpack.c.h.b16 %v1262
        %v5710 = vunpack.c.l.b16 %v1263
        %v5711 = vunpack.c.h.b16 %v1263
        %v5712 = vunpack.c.l.b16 %v1264
        %v5713 = vunpack.c.h.b16 %v1264
        %v5714 = vunpack.c.l.b16 %v1265
        %v5715 = vunpack.c.h.b16 %v1265
        %v5716 = vunpack.c.l.b16 %v1266
        %v5717 = vunpack.c.h.b16 %v1266
        %v5718 = vunpack.c.l.b16 %v1267
        %v5719 = vunpack.c.h.b16 %v1267
        %v5720 = vunpack.c.l.b16 %v1268
        %v5721 = vunpack.c.h.b16 %v1268
        %v5722 = vunpack.c.l.b16 %v1269
        %v5723 = vunpack.c.h.b16 %v1269
        %v5724 = vunpack.c.l.b16 %v1270
        %v5725 = vunpack.c.h.b16 %v1270
        %v5726 = vunpack.c.l.b16 %v1271
        %v5727 = vunpack.c.h.b16 %v1271
        %v5728 = vunpack.c.l.b16 %v1272
        %v5729 = vunpack.c.h.b16 %v1272
        %v5730 = vunpack.c.l.b16 %v1273
        %v5731 = vunpack.c.h.b16 %v1273
        %v5732 = vunpack.c.l.b16 %v1274
        %v5733 = vunpack.c.h.b16 %v1274
        %v5734 = vunpack.c.l.b16 %v1275
        %v5735 = vunpack.c.h.b16 %v1275
        %v5736 = vunpack.c.l.b16 %v1276
        %v5737 = vunpack.c.h.b16 %v1276
        %v5738 = vunpack.c.l.b16 %v1277
        %v5739 = vunpack.c.h.b16 %v1277
        %v5740 = vunpack.c.l.b16 %v1278
        %v5741 = vunpack.c.h.b16 %v1278
        %v5742 = vunpack.c.l.b16 %v1279
        %v5743 = vunpack.c.h.b16 %v1279
        %v5744 = vunpack.c.l.b16 %v1280
        %v5745 = vunpack.c.h.b16 %v1280
        %v5746 = vunpack.c.l.b16 %v1281
        %v5747 = vunpack.c.h.b16 %v1281
        %v5748 = vunpack.c.l.b16 %v1282
        %v5749 = vunpack.c.h.b16 %v1282
        %v5750 = vunpack.c.l.b16 %v1283
        %v5751 = vunpack.c.h.b16 %v1283
        %v5752 = vunpack.c.l.b16 %v1284
        %v5753 = vunpack.c.h.b16 %v1284
        %v5754 = vunpack.c.l.b16 %v1285
        %v5755 = vunpack.c.h.b16 %v1285
        %v5756 = vunpack.c.l.b16 %v1286
        %v5757 = vunpack.c.h.b16 %v1286
        %v5758 = vunpack.c.l.b16 %v1287
        %v5759 = vunpack.c.h.b16 %v1287
        %v5760 = vunpack.c.l.b16 %v1288
        %v5761 = vunpack.c.h.b16 %v1288
        %v5762 = vunpack.c.l.b16 %v1289
        %v5763 = vunpack.c.h.b16 %v1289
        %v5764 = vunpack.c.l.b16 %v1290
        %v5765 = vunpack.c.h.b16 %v1290
        %v5766 = vunpack.c.l.b16 %v1291
        %v5767 = vunpack.c.h.b16 %v1291
        %v5768 = vunpack.c.l.b16 %v1292
        %v5769 = vunpack.c.h.b16 %v1292
        %v5770 = vunpack.c.l.b16 %v1293
        %v5771 = vunpack.c.h.b16 %v1293
        %v5772 = vunpack.c.l.b16 %v1294
        %v5773 = vunpack.c.h.b16 %v1294
        %v5774 = vunpack.c.l.b16 %v1295
        %v5775 = vunpack.c.h.b16 %v1295
        %v5776 = vunpack.c.l.b16 %v1296
        %v5777 = vunpack.c.h.b16 %v1296
        %v5778 = vunpack.c.l.b16 %v1297
        %v5779 = vunpack.c.h.b16 %v1297
        %v5780 = vunpack.c.l.b16 %v1298
        %v5781 = vunpack.c.h.b16 %v1298
        %v5782 = vunpack.c.l.b16 %v1299
        %v5783 = vunpack.c.h.b16 %v1299
        %v5784 = vunpack.c.l.b16 %v1300
        %v5785 = vunpack.c.h.b16 %v1300
        %v5786 = vunpack.c.l.b16 %v1301
        %v5787 = vunpack.c.h.b16 %v1301
        %v5788 = vunpack.c.l.b16 %v1302
        %v5789 = vunpack.c.h.b16 %v1302
        %v5790 = vunpack.c.l.b16 %v1303
        %v5791 = vunpack.c.h.b16 %v1303
        %v5792 = vunpack.c.l.b16 %v1304
        %v5793 = vunpack.c.h.b16 %v1304
        %v5794 = vunpack.c.l.b16 %v1305
        %v5795 = vunpack.c.h.b16 %v1305
        %v5796 = vunpack.c.l.b16 %v1306
        %v5797 = vunpack.c.h.b16 %v1306
        %v5798 = vunpack.c.l.b16 %v1307
        %v5799 = vunpack.c.h.b16 %v1307
        %v5800 = vunpack.c.l.b16 %v1308
        %v5801 = vunpack.c.h.b16 %v1308
        %v5802 = vunpack.c.l.b16 %v1309
        %v5803 = vunpack.c.h.b16 %v1309
        %v5804 = vunpack.c.l.b16 %v1310
        %v5805 = vunpack.c.h.b16 %v1310
        %v5806 = vunpack.c.l.b16 %v1311
        %v5807 = vunpack.c.h.b16 %v1311
        %v5808 = vunpack.c.l.b16 %v1312
        %v5809 = vunpack.c.h.b16 %v1312
        %v5810 = vunpack.c.l.b16 %v1313
        %v5811 = vunpack.c.h.b16 %v1313
        %v5812 = vunpack.c.l.b16 %v1314
        %v5813 = vunpack.c.h.b16 %v1314
        %v5814 = vunpack.c.l.b16 %v1315
        %v5815 = vunpack.c.h.b16 %v1315
        %v5816 = vunpack.c.l.b16 %v1316
        %v5817 = vunpack.c.h.b16 %v1316
        %v5818 = vunpack.c.l.b16 %v1317
        %v5819 = vunpack.c.h.b16 %v1317
        %v5820 = vunpack.c.l.b16 %v1318
        %v5821 = vunpack.c.h.b16 %v1318
        %v5822 = vunpack.c.l.b16 %v1319
        %v5823 = vunpack.c.h.b16 %v1319
        %v5824 = vunpack.c.l.b16 %v1320
        %v5825 = vunpack.c.h.b16 %v1320
        %v5826 = vunpack.c.l.b16 %v1321
        %v5827 = vunpack.c.h.b16 %v1321
        %v5828 = vunpack.c.l.b16 %v1322
        %v5829 = vunpack.c.h.b16 %v1322
        %v5830 = vunpack.c.l.b16 %v1323
        %v5831 = vunpack.c.h.b16 %v1323
        %v5832 = vunpack.c.l.b16 %v1324
        %v5833 = vunpack.c.h.b16 %v1324
        %v5834 = vunpack.c.l.b16 %v1325
        %v5835 = vunpack.c.h.b16 %v1325
        %v5836 = vunpack.c.l.b16 %v1326
        %v5837 = vunpack.c.h.b16 %v1326
        %v5838 = vunpack.c.l.b16 %v1327
        %v5839 = vunpack.c.h.b16 %v1327
        %v5840 = vunpack.c.l.b16 %v1328
        %v5841 = vunpack.c.h.b16 %v1328
        %v5842 = vunpack.c.l.b16 %v1329
        %v5843 = vunpack.c.h.b16 %v1329
        %v5844 = vunpack.c.l.b16 %v1330
        %v5845 = vunpack.c.h.b16 %v1330
        %v5846 = vunpack.c.l.b16 %v1331
        %v5847 = vunpack.c.h.b16 %v1331
        %v5848 = vunpack.c.l.b16 %v1332
        %v5849 = vunpack.c.h.b16 %v1332
        %v5850 = vunpack.c.l.b16 %v1333
        %v5851 = vunpack.c.h.b16 %v1333
        %v5852 = vunpack.c.l.b16 %v1334
        %v5853 = vunpack.c.h.b16 %v1334
        %v5854 = vunpack.c.l.b16 %v1335
        %v5855 = vunpack.c.h.b16 %v1335
        %v5856 = vunpack.c.l.b16 %v1336
        %v5857 = vunpack.c.h.b16 %v1336
        %v5858 = vunpack.c.l.b16 %v1337
        %v5859 = vunpack.c.h.b16 %v1337
        %v5860 = vunpack.c.l.b16 %v1338
        %v5861 = vunpack.c.h.b16 %v1338
        %v5862 = vunpack.c.l.b16 %v1339
        %v5863 = vunpack.c.h.b16 %v1339
        %v5864 = vunpack.c.l.b16 %v1340
        %v5865 = vunpack.c.h.b16 %v1340
        %v5866 = vunpack.c.l.b16 %v1341
        %v5867 = vunpack.c.h.b16 %v1341
        %v5868 = vunpack.c.l.b16 %v1342
        %v5869 = vunpack.c.h.b16 %v1342
        %v5870 = vunpack.c.l.b16 %v1343
        %v5871 = vunpack.c.h.b16 %v1343
        %v5872 = vunpack.c.l.b16 %v1344
        %v5873 = vunpack.c.h.b16 %v1344
        %v5874 = vunpack.c.l.b16 %v1345
        %v5875 = vunpack.c.h.b16 %v1345
        %v5876 = vunpack.c.l.b16 %v1346
        %v5877 = vunpack.c.h.b16 %v1346
        %v5878 = vunpack.c.l.b16 %v1347
        %v5879 = vunpack.c.h.b16 %v1347
        %v5880 = vunpack.c.l.b16 %v1348
        %v5881 = vunpack.c.h.b16 %v1348
        %v5882 = vunpack.c.l.b16 %v1349
        %v5883 = vunpack.c.h.b16 %v1349
        %v5884 = vunpack.c.l.b16 %v1350
        %v5885 = vunpack.c.h.b16 %v1350
        %v5886 = vunpack.c.l.b16 %v1351
        %v5887 = vunpack.c.h.b16 %v1351
        %v5888 = vunpack.c.l.b16 %v1352
        %v5889 = vunpack.c.h.b16 %v1352
        %v5890 = vunpack.c.l.b16 %v1353
        %v5891 = vunpack.c.h.b16 %v1353
        %v5892 = vunpack.c.l.b16 %v1354
        %v5893 = vunpack.c.h.b16 %v1354
        %v5894 = vunpack.c.l.b16 %v1355
        %v5895 = vunpack.c.h.b16 %v1355
        %v5896 = vunpack.c.l.b16 %v1356
        %v5897 = vunpack.c.h.b16 %v1356
        %v5898 = vunpack.c.l.b16 %v1357
        %v5899 = vunpack.c.h.b16 %v1357
        %v5900 = vunpack.c.l.b16 %v1358
        %v5901 = vunpack.c.h.b16 %v1358
        %v5902 = vunpack.c.l.b16 %v1359
        %v5903 = vunpack.c.h.b16 %v1359
        %v5904 = vunpack.c.l.b16 %v1360
        %v5905 = vunpack.c.h.b16 %v1360
        %v5906 = vunpack.c.l.b16 %v1361
        %v5907 = vunpack.c.h.b16 %v1361
        %v5908 = vunpack.c.l.b16 %v1362
        %v5909 = vunpack.c.h.b16 %v1362
        %v5910 = vunpack.c.l.b16 %v1363
        %v5911 = vunpack.c.h.b16 %v1363
        %v5912 = vunpack.c.l.b16 %v1364
        %v5913 = vunpack.c.h.b16 %v1364
        %v5914 = vunpack.c.l.b16 %v1365
        %v5915 = vunpack.c.h.b16 %v1365
        %v5916 = vunpack.c.l.b16 %v1366
        %v5917 = vunpack.c.h.b16 %v1366
        %v5918 = vunpack.c.l.b16 %v1367
        %v5919 = vunpack.c.h.b16 %v1367
        %v5920 = vunpack.c.l.b16 %v1368
        %v5921 = vunpack.c.h.b16 %v1368
        %v5922 = vunpack.c.l.b16 %v1369
        %v5923 = vunpack.c.h.b16 %v1369
        %v5924 = vunpack.c.l.b16 %v1370
        %v5925 = vunpack.c.h.b16 %v1370
        %v5926 = vunpack.c.l.b16 %v1371
        %v5927 = vunpack.c.h.b16 %v1371
        %v5928 = vunpack.c.l.b16 %v1372
        %v5929 = vunpack.c.h.b16 %v1372
        %v5930 = vunpack.c.l.b16 %v1373
        %v5931 = vunpack.c.h.b16 %v1373
        %v5932 = vunpack.c.l.b16 %v1374
        %v5933 = vunpack.c.h.b16 %v1374
        %v5934 = vunpack.c.l.b16 %v1375
        %v5935 = vunpack.c.h.b16 %v1375
        %v5936 = vunpack.c.l.b16 %v1376
        %v5937 = vunpack.c.h.b16 %v1376
        %v5938 = vunpack.c.l.b16 %v1377
        %v5939 = vunpack.c.h.b16 %v1377
        %v5940 = vunpack.c.l.b16 %v1378
        %v5941 = vunpack.c.h.b16 %v1378
        %v5942 = vunpack.c.l.b16 %v1379
        %v5943 = vunpack.c.h.b16 %v1379
        %v5944 = vunpack.c.l.b16 %v1380
        %v5945 = vunpack.c.h.b16 %v1380
        %v5946 = vunpack.c.l.b16 %v1381
        %v5947 = vunpack.c.h.b16 %v1381
        %v5948 = vunpack.c.l.b16 %v1382
        %v5949 = vunpack.c.h.b16 %v1382
        %v5950 = vunpack.c.l.b16 %v1383
        %v5951 = vunpack.c.h.b16 %v1383
        %v5952 = vunpack.c.l.b16 %v1384
        %v5953 = vunpack.c.h.b16 %v1384
        %v5954 = vunpack.c.l.b16 %v1385
        %v5955 = vunpack.c.h.b16 %v1385
        %v5956 = vunpack.c.l.b16 %v1386
        %v5957 = vunpack.c.h.b16 %v1386
        %v5958 = vunpack.c.l.b16 %v1387
        %v5959 = vunpack.c.h.b16 %v1387
        %v5960 = vunpack.c.l.b16 %v1388
        %v5961 = vunpack.c.h.b16 %v1388
        %v5962 = vunpack.c.l.b16 %v1389
        %v5963 = vunpack.c.h.b16 %v1389
        %v5964 = vunpack.c.l.b16 %v1390
        %v5965 = vunpack.c.h.b16 %v1390
        %v5966 = vunpack.c.l.b16 %v1391
        %v5967 = vunpack.c.h.b16 %v1391
        %v5968 = vunpack.c.l.b16 %v1392
        %v5969 = vunpack.c.h.b16 %v1392
        %v5970 = vunpack.c.l.b16 %v1393
        %v5971 = vunpack.c.h.b16 %v1393
        %v5972 = vunpack.c.l.b16 %v1394
        %v5973 = vunpack.c.h.b16 %v1394
        %v5974 = vunpack.c.l.b16 %v1395
        %v5975 = vunpack.c.h.b16 %v1395
        %v5976 = vunpack.c.l.b16 %v1396
        %v5977 = vunpack.c.h.b16 %v1396
        %v5978 = vunpack.c.l.b16 %v1397
        %v5979 = vunpack.c.h.b16 %v1397
        %v5980 = vunpack.c.l.b16 %v1398
        %v5981 = vunpack.c.h.b16 %v1398
        %v5982 = vunpack.c.l.b16 %v1399
        %v5983 = vunpack.c.h.b16 %v1399
        %v5984 = vunpack.c.l.b16 %v1400
        %v5985 = vunpack.c.h.b16 %v1400
        %v5986 = vunpack.c.l.b16 %v1401
        %v5987 = vunpack.c.h.b16 %v1401
        %v5988 = vunpack.c.l.b16 %v1402
        %v5989 = vunpack.c.h.b16 %v1402
        %v5990 = vunpack.c.l.b16 %v1403
        %v5991 = vunpack.c.h.b16 %v1403
        %v5992 = vunpack.c.l.b16 %v1404
        %v5993 = vunpack.c.h.b16 %v1404
        %v5994 = vunpack.c.l.b16 %v1405
        %v5995 = vunpack.c.h.b16 %v1405
        %v5996 = vunpack.c.l.b16 %v1406
        %v5997 = vunpack.c.h.b16 %v1406
        %v5998 = vunpack.c.l.b16 %v1407
        %v5999 = vunpack.c.h.b16 %v1407
        %v6000 = vunpack.c.l.b16 %v1408
        %v6001 = vunpack.c.h.b16 %v1408
        %v6002 = vunpack.c.l.b16 %v1409
        %v6003 = vunpack.c.h.b16 %v1409
        %v6004 = vunpack.c.l.b16 %v1410
        %v6005 = vunpack.c.h.b16 %v1410
        %v6006 = vunpack.c.l.b16 %v1411
        %v6007 = vunpack.c.h.b16 %v1411
        %v6008 = vunpack.c.l.b16 %v1412
        %v6009 = vunpack.c.h.b16 %v1412
        %v6010 = vunpack.c.l.b16 %v1413
        %v6011 = vunpack.c.h.b16 %v1413
        %v6012 = vunpack.c.l.b16 %v1414
        %v6013 = vunpack.c.h.b16 %v1414
        %v6014 = vunpack.c.l.b16 %v1415
        %v6015 = vunpack.c.h.b16 %v1415
        %v6016 = vunpack.c.l.b16 %v1416
        %v6017 = vunpack.c.h.b16 %v1416
        %v6018 = vunpack.c.l.b16 %v1417
        %v6019 = vunpack.c.h.b16 %v1417
        %v6020 = vunpack.c.l.b16 %v1418
        %v6021 = vunpack.c.h.b16 %v1418
        %v6022 = vunpack.c.l.b16 %v1419
        %v6023 = vunpack.c.h.b16 %v1419
        %v6024 = vunpack.c.l.b16 %v1420
        %v6025 = vunpack.c.h.b16 %v1420
        %v6026 = vunpack.c.l.b16 %v1421
        %v6027 = vunpack.c.h.b16 %v1421
        %v6028 = vunpack.c.l.b16 %v1422
        %v6029 = vunpack.c.h.b16 %v1422
        %v6030 = vunpack.c.l.b16 %v1423
        %v6031 = vunpack.c.h.b16 %v1423
        %v6032 = vunpack.c.l.b16 %v1424
        %v6033 = vunpack.c.h.b16 %v1424
        %v6034 = vunpack.c.l.b16 %v1425
        %v6035 = vunpack.c.h.b16 %v1425
        %v6036 = vunpack.c.l.b16 %v1426
        %v6037 = vunpack.c.h.b16 %v1426
        %v6038 = vunpack.c.l.b16 %v1427
        %v6039 = vunpack.c.h.b16 %v1427
        %v6040 = vunpack.c.l.b16 %v1428
        %v6041 = vunpack.c.h.b16 %v1428
        %v6042 = vunpack.c.l.b16 %v1429
        %v6043 = vunpack.c.h.b16 %v1429
        %v6044 = vunpack.c.l.b16 %v1430
        %v6045 = vunpack.c.h.b16 %v1430
        %v6046 = vunpack.c.l.b16 %v1431
        %v6047 = vunpack.c.h.b16 %v1431
        %v6048 = vunpack.c.l.b16 %v1432
        %v6049 = vunpack.c.h.b16 %v1432
        %v6050 = vunpack.c.l.b16 %v1433
        %v6051 = vunpack.c.h.b16 %v1433
        %v6052 = vunpack.c.l.b16 %v1434
        %v6053 = vunpack.c.h.b16 %v1434
        %v6054 = vunpack.c.l.b16 %v1435
        %v6055 = vunpack.c.h.b16 %v1435
        %v6056 = vunpack.c.l.b16 %v1436
        %v6057 = vunpack.c.h.b16 %v1436
        %v6058 = vunpack.c.l.b16 %v1437
        %v6059 = vunpack.c.h.b16 %v1437
        %v6060 = vunpack.c.l.b16 %v1438
        %v6061 = vunpack.c.h.b16 %v1438
        %v6062 = vunpack.c.l.b16 %v1439
        %v6063 = vunpack.c.h.b16 %v1439
        %v6064 = vunpack.c.l.b16 %v1440
        %v6065 = vunpack.c.h.b16 %v1440
        %v6066 = vunpack.c.l.b16 %v1441
        %v6067 = vunpack.c.h.b16 %v1441
        %v6068 = vunpack.c.l.b16 %v1442
        %v6069 = vunpack.c.h.b16 %v1442
        %v6070 = vunpack.c.l.b16 %v1443
        %v6071 = vunpack.c.h.b16 %v1443
        %v6072 = vunpack.c.l.b16 %v1444
        %v6073 = vunpack.c.h.b16 %v1444
        %v6074 = vunpack.c.l.b16 %v1445
        %v6075 = vunpack.c.h.b16 %v1445
        %v6076 = vunpack.c.l.b16 %v1446
        %v6077 = vunpack.c.h.b16 %v1446
        %v6078 = vunpack.c.l.b16 %v1447
        %v6079 = vunpack.c.h.b16 %v1447
        %v6080 = vunpack.c.l.b16 %v1448
        %v6081 = vunpack.c.h.b16 %v1448
        %v6082 = vunpack.c.l.b16 %v1449
        %v6083 = vunpack.c.h.b16 %v1449
        %v6084 = vunpack.c.l.b16 %v1450
        %v6085 = vunpack.c.h.b16 %v1450
        %v6086 = vunpack.c.l.b16 %v1451
        %v6087 = vunpack.c.h.b16 %v1451
        %v6088 = vunpack.c.l.b16 %v1452
        %v6089 = vunpack.c.h.b16 %v1452
        %v6090 = vunpack.c.l.b16 %v1453
        %v6091 = vunpack.c.h.b16 %v1453
        %v6092 = vunpack.c.l.b16 %v1454
        %v6093 = vunpack.c.h.b16 %v1454
        %v6094 = vunpack.c.l.b16 %v1455
        %v6095 = vunpack.c.h.b16 %v1455
        %v6096 = vunpack.c.l.b16 %v1456
        %v6097 = vunpack.c.h.b16 %v1456
        %v6098 = vunpack.c.l.b16 %v1457
        %v6099 = vunpack.c.h.b16 %v1457
        %v6100 = vunpack.c.l.b16 %v1458
        %v6101 = vunpack.c.h.b16 %v1458
        %v6102 = vunpack.c.l.b16 %v1459
        %v6103 = vunpack.c.h.b16 %v1459
        %v6104 = vunpack.c.l.b16 %v1460
        %v6105 = vunpack.c.h.b16 %v1460
        %v6106 = vunpack.c.l.b16 %v1461
        %v6107 = vunpack.c.h.b16 %v1461
        %v6108 = vunpack.c.l.b16 %v1462
        %v6109 = vunpack.c.h.b16 %v1462
        %v6110 = vunpack.c.l.b16 %v1463
        %v6111 = vunpack.c.h.b16 %v1463
        %v6112 = vunpack.c.l.b16 %v1464
        %v6113 = vunpack.c.h.b16 %v1464
        %v6114 = vunpack.c.l.b16 %v1465
        %v6115 = vunpack.c.h.b16 %v1465
        %v6116 = vunpack.c.l.b16 %v1466
        %v6117 = vunpack.c.h.b16 %v1466
        %v6118 = vunpack.c.l.b16 %v1467
        %v6119 = vunpack.c.h.b16 %v1467
        %v6120 = vunpack.c.l.b16 %v1468
        %v6121 = vunpack.c.h.b16 %v1468
        %v6122 = vunpack.c.l.b16 %v1469
        %v6123 = vunpack.c.h.b16 %v1469
        %v6124 = vunpack.c.l.b16 %v1470
        %v6125 = vunpack.c.h.b16 %v1470
        %v6126 = vunpack.c.l.b16 %v1471
        %v6127 = vunpack.c.h.b16 %v1471
        %v6128 = vunpack.c.l.b16 %v1472
        %v6129 = vunpack.c.h.b16 %v1472
        %v6130 = vunpack.c.l.b16 %v1473
        %v6131 = vunpack.c.h.b16 %v1473
        %v6132 = vunpack.c.l.b16 %v1474
        %v6133 = vunpack.c.h.b16 %v1474
        %v6134 = vunpack.c.l.b16 %v1475
        %v6135 = vunpack.c.h.b16 %v1475
        %v6136 = vunpack.c.l.b16 %v1476
        %v6137 = vunpack.c.h.b16 %v1476
        %v6138 = vunpack.c.l.b16 %v1477
        %v6139 = vunpack.c.h.b16 %v1477
        %v6140 = vunpack.c.l.b16 %v1478
        %v6141 = vunpack.c.h.b16 %v1478
        %v6142 = vunpack.c.l.b16 %v1479
        %v6143 = vunpack.c.h.b16 %v1479
        %v6144 = vunpack.c.l.b16 %v1480
        %v6145 = vunpack.c.h.b16 %v1480
        %v6146 = vunpack.c.l.b16 %v1481
        %v6147 = vunpack.c.h.b16 %v1481
        %v6148 = vunpack.c.l.b16 %v1482
        %v6149 = vunpack.c.h.b16 %v1482
        %v6150 = vunpack.c.l.b16 %v1483
        %v6151 = vunpack.c.h.b16 %v1483
        %v6152 = vunpack.c.l.b16 %v1484
        %v6153 = vunpack.c.h.b16 %v1484
        %v6154 = vunpack.c.l.b16 %v1485
        %v6155 = vunpack.c.h.b16 %v1485
        %v6156 = vunpack.c.l.b16 %v1486
        %v6157 = vunpack.c.h.b16 %v1486
        %v6158 = vunpack.c.l.b16 %v1487
        %v6159 = vunpack.c.h.b16 %v1487
        %v6160 = vunpack.c.l.b16 %v1488
        %v6161 = vunpack.c.h.b16 %v1488
        %v6162 = vunpack.c.l.b16 %v1489
        %v6163 = vunpack.c.h.b16 %v1489
        %v6164 = vunpack.c.l.b16 %v1490
        %v6165 = vunpack.c.h.b16 %v1490
        %v6166 = vunpack.c.l.b16 %v1491
        %v6167 = vunpack.c.h.b16 %v1491
        %v6168 = vunpack.c.l.b16 %v1492
        %v6169 = vunpack.c.h.b16 %v1492
        %v6170 = vunpack.c.l.b16 %v1493
        %v6171 = vunpack.c.h.b16 %v1493
        %v6172 = vunpack.c.l.b16 %v1494
        %v6173 = vunpack.c.h.b16 %v1494
        %v6174 = vunpack.c.l.b16 %v1495
        %v6175 = vunpack.c.h.b16 %v1495
        %v6176 = vunpack.c.l.b16 %v1496
        %v6177 = vunpack.c.h.b16 %v1496
        %v6178 = vunpack.c.l.b16 %v1497
        %v6179 = vunpack.c.h.b16 %v1497
        %v6180 = vunpack.c.l.b16 %v1498
        %v6181 = vunpack.c.h.b16 %v1498
        %v6182 = vunpack.c.l.b16 %v1499
        %v6183 = vunpack.c.h.b16 %v1499
        %v6184 = vunpack.c.l.b16 %v1500
        %v6185 = vunpack.c.h.b16 %v1500
        %v6186 = vunpack.c.l.b16 %v1501
        %v6187 = vunpack.c.h.b16 %v1501
        %v6188 = vunpack.c.l.b16 %v1502
        %v6189 = vunpack.c.h.b16 %v1502
        %v6190 = vunpack.c.l.b16 %v1503
        %v6191 = vunpack.c.h.b16 %v1503
        %v6192 = vunpack.c.l.b16 %v1504
        %v6193 = vunpack.c.h.b16 %v1504
        %v6194 = vunpack.c.l.b16 %v1505
        %v6195 = vunpack.c.h.b16 %v1505
        %v6196 = vunpack.c.l.b16 %v1506
        %v6197 = vunpack.c.h.b16 %v1506
        %v6198 = vunpack.c.l.b16 %v1507
        %v6199 = vunpack.c.h.b16 %v1507
        %v6200 = vunpack.c.l.b16 %v1508
        %v6201 = vunpack.c.h.b16 %v1508
        %v6202 = vunpack.c.l.b16 %v1509
        %v6203 = vunpack.c.h.b16 %v1509
        %v6204 = vunpack.c.l.b16 %v1510
        %v6205 = vunpack.c.h.b16 %v1510
        %v6206 = vunpack.c.l.b16 %v1511
        %v6207 = vunpack.c.h.b16 %v1511
        %v6208 = vunpack.c.l.b16 %v1512
        %v6209 = vunpack.c.h.b16 %v1512
        %v6210 = vunpack.c.l.b16 %v1513
        %v6211 = vunpack.c.h.b16 %v1513
        %v6212 = vunpack.c.l.b16 %v1514
        %v6213 = vunpack.c.h.b16 %v1514
        %v6214 = vunpack.c.l.b16 %v1515
        %v6215 = vunpack.c.h.b16 %v1515
        %v6216 = vunpack.c.l.b16 %v1516
        %v6217 = vunpack.c.h.b16 %v1516
        %v6218 = vunpack.c.l.b16 %v1517
        %v6219 = vunpack.c.h.b16 %v1517
        %v6220 = vunpack.c.l.b16 %v1518
        %v6221 = vunpack.c.h.b16 %v1518
        %v6222 = vunpack.c.l.b16 %v1519
        %v6223 = vunpack.c.h.b16 %v1519
        %v6224 = vunpack.c.l.b16 %v1520
        %v6225 = vunpack.c.h.b16 %v1520
        %v6226 = vunpack.c.l.b16 %v1521
        %v6227 = vunpack.c.h.b16 %v1521
        %v6228 = vunpack.c.l.b16 %v1522
        %v6229 = vunpack.c.h.b16 %v1522
        %v6230 = vunpack.c.l.b16 %v1523
        %v6231 = vunpack.c.h.b16 %v1523
        %v6232 = vunpack.c.l.b16 %v1524
        %v6233 = vunpack.c.h.b16 %v1524
        %v6234 = vunpack.c.l.b16 %v1525
        %v6235 = vunpack.c.h.b16 %v1525
        %v6236 = vunpack.c.l.b16 %v1526
        %v6237 = vunpack.c.h.b16 %v1526
        %v6238 = vunpack.c.l.b16 %v1527
        %v6239 = vunpack.c.h.b16 %v1527
        %v6240 = vunpack.c.l.b16 %v1528
        %v6241 = vunpack.c.h.b16 %v1528
        %v6242 = vunpack.c.l.b16 %v1529
        %v6243 = vunpack.c.h.b16 %v1529
        %v6244 = vunpack.c.l.b16 %v1530
        %v6245 = vunpack.c.h.b16 %v1530
        %v6246 = vunpack.c.l.b16 %v1531
        %v6247 = vunpack.c.h.b16 %v1531
        %v6248 = vunpack.c.l.b16 %v1532
        %v6249 = vunpack.c.h.b16 %v1532
        %v6250 = vunpack.c.l.b16 %v1533
        %v6251 = vunpack.c.h.b16 %v1533
        %v6252 = vunpack.c.l.b16 %v1534
        %v6253 = vunpack.c.h.b16 %v1534
        %v6254 = vunpack.c.l.b16 %v1535
        %v6255 = vunpack.c.h.b16 %v1535
        %v6256 = vunpack.c.l.b16 %v1536
        %v6257 = vunpack.c.h.b16 %v1536
        %v6258 = vunpack.c.l.b16 %v1537
        %v6259 = vunpack.c.h.b16 %v1537
        %v6260 = vunpack.c.l.b16 %v1538
        %v6261 = vunpack.c.h.b16 %v1538
        %v6262 = vunpack.c.l.b16 %v1539
        %v6263 = vunpack.c.h.b16 %v1539
        %v6264 = vunpack.c.l.b16 %v1540
        %v6265 = vunpack.c.h.b16 %v1540
        %v6266 = vunpack.c.l.b16 %v1541
        %v6267 = vunpack.c.h.b16 %v1541
        %v6268 = vunpack.c.l.b16 %v1542
        %v6269 = vunpack.c.h.b16 %v1542
        %v6270 = vunpack.c.l.b16 %v1543
        %v6271 = vunpack.c.h.b16 %v1543
        %v6272 = vunpack.c.l.b16 %v1544
        %v6273 = vunpack.c.h.b16 %v1544
        %v6274 = vunpack.c.l.b16 %v1545
        %v6275 = vunpack.c.h.b16 %v1545
        %v6276 = vunpack.c.l.b16 %v1546
        %v6277 = vunpack.c.h.b16 %v1546
        %v6278 = vunpack.c.l.b16 %v1547
        %v6279 = vunpack.c.h.b16 %v1547
        %v6280 = vunpack.c.l.b16 %v1548
        %v6281 = vunpack.c.h.b16 %v1548
        %v6282 = vunpack.c.l.b16 %v1549
        %v6283 = vunpack.c.h.b16 %v1549
        %v6284 = vunpack.c.l.b16 %v1550
        %v6285 = vunpack.c.h.b16 %v1550
        %v6286 = vunpack.c.l.b16 %v1551
        %v6287 = vunpack.c.h.b16 %v1551
        %v6288 = vunpack.c.l.b16 %v1552
        %v6289 = vunpack.c.h.b16 %v1552
        %v6290 = vunpack.c.l.b16 %v1553
        %v6291 = vunpack.c.h.b16 %v1553
        %v6292 = vunpack.c.l.b16 %v1554
        %v6293 = vunpack.c.h.b16 %v1554
        %v6294 = vunpack.c.l.b16 %v1555
        %v6295 = vunpack.c.h.b16 %v1555
        %v6296 = vunpack.c.l.b16 %v1556
        %v6297 = vunpack.c.h.b16 %v1556
        %v6298 = vunpack.c.l.b16 %v1557
        %v6299 = vunpack.c.h.b16 %v1557
        %v6300 = vunpack.c.l.b16 %v1558
        %v6301 = vunpack.c.h.b16 %v1558
        %v6302 = vunpack.c.l.b16 %v1559
        %v6303 = vunpack.c.h.b16 %v1559
        %v6304 = vunpack.c.l.b16 %v1560
        %v6305 = vunpack.c.h.b16 %v1560
        %v6306 = vunpack.c.l.b16 %v1561
        %v6307 = vunpack.c.h.b16 %v1561
        %v6308 = vunpack.c.l.b16 %v1562
        %v6309 = vunpack.c.h.b16 %v1562
        %v6310 = vunpack.c.l.b16 %v1563
        %v6311 = vunpack.c.h.b16 %v1563
        %v6312 = vunpack.c.l.b16 %v1564
        %v6313 = vunpack.c.h.b16 %v1564
        %v6314 = vunpack.c.l.b16 %v1565
        %v6315 = vunpack.c.h.b16 %v1565
        %v6316 = vunpack.c.l.b16 %v1566
        %v6317 = vunpack.c.h.b16 %v1566
        %v6318 = vunpack.c.l.b16 %v1567
        %v6319 = vunpack.c.h.b16 %v1567
        %v6320 = vunpack.c.l.b16 %v1568
        %v6321 = vunpack.c.h.b16 %v1568
        %v6322 = vunpack.c.l.b16 %v1569
        %v6323 = vunpack.c.h.b16 %v1569
        %v6324 = vunpack.c.l.b16 %v1570
        %v6325 = vunpack.c.h.b16 %v1570
        %v6326 = vunpack.c.l.b16 %v1571
        %v6327 = vunpack.c.h.b16 %v1571
        %v6328 = vunpack.c.l.b16 %v1572
        %v6329 = vunpack.c.h.b16 %v1572
        %v6330 = vunpack.c.l.b16 %v1573
        %v6331 = vunpack.c.h.b16 %v1573
        %v6332 = vunpack.c.l.b16 %v1574
        %v6333 = vunpack.c.h.b16 %v1574
        %v6334 = vunpack.c.l.b16 %v1575
        %v6335 = vunpack.c.h.b16 %v1575
        %v6336 = vunpack.c.l.b16 %v1576
        %v6337 = vunpack.c.h.b16 %v1576
        %v6338 = vunpack.c.l.b16 %v1577
        %v6339 = vunpack.c.h.b16 %v1577
        %v6340 = vunpack.c.l.b16 %v1578
        %v6341 = vunpack.c.h.b16 %v1578
        %v6342 = vunpack.c.l.b16 %v1579
        %v6343 = vunpack.c.h.b16 %v1579
        %v6344 = vunpack.c.l.b16 %v1580
        %v6345 = vunpack.c.h.b16 %v1580
        %v6346 = vunpack.c.l.b16 %v1581
        %v6347 = vunpack.c.h.b16 %v1581
        %v6348 = vunpack.c.l.b16 %v1582
        %v6349 = vunpack.c.h.b16 %v1582
        %v6350 = vunpack.c.l.b16 %v1583
        %v6351 = vunpack.c.h.b16 %v1583
        %v6352 = vunpack.c.l.b16 %v1584
        %v6353 = vunpack.c.h.b16 %v1584
        %v6354 = vunpack.c.l.b16 %v1585
        %v6355 = vunpack.c.h.b16 %v1585
        %v6356 = vunpack.c.l.b16 %v1586
        %v6357 = vunpack.c.h.b16 %v1586
        %v6358 = vunpack.c.l.b16 %v1587
        %v6359 = vunpack.c.h.b16 %v1587
        %v6360 = vunpack.c.l.b16 %v1588
        %v6361 = vunpack.c.h.b16 %v1588
        %v6362 = vunpack.c.l.b16 %v1589
        %v6363 = vunpack.c.h.b16 %v1589
        %v6364 = vunpack.c.l.b16 %v1590
        %v6365 = vunpack.c.h.b16 %v1590
        %v6366 = vunpack.c.l.b16 %v1591
        %v6367 = vunpack.c.h.b16 %v1591
        %v6368 = vunpack.c.l.b16 %v1592
        %v6369 = vunpack.c.h.b16 %v1592
        %v6370 = vunpack.c.l.b16 %v1593
        %v6371 = vunpack.c.h.b16 %v1593
        %v6372 = vunpack.c.l.b16 %v1594
        %v6373 = vunpack.c.h.b16 %v1594
        %v6374 = vunpack.c.l.b16 %v1595
        %v6375 = vunpack.c.h.b16 %v1595
        %v6376 = vunpack.c.l.b16 %v1596
        %v6377 = vunpack.c.h.b16 %v1596
        %v6378 = vunpack.c.l.b16 %v1597
        %v6379 = vunpack.c.h.b16 %v1597
        %v6380 = vunpack.c.l.b16 %v1598
        %v6381 = vunpack.c.h.b16 %v1598
        %v6382 = vunpack.c.l.b16 %v1599
        %v6383 = vunpack.c.h.b16 %v1599
        %v6384 = vunpack.c.l.b16 %v1600
        %v6385 = vunpack.c.h.b16 %v1600
        %v6386 = vunpack.c.l.b16 %v1601
        %v6387 = vunpack.c.h.b16 %v1601
        %v6388 = vunpack.c.l.b16 %v1602
        %v6389 = vunpack.c.h.b16 %v1602
        %v6390 = vunpack.c.l.b16 %v1603
        %v6391 = vunpack.c.h.b16 %v1603
        %v6392 = vunpack.c.l.b16 %v1604
        %v6393 = vunpack.c.h.b16 %v1604
        %v6394 = vunpack.c.l.b16 %v1605
        %v6395 = vunpack.c.h.b16 %v1605
        %v6396 = vunpack.c.l.b16 %v1606
        %v6397 = vunpack.c.h.b16 %v1606
        %v6398 = vunpack.c.l.b16 %v1607
        %v6399 = vunpack.c.h.b16 %v1607
        %v6400 = vunpack.c.l.b16 %v1608
        %v6401 = vunpack.c.h.b16 %v1608
        %v6402 = vunpack.c.l.b16 %v1609
        %v6403 = vunpack.c.h.b16 %v1609
        %v6404 = vunpack.c.l.b16 %v1610
        %v6405 = vunpack.c.h.b16 %v1610
        %v6406 = vunpack.c.l.b16 %v1611
        %v6407 = vunpack.c.h.b16 %v1611
        %v6408 = vunpack.c.l.b16 %v1612
        %v6409 = vunpack.c.h.b16 %v1612
        %v6410 = vunpack.c.l.b16 %v1613
        %v6411 = vunpack.c.h.b16 %v1613
        %v6412 = vunpack.c.l.b16 %v1614
        %v6413 = vunpack.c.h.b16 %v1614
        %v6414 = vunpack.c.l.b16 %v1615
        %v6415 = vunpack.c.h.b16 %v1615
        %v6416 = vunpack.c.l.b16 %v1616
        %v6417 = vunpack.c.h.b16 %v1616
        %v6418 = vunpack.c.l.b16 %v1617
        %v6419 = vunpack.c.h.b16 %v1617
        %v6420 = vunpack.c.l.b16 %v1618
        %v6421 = vunpack.c.h.b16 %v1618
        %v6422 = vunpack.c.l.b16 %v1619
        %v6423 = vunpack.c.h.b16 %v1619
        %v6424 = vunpack.c.l.b16 %v1620
        %v6425 = vunpack.c.h.b16 %v1620
        %v6426 = vunpack.c.l.b16 %v1621
        %v6427 = vunpack.c.h.b16 %v1621
        %v6428 = vunpack.c.l.b16 %v1622
        %v6429 = vunpack.c.h.b16 %v1622
        %v6430 = vunpack.c.l.b16 %v1623
        %v6431 = vunpack.c.h.b16 %v1623
        %v6432 = vunpack.c.l.b16 %v1624
        %v6433 = vunpack.c.h.b16 %v1624
        %v6434 = vunpack.c.l.b16 %v1625
        %v6435 = vunpack.c.h.b16 %v1625
        %v6436 = vunpack.c.l.b16 %v1626
        %v6437 = vunpack.c.h.b16 %v1626
        %v6438 = vunpack.c.l.b16 %v1627
        %v6439 = vunpack.c.h.b16 %v1627
        %v6440 = vunpack.c.l.b16 %v1628
        %v6441 = vunpack.c.h.b16 %v1628
        %v6442 = vunpack.c.l.b16 %v1629
        %v6443 = vunpack.c.h.b16 %v1629
        %v6444 = vunpack.c.l.b16 %v1630
        %v6445 = vunpack.c.h.b16 %v1630
        %v6446 = vunpack.c.l.b16 %v1631
        %v6447 = vunpack.c.h.b16 %v1631
        %v6448 = vunpack.c.l.b16 %v1632
        %v6449 = vunpack.c.h.b16 %v1632
        %v6450 = vunpack.c.l.b16 %v1633
        %v6451 = vunpack.c.h.b16 %v1633
        %v6452 = vunpack.c.l.b16 %v1634
        %v6453 = vunpack.c.h.b16 %v1634
        %v6454 = vunpack.c.l.b16 %v1635
        %v6455 = vunpack.c.h.b16 %v1635
        %v6456 = vunpack.c.l.b16 %v1636
        %v6457 = vunpack.c.h.b16 %v1636
        %v6458 = vunpack.c.l.b16 %v1637
        %v6459 = vunpack.c.h.b16 %v1637
        %v6460 = vunpack.c.l.b16 %v1638
        %v6461 = vunpack.c.h.b16 %v1638
        %v6462 = vunpack.c.l.b16 %v1639
        %v6463 = vunpack.c.h.b16 %v1639
        %v6464 = vunpack.c.l.b16 %v1640
        %v6465 = vunpack.c.h.b16 %v1640
        %v6466 = vunpack.c.l.b16 %v1641
        %v6467 = vunpack.c.h.b16 %v1641
        %v6468 = vunpack.c.l.b16 %v1642
        %v6469 = vunpack.c.h.b16 %v1642
        %v6470 = vunpack.c.l.b16 %v1643
        %v6471 = vunpack.c.h.b16 %v1643
        %v6472 = vunpack.c.l.b16 %v1644
        %v6473 = vunpack.c.h.b16 %v1644
        %v6474 = vunpack.c.l.b16 %v1645
        %v6475 = vunpack.c.h.b16 %v1645
        %v6476 = vunpack.c.l.b16 %v1646
        %v6477 = vunpack.c.h.b16 %v1646
        %v6478 = vunpack.c.l.b16 %v1647
        %v6479 = vunpack.c.h.b16 %v1647
        %v6480 = vunpack.c.l.b16 %v1648
        %v6481 = vunpack.c.h.b16 %v1648
        %v6482 = vunpack.c.l.b16 %v1649
        %v6483 = vunpack.c.h.b16 %v1649
        %v6484 = vunpack.c.l.b16 %v1650
        %v6485 = vunpack.c.h.b16 %v1650
        %v6486 = vunpack.c.l.b16 %v1651
        %v6487 = vunpack.c.h.b16 %v1651
        %v6488 = vunpack.c.l.b16 %v1652
        %v6489 = vunpack.c.h.b16 %v1652
        %v6490 = vunpack.c.l.b16 %v1653
        %v6491 = vunpack.c.h.b16 %v1653
        %v6492 = vunpack.c.l.b16 %v1654
        %v6493 = vunpack.c.h.b16 %v1654
        %v6494 = vunpack.c.l.b16 %v1655
        %v6495 = vunpack.c.h.b16 %v1655
        %v6496 = vunpack.c.l.b16 %v1656
        %v6497 = vunpack.c.h.b16 %v1656
        %v6498 = vunpack.c.l.b16 %v1657
        %v6499 = vunpack.c.h.b16 %v1657
        %v6500 = vunpack.c.l.b16 %v1658
        %v6501 = vunpack.c.h.b16 %v1658
        %v6502 = vunpack.c.l.b16 %v1659
        %v6503 = vunpack.c.h.b16 %v1659
        %v6504 = vunpack.c.l.b16 %v1660
        %v6505 = vunpack.c.h.b16 %v1660
        %v6506 = vunpack.c.l.b16 %v1661
        %v6507 = vunpack.c.h.b16 %v1661
        %v6508 = vunpack.c.l.b16 %v1662
        %v6509 = vunpack.c.h.b16 %v1662
        %v6510 = vunpack.c.l.b16 %v1663
        %v6511 = vunpack.c.h.b16 %v1663
        %v6512 = vunpack.c.l.b16 %v1664
        %v6513 = vunpack.c.h.b16 %v1664
        %v6514 = vunpack.c.l.b16 %v1665
        %v6515 = vunpack.c.h.b16 %v1665
        %v6516 = vunpack.c.l.b16 %v1666
        %v6517 = vunpack.c.h.b16 %v1666
        %v6518 = vunpack.c.l.b16 %v1667
        %v6519 = vunpack.c.h.b16 %v1667
        %v6520 = vunpack.c.l.b16 %v1668
        %v6521 = vunpack.c.h.b16 %v1668
        %v6522 = vunpack.c.l.b16 %v1669
        %v6523 = vunpack.c.h.b16 %v1669
        %v6524 = vunpack.c.l.b16 %v1670
        %v6525 = vunpack.c.h.b16 %v1670
        %v6526 = vunpack.c.l.b16 %v1671
        %v6527 = vunpack.c.h.b16 %v1671
        %v6528 = vunpack.c.l.b16 %v1672
        %v6529 = vunpack.c.h.b16 %v1672
        %v6530 = vunpack.c.l.b16 %v1673
        %v6531 = vunpack.c.h.b16 %v1673
        %v6532 = vunpack.c.l.b16 %v1674
        %v6533 = vunpack.c.h.b16 %v1674
        %v6534 = vunpack.c.l.b16 %v1675
        %v6535 = vunpack.c.h.b16 %v1675
        %v6536 = vunpack.c.l.b16 %v1676
        %v6537 = vunpack.c.h.b16 %v1676
        %v6538 = vunpack.c.l.b16 %v1677
        %v6539 = vunpack.c.h.b16 %v1677
        %v6540 = vunpack.c.l.b16 %v1678
        %v6541 = vunpack.c.h.b16 %v1678
        %v6542 = vunpack.c.l.b16 %v1679
        %v6543 = vunpack.c.h.b16 %v1679
        %v6544 = vunpack.c.l.b16 %v1680
        %v6545 = vunpack.c.h.b16 %v1680
        %v6546 = vunpack.c.l.b16 %v1681
        %v6547 = vunpack.c.h.b16 %v1681
        %v6548 = vunpack.c.l.b16 %v1682
        %v6549 = vunpack.c.h.b16 %v1682
        %v6550 = vunpack.c.l.b16 %v1683
        %v6551 = vunpack.c.h.b16 %v1683
        %v6552 = vunpack.c.l.b16 %v1684
        %v6553 = vunpack.c.h.b16 %v1684
        %v6554 = vunpack.c.l.b16 %v1685
        %v6555 = vunpack.c.h.b16 %v1685
        %v6556 = vunpack.c.l.b16 %v1686
        %v6557 = vunpack.c.h.b16 %v1686
        %v6558 = vunpack.c.l.b16 %v1687
        %v6559 = vunpack.c.h.b16 %v1687
        %v6560 = vunpack.c.l.b16 %v1688
        %v6561 = vunpack.c.h.b16 %v1688
        %v6562 = vunpack.c.l.b16 %v1689
        %v6563 = vunpack.c.h.b16 %v1689
        %v6564 = vunpack.c.l.b16 %v1690
        %v6565 = vunpack.c.h.b16 %v1690
        %v6566 = vunpack.c.l.b16 %v1691
        %v6567 = vunpack.c.h.b16 %v1691
        %v6568 = vunpack.c.l.b16 %v1692
        %v6569 = vunpack.c.h.b16 %v1692
        %v6570 = vunpack.c.l.b16 %v1693
        %v6571 = vunpack.c.h.b16 %v1693
        %v6572 = vunpack.c.l.b16 %v1694
        %v6573 = vunpack.c.h.b16 %v1694
        %v6574 = vunpack.c.l.b16 %v1695
        %v6575 = vunpack.c.h.b16 %v1695
        %v6576 = vunpack.c.l.b16 %v1696
        %v6577 = vunpack.c.h.b16 %v1696
        %v6578 = vunpack.c.l.b16 %v1697
        %v6579 = vunpack.c.h.b16 %v1697
        %v6580 = vunpack.c.l.b16 %v1698
        %v6581 = vunpack.c.h.b16 %v1698
        %v6582 = vunpack.c.l.b16 %v1699
        %v6583 = vunpack.c.h.b16 %v1699
        %v6584 = vunpack.c.l.b16 %v1700
        %v6585 = vunpack.c.h.b16 %v1700
        %v6586 = vunpack.c.l.b16 %v1701
        %v6587 = vunpack.c.h.b16 %v1701
        %v6588 = vunpack.c.l.b16 %v1702
        %v6589 = vunpack.c.h.b16 %v1702
        %v6590 = vunpack.c.l.b16 %v1703
        %v6591 = vunpack.c.h.b16 %v1703
        %v6592 = vunpack.c.l.b16 %v1704
        %v6593 = vunpack.c.h.b16 %v1704
        %v6594 = vunpack.c.l.b16 %v1705
        %v6595 = vunpack.c.h.b16 %v1705
        %v6596 = vunpack.c.l.b16 %v1706
        %v6597 = vunpack.c.h.b16 %v1706
        %v6598 = vunpack.c.l.b16 %v1707
        %v6599 = vunpack.c.h.b16 %v1707
        %v6600 = vunpack.c.l.b16 %v1708
        %v6601 = vunpack.c.h.b16 %v1708
        %v6602 = vunpack.c.l.b16 %v1709
        %v6603 = vunpack.c.h.b16 %v1709
        %v6604 = vunpack.c.l.b16 %v1710
        %v6605 = vunpack.c.h.b16 %v1710
        %v6606 = vunpack.c.l.b16 %v1711
        %v6607 = vunpack.c.h.b16 %v1711
        %v6608 = vunpack.c.l.b16 %v1712
        %v6609 = vunpack.c.h.b16 %v1712
        %v6610 = vunpack.c.l.b16 %v1713
        %v6611 = vunpack.c.h.b16 %v1713
        %v6612 = vunpack.c.l.b16 %v1714
        %v6613 = vunpack.c.h.b16 %v1714
        %v6614 = vunpack.c.l.b16 %v1715
        %v6615 = vunpack.c.h.b16 %v1715
        %v6616 = vunpack.c.l.b16 %v1716
        %v6617 = vunpack.c.h.b16 %v1716
        %v6618 = vunpack.c.l.b16 %v1717
        %v6619 = vunpack.c.h.b16 %v1717
        %v6620 = vunpack.c.l.b16 %v1718
        %v6621 = vunpack.c.h.b16 %v1718
        %v6622 = vunpack.c.l.b16 %v1719
        %v6623 = vunpack.c.h.b16 %v1719
        %v6624 = vunpack.c.l.b16 %v1720
        %v6625 = vunpack.c.h.b16 %v1720
        %v6626 = vunpack.c.l.b16 %v1721
        %v6627 = vunpack.c.h.b16 %v1721
        %v6628 = vunpack.c.l.b16 %v1722
        %v6629 = vunpack.c.h.b16 %v1722
        %v6630 = vunpack.c.l.b16 %v1723
        %v6631 = vunpack.c.h.b16 %v1723
        %v6632 = vunpack.c.l.b16 %v1724
        %v6633 = vunpack.c.h.b16 %v1724
        %v6634 = vunpack.c.l.b16 %v1725
        %v6635 = vunpack.c.h.b16 %v1725
        %v6636 = vunpack.c.l.b16 %v1726
        %v6637 = vunpack.c.h.b16 %v1726
        %v6638 = vunpack.c.l.b16 %v1727
        %v6639 = vunpack.c.h.b16 %v1727
        %v6640 = vunpack.c.l.b16 %v1728
        %v6641 = vunpack.c.h.b16 %v1728
        %v6642 = vunpack.c.l.b16 %v1729
        %v6643 = vunpack.c.h.b16 %v1729
        %v6644 = vunpack.c.l.b16 %v1730
        %v6645 = vunpack.c.h.b16 %v1730
        %v6646 = vunpack.c.l.b16 %v1731
        %v6647 = vunpack.c.h.b16 %v1731
        %v6648 = vunpack.c.l.b16 %v1732
        %v6649 = vunpack.c.h.b16 %v1732
        %v6650 = vunpack.c.l.b16 %v1733
        %v6651 = vunpack.c.h.b16 %v1733
        %v6652 = vunpack.c.l.b16 %v1734
        %v6653 = vunpack.c.h.b16 %v1734
        %v6654 = vunpack.c.l.b16 %v1735
        %v6655 = vunpack.c.h.b16 %v1735
        %v6656 = vunpack.c.l.b16 %v1736
        %v6657 = vunpack.c.h.b16 %v1736
        %v6658 = vunpack.c.l.b16 %v1737
        %v6659 = vunpack.c.h.b16 %v1737
        %v6660 = vunpack.c.l.b16 %v1738
        %v6661 = vunpack.c.h.b16 %v1738
        %v6662 = vunpack.c.l.b16 %v1739
        %v6663 = vunpack.c.h.b16 %v1739
        %v6664 = vunpack.c.l.b16 %v1740
        %v6665 = vunpack.c.h.b16 %v1740
        %v6666 = vunpack.c.l.b16 %v1741
        %v6667 = vunpack.c.h.b16 %v1741
        %v6668 = vunpack.c.l.b16 %v1742
        %v6669 = vunpack.c.h.b16 %v1742
        %v6670 = vunpack.c.l.b16 %v1743
        %v6671 = vunpack.c.h.b16 %v1743
        %v6672 = vunpack.c.l.b16 %v1744
        %v6673 = vunpack.c.h.b16 %v1744
        %v6674 = vunpack.c.l.b16 %v1745
        %v6675 = vunpack.c.h.b16 %v1745
        %v6676 = vunpack.c.l.b16 %v1746
        %v6677 = vunpack.c.h.b16 %v1746
        %v6678 = vunpack.c.l.b16 %v1747
        %v6679 = vunpack.c.h.b16 %v1747
        %v6680 = vunpack.c.l.b16 %v1748
        %v6681 = vunpack.c.h.b16 %v1748
        %v6682 = vunpack.c.l.b16 %v1749
        %v6683 = vunpack.c.h.b16 %v1749
        %v6684 = vunpack.c.l.b16 %v1750
        %v6685 = vunpack.c.h.b16 %v1750
        %v6686 = vunpack.c.l.b16 %v1751
        %v6687 = vunpack.c.h.b16 %v1751
        %v6688 = vunpack.c.l.b16 %v1752
        %v6689 = vunpack.c.h.b16 %v1752
        %v6690 = vunpack.c.l.b16 %v1753
        %v6691 = vunpack.c.h.b16 %v1753
        %v6692 = vunpack.c.l.b16 %v1754
        %v6693 = vunpack.c.h.b16 %v1754
        %v6694 = vunpack.c.l.b16 %v1755
        %v6695 = vunpack.c.h.b16 %v1755
        %v6696 = vunpack.c.l.b16 %v1756
        %v6697 = vunpack.c.h.b16 %v1756
        %v6698 = vunpack.c.l.b16 %v1757
        %v6699 = vunpack.c.h.b16 %v1757
        %v6700 = vunpack.c.l.b16 %v1758
        %v6701 = vunpack.c.h.b16 %v1758
        %v6702 = vunpack.c.l.b16 %v1759
        %v6703 = vunpack.c.h.b16 %v1759
        %v6704 = vunpack.c.l.b16 %v1760
        %v6705 = vunpack.c.h.b16 %v1760
        %v6706 = vunpack.c.l.b16 %v1761
        %v6707 = vunpack.c.h.b16 %v1761
        %v6708 = vunpack.c.l.b16 %v1762
        %v6709 = vunpack.c.h.b16 %v1762
        %v6710 = vunpack.c.l.b16 %v1763
        %v6711 = vunpack.c.h.b16 %v1763
        %v6712 = vunpack.c.l.b16 %v1764
        %v6713 = vunpack.c.h.b16 %v1764
        %v6714 = vunpack.c.l.b16 %v1765
        %v6715 = vunpack.c.h.b16 %v1765
        %v6716 = vunpack.c.l.b16 %v1766
        %v6717 = vunpack.c.h.b16 %v1766
        %v6718 = vunpack.c.l.b16 %v1767
        %v6719 = vunpack.c.h.b16 %v1767
        %v6720 = vunpack.c.l.b16 %v1768
        %v6721 = vunpack.c.h.b16 %v1768
        %v6722 = vunpack.c.l.b16 %v1769
        %v6723 = vunpack.c.h.b16 %v1769
        %v6724 = vunpack.c.l.b16 %v1770
        %v6725 = vunpack.c.h.b16 %v1770
        %v6726 = vunpack.c.l.b16 %v1771
        %v6727 = vunpack.c.h.b16 %v1771
        %v6728 = vpack.c.b16 %v3660, %v3656
        %v6729 = vpack.c.b16 %v3661, %v3657
        %v6730 = vpack.c.b16 %v3662, %v3658
        %v6731 = vpack.c.b16 %v3663, %v3659
        %v6732 = vpack.c.b16 %v3668, %v3664
        %v6733 = vpack.c.b16 %v3669, %v3665
        %v6734 = vpack.c.b16 %v3670, %v3666
        %v6735 = vpack.c.b16 %v3671, %v3667
        %v6736 = vpack.c.b16 %v3676, %v3672
        %v6737 = vpack.c.b16 %v3677, %v3673
        %v6738 = vpack.c.b16 %v3678, %v3674
        %v6739 = vpack.c.b16 %v3679, %v3675
        %v6740 = vpack.c.b16 %v3684, %v3680
        %v6741 = vpack.c.b16 %v3685, %v3681
        %v6742 = vpack.c.b16 %v3686, %v3682
        %v6743 = vpack.c.b16 %v3687, %v3683
        %v6744 = vpack.c.b16 %v3692, %v3688
        %v6745 = vpack.c.b16 %v3693, %v3689
        %v6746 = vpack.c.b16 %v3694, %v3690
        %v6747 = vpack.c.b16 %v3695, %v3691
        %v6748 = vpack.c.b16 %v3700, %v3696
        %v6749 = vpack.c.b16 %v3701, %v3697
        %v6750 = vpack.c.b16 %v3702, %v3698
        %v6751 = vpack.c.b16 %v3703, %v3699
        %v6752 = vpack.c.b16 %v3708, %v3704
        %v6753 = vpack.c.b16 %v3709, %v3705
        %v6754 = vpack.c.b16 %v3710, %v3706
        %v6755 = vpack.c.b16 %v3711, %v3707
        %v6756 = vpack.c.b16 %v3716, %v3712
        %v6757 = vpack.c.b16 %v3717, %v3713
        %v6758 = vpack.c.b16 %v3718, %v3714
        %v6759 = vpack.c.b16 %v3719, %v3715
        %v6760 = vpack.c.b16 %v3724, %v3720
        %v6761 = vpack.c.b16 %v3725, %v3721
        %v6762 = vpack.c.b16 %v3726, %v3722
        %v6763 = vpack.c.b16 %v3727, %v3723
        %v6764 = vpack.c.b16 %v3732, %v3728
        %v6765 = vpack.c.b16 %v3733, %v3729
        %v6766 = vpack.c.b16 %v3734, %v3730
        %v6767 = vpack.c.b16 %v3735, %v3731
        %v6768 = vpack.c.b16 %v3740, %v3736
        %v6769 = vpack.c.b16 %v3741, %v3737
        %v6770 = vpack.c.b16 %v3742, %v3738
        %v6771 = vpack.c.b16 %v3743, %v3739
        %v6772 = vpack.c.b16 %v3748, %v3744
        %v6773 = vpack.c.b16 %v3749, %v3745
        %v6774 = vpack.c.b16 %v3750, %v3746
        %v6775 = vpack.c.b16 %v3751, %v3747
        %v6776 = vpack.c.b16 %v3756, %v3752
        %v6777 = vpack.c.b16 %v3757, %v3753
        %v6778 = vpack.c.b16 %v3758, %v3754
        %v6779 = vpack.c.b16 %v3759, %v3755
        %v6780 = vpack.c.b16 %v3764, %v3760
        %v6781 = vpack.c.b16 %v3765, %v3761
        %v6782 = vpack.c.b16 %v3766, %v3762
        %v6783 = vpack.c.b16 %v3767, %v3763
        %v6784 = vpack.c.b16 %v3772, %v3768
        %v6785 = vpack.c.b16 %v3773, %v3769
        %v6786 = vpack.c.b16 %v3774, %v3770
        %v6787 = vpack.c.b16 %v3775, %v3771
        %v6788 = vpack.c.b16 %v3780, %v3776
        %v6789 = vpack.c.b16 %v3781, %v3777
        %v6790 = vpack.c.b16 %v3782, %v3778
        %v6791 = vpack.c.b16 %v3783, %v3779
        %v6792 = vpack.c.b16 %v3788, %v3784
        %v6793 = vpack.c.b16 %v3789, %v3785
        %v6794 = vpack.c.b16 %v3790, %v3786
        %v6795 = vpack.c.b16 %v3791, %v3787
        %v6796 = vpack.c.b16 %v3796, %v3792
        %v6797 = vpack.c.b16 %v3797, %v3793
        %v6798 = vpack.c.b16 %v3798, %v3794
        %v6799 = vpack.c.b16 %v3799, %v3795
        %v6800 = vpack.c.b16 %v3804, %v3800
        %v6801 = vpack.c.b16 %v3805, %v3801
        %v6802 = vpack.c.b16 %v3806, %v3802
        %v6803 = vpack.c.b16 %v3807, %v3803
        %v6804 = vpack.c.b16 %v3812, %v3808
        %v6805 = vpack.c.b16 %v3813, %v3809
        %v6806 = vpack.c.b16 %v3814, %v3810
        %v6807 = vpack.c.b16 %v3815, %v3811
        %v6808 = vpack.c.b16 %v3820, %v3816
        %v6809 = vpack.c.b16 %v3821, %v3817
        %v6810 = vpack.c.b16 %v3822, %v3818
        %v6811 = vpack.c.b16 %v3823, %v3819
        %v6812 = vpack.c.b16 %v3828, %v3824
        %v6813 = vpack.c.b16 %v3829, %v3825
        %v6814 = vpack.c.b16 %v3830, %v3826
        %v6815 = vpack.c.b16 %v3831, %v3827
        %v6816 = vpack.c.b16 %v3836, %v3832
        %v6817 = vpack.c.b16 %v3837, %v3833
        %v6818 = vpack.c.b16 %v3838, %v3834
        %v6819 = vpack.c.b16 %v3839, %v3835
        %v6820 = vpack.c.b16 %v3844, %v3840
        %v6821 = vpack.c.b16 %v3845, %v3841
        %v6822 = vpack.c.b16 %v3846, %v3842
        %v6823 = vpack.c.b16 %v3847, %v3843
        %v6824 = vpack.c.b16 %v3852, %v3848
        %v6825 = vpack.c.b16 %v3853, %v3849
        %v6826 = vpack.c.b16 %v3854, %v3850
        %v6827 = vpack.c.b16 %v3855, %v3851
        %v6828 = vpack.c.b16 %v3860, %v3856
        %v6829 = vpack.c.b16 %v3861, %v3857
        %v6830 = vpack.c.b16 %v3862, %v3858
        %v6831 = vpack.c.b16 %v3863, %v3859
        %v6832 = vpack.c.b16 %v3868, %v3864
        %v6833 = vpack.c.b16 %v3869, %v3865
        %v6834 = vpack.c.b16 %v3870, %v3866
        %v6835 = vpack.c.b16 %v3871, %v3867
        %v6836 = vpack.c.b16 %v3876, %v3872
        %v6837 = vpack.c.b16 %v3877, %v3873
        %v6838 = vpack.c.b16 %v3878, %v3874
        %v6839 = vpack.c.b16 %v3879, %v3875
        %v6840 = vpack.c.b16 %v3884, %v3880
        %v6841 = vpack.c.b16 %v3885, %v3881
        %v6842 = vpack.c.b16 %v3886, %v3882
        %v6843 = vpack.c.b16 %v3887, %v3883
        %v6844 = vpack.c.b16 %v3892, %v3888
        %v6845 = vpack.c.b16 %v3893, %v3889
        %v6846 = vpack.c.b16 %v3894, %v3890
        %v6847 = vpack.c.b16 %v3895, %v3891
        %v6848 = vpack.c.b16 %v3900, %v3896
        %v6849 = vpack.c.b16 %v3901, %v3897
        %v6850 = vpack.c.b16 %v3902, %v3898
        %v6851 = vpack.c.b16 %v3903, %v3899
        %v6852 = vpack.c.b16 %v3908, %v3904
        %v6853 = vpack.c.b16 %v3909, %v3905
        %v6854 = vpack.c.b16 %v3910, %v3906
        %v6855 = vpack.c.b16 %v3911, %v3907
        %v6856 = vpack.c.b16 %v3916, %v3912
        %v6857 = vpack.c.b16 %v3917, %v3913
        %v6858 = vpack.c.b16 %v3918, %v3914
        %v6859 = vpack.c.b16 %v3919, %v3915
        %v6860 = vpack.c.b16 %v3924, %v3920
        %v6861 = vpack.c.b16 %v3925, %v3921
        %v6862 = vpack.c.b16 %v3926, %v3922
        %v6863 = vpack.c.b16 %v3927, %v3923
        %v6864 = vpack.c.b16 %v3932, %v3928
        %v6865 = vpack.c.b16 %v3933, %v3929
        %v6866 = vpack.c.b16 %v3934, %v3930
        %v6867 = vpack.c.b16 %v3935, %v3931
        %v6868 = vpack.c.b16 %v3940, %v3936
        %v6869 = vpack.c.b16 %v3941, %v3937
        %v6870 = vpack.c.b16 %v3942, %v3938
        %v6871 = vpack.c.b16 %v3943, %v3939
        %v6872 = vpack.c.b16 %v3948, %v3944
        %v6873 = vpack.c.b16 %v3949, %v3945
        %v6874 = vpack.c.b16 %v3950, %v3946
        %v6875 = vpack.c.b16 %v3951, %v3947
        %v6876 = vpack.c.b16 %v3956, %v3952
        %v6877 = vpack.c.b16 %v3957, %v3953
        %v6878 = vpack.c.b16 %v3958, %v3954
        %v6879 = vpack.c.b16 %v3959, %v3955
        %v6880 = vpack.c.b16 %v3964, %v3960
        %v6881 = vpack.c.b16 %v3965, %v3961
        %v6882 = vpack.c.b16 %v3966, %v3962
        %v6883 = vpack.c.b16 %v3967, %v3963
        %v6884 = vpack.c.b16 %v3972, %v3968
        %v6885 = vpack.c.b16 %v3973, %v3969
        %v6886 = vpack.c.b16 %v3974, %v3970
        %v6887 = vpack.c.b16 %v3975, %v3971
        %v6888 = vpack.c.b16 %v3980, %v3976
        %v6889 = vpack.c.b16 %v3981, %v3977
        %v6890 = vpack.c.b16 %v3982, %v3978
        %v6891 = vpack.c.b16 %v3983, %v3979
        %v6892 = vpack.c.b16 %v3988, %v3984
        %v6893 = vpack.c.b16 %v3989, %v3985
        %v6894 = vpack.c.b16 %v3990, %v3986
        %v6895 = vpack.c.b16 %v3991, %v3987
        %v6896 = vpack.c.b16 %v3996, %v3992
        %v6897 = vpack.c.b16 %v3997, %v3993
        %v6898 = vpack.c.b16 %v3998, %v3994
        %v6899 = vpack.c.b16 %v3999, %v3995
        %v6900 = vpack.c.b16 %v4004, %v4000
        %v6901 = vpack.c.b16 %v4005, %v4001
        %v6902 = vpack.c.b16 %v4006, %v4002
        %v6903 = vpack.c.b16 %v4007, %v4003
        %v6904 = vpack.c.b16 %v4012, %v4008
        %v6905 = vpack.c.b16 %v4013, %v4009
        %v6906 = vpack.c.b16 %v4014, %v4010
        %v6907 = vpack.c.b16 %v4015, %v4011
        %v6908 = vpack.c.b16 %v4020, %v4016
        %v6909 = vpack.c.b16 %v4021, %v4017
        %v6910 = vpack.c.b16 %v4022, %v4018
        %v6911 = vpack.c.b16 %v4023, %v4019
        %v6912 = vpack.c.b16 %v4028, %v4024
        %v6913 = vpack.c.b16 %v4029, %v4025
        %v6914 = vpack.c.b16 %v4030, %v4026
        %v6915 = vpack.c.b16 %v4031, %v4027
        %v6916 = vpack.c.b16 %v4036, %v4032
        %v6917 = vpack.c.b16 %v4037, %v4033
        %v6918 = vpack.c.b16 %v4038, %v4034
        %v6919 = vpack.c.b16 %v4039, %v4035
        %v6920 = vpack.c.b16 %v4044, %v4040
        %v6921 = vpack.c.b16 %v4045, %v4041
        %v6922 = vpack.c.b16 %v4046, %v4042
        %v6923 = vpack.c.b16 %v4047, %v4043
        %v6924 = vpack.c.b16 %v4052, %v4048
        %v6925 = vpack.c.b16 %v4053, %v4049
        %v6926 = vpack.c.b16 %v4054, %v4050
        %v6927 = vpack.c.b16 %v4055, %v4051
        %v6928 = vpack.c.b16 %v4060, %v4056
        %v6929 = vpack.c.b16 %v4061, %v4057
        %v6930 = vpack.c.b16 %v4062, %v4058
        %v6931 = vpack.c.b16 %v4063, %v4059
        %v6932 = vpack.c.b16 %v4068, %v4064
        %v6933 = vpack.c.b16 %v4069, %v4065
        %v6934 = vpack.c.b16 %v4070, %v4066
        %v6935 = vpack.c.b16 %v4071, %v4067
        %v6936 = vpack.c.b16 %v4076, %v4072
        %v6937 = vpack.c.b16 %v4077, %v4073
        %v6938 = vpack.c.b16 %v4078, %v4074
        %v6939 = vpack.c.b16 %v4079, %v4075
        %v6940 = vpack.c.b16 %v4084, %v4080
        %v6941 = vpack.c.b16 %v4085, %v4081
        %v6942 = vpack.c.b16 %v4086, %v4082
        %v6943 = vpack.c.b16 %v4087, %v4083
        %v6944 = vpack.c.b16 %v4092, %v4088
        %v6945 = vpack.c.b16 %v4093, %v4089
        %v6946 = vpack.c.b16 %v4094, %v4090
        %v6947 = vpack.c.b16 %v4095, %v4091
        %v6948 = vpack.c.b16 %v4100, %v4096
        %v6949 = vpack.c.b16 %v4101, %v4097
        %v6950 = vpack.c.b16 %v4102, %v4098
        %v6951 = vpack.c.b16 %v4103, %v4099
        %v6952 = vpack.c.b16 %v4108, %v4104
        %v6953 = vpack.c.b16 %v4109, %v4105
        %v6954 = vpack.c.b16 %v4110, %v4106
        %v6955 = vpack.c.b16 %v4111, %v4107
        %v6956 = vpack.c.b16 %v4116, %v4112
        %v6957 = vpack.c.b16 %v4117, %v4113
        %v6958 = vpack.c.b16 %v4118, %v4114
        %v6959 = vpack.c.b16 %v4119, %v4115
        %v6960 = vpack.c.b16 %v4124, %v4120
        %v6961 = vpack.c.b16 %v4125, %v4121
        %v6962 = vpack.c.b16 %v4126, %v4122
        %v6963 = vpack.c.b16 %v4127, %v4123
        %v6964 = vpack.c.b16 %v4132, %v4128
        %v6965 = vpack.c.b16 %v4133, %v4129
        %v6966 = vpack.c.b16 %v4134, %v4130
        %v6967 = vpack.c.b16 %v4135, %v4131
        %v6968 = vpack.c.b16 %v4140, %v4136
        %v6969 = vpack.c.b16 %v4141, %v4137
        %v6970 = vpack.c.b16 %v4142, %v4138
        %v6971 = vpack.c.b16 %v4143, %v4139
        %v6972 = vpack.c.b16 %v4148, %v4144
        %v6973 = vpack.c.b16 %v4149, %v4145
        %v6974 = vpack.c.b16 %v4150, %v4146
        %v6975 = vpack.c.b16 %v4151, %v4147
        %v6976 = vpack.c.b16 %v4156, %v4152
        %v6977 = vpack.c.b16 %v4157, %v4153
        %v6978 = vpack.c.b16 %v4158, %v4154
        %v6979 = vpack.c.b16 %v4159, %v4155
        %v6980 = vpack.c.b16 %v4164, %v4160
        %v6981 = vpack.c.b16 %v4165, %v4161
        %v6982 = vpack.c.b16 %v4166, %v4162
        %v6983 = vpack.c.b16 %v4167, %v4163
        %v6984 = vpack.c.b16 %v4172, %v4168
        %v6985 = vpack.c.b16 %v4173, %v4169
        %v6986 = vpack.c.b16 %v4174, %v4170
        %v6987 = vpack.c.b16 %v4175, %v4171
        %v6988 = vpack.c.b16 %v4180, %v4176
        %v6989 = vpack.c.b16 %v4181, %v4177
        %v6990 = vpack.c.b16 %v4182, %v4178
        %v6991 = vpack.c.b16 %v4183, %v4179
        %v6992 = vpack.c.b16 %v4188, %v4184
        %v6993 = vpack.c.b16 %v4189, %v4185
        %v6994 = vpack.c.b16 %v4190, %v4186
        %v6995 = vpack.c.b16 %v4191, %v4187
        %v6996 = vpack.c.b16 %v4196, %v4192
        %v6997 = vpack.c.b16 %v4197, %v4193
        %v6998 = vpack.c.b16 %v4198, %v4194
        %v6999 = vpack.c.b16 %v4199, %v4195
        %v7000 = vpack.c.b16 %v4204, %v4200
        %v7001 = vpack.c.b16 %v4205, %v4201
        %v7002 = vpack.c.b16 %v4206, %v4202
        %v7003 = vpack.c.b16 %v4207, %v4203
        %v7004 = vpack.c.b16 %v4212, %v4208
        %v7005 = vpack.c.b16 %v4213, %v4209
        %v7006 = vpack.c.b16 %v4214, %v4210
        %v7007 = vpack.c.b16 %v4215, %v4211
        %v7008 = vpack.c.b16 %v4220, %v4216
        %v7009 = vpack.c.b16 %v4221, %v4217
        %v7010 = vpack.c.b16 %v4222, %v4218
        %v7011 = vpack.c.b16 %v4223, %v4219
        %v7012 = vpack.c.b16 %v4228, %v4224
        %v7013 = vpack.c.b16 %v4229, %v4225
        %v7014 = vpack.c.b16 %v4230, %v4226
        %v7015 = vpack.c.b16 %v4231, %v4227
        %v7016 = vpack.c.b16 %v4236, %v4232
        %v7017 = vpack.c.b16 %v4237, %v4233
        %v7018 = vpack.c.b16 %v4238, %v4234
        %v7019 = vpack.c.b16 %v4239, %v4235
        %v7020 = vpack.c.b16 %v4244, %v4240
        %v7021 = vpack.c.b16 %v4245, %v4241
        %v7022 = vpack.c.b16 %v4246, %v4242
        %v7023 = vpack.c.b16 %v4247, %v4243
        %v7024 = vpack.c.b16 %v4252, %v4248
        %v7025 = vpack.c.b16 %v4253, %v4249
        %v7026 = vpack.c.b16 %v4254, %v4250
        %v7027 = vpack.c.b16 %v4255, %v4251
        %v7028 = vpack.c.b16 %v4260, %v4256
        %v7029 = vpack.c.b16 %v4261, %v4257
        %v7030 = vpack.c.b16 %v4262, %v4258
        %v7031 = vpack.c.b16 %v4263, %v4259
        %v7032 = vpack.c.b16 %v4268, %v4264
        %v7033 = vpack.c.b16 %v4269, %v4265
        %v7034 = vpack.c.b16 %v4270, %v4266
        %v7035 = vpack.c.b16 %v4271, %v4267
        %v7036 = vpack.c.b16 %v4276, %v4272
        %v7037 = vpack.c.b16 %v4277, %v4273
        %v7038 = vpack.c.b16 %v4278, %v4274
        %v7039 = vpack.c.b16 %v4279, %v4275
        %v7040 = vpack.c.b16 %v4284, %v4280
        %v7041 = vpack.c.b16 %v4285, %v4281
        %v7042 = vpack.c.b16 %v4286, %v4282
        %v7043 = vpack.c.b16 %v4287, %v4283
        %v7044 = vpack.c.b16 %v4292, %v4288
        %v7045 = vpack.c.b16 %v4293, %v4289
        %v7046 = vpack.c.b16 %v4294, %v4290
        %v7047 = vpack.c.b16 %v4295, %v4291
        %v7048 = vpack.c.b16 %v4300, %v4296
        %v7049 = vpack.c.b16 %v4301, %v4297
        %v7050 = vpack.c.b16 %v4302, %v4298
        %v7051 = vpack.c.b16 %v4303, %v4299
        %v7052 = vpack.c.b16 %v4308, %v4304
        %v7053 = vpack.c.b16 %v4309, %v4305
        %v7054 = vpack.c.b16 %v4310, %v4306
        %v7055 = vpack.c.b16 %v4311, %v4307
        %v7056 = vpack.c.b16 %v4316, %v4312
        %v7057 = vpack.c.b16 %v4317, %v4313
        %v7058 = vpack.c.b16 %v4318, %v4314
        %v7059 = vpack.c.b16 %v4319, %v4315
        %v7060 = vpack.c.b16 %v4324, %v4320
        %v7061 = vpack.c.b16 %v4325, %v4321
        %v7062 = vpack.c.b16 %v4326, %v4322
        %v7063 = vpack.c.b16 %v4327, %v4323
        %v7064 = vpack.c.b16 %v4332, %v4328
        %v7065 = vpack.c.b16 %v4333, %v4329
        %v7066 = vpack.c.b16 %v4334, %v4330
        %v7067 = vpack.c.b16 %v4335, %v4331
        %v7068 = vpack.c.b16 %v4340, %v4336
        %v7069 = vpack.c.b16 %v4341, %v4337
        %v7070 = vpack.c.b16 %v4342, %v4338
        %v7071 = vpack.c.b16 %v4343, %v4339
        %v7072 = vpack.c.b16 %v4348, %v4344
        %v7073 = vpack.c.b16 %v4349, %v4345
        %v7074 = vpack.c.b16 %v4350, %v4346
        %v7075 = vpack.c.b16 %v4351, %v4347
        %v7076 = vpack.c.b16 %v4356, %v4352
        %v7077 = vpack.c.b16 %v4357, %v4353
        %v7078 = vpack.c.b16 %v4358, %v4354
        %v7079 = vpack.c.b16 %v4359, %v4355
        %v7080 = vpack.c.b16 %v4364, %v4360
        %v7081 = vpack.c.b16 %v4365, %v4361
        %v7082 = vpack.c.b16 %v4366, %v4362
        %v7083 = vpack.c.b16 %v4367, %v4363
        %v7084 = vpack.c.b16 %v4372, %v4368
        %v7085 = vpack.c.b16 %v4373, %v4369
        %v7086 = vpack.c.b16 %v4374, %v4370
        %v7087 = vpack.c.b16 %v4375, %v4371
        %v7088 = vpack.c.b16 %v4380, %v4376
        %v7089 = vpack.c.b16 %v4381, %v4377
        %v7090 = vpack.c.b16 %v4382, %v4378
        %v7091 = vpack.c.b16 %v4383, %v4379
        %v7092 = vpack.c.b16 %v4388, %v4384
        %v7093 = vpack.c.b16 %v4389, %v4385
        %v7094 = vpack.c.b16 %v4390, %v4386
        %v7095 = vpack.c.b16 %v4391, %v4387
        %v7096 = vpack.c.b16 %v4396, %v4392
        %v7097 = vpack.c.b16 %v4397, %v4393
        %v7098 = vpack.c.b16 %v4398, %v4394
        %v7099 = vpack.c.b16 %v4399, %v4395
        %v7100 = vpack.c.b16 %v4404, %v4400
        %v7101 = vpack.c.b16 %v4405, %v4401
        %v7102 = vpack.c.b16 %v4406, %v4402
        %v7103 = vpack.c.b16 %v4407, %v4403
        %v7104 = vpack.c.b16 %v4412, %v4408
        %v7105 = vpack.c.b16 %v4413, %v4409
        %v7106 = vpack.c.b16 %v4414, %v4410
        %v7107 = vpack.c.b16 %v4415, %v4411
        %v7108 = vpack.c.b16 %v4420, %v4416
        %v7109 = vpack.c.b16 %v4421, %v4417
        %v7110 = vpack.c.b16 %v4422, %v4418
        %v7111 = vpack.c.b16 %v4423, %v4419
        %v7112 = vpack.c.b16 %v4428, %v4424
        %v7113 = vpack.c.b16 %v4429, %v4425
        %v7114 = vpack.c.b16 %v4430, %v4426
        %v7115 = vpack.c.b16 %v4431, %v4427
        %v7116 = vpack.c.b16 %v4436, %v4432
        %v7117 = vpack.c.b16 %v4437, %v4433
        %v7118 = vpack.c.b16 %v4438, %v4434
        %v7119 = vpack.c.b16 %v4439, %v4435
        %v7120 = vpack.c.b16 %v4444, %v4440
        %v7121 = vpack.c.b16 %v4445, %v4441
        %v7122 = vpack.c.b16 %v4446, %v4442
        %v7123 = vpack.c.b16 %v4447, %v4443
        %v7124 = vpack.c.b16 %v4452, %v4448
        %v7125 = vpack.c.b16 %v4453, %v4449
        %v7126 = vpack.c.b16 %v4454, %v4450
        %v7127 = vpack.c.b16 %v4455, %v4451
        %v7128 = vpack.c.b16 %v4460, %v4456
        %v7129 = vpack.c.b16 %v4461, %v4457
        %v7130 = vpack.c.b16 %v4462, %v4458
        %v7131 = vpack.c.b16 %v4463, %v4459
        %v7132 = vpack.c.b16 %v4468, %v4464
        %v7133 = vpack.c.b16 %v4469, %v4465
        %v7134 = vpack.c.b16 %v4470, %v4466
        %v7135 = vpack.c.b16 %v4471, %v4467
        %v7136 = vpack.c.b16 %v4476, %v4472
        %v7137 = vpack.c.b16 %v4477, %v4473
        %v7138 = vpack.c.b16 %v4478, %v4474
        %v7139 = vpack.c.b16 %v4479, %v4475
        %v7140 = vpack.c.b16 %v4484, %v4480
        %v7141 = vpack.c.b16 %v4485, %v4481
        %v7142 = vpack.c.b16 %v4486, %v4482
        %v7143 = vpack.c.b16 %v4487, %v4483
        %v7144 = vpack.c.b16 %v4492, %v4488
        %v7145 = vpack.c.b16 %v4493, %v4489
        %v7146 = vpack.c.b16 %v4494, %v4490
        %v7147 = vpack.c.b16 %v4495, %v4491
        %v7148 = vpack.c.b16 %v4500, %v4496
        %v7149 = vpack.c.b16 %v4501, %v4497
        %v7150 = vpack.c.b16 %v4502, %v4498
        %v7151 = vpack.c.b16 %v4503, %v4499
        %v7152 = vpack.c.b16 %v4508, %v4504
        %v7153 = vpack.c.b16 %v4509, %v4505
        %v7154 = vpack.c.b16 %v4510, %v4506
        %v7155 = vpack.c.b16 %v4511, %v4507
        %v7156 = vpack.c.b16 %v4516, %v4512
        %v7157 = vpack.c.b16 %v4517, %v4513
        %v7158 = vpack.c.b16 %v4518, %v4514
        %v7159 = vpack.c.b16 %v4519, %v4515
        %v7160 = vpack.c.b16 %v4524, %v4520
        %v7161 = vpack.c.b16 %v4525, %v4521
        %v7162 = vpack.c.b16 %v4526, %v4522
        %v7163 = vpack.c.b16 %v4527, %v4523
        %v7164 = vpack.c.b16 %v4532, %v4528
        %v7165 = vpack.c.b16 %v4533, %v4529
        %v7166 = vpack.c.b16 %v4534, %v4530
        %v7167 = vpack.c.b16 %v4535, %v4531
        %v7168 = vpack.c.b16 %v4540, %v4536
        %v7169 = vpack.c.b16 %v4541, %v4537
        %v7170 = vpack.c.b16 %v4542, %v4538
        %v7171 = vpack.c.b16 %v4543, %v4539
        %v7172 = vpack.c.b16 %v4548, %v4544
        %v7173 = vpack.c.b16 %v4549, %v4545
        %v7174 = vpack.c.b16 %v4550, %v4546
        %v7175 = vpack.c.b16 %v4551, %v4547
        %v7176 = vpack.c.b16 %v4556, %v4552
        %v7177 = vpack.c.b16 %v4557, %v4553
        %v7178 = vpack.c.b16 %v4558, %v4554
        %v7179 = vpack.c.b16 %v4559, %v4555
        %v7180 = vpack.c.b16 %v4564, %v4560
        %v7181 = vpack.c.b16 %v4565, %v4561
        %v7182 = vpack.c.b16 %v4566, %v4562
        %v7183 = vpack.c.b16 %v4567, %v4563
        %v7184 = vpack.c.b16 %v4572, %v4568
        %v7185 = vpack.c.b16 %v4573, %v4569
        %v7186 = vpack.c.b16 %v4574, %v4570
        %v7187 = vpack.c.b16 %v4575, %v4571
        %v7188 = vpack.c.b16 %v4580, %v4576
        %v7189 = vpack.c.b16 %v4581, %v4577
        %v7190 = vpack.c.b16 %v4582, %v4578
        %v7191 = vpack.c.b16 %v4583, %v4579
        %v7192 = vpack.c.b16 %v4588, %v4584
        %v7193 = vpack.c.b16 %v4589, %v4585
        %v7194 = vpack.c.b16 %v4590, %v4586
        %v7195 = vpack.c.b16 %v4591, %v4587
        %v7196 = vpack.c.b16 %v4596, %v4592
        %v7197 = vpack.c.b16 %v4597, %v4593
        %v7198 = vpack.c.b16 %v4598, %v4594
        %v7199 = vpack.c.b16 %v4599, %v4595
        %v7200 = vpack.c.b16 %v4604, %v4600
        %v7201 = vpack.c.b16 %v4605, %v4601
        %v7202 = vpack.c.b16 %v4606, %v4602
        %v7203 = vpack.c.b16 %v4607, %v4603
        %v7204 = vpack.c.b16 %v4612, %v4608
        %v7205 = vpack.c.b16 %v4613, %v4609
        %v7206 = vpack.c.b16 %v4614, %v4610
        %v7207 = vpack.c.b16 %v4615, %v4611
        %v7208 = vpack.c.b16 %v4620, %v4616
        %v7209 = vpack.c.b16 %v4621, %v4617
        %v7210 = vpack.c.b16 %v4622, %v4618
        %v7211 = vpack.c.b16 %v4623, %v4619
        %v7212 = vpack.c.b16 %v4628, %v4624
        %v7213 = vpack.c.b16 %v4629, %v4625
        %v7214 = vpack.c.b16 %v4630, %v4626
        %v7215 = vpack.c.b16 %v4631, %v4627
        %v7216 = vpack.c.b16 %v4636, %v4632
        %v7217 = vpack.c.b16 %v4637, %v4633
        %v7218 = vpack.c.b16 %v4638, %v4634
        %v7219 = vpack.c.b16 %v4639, %v4635
        %v7220 = vpack.c.b16 %v4644, %v4640
        %v7221 = vpack.c.b16 %v4645, %v4641
        %v7222 = vpack.c.b16 %v4646, %v4642
        %v7223 = vpack.c.b16 %v4647, %v4643
        %v7224 = vpack.c.b16 %v4652, %v4648
        %v7225 = vpack.c.b16 %v4653, %v4649
        %v7226 = vpack.c.b16 %v4654, %v4650
        %v7227 = vpack.c.b16 %v4655, %v4651
        %v7228 = vpack.c.b16 %v4660, %v4656
        %v7229 = vpack.c.b16 %v4661, %v4657
        %v7230 = vpack.c.b16 %v4662, %v4658
        %v7231 = vpack.c.b16 %v4663, %v4659
        %v7232 = vpack.c.b16 %v4668, %v4664
        %v7233 = vpack.c.b16 %v4669, %v4665
        %v7234 = vpack.c.b16 %v4670, %v4666
        %v7235 = vpack.c.b16 %v4671, %v4667
        %v7236 = vpack.c.b16 %v4676, %v4672
        %v7237 = vpack.c.b16 %v4677, %v4673
        %v7238 = vpack.c.b16 %v4678, %v4674
        %v7239 = vpack.c.b16 %v4679, %v4675
        %v7240 = vpack.c.b16 %v4684, %v4680
        %v7241 = vpack.c.b16 %v4685, %v4681
        %v7242 = vpack.c.b16 %v4686, %v4682
        %v7243 = vpack.c.b16 %v4687, %v4683
        %v7244 = vpack.c.b16 %v4692, %v4688
        %v7245 = vpack.c.b16 %v4693, %v4689
        %v7246 = vpack.c.b16 %v4694, %v4690
        %v7247 = vpack.c.b16 %v4695, %v4691
        %v7248 = vpack.c.b16 %v4700, %v4696
        %v7249 = vpack.c.b16 %v4701, %v4697
        %v7250 = vpack.c.b16 %v4702, %v4698
        %v7251 = vpack.c.b16 %v4703, %v4699
        %v7252 = vpack.c.b16 %v4708, %v4704
        %v7253 = vpack.c.b16 %v4709, %v4705
        %v7254 = vpack.c.b16 %v4710, %v4706
        %v7255 = vpack.c.b16 %v4711, %v4707
        %v7256 = vpack.c.b16 %v4716, %v4712
        %v7257 = vpack.c.b16 %v4717, %v4713
        %v7258 = vpack.c.b16 %v4718, %v4714
        %v7259 = vpack.c.b16 %v4719, %v4715
        %v7260 = vpack.c.b16 %v4724, %v4720
        %v7261 = vpack.c.b16 %v4725, %v4721
        %v7262 = vpack.c.b16 %v4726, %v4722
        %v7263 = vpack.c.b16 %v4727, %v4723
        %v7264 = vpack.c.b16 %v4732, %v4728
        %v7265 = vpack.c.b16 %v4733, %v4729
        %v7266 = vpack.c.b16 %v4734, %v4730
        %v7267 = vpack.c.b16 %v4735, %v4731
        %v7268 = vpack.c.b16 %v4740, %v4736
        %v7269 = vpack.c.b16 %v4741, %v4737
        %v7270 = vpack.c.b16 %v4742, %v4738
        %v7271 = vpack.c.b16 %v4743, %v4739
        %v7272 = vpack.c.b16 %v4748, %v4744
        %v7273 = vpack.c.b16 %v4749, %v4745
        %v7274 = vpack.c.b16 %v4750, %v4746
        %v7275 = vpack.c.b16 %v4751, %v4747
        %v7276 = vpack.c.b16 %v4756, %v4752
        %v7277 = vpack.c.b16 %v4757, %v4753
        %v7278 = vpack.c.b16 %v4758, %v4754
        %v7279 = vpack.c.b16 %v4759, %v4755
        %v7280 = vpack.c.b16 %v4764, %v4760
        %v7281 = vpack.c.b16 %v4765, %v4761
        %v7282 = vpack.c.b16 %v4766, %v4762
        %v7283 = vpack.c.b16 %v4767, %v4763
        %v7284 = vpack.c.b16 %v4772, %v4768
        %v7285 = vpack.c.b16 %v4773, %v4769
        %v7286 = vpack.c.b16 %v4774, %v4770
        %v7287 = vpack.c.b16 %v4775, %v4771
        %v7288 = vpack.c.b16 %v4780, %v4776
        %v7289 = vpack.c.b16 %v4781, %v4777
        %v7290 = vpack.c.b16 %v4782, %v4778
        %v7291 = vpack.c.b16 %v4783, %v4779
        %v7292 = vpack.c.b16 %v4788, %v4784
        %v7293 = vpack.c.b16 %v4789, %v4785
        %v7294 = vpack.c.b16 %v4790, %v4786
        %v7295 = vpack.c.b16 %v4791, %v4787
        %v7296 = vpack.c.b16 %v4796, %v4792
        %v7297 = vpack.c.b16 %v4797, %v4793
        %v7298 = vpack.c.b16 %v4798, %v4794
        %v7299 = vpack.c.b16 %v4799, %v4795
        %v7300 = vpack.c.b16 %v4804, %v4800
        %v7301 = vpack.c.b16 %v4805, %v4801
        %v7302 = vpack.c.b16 %v4806, %v4802
        %v7303 = vpack.c.b16 %v4807, %v4803
        %v7304 = vpack.c.b16 %v4812, %v4808
        %v7305 = vpack.c.b16 %v4813, %v4809
        %v7306 = vpack.c.b16 %v4814, %v4810
        %v7307 = vpack.c.b16 %v4815, %v4811
        %v7308 = vpack.c.b16 %v4820, %v4816
        %v7309 = vpack.c.b16 %v4821, %v4817
        %v7310 = vpack.c.b16 %v4822, %v4818
        %v7311 = vpack.c.b16 %v4823, %v4819
        %v7312 = vpack.c.b16 %v4828, %v4824
        %v7313 = vpack.c.b16 %v4829, %v4825
        %v7314 = vpack.c.b16 %v4830, %v4826
        %v7315 = vpack.c.b16 %v4831, %v4827
        %v7316 = vpack.c.b16 %v4836, %v4832
        %v7317 = vpack.c.b16 %v4837, %v4833
        %v7318 = vpack.c.b16 %v4838, %v4834
        %v7319 = vpack.c.b16 %v4839, %v4835
        %v7320 = vpack.c.b16 %v4844, %v4840
        %v7321 = vpack.c.b16 %v4845, %v4841
        %v7322 = vpack.c.b16 %v4846, %v4842
        %v7323 = vpack.c.b16 %v4847, %v4843
        %v7324 = vpack.c.b16 %v4852, %v4848
        %v7325 = vpack.c.b16 %v4853, %v4849
        %v7326 = vpack.c.b16 %v4854, %v4850
        %v7327 = vpack.c.b16 %v4855, %v4851
        %v7328 = vpack.c.b16 %v4860, %v4856
        %v7329 = vpack.c.b16 %v4861, %v4857
        %v7330 = vpack.c.b16 %v4862, %v4858
        %v7331 = vpack.c.b16 %v4863, %v4859
        %v7332 = vpack.c.b16 %v4868, %v4864
        %v7333 = vpack.c.b16 %v4869, %v4865
        %v7334 = vpack.c.b16 %v4870, %v4866
        %v7335 = vpack.c.b16 %v4871, %v4867
        %v7336 = vpack.c.b16 %v4876, %v4872
        %v7337 = vpack.c.b16 %v4877, %v4873
        %v7338 = vpack.c.b16 %v4878, %v4874
        %v7339 = vpack.c.b16 %v4879, %v4875
        %v7340 = vpack.c.b16 %v4884, %v4880
        %v7341 = vpack.c.b16 %v4885, %v4881
        %v7342 = vpack.c.b16 %v4886, %v4882
        %v7343 = vpack.c.b16 %v4887, %v4883
        %v7344 = vpack.c.b16 %v4892, %v4888
        %v7345 = vpack.c.b16 %v4893, %v4889
        %v7346 = vpack.c.b16 %v4894, %v4890
        %v7347 = vpack.c.b16 %v4895, %v4891
        %v7348 = vpack.c.b16 %v4900, %v4896
        %v7349 = vpack.c.b16 %v4901, %v4897
        %v7350 = vpack.c.b16 %v4902, %v4898
        %v7351 = vpack.c.b16 %v4903, %v4899
        %v7352 = vpack.c.b16 %v4908, %v4904
        %v7353 = vpack.c.b16 %v4909, %v4905
        %v7354 = vpack.c.b16 %v4910, %v4906
        %v7355 = vpack.c.b16 %v4911, %v4907
        %v7356 = vpack.c.b16 %v4916, %v4912
        %v7357 = vpack.c.b16 %v4917, %v4913
        %v7358 = vpack.c.b16 %v4918, %v4914
        %v7359 = vpack.c.b16 %v4919, %v4915
        %v7360 = vpack.c.b16 %v4924, %v4920
        %v7361 = vpack.c.b16 %v4925, %v4921
        %v7362 = vpack.c.b16 %v4926, %v4922
        %v7363 = vpack.c.b16 %v4927, %v4923
        %v7364 = vpack.c.b16 %v4932, %v4928
        %v7365 = vpack.c.b16 %v4933, %v4929
        %v7366 = vpack.c.b16 %v4934, %v4930
        %v7367 = vpack.c.b16 %v4935, %v4931
        %v7368 = vpack.c.b16 %v4940, %v4936
        %v7369 = vpack.c.b16 %v4941, %v4937
        %v7370 = vpack.c.b16 %v4942, %v4938
        %v7371 = vpack.c.b16 %v4943, %v4939
        %v7372 = vpack.c.b16 %v4948, %v4944
        %v7373 = vpack.c.b16 %v4949, %v4945
        %v7374 = vpack.c.b16 %v4950, %v4946
        %v7375 = vpack.c.b16 %v4951, %v4947
        %v7376 = vpack.c.b16 %v4956, %v4952
        %v7377 = vpack.c.b16 %v4957, %v4953
        %v7378 = vpack.c.b16 %v4958, %v4954
        %v7379 = vpack.c.b16 %v4959, %v4955
        %v7380 = vpack.c.b16 %v4964, %v4960
        %v7381 = vpack.c.b16 %v4965, %v4961
        %v7382 = vpack.c.b16 %v4966, %v4962
        %v7383 = vpack.c.b16 %v4967, %v4963
        %v7384 = vpack.c.b16 %v4972, %v4968
        %v7385 = vpack.c.b16 %v4973, %v4969
        %v7386 = vpack.c.b16 %v4974, %v4970
        %v7387 = vpack.c.b16 %v4975, %v4971
        %v7388 = vpack.c.b16 %v4980, %v4976
        %v7389 = vpack.c.b16 %v4981, %v4977
        %v7390 = vpack.c.b16 %v4982, %v4978
        %v7391 = vpack.c.b16 %v4983, %v4979
        %v7392 = vpack.c.b16 %v4988, %v4984
        %v7393 = vpack.c.b16 %v4989, %v4985
        %v7394 = vpack.c.b16 %v4990, %v4986
        %v7395 = vpack.c.b16 %v4991, %v4987
        %v7396 = vpack.c.b16 %v4996, %v4992
        %v7397 = vpack.c.b16 %v4997, %v4993
        %v7398 = vpack.c.b16 %v4998, %v4994
        %v7399 = vpack.c.b16 %v4999, %v4995
        %v7400 = vpack.c.b16 %v5004, %v5000
        %v7401 = vpack.c.b16 %v5005, %v5001
        %v7402 = vpack.c.b16 %v5006, %v5002
        %v7403 = vpack.c.b16 %v5007, %v5003
        %v7404 = vpack.c.b16 %v5012, %v5008
        %v7405 = vpack.c.b16 %v5013, %v5009
        %v7406 = vpack.c.b16 %v5014, %v5010
        %v7407 = vpack.c.b16 %v5015, %v5011
        %v7408 = vpack.c.b16 %v5020, %v5016
        %v7409 = vpack.c.b16 %v5021, %v5017
        %v7410 = vpack.c.b16 %v5022, %v5018
        %v7411 = vpack.c.b16 %v5023, %v5019
        %v7412 = vpack.c.b16 %v5028, %v5024
        %v7413 = vpack.c.b16 %v5029, %v5025
        %v7414 = vpack.c.b16 %v5030, %v5026
        %v7415 = vpack.c.b16 %v5031, %v5027
        %v7416 = vpack.c.b16 %v5036, %v5032
        %v7417 = vpack.c.b16 %v5037, %v5033
        %v7418 = vpack.c.b16 %v5038, %v5034
        %v7419 = vpack.c.b16 %v5039, %v5035
        %v7420 = vpack.c.b16 %v5044, %v5040
        %v7421 = vpack.c.b16 %v5045, %v5041
        %v7422 = vpack.c.b16 %v5046, %v5042
        %v7423 = vpack.c.b16 %v5047, %v5043
        %v7424 = vpack.c.b16 %v5052, %v5048
        %v7425 = vpack.c.b16 %v5053, %v5049
        %v7426 = vpack.c.b16 %v5054, %v5050
        %v7427 = vpack.c.b16 %v5055, %v5051
        %v7428 = vpack.c.b16 %v5060, %v5056
        %v7429 = vpack.c.b16 %v5061, %v5057
        %v7430 = vpack.c.b16 %v5062, %v5058
        %v7431 = vpack.c.b16 %v5063, %v5059
        %v7432 = vpack.c.b16 %v5068, %v5064
        %v7433 = vpack.c.b16 %v5069, %v5065
        %v7434 = vpack.c.b16 %v5070, %v5066
        %v7435 = vpack.c.b16 %v5071, %v5067
        %v7436 = vpack.c.b16 %v5076, %v5072
        %v7437 = vpack.c.b16 %v5077, %v5073
        %v7438 = vpack.c.b16 %v5078, %v5074
        %v7439 = vpack.c.b16 %v5079, %v5075
        %v7440 = vpack.c.b16 %v5084, %v5080
        %v7441 = vpack.c.b16 %v5085, %v5081
        %v7442 = vpack.c.b16 %v5086, %v5082
        %v7443 = vpack.c.b16 %v5087, %v5083
        %v7444 = vpack.c.b16 %v5092, %v5088
        %v7445 = vpack.c.b16 %v5093, %v5089
        %v7446 = vpack.c.b16 %v5094, %v5090
        %v7447 = vpack.c.b16 %v5095, %v5091
        %v7448 = vpack.c.b16 %v5100, %v5096
        %v7449 = vpack.c.b16 %v5101, %v5097
        %v7450 = vpack.c.b16 %v5102, %v5098
        %v7451 = vpack.c.b16 %v5103, %v5099
        %v7452 = vpack.c.b16 %v5108, %v5104
        %v7453 = vpack.c.b16 %v5109, %v5105
        %v7454 = vpack.c.b16 %v5110, %v5106
        %v7455 = vpack.c.b16 %v5111, %v5107
        %v7456 = vpack.c.b16 %v5116, %v5112
        %v7457 = vpack.c.b16 %v5117, %v5113
        %v7458 = vpack.c.b16 %v5118, %v5114
        %v7459 = vpack.c.b16 %v5119, %v5115
        %v7460 = vpack.c.b16 %v5124, %v5120
        %v7461 = vpack.c.b16 %v5125, %v5121
        %v7462 = vpack.c.b16 %v5126, %v5122
        %v7463 = vpack.c.b16 %v5127, %v5123
        %v7464 = vpack.c.b16 %v5132, %v5128
        %v7465 = vpack.c.b16 %v5133, %v5129
        %v7466 = vpack.c.b16 %v5134, %v5130
        %v7467 = vpack.c.b16 %v5135, %v5131
        %v7468 = vpack.c.b16 %v5140, %v5136
        %v7469 = vpack.c.b16 %v5141, %v5137
        %v7470 = vpack.c.b16 %v5142, %v5138
        %v7471 = vpack.c.b16 %v5143, %v5139
        %v7472 = vpack.c.b16 %v5148, %v5144
        %v7473 = vpack.c.b16 %v5149, %v5145
        %v7474 = vpack.c.b16 %v5150, %v5146
        %v7475 = vpack.c.b16 %v5151, %v5147
        %v7476 = vpack.c.b16 %v5156, %v5152
        %v7477 = vpack.c.b16 %v5157, %v5153
        %v7478 = vpack.c.b16 %v5158, %v5154
        %v7479 = vpack.c.b16 %v5159, %v5155
        %v7480 = vpack.c.b16 %v5164, %v5160
        %v7481 = vpack.c.b16 %v5165, %v5161
        %v7482 = vpack.c.b16 %v5166, %v5162
        %v7483 = vpack.c.b16 %v5167, %v5163
        %v7484 = vpack.c.b16 %v5172, %v5168
        %v7485 = vpack.c.b16 %v5173, %v5169
        %v7486 = vpack.c.b16 %v5174, %v5170
        %v7487 = vpack.c.b16 %v5175, %v5171
        %v7488 = vpack.c.b16 %v5180, %v5176
        %v7489 = vpack.c.b16 %v5181, %v5177
        %v7490 = vpack.c.b16 %v5182, %v5178
        %v7491 = vpack.c.b16 %v5183, %v5179
        %v7492 = vpack.c.b16 %v5188, %v5184
        %v7493 = vpack.c.b16 %v5189, %v5185
        %v7494 = vpack.c.b16 %v5190, %v5186
        %v7495 = vpack.c.b16 %v5191, %v5187
        %v7496 = vpack.c.b16 %v5196, %v5192
        %v7497 = vpack.c.b16 %v5197, %v5193
        %v7498 = vpack.c.b16 %v5198, %v5194
        %v7499 = vpack.c.b16 %v5199, %v5195
        %v7500 = vpack.c.b16 %v5204, %v5200
        %v7501 = vpack.c.b16 %v5205, %v5201
        %v7502 = vpack.c.b16 %v5206, %v5202
        %v7503 = vpack.c.b16 %v5207, %v5203
        %v7504 = vpack.c.b16 %v5212, %v5208
        %v7505 = vpack.c.b16 %v5213, %v5209
        %v7506 = vpack.c.b16 %v5214, %v5210
        %v7507 = vpack.c.b16 %v5215, %v5211
        %v7508 = vpack.c.b16 %v5220, %v5216
        %v7509 = vpack.c.b16 %v5221, %v5217
        %v7510 = vpack.c.b16 %v5222, %v5218
        %v7511 = vpack.c.b16 %v5223, %v5219
        %v7512 = vpack.c.b16 %v5228, %v5224
        %v7513 = vpack.c.b16 %v5229, %v5225
        %v7514 = vpack.c.b16 %v5230, %v5226
        %v7515 = vpack.c.b16 %v5231, %v5227
        %v7516 = vpack.c.b16 %v5236, %v5232
        %v7517 = vpack.c.b16 %v5237, %v5233
        %v7518 = vpack.c.b16 %v5238, %v5234
        %v7519 = vpack.c.b16 %v5239, %v5235
        %v7520 = vpack.c.b16 %v5244, %v5240
        %v7521 = vpack.c.b16 %v5245, %v5241
        %v7522 = vpack.c.b16 %v5246, %v5242
        %v7523 = vpack.c.b16 %v5247, %v5243
        %v7524 = vpack.c.b16 %v5252, %v5248
        %v7525 = vpack.c.b16 %v5253, %v5249
        %v7526 = vpack.c.b16 %v5254, %v5250
        %v7527 = vpack.c.b16 %v5255, %v5251
        %v7528 = vpack.c.b16 %v5260, %v5256
        %v7529 = vpack.c.b16 %v5261, %v5257
        %v7530 = vpack.c.b16 %v5262, %v5258
        %v7531 = vpack.c.b16 %v5263, %v5259
        %v7532 = vpack.c.b16 %v5268, %v5264
        %v7533 = vpack.c.b16 %v5269, %v5265
        %v7534 = vpack.c.b16 %v5270, %v5266
        %v7535 = vpack.c.b16 %v5271, %v5267
        %v7536 = vpack.c.b16 %v5276, %v5272
        %v7537 = vpack.c.b16 %v5277, %v5273
        %v7538 = vpack.c.b16 %v5278, %v5274
        %v7539 = vpack.c.b16 %v5279, %v5275
        %v7540 = vpack.c.b16 %v5284, %v5280
        %v7541 = vpack.c.b16 %v5285, %v5281
        %v7542 = vpack.c.b16 %v5286, %v5282
        %v7543 = vpack.c.b16 %v5287, %v5283
        %v7544 = vpack.c.b16 %v5292, %v5288
        %v7545 = vpack.c.b16 %v5293, %v5289
        %v7546 = vpack.c.b16 %v5294, %v5290
        %v7547 = vpack.c.b16 %v5295, %v5291
        %v7548 = vpack.c.b16 %v5300, %v5296
        %v7549 = vpack.c.b16 %v5301, %v5297
        %v7550 = vpack.c.b16 %v5302, %v5298
        %v7551 = vpack.c.b16 %v5303, %v5299
        %v7552 = vpack.c.b16 %v5308, %v5304
        %v7553 = vpack.c.b16 %v5309, %v5305
        %v7554 = vpack.c.b16 %v5310, %v5306
        %v7555 = vpack.c.b16 %v5311, %v5307
        %v7556 = vpack.c.b16 %v5316, %v5312
        %v7557 = vpack.c.b16 %v5317, %v5313
        %v7558 = vpack.c.b16 %v5318, %v5314
        %v7559 = vpack.c.b16 %v5319, %v5315
        %v7560 = vpack.c.b16 %v5324, %v5320
        %v7561 = vpack.c.b16 %v5325, %v5321
        %v7562 = vpack.c.b16 %v5326, %v5322
        %v7563 = vpack.c.b16 %v5327, %v5323
        %v7564 = vpack.c.b16 %v5332, %v5328
        %v7565 = vpack.c.b16 %v5333, %v5329
        %v7566 = vpack.c.b16 %v5334, %v5330
        %v7567 = vpack.c.b16 %v5335, %v5331
        %v7568 = vpack.c.b16 %v5340, %v5336
        %v7569 = vpack.c.b16 %v5341, %v5337
        %v7570 = vpack.c.b16 %v5342, %v5338
        %v7571 = vpack.c.b16 %v5343, %v5339
        %v7572 = vpack.c.b16 %v5348, %v5344
        %v7573 = vpack.c.b16 %v5349, %v5345
        %v7574 = vpack.c.b16 %v5350, %v5346
        %v7575 = vpack.c.b16 %v5351, %v5347
        %v7576 = vpack.c.b16 %v5356, %v5352
        %v7577 = vpack.c.b16 %v5357, %v5353
        %v7578 = vpack.c.b16 %v5358, %v5354
        %v7579 = vpack.c.b16 %v5359, %v5355
        %v7580 = vpack.c.b16 %v5364, %v5360
        %v7581 = vpack.c.b16 %v5365, %v5361
        %v7582 = vpack.c.b16 %v5366, %v5362
        %v7583 = vpack.c.b16 %v5367, %v5363
        %v7584 = vpack.c.b16 %v5372, %v5368
        %v7585 = vpack.c.b16 %v5373, %v5369
        %v7586 = vpack.c.b16 %v5374, %v5370
        %v7587 = vpack.c.b16 %v5375, %v5371
        %v7588 = vpack.c.b16 %v5380, %v5376
        %v7589 = vpack.c.b16 %v5381, %v5377
        %v7590 = vpack.c.b16 %v5382, %v5378
        %v7591 = vpack.c.b16 %v5383, %v5379
        %v7592 = vpack.c.b16 %v5388, %v5384
        %v7593 = vpack.c.b16 %v5389, %v5385
        %v7594 = vpack.c.b16 %v5390, %v5386
        %v7595 = vpack.c.b16 %v5391, %v5387
        %v7596 = vpack.c.b16 %v5396, %v5392
        %v7597 = vpack.c.b16 %v5397, %v5393
        %v7598 = vpack.c.b16 %v5398, %v5394
        %v7599 = vpack.c.b16 %v5399, %v5395
        %v7600 = vpack.c.b16 %v5404, %v5400
        %v7601 = vpack.c.b16 %v5405, %v5401
        %v7602 = vpack.c.b16 %v5406, %v5402
        %v7603 = vpack.c.b16 %v5407, %v5403
        %v7604 = vpack.c.b16 %v5412, %v5408
        %v7605 = vpack.c.b16 %v5413, %v5409
        %v7606 = vpack.c.b16 %v5414, %v5410
        %v7607 = vpack.c.b16 %v5415, %v5411
        %v7608 = vpack.c.b16 %v5420, %v5416
        %v7609 = vpack.c.b16 %v5421, %v5417
        %v7610 = vpack.c.b16 %v5422, %v5418
        %v7611 = vpack.c.b16 %v5423, %v5419
        %v7612 = vpack.c.b16 %v5428, %v5424
        %v7613 = vpack.c.b16 %v5429, %v5425
        %v7614 = vpack.c.b16 %v5430, %v5426
        %v7615 = vpack.c.b16 %v5431, %v5427
        %v7616 = vpack.c.b16 %v5436, %v5432
        %v7617 = vpack.c.b16 %v5437, %v5433
        %v7618 = vpack.c.b16 %v5438, %v5434
        %v7619 = vpack.c.b16 %v5439, %v5435
        %v7620 = vpack.c.b16 %v5444, %v5440
        %v7621 = vpack.c.b16 %v5445, %v5441
        %v7622 = vpack.c.b16 %v5446, %v5442
        %v7623 = vpack.c.b16 %v5447, %v5443
        %v7624 = vpack.c.b16 %v5452, %v5448
        %v7625 = vpack.c.b16 %v5453, %v5449
        %v7626 = vpack.c.b16 %v5454, %v5450
        %v7627 = vpack.c.b16 %v5455, %v5451
        %v7628 = vpack.c.b16 %v5460, %v5456
        %v7629 = vpack.c.b16 %v5461, %v5457
        %v7630 = vpack.c.b16 %v5462, %v5458
        %v7631 = vpack.c.b16 %v5463, %v5459
        %v7632 = vpack.c.b16 %v5468, %v5464
        %v7633 = vpack.c.b16 %v5469, %v5465
        %v7634 = vpack.c.b16 %v5470, %v5466
        %v7635 = vpack.c.b16 %v5471, %v5467
        %v7636 = vpack.c.b16 %v5476, %v5472
        %v7637 = vpack.c.b16 %v5477, %v5473
        %v7638 = vpack.c.b16 %v5478, %v5474
        %v7639 = vpack.c.b16 %v5479, %v5475
        %v7640 = vpack.c.b16 %v5484, %v5480
        %v7641 = vpack.c.b16 %v5485, %v5481
        %v7642 = vpack.c.b16 %v5486, %v5482
        %v7643 = vpack.c.b16 %v5487, %v5483
        %v7644 = vpack.c.b16 %v5492, %v5488
        %v7645 = vpack.c.b16 %v5493, %v5489
        %v7646 = vpack.c.b16 %v5494, %v5490
        %v7647 = vpack.c.b16 %v5495, %v5491
        %v7648 = vpack.c.b16 %v5500, %v5496
        %v7649 = vpack.c.b16 %v5501, %v5497
        %v7650 = vpack.c.b16 %v5502, %v5498
        %v7651 = vpack.c.b16 %v5503, %v5499
        %v7652 = vpack.c.b16 %v5508, %v5504
        %v7653 = vpack.c.b16 %v5509, %v5505
        %v7654 = vpack.c.b16 %v5510, %v5506
        %v7655 = vpack.c.b16 %v5511, %v5507
        %v7656 = vpack.c.b16 %v5516, %v5512
        %v7657 = vpack.c.b16 %v5517, %v5513
        %v7658 = vpack.c.b16 %v5518, %v5514
        %v7659 = vpack.c.b16 %v5519, %v5515
        %v7660 = vpack.c.b16 %v5524, %v5520
        %v7661 = vpack.c.b16 %v5525, %v5521
        %v7662 = vpack.c.b16 %v5526, %v5522
        %v7663 = vpack.c.b16 %v5527, %v5523
        %v7664 = vpack.c.b16 %v5532, %v5528
        %v7665 = vpack.c.b16 %v5533, %v5529
        %v7666 = vpack.c.b16 %v5534, %v5530
        %v7667 = vpack.c.b16 %v5535, %v5531
        %v7668 = vpack.c.b16 %v5540, %v5536
        %v7669 = vpack.c.b16 %v5541, %v5537
        %v7670 = vpack.c.b16 %v5542, %v5538
        %v7671 = vpack.c.b16 %v5543, %v5539
        %v7672 = vpack.c.b16 %v5548, %v5544
        %v7673 = vpack.c.b16 %v5549, %v5545
        %v7674 = vpack.c.b16 %v5550, %v5546
        %v7675 = vpack.c.b16 %v5551, %v5547
        %v7676 = vpack.c.b16 %v5556, %v5552
        %v7677 = vpack.c.b16 %v5557, %v5553
        %v7678 = vpack.c.b16 %v5558, %v5554
        %v7679 = vpack.c.b16 %v5559, %v5555
        %v7680 = vpack.c.b16 %v5564, %v5560
        %v7681 = vpack.c.b16 %v5565, %v5561
        %v7682 = vpack.c.b16 %v5566, %v5562
        %v7683 = vpack.c.b16 %v5567, %v5563
        %v7684 = vpack.c.b16 %v5572, %v5568
        %v7685 = vpack.c.b16 %v5573, %v5569
        %v7686 = vpack.c.b16 %v5574, %v5570
        %v7687 = vpack.c.b16 %v5575, %v5571
        %v7688 = vpack.c.b16 %v5580, %v5576
        %v7689 = vpack.c.b16 %v5581, %v5577
        %v7690 = vpack.c.b16 %v5582, %v5578
        %v7691 = vpack.c.b16 %v5583, %v5579
        %v7692 = vpack.c.b16 %v5588, %v5584
        %v7693 = vpack.c.b16 %v5589, %v5585
        %v7694 = vpack.c.b16 %v5590, %v5586
        %v7695 = vpack.c.b16 %v5591, %v5587
        %v7696 = vpack.c.b16 %v5596, %v5592
        %v7697 = vpack.c.b16 %v5597, %v5593
        %v7698 = vpack.c.b16 %v5598, %v5594
        %v7699 = vpack.c.b16 %v5599, %v5595
        %v7700 = vpack.c.b16 %v5604, %v5600
        %v7701 = vpack.c.b16 %v5605, %v5601
        %v7702 = vpack.c.b16 %v5606, %v5602
        %v7703 = vpack.c.b16 %v5607, %v5603
        %v7704 = vpack.c.b16 %v5612, %v5608
        %v7705 = vpack.c.b16 %v5613, %v5609
        %v7706 = vpack.c.b16 %v5614, %v5610
        %v7707 = vpack.c.b16 %v5615, %v5611
        %v7708 = vpack.c.b16 %v5620, %v5616
        %v7709 = vpack.c.b16 %v5621, %v5617
        %v7710 = vpack.c.b16 %v5622, %v5618
        %v7711 = vpack.c.b16 %v5623, %v5619
        %v7712 = vpack.c.b16 %v5628, %v5624
        %v7713 = vpack.c.b16 %v5629, %v5625
        %v7714 = vpack.c.b16 %v5630, %v5626
        %v7715 = vpack.c.b16 %v5631, %v5627
        %v7716 = vpack.c.b16 %v5636, %v5632
        %v7717 = vpack.c.b16 %v5637, %v5633
        %v7718 = vpack.c.b16 %v5638, %v5634
        %v7719 = vpack.c.b16 %v5639, %v5635
        %v7720 = vpack.c.b16 %v5644, %v5640
        %v7721 = vpack.c.b16 %v5645, %v5641
        %v7722 = vpack.c.b16 %v5646, %v5642
        %v7723 = vpack.c.b16 %v5647, %v5643
        %v7724 = vpack.c.b16 %v5652, %v5648
        %v7725 = vpack.c.b16 %v5653, %v5649
        %v7726 = vpack.c.b16 %v5654, %v5650
        %v7727 = vpack.c.b16 %v5655, %v5651
        %v7728 = vpack.c.b16 %v5660, %v5656
        %v7729 = vpack.c.b16 %v5661, %v5657
        %v7730 = vpack.c.b16 %v5662, %v5658
        %v7731 = vpack.c.b16 %v5663, %v5659
        %v7732 = vpack.c.b16 %v5668, %v5664
        %v7733 = vpack.c.b16 %v5669, %v5665
        %v7734 = vpack.c.b16 %v5670, %v5666
        %v7735 = vpack.c.b16 %v5671, %v5667
        %v7736 = vpack.c.b16 %v5676, %v5672
        %v7737 = vpack.c.b16 %v5677, %v5673
        %v7738 = vpack.c.b16 %v5678, %v5674
        %v7739 = vpack.c.b16 %v5679, %v5675
        %v7740 = vpack.c.b16 %v5684, %v5680
        %v7741 = vpack.c.b16 %v5685, %v5681
        %v7742 = vpack.c.b16 %v5686, %v5682
        %v7743 = vpack.c.b16 %v5687, %v5683
        %v7744 = vpack.c.b16 %v5692, %v5688
        %v7745 = vpack.c.b16 %v5693, %v5689
        %v7746 = vpack.c.b16 %v5694, %v5690
        %v7747 = vpack.c.b16 %v5695, %v5691
        %v7748 = vpack.c.b16 %v5700, %v5696
        %v7749 = vpack.c.b16 %v5701, %v5697
        %v7750 = vpack.c.b16 %v5702, %v5698
        %v7751 = vpack.c.b16 %v5703, %v5699
        %v7752 = vpack.c.b16 %v5708, %v5704
        %v7753 = vpack.c.b16 %v5709, %v5705
        %v7754 = vpack.c.b16 %v5710, %v5706
        %v7755 = vpack.c.b16 %v5711, %v5707
        %v7756 = vpack.c.b16 %v5716, %v5712
        %v7757 = vpack.c.b16 %v5717, %v5713
        %v7758 = vpack.c.b16 %v5718, %v5714
        %v7759 = vpack.c.b16 %v5719, %v5715
        %v7760 = vpack.c.b16 %v5724, %v5720
        %v7761 = vpack.c.b16 %v5725, %v5721
        %v7762 = vpack.c.b16 %v5726, %v5722
        %v7763 = vpack.c.b16 %v5727, %v5723
        %v7764 = vpack.c.b16 %v5732, %v5728
        %v7765 = vpack.c.b16 %v5733, %v5729
        %v7766 = vpack.c.b16 %v5734, %v5730
        %v7767 = vpack.c.b16 %v5735, %v5731
        %v7768 = vpack.c.b16 %v5740, %v5736
        %v7769 = vpack.c.b16 %v5741, %v5737
        %v7770 = vpack.c.b16 %v5742, %v5738
        %v7771 = vpack.c.b16 %v5743, %v5739
        %v7772 = vpack.c.b16 %v5748, %v5744
        %v7773 = vpack.c.b16 %v5749, %v5745
        %v7774 = vpack.c.b16 %v5750, %v5746
        %v7775 = vpack.c.b16 %v5751, %v5747
        %v7776 = vpack.c.b16 %v5756, %v5752
        %v7777 = vpack.c.b16 %v5757, %v5753
        %v7778 = vpack.c.b16 %v5758, %v5754
        %v7779 = vpack.c.b16 %v5759, %v5755
        %v7780 = vpack.c.b16 %v5764, %v5760
        %v7781 = vpack.c.b16 %v5765, %v5761
        %v7782 = vpack.c.b16 %v5766, %v5762
        %v7783 = vpack.c.b16 %v5767, %v5763
        %v7784 = vpack.c.b16 %v5772, %v5768
        %v7785 = vpack.c.b16 %v5773, %v5769
        %v7786 = vpack.c.b16 %v5774, %v5770
        %v7787 = vpack.c.b16 %v5775, %v5771
        %v7788 = vpack.c.b16 %v5780, %v5776
        %v7789 = vpack.c.b16 %v5781, %v5777
        %v7790 = vpack.c.b16 %v5782, %v5778
        %v7791 = vpack.c.b16 %v5783, %v5779
        %v7792 = vpack.c.b16 %v5788, %v5784
        %v7793 = vpack.c.b16 %v5789, %v5785
        %v7794 = vpack.c.b16 %v5790, %v5786
        %v7795 = vpack.c.b16 %v5791, %v5787
        %v7796 = vpack.c.b16 %v5796, %v5792
        %v7797 = vpack.c.b16 %v5797, %v5793
        %v7798 = vpack.c.b16 %v5798, %v5794
        %v7799 = vpack.c.b16 %v5799, %v5795
        %v7800 = vpack.c.b16 %v5804, %v5800
        %v7801 = vpack.c.b16 %v5805, %v5801
        %v7802 = vpack.c.b16 %v5806, %v5802
        %v7803 = vpack.c.b16 %v5807, %v5803
        %v7804 = vpack.c.b16 %v5812, %v5808
        %v7805 = vpack.c.b16 %v5813, %v5809
        %v7806 = vpack.c.b16 %v5814, %v5810
        %v7807 = vpack.c.b16 %v5815, %v5811
        %v7808 = vpack.c.b16 %v5820, %v5816
        %v7809 = vpack.c.b16 %v5821, %v5817
        %v7810 = vpack.c.b16 %v5822, %v5818
        %v7811 = vpack.c.b16 %v5823, %v5819
        %v7812 = vpack.c.b16 %v5828, %v5824
        %v7813 = vpack.c.b16 %v5829, %v5825
        %v7814 = vpack.c.b16 %v5830, %v5826
        %v7815 = vpack.c.b16 %v5831, %v5827
        %v7816 = vpack.c.b16 %v5836, %v5832
        %v7817 = vpack.c.b16 %v5837, %v5833
        %v7818 = vpack.c.b16 %v5838, %v5834
        %v7819 = vpack.c.b16 %v5839, %v5835
        %v7820 = vpack.c.b16 %v5844, %v5840
        %v7821 = vpack.c.b16 %v5845, %v5841
        %v7822 = vpack.c.b16 %v5846, %v5842
        %v7823 = vpack.c.b16 %v5847, %v5843
        %v7824 = vpack.c.b16 %v5852, %v5848
        %v7825 = vpack.c.b16 %v5853, %v5849
        %v7826 = vpack.c.b16 %v5854, %v5850
        %v7827 = vpack.c.b16 %v5855, %v5851
        %v7828 = vpack.c.b16 %v5860, %v5856
        %v7829 = vpack.c.b16 %v5861, %v5857
        %v7830 = vpack.c.b16 %v5862, %v5858
        %v7831 = vpack.c.b16 %v5863, %v5859
        %v7832 = vpack.c.b16 %v5868, %v5864
        %v7833 = vpack.c.b16 %v5869, %v5865
        %v7834 = vpack.c.b16 %v5870, %v5866
        %v7835 = vpack.c.b16 %v5871, %v5867
        %v7836 = vpack.c.b16 %v5876, %v5872
        %v7837 = vpack.c.b16 %v5877, %v5873
        %v7838 = vpack.c.b16 %v5878, %v5874
        %v7839 = vpack.c.b16 %v5879, %v5875
        %v7840 = vpack.c.b16 %v5884, %v5880
        %v7841 = vpack.c.b16 %v5885, %v5881
        %v7842 = vpack.c.b16 %v5886, %v5882
        %v7843 = vpack.c.b16 %v5887, %v5883
        %v7844 = vpack.c.b16 %v5892, %v5888
        %v7845 = vpack.c.b16 %v5893, %v5889
        %v7846 = vpack.c.b16 %v5894, %v5890
        %v7847 = vpack.c.b16 %v5895, %v5891
        %v7848 = vpack.c.b16 %v5900, %v5896
        %v7849 = vpack.c.b16 %v5901, %v5897
        %v7850 = vpack.c.b16 %v5902, %v5898
        %v7851 = vpack.c.b16 %v5903, %v5899
        %v7852 = vpack.c.b16 %v5908, %v5904
        %v7853 = vpack.c.b16 %v5909, %v5905
        %v7854 = vpack.c.b16 %v5910, %v5906
        %v7855 = vpack.c.b16 %v5911, %v5907
        %v7856 = vpack.c.b16 %v5916, %v5912
        %v7857 = vpack.c.b16 %v5917, %v5913
        %v7858 = vpack.c.b16 %v5918, %v5914
        %v7859 = vpack.c.b16 %v5919, %v5915
        %v7860 = vpack.c.b16 %v5924, %v5920
        %v7861 = vpack.c.b16 %v5925, %v5921
        %v7862 = vpack.c.b16 %v5926, %v5922
        %v7863 = vpack.c.b16 %v5927, %v5923
        %v7864 = vpack.c.b16 %v5932, %v5928
        %v7865 = vpack.c.b16 %v5933, %v5929
        %v7866 = vpack.c.b16 %v5934, %v5930
        %v7867 = vpack.c.b16 %v5935, %v5931
        %v7868 = vpack.c.b16 %v5940, %v5936
        %v7869 = vpack.c.b16 %v5941, %v5937
        %v7870 = vpack.c.b16 %v5942, %v5938
        %v7871 = vpack.c.b16 %v5943, %v5939
        %v7872 = vpack.c.b16 %v5948, %v5944
        %v7873 = vpack.c.b16 %v5949, %v5945
        %v7874 = vpack.c.b16 %v5950, %v5946
        %v7875 = vpack.c.b16 %v5951, %v5947
        %v7876 = vpack.c.b16 %v5956, %v5952
        %v7877 = vpack.c.b16 %v5957, %v5953
        %v7878 = vpack.c.b16 %v5958, %v5954
        %v7879 = vpack.c.b16 %v5959, %v5955
        %v7880 = vpack.c.b16 %v5964, %v5960
        %v7881 = vpack.c.b16 %v5965, %v5961
        %v7882 = vpack.c.b16 %v5966, %v5962
        %v7883 = vpack.c.b16 %v5967, %v5963
        %v7884 = vpack.c.b16 %v5972, %v5968
        %v7885 = vpack.c.b16 %v5973, %v5969
        %v7886 = vpack.c.b16 %v5974, %v5970
        %v7887 = vpack.c.b16 %v5975, %v5971
        %v7888 = vpack.c.b16 %v5980, %v5976
        %v7889 = vpack.c.b16 %v5981, %v5977
        %v7890 = vpack.c.b16 %v5982, %v5978
        %v7891 = vpack.c.b16 %v5983, %v5979
        %v7892 = vpack.c.b16 %v5988, %v5984
        %v7893 = vpack.c.b16 %v5989, %v5985
        %v7894 = vpack.c.b16 %v5990, %v5986
        %v7895 = vpack.c.b16 %v5991, %v5987
        %v7896 = vpack.c.b16 %v5996, %v5992
        %v7897 = vpack.c.b16 %v5997, %v5993
        %v7898 = vpack.c.b16 %v5998, %v5994
        %v7899 = vpack.c.b16 %v5999, %v5995
        %v7900 = vpack.c.b16 %v6004, %v6000
        %v7901 = vpack.c.b16 %v6005, %v6001
        %v7902 = vpack.c.b16 %v6006, %v6002
        %v7903 = vpack.c.b16 %v6007, %v6003
        %v7904 = vpack.c.b16 %v6012, %v6008
        %v7905 = vpack.c.b16 %v6013, %v6009
        %v7906 = vpack.c.b16 %v6014, %v6010
        %v7907 = vpack.c.b16 %v6015, %v6011
        %v7908 = vpack.c.b16 %v6020, %v6016
        %v7909 = vpack.c.b16 %v6021, %v6017
        %v7910 = vpack.c.b16 %v6022, %v6018
        %v7911 = vpack.c.b16 %v6023, %v6019
        %v7912 = vpack.c.b16 %v6028, %v6024
        %v7913 = vpack.c.b16 %v6029, %v6025
        %v7914 = vpack.c.b16 %v6030, %v6026
        %v7915 = vpack.c.b16 %v6031, %v6027
        %v7916 = vpack.c.b16 %v6036, %v6032
        %v7917 = vpack.c.b16 %v6037, %v6033
        %v7918 = vpack.c.b16 %v6038, %v6034
        %v7919 = vpack.c.b16 %v6039, %v6035
        %v7920 = vpack.c.b16 %v6044, %v6040
        %v7921 = vpack.c.b16 %v6045, %v6041
        %v7922 = vpack.c.b16 %v6046, %v6042
        %v7923 = vpack.c.b16 %v6047, %v6043
        %v7924 = vpack.c.b16 %v6052, %v6048
        %v7925 = vpack.c.b16 %v6053, %v6049
        %v7926 = vpack.c.b16 %v6054, %v6050
        %v7927 = vpack.c.b16 %v6055, %v6051
        %v7928 = vpack.c.b16 %v6060, %v6056
        %v7929 = vpack.c.b16 %v6061, %v6057
        %v7930 = vpack.c.b16 %v6062, %v6058
        %v7931 = vpack.c.b16 %v6063, %v6059
        %v7932 = vpack.c.b16 %v6068, %v6064
        %v7933 = vpack.c.b16 %v6069, %v6065
        %v7934 = vpack.c.b16 %v6070, %v6066
        %v7935 = vpack.c.b16 %v6071, %v6067
        %v7936 = vpack.c.b16 %v6076, %v6072
        %v7937 = vpack.c.b16 %v6077, %v6073
        %v7938 = vpack.c.b16 %v6078, %v6074
        %v7939 = vpack.c.b16 %v6079, %v6075
        %v7940 = vpack.c.b16 %v6084, %v6080
        %v7941 = vpack.c.b16 %v6085, %v6081
        %v7942 = vpack.c.b16 %v6086, %v6082
        %v7943 = vpack.c.b16 %v6087, %v6083
        %v7944 = vpack.c.b16 %v6092, %v6088
        %v7945 = vpack.c.b16 %v6093, %v6089
        %v7946 = vpack.c.b16 %v6094, %v6090
        %v7947 = vpack.c.b16 %v6095, %v6091
        %v7948 = vpack.c.b16 %v6100, %v6096
        %v7949 = vpack.c.b16 %v6101, %v6097
        %v7950 = vpack.c.b16 %v6102, %v6098
        %v7951 = vpack.c.b16 %v6103, %v6099
        %v7952 = vpack.c.b16 %v6108, %v6104
        %v7953 = vpack.c.b16 %v6109, %v6105
        %v7954 = vpack.c.b16 %v6110, %v6106
        %v7955 = vpack.c.b16 %v6111, %v6107
        %v7956 = vpack.c.b16 %v6116, %v6112
        %v7957 = vpack.c.b16 %v6117, %v6113
        %v7958 = vpack.c.b16 %v6118, %v6114
        %v7959 = vpack.c.b16 %v6119, %v6115
        %v7960 = vpack.c.b16 %v6124, %v6120
        %v7961 = vpack.c.b16 %v6125, %v6121
        %v7962 = vpack.c.b16 %v6126, %v6122
        %v7963 = vpack.c.b16 %v6127, %v6123
        %v7964 = vpack.c.b16 %v6132, %v6128
        %v7965 = vpack.c.b16 %v6133, %v6129
        %v7966 = vpack.c.b16 %v6134, %v6130
        %v7967 = vpack.c.b16 %v6135, %v6131
        %v7968 = vpack.c.b16 %v6140, %v6136
        %v7969 = vpack.c.b16 %v6141, %v6137
        %v7970 = vpack.c.b16 %v6142, %v6138
        %v7971 = vpack.c.b16 %v6143, %v6139
        %v7972 = vpack.c.b16 %v6148, %v6144
        %v7973 = vpack.c.b16 %v6149, %v6145
        %v7974 = vpack.c.b16 %v6150, %v6146
        %v7975 = vpack.c.b16 %v6151, %v6147
        %v7976 = vpack.c.b16 %v6156, %v6152
        %v7977 = vpack.c.b16 %v6157, %v6153
        %v7978 = vpack.c.b16 %v6158, %v6154
        %v7979 = vpack.c.b16 %v6159, %v6155
        %v7980 = vpack.c.b16 %v6164, %v6160
        %v7981 = vpack.c.b16 %v6165, %v6161
        %v7982 = vpack.c.b16 %v6166, %v6162
        %v7983 = vpack.c.b16 %v6167, %v6163
        %v7984 = vpack.c.b16 %v6172, %v6168
        %v7985 = vpack.c.b16 %v6173, %v6169
        %v7986 = vpack.c.b16 %v6174, %v6170
        %v7987 = vpack.c.b16 %v6175, %v6171
        %v7988 = vpack.c.b16 %v6180, %v6176
        %v7989 = vpack.c.b16 %v6181, %v6177
        %v7990 = vpack.c.b16 %v6182, %v6178
        %v7991 = vpack.c.b16 %v6183, %v6179
        %v7992 = vpack.c.b16 %v6188, %v6184
        %v7993 = vpack.c.b16 %v6189, %v6185
        %v7994 = vpack.c.b16 %v6190, %v6186
        %v7995 = vpack.c.b16 %v6191, %v6187
        %v7996 = vpack.c.b16 %v6196, %v6192
        %v7997 = vpack.c.b16 %v6197, %v6193
        %v7998 = vpack.c.b16 %v6198, %v6194
        %v7999 = vpack.c.b16 %v6199, %v6195
        %v8000 = vpack.c.b16 %v6204, %v6200
        %v8001 = vpack.c.b16 %v6205, %v6201
        %v8002 = vpack.c.b16 %v6206, %v6202
        %v8003 = vpack.c.b16 %v6207, %v6203
        %v8004 = vpack.c.b16 %v6212, %v6208
        %v8005 = vpack.c.b16 %v6213, %v6209
        %v8006 = vpack.c.b16 %v6214, %v6210
        %v8007 = vpack.c.b16 %v6215, %v6211
        %v8008 = vpack.c.b16 %v6220, %v6216
        %v8009 = vpack.c.b16 %v6221, %v6217
        %v8010 = vpack.c.b16 %v6222, %v6218
        %v8011 = vpack.c.b16 %v6223, %v6219
        %v8012 = vpack.c.b16 %v6228, %v6224
        %v8013 = vpack.c.b16 %v6229, %v6225
        %v8014 = vpack.c.b16 %v6230, %v6226
        %v8015 = vpack.c.b16 %v6231, %v6227
        %v8016 = vpack.c.b16 %v6236, %v6232
        %v8017 = vpack.c.b16 %v6237, %v6233
        %v8018 = vpack.c.b16 %v6238, %v6234
        %v8019 = vpack.c.b16 %v6239, %v6235
        %v8020 = vpack.c.b16 %v6244, %v6240
        %v8021 = vpack.c.b16 %v6245, %v6241
        %v8022 = vpack.c.b16 %v6246, %v6242
        %v8023 = vpack.c.b16 %v6247, %v6243
        %v8024 = vpack.c.b16 %v6252, %v6248
        %v8025 = vpack.c.b16 %v6253, %v6249
        %v8026 = vpack.c.b16 %v6254, %v6250
        %v8027 = vpack.c.b16 %v6255, %v6251
        %v8028 = vpack.c.b16 %v6260, %v6256
        %v8029 = vpack.c.b16 %v6261, %v6257
        %v8030 = vpack.c.b16 %v6262, %v6258
        %v8031 = vpack.c.b16 %v6263, %v6259
        %v8032 = vpack.c.b16 %v6268, %v6264
        %v8033 = vpack.c.b16 %v6269, %v6265
        %v8034 = vpack.c.b16 %v6270, %v6266
        %v8035 = vpack.c.b16 %v6271, %v6267
        %v8036 = vpack.c.b16 %v6276, %v6272
        %v8037 = vpack.c.b16 %v6277, %v6273
        %v8038 = vpack.c.b16 %v6278, %v6274
        %v8039 = vpack.c.b16 %v6279, %v6275
        %v8040 = vpack.c.b16 %v6284, %v6280
        %v8041 = vpack.c.b16 %v6285, %v6281
        %v8042 = vpack.c.b16 %v6286, %v6282
        %v8043 = vpack.c.b16 %v6287, %v6283
        %v8044 = vpack.c.b16 %v6292, %v6288
        %v8045 = vpack.c.b16 %v6293, %v6289
        %v8046 = vpack.c.b16 %v6294, %v6290
        %v8047 = vpack.c.b16 %v6295, %v6291
        %v8048 = vpack.c.b16 %v6300, %v6296
        %v8049 = vpack.c.b16 %v6301, %v6297
        %v8050 = vpack.c.b16 %v6302, %v6298
        %v8051 = vpack.c.b16 %v6303, %v6299
        %v8052 = vpack.c.b16 %v6308, %v6304
        %v8053 = vpack.c.b16 %v6309, %v6305
        %v8054 = vpack.c.b16 %v6310, %v6306
        %v8055 = vpack.c.b16 %v6311, %v6307
        %v8056 = vpack.c.b16 %v6316, %v6312
        %v8057 = vpack.c.b16 %v6317, %v6313
        %v8058 = vpack.c.b16 %v6318, %v6314
        %v8059 = vpack.c.b16 %v6319, %v6315
        %v8060 = vpack.c.b16 %v6324, %v6320
        %v8061 = vpack.c.b16 %v6325, %v6321
        %v8062 = vpack.c.b16 %v6326, %v6322
        %v8063 = vpack.c.b16 %v6327, %v6323
        %v8064 = vpack.c.b16 %v6332, %v6328
        %v8065 = vpack.c.b16 %v6333, %v6329
        %v8066 = vpack.c.b16 %v6334, %v6330
        %v8067 = vpack.c.b16 %v6335, %v6331
        %v8068 = vpack.c.b16 %v6340, %v6336
        %v8069 = vpack.c.b16 %v6341, %v6337
        %v8070 = vpack.c.b16 %v6342, %v6338
        %v8071 = vpack.c.b16 %v6343, %v6339
        %v8072 = vpack.c.b16 %v6348, %v6344
        %v8073 = vpack.c.b16 %v6349, %v6345
        %v8074 = vpack.c.b16 %v6350, %v6346
        %v8075 = vpack.c.b16 %v6351, %v6347
        %v8076 = vpack.c.b16 %v6356, %v6352
        %v8077 = vpack.c.b16 %v6357, %v6353
        %v8078 = vpack.c.b16 %v6358, %v6354
        %v8079 = vpack.c.b16 %v6359, %v6355
        %v8080 = vpack.c.b16 %v6364, %v6360
        %v8081 = vpack.c.b16 %v6365, %v6361
        %v8082 = vpack.c.b16 %v6366, %v6362
        %v8083 = vpack.c.b16 %v6367, %v6363
        %v8084 = vpack.c.b16 %v6372, %v6368
        %v8085 = vpack.c.b16 %v6373, %v6369
        %v8086 = vpack.c.b16 %v6374, %v6370
        %v8087 = vpack.c.b16 %v6375, %v6371
        %v8088 = vpack.c.b16 %v6380, %v6376
        %v8089 = vpack.c.b16 %v6381, %v6377
        %v8090 = vpack.c.b16 %v6382, %v6378
        %v8091 = vpack.c.b16 %v6383, %v6379
        %v8092 = vpack.c.b16 %v6388, %v6384
        %v8093 = vpack.c.b16 %v6389, %v6385
        %v8094 = vpack.c.b16 %v6390, %v6386
        %v8095 = vpack.c.b16 %v6391, %v6387
        %v8096 = vpack.c.b16 %v6396, %v6392
        %v8097 = vpack.c.b16 %v6397, %v6393
        %v8098 = vpack.c.b16 %v6398, %v6394
        %v8099 = vpack.c.b16 %v6399, %v6395
        %v8100 = vpack.c.b16 %v6404, %v6400
        %v8101 = vpack.c.b16 %v6405, %v6401
        %v8102 = vpack.c.b16 %v6406, %v6402
        %v8103 = vpack.c.b16 %v6407, %v6403
        %v8104 = vpack.c.b16 %v6412, %v6408
        %v8105 = vpack.c.b16 %v6413, %v6409
        %v8106 = vpack.c.b16 %v6414, %v6410
        %v8107 = vpack.c.b16 %v6415, %v6411
        %v8108 = vpack.c.b16 %v6420, %v6416
        %v8109 = vpack.c.b16 %v6421, %v6417
        %v8110 = vpack.c.b16 %v6422, %v6418
        %v8111 = vpack.c.b16 %v6423, %v6419
        %v8112 = vpack.c.b16 %v6428, %v6424
        %v8113 = vpack.c.b16 %v6429, %v6425
        %v8114 = vpack.c.b16 %v6430, %v6426
        %v8115 = vpack.c.b16 %v6431, %v6427
        %v8116 = vpack.c.b16 %v6436, %v6432
        %v8117 = vpack.c.b16 %v6437, %v6433
        %v8118 = vpack.c.b16 %v6438, %v6434
        %v8119 = vpack.c.b16 %v6439, %v6435
        %v8120 = vpack.c.b16 %v6444, %v6440
        %v8121 = vpack.c.b16 %v6445, %v6441
        %v8122 = vpack.c.b16 %v6446, %v6442
        %v8123 = vpack.c.b16 %v6447, %v6443
        %v8124 = vpack.c.b16 %v6452, %v6448
        %v8125 = vpack.c.b16 %v6453, %v6449
        %v8126 = vpack.c.b16 %v6454, %v6450
        %v8127 = vpack.c.b16 %v6455, %v6451
        %v8128 = vpack.c.b16 %v6460, %v6456
        %v8129 = vpack.c.b16 %v6461, %v6457
        %v8130 = vpack.c.b16 %v6462, %v6458
        %v8131 = vpack.c.b16 %v6463, %v6459
        %v8132 = vpack.c.b16 %v6468, %v6464
        %v8133 = vpack.c.b16 %v6469, %v6465
        %v8134 = vpack.c.b16 %v6470, %v6466
        %v8135 = vpack.c.b16 %v6471, %v6467
        %v8136 = vpack.c.b16 %v6476, %v6472
        %v8137 = vpack.c.b16 %v6477, %v6473
        %v8138 = vpack.c.b16 %v6478, %v6474
        %v8139 = vpack.c.b16 %v6479, %v6475
        %v8140 = vpack.c.b16 %v6484, %v6480
        %v8141 = vpack.c.b16 %v6485, %v6481
        %v8142 = vpack.c.b16 %v6486, %v6482
        %v8143 = vpack.c.b16 %v6487, %v6483
        %v8144 = vpack.c.b16 %v6492, %v6488
        %v8145 = vpack.c.b16 %v6493, %v6489
        %v8146 = vpack.c.b16 %v6494, %v6490
        %v8147 = vpack.c.b16 %v6495, %v6491
        %v8148 = vpack.c.b16 %v6500, %v6496
        %v8149 = vpack.c.b16 %v6501, %v6497
        %v8150 = vpack.c.b16 %v6502, %v6498
        %v8151 = vpack.c.b16 %v6503, %v6499
        %v8152 = vpack.c.b16 %v6508, %v6504
        %v8153 = vpack.c.b16 %v6509, %v6505
        %v8154 = vpack.c.b16 %v6510, %v6506
        %v8155 = vpack.c.b16 %v6511, %v6507
        %v8156 = vpack.c.b16 %v6516, %v6512
        %v8157 = vpack.c.b16 %v6517, %v6513
        %v8158 = vpack.c.b16 %v6518, %v6514
        %v8159 = vpack.c.b16 %v6519, %v6515
        %v8160 = vpack.c.b16 %v6524, %v6520
        %v8161 = vpack.c.b16 %v6525, %v6521
        %v8162 = vpack.c.b16 %v6526, %v6522
        %v8163 = vpack.c.b16 %v6527, %v6523
        %v8164 = vpack.c.b16 %v6532, %v6528
        %v8165 = vpack.c.b16 %v6533, %v6529
        %v8166 = vpack.c.b16 %v6534, %v6530
        %v8167 = vpack.c.b16 %v6535, %v6531
        %v8168 = vpack.c.b16 %v6540, %v6536
        %v8169 = vpack.c.b16 %v6541, %v6537
        %v8170 = vpack.c.b16 %v6542, %v6538
        %v8171 = vpack.c.b16 %v6543, %v6539
        %v8172 = vpack.c.b16 %v6548, %v6544
        %v8173 = vpack.c.b16 %v6549, %v6545
        %v8174 = vpack.c.b16 %v6550, %v6546
        %v8175 = vpack.c.b16 %v6551, %v6547
        %v8176 = vpack.c.b16 %v6556, %v6552
        %v8177 = vpack.c.b16 %v6557, %v6553
        %v8178 = vpack.c.b16 %v6558, %v6554
        %v8179 = vpack.c.b16 %v6559, %v6555
        %v8180 = vpack.c.b16 %v6564, %v6560
        %v8181 = vpack.c.b16 %v6565, %v6561
        %v8182 = vpack.c.b16 %v6566, %v6562
        %v8183 = vpack.c.b16 %v6567, %v6563
        %v8184 = vpack.c.b16 %v6572, %v6568
        %v8185 = vpack.c.b16 %v6573, %v6569
        %v8186 = vpack.c.b16 %v6574, %v6570
        %v8187 = vpack.c.b16 %v6575, %v6571
        %v8188 = vpack.c.b16 %v6580, %v6576
        %v8189 = vpack.c.b16 %v6581, %v6577
        %v8190 = vpack.c.b16 %v6582, %v6578
        %v8191 = vpack.c.b16 %v6583, %v6579
        %v8192 = vpack.c.b16 %v6588, %v6584
        %v8193 = vpack.c.b16 %v6589, %v6585
        %v8194 = vpack.c.b16 %v6590, %v6586
        %v8195 = vpack.c.b16 %v6591, %v6587
        %v8196 = vpack.c.b16 %v6596, %v6592
        %v8197 = vpack.c.b16 %v6597, %v6593
        %v8198 = vpack.c.b16 %v6598, %v6594
        %v8199 = vpack.c.b16 %v6599, %v6595
        %v8200 = vpack.c.b16 %v6604, %v6600
        %v8201 = vpack.c.b16 %v6605, %v6601
        %v8202 = vpack.c.b16 %v6606, %v6602
        %v8203 = vpack.c.b16 %v6607, %v6603
        %v8204 = vpack.c.b16 %v6612, %v6608
        %v8205 = vpack.c.b16 %v6613, %v6609
        %v8206 = vpack.c.b16 %v6614, %v6610
        %v8207 = vpack.c.b16 %v6615, %v6611
        %v8208 = vpack.c.b16 %v6620, %v6616
        %v8209 = vpack.c.b16 %v6621, %v6617
        %v8210 = vpack.c.b16 %v6622, %v6618
        %v8211 = vpack.c.b16 %v6623, %v6619
        %v8212 = vpack.c.b16 %v6628, %v6624
        %v8213 = vpack.c.b16 %v6629, %v6625
        %v8214 = vpack.c.b16 %v6630, %v6626
        %v8215 = vpack.c.b16 %v6631, %v6627
        %v8216 = vpack.c.b16 %v6636, %v6632
        %v8217 = vpack.c.b16 %v6637, %v6633
        %v8218 = vpack.c.b16 %v6638, %v6634
        %v8219 = vpack.c.b16 %v6639, %v6635
        %v8220 = vpack.c.b16 %v6644, %v6640
        %v8221 = vpack.c.b16 %v6645, %v6641
        %v8222 = vpack.c.b16 %v6646, %v6642
        %v8223 = vpack.c.b16 %v6647, %v6643
        %v8224 = vpack.c.b16 %v6652, %v6648
        %v8225 = vpack.c.b16 %v6653, %v6649
        %v8226 = vpack.c.b16 %v6654, %v6650
        %v8227 = vpack.c.b16 %v6655, %v6651
        %v8228 = vpack.c.b16 %v6660, %v6656
        %v8229 = vpack.c.b16 %v6661, %v6657
        %v8230 = vpack.c.b16 %v6662, %v6658
        %v8231 = vpack.c.b16 %v6663, %v6659
        %v8232 = vpack.c.b16 %v6668, %v6664
        %v8233 = vpack.c.b16 %v6669, %v6665
        %v8234 = vpack.c.b16 %v6670, %v6666
        %v8235 = vpack.c.b16 %v6671, %v6667
        %v8236 = vpack.c.b16 %v6676, %v6672
        %v8237 = vpack.c.b16 %v6677, %v6673
        %v8238 = vpack.c.b16 %v6678, %v6674
        %v8239 = vpack.c.b16 %v6679, %v6675
        %v8240 = vpack.c.b16 %v6684, %v6680
        %v8241 = vpack.c.b16 %v6685, %v6681
        %v8242 = vpack.c.b16 %v6686, %v6682
        %v8243 = vpack.c.b16 %v6687, %v6683
        %v8244 = vpack.c.b16 %v6692, %v6688
        %v8245 = vpack.c.b16 %v6693, %v6689
        %v8246 = vpack.c.b16 %v6694, %v6690
        %v8247 = vpack.c.b16 %v6695, %v6691
        %v8248 = vpack.c.b16 %v6700, %v6696
        %v8249 = vpack.c.b16 %v6701, %v6697
        %v8250 = vpack.c.b16 %v6702, %v6698
        %v8251 = vpack.c.b16 %v6703, %v6699
        %v8252 = vpack.c.b16 %v6708, %v6704
        %v8253 = vpack.c.b16 %v6709, %v6705
        %v8254 = vpack.c.b16 %v6710, %v6706
        %v8255 = vpack.c.b16 %v6711, %v6707
        %v8256 = vpack.c.b16 %v6716, %v6712
        %v8257 = vpack.c.b16 %v6717, %v6713
        %v8258 = vpack.c.b16 %v6718, %v6714
        %v8259 = vpack.c.b16 %v6719, %v6715
        %v8260 = vpack.c.b16 %v6724, %v6720
        %v8261 = vpack.c.b16 %v6725, %v6721
        %v8262 = vpack.c.b16 %v6726, %v6722
        %v8263 = vpack.c.b16 %v6727, %v6723
        %9800 = vmatprep.subr.bf16.mxu0 %v6729
        %9801 = vmatpush1.bf16.msra.mxu0 %v6728
        %9802 = vmatprep.subr.bf16.mxu0 %v6733
        %9803 = vmatpush1.bf16.msra.mxu0 %v6732
        %9804 = vmatprep.subr.bf16.mxu0 %v6737
        %9805 = vmatpush1.bf16.msra.mxu0 %v6736
        %9806 = vmatprep.subr.bf16.mxu0 %v6741
        %9807 = vmatpush1.bf16.msra.mxu0 %v6740
        %9808 = vmatprep.subr.bf16.mxu0 %v6745
        %9809 = vmatpush1.bf16.msra.mxu0 %v6744
        %9810 = vmatprep.subr.bf16.mxu0 %v6749
        %9811 = vmatpush1.bf16.msra.mxu0 %v6748
        %9812 = vmatprep.subr.bf16.mxu0 %v6753
        %9813 = vmatpush1.bf16.msra.mxu0 %v6752
        %9814 = vmatprep.subr.bf16.mxu0 %v6757
        %9815 = vmatpush1.bf16.msra.mxu0 %v6756
        %9816 = vmatprep.subr.bf16.mxu0 %v6761
        %9817 = vmatpush1.bf16.msra.mxu0 %v6760
        %9818 = vmatprep.subr.bf16.mxu0 %v6765
        %9819 = vmatpush1.bf16.msra.mxu0 %v6764
        %9820 = vmatprep.subr.bf16.mxu0 %v6769
        %9821 = vmatpush1.bf16.msra.mxu0 %v6768
        %9822 = vmatprep.subr.bf16.mxu0 %v6773
        %9823 = vmatpush1.bf16.msra.mxu0 %v6772
        %9824 = vmatprep.subr.bf16.mxu0 %v6777
        %9825 = vmatpush1.bf16.msra.mxu0 %v6776
        %9826 = vmatprep.subr.bf16.mxu0 %v6781
        %9827 = vmatpush1.bf16.msra.mxu0 %v6780
        %9828 = vmatprep.subr.bf16.mxu0 %v6785
        %9829 = vmatpush1.bf16.msra.mxu0 %v6784
        %9830 = vmatprep.subr.bf16.mxu0 %v6789
        %9831 = vmatpush1.bf16.msra.mxu0 %v6788
        %9832 = vmatprep.mubr.bf16.mxu0 %v1815
        %9833 = vmatmul.mubr.bf16.gmra.mrb[0].mxu0 %v1801
        %v9834 = vpop.f32.mrb[0].mxu0
        %v9835 = vadd.f32 0.0, %v9834
        %v9836 = vpop.f32.mrb[0].mxu0
        %v9837 = vadd.f32 0.0, %v9836
        %v9838 = vpop.f32.mrb[0].mxu0
        %v9839 = vpop.f32.mrb[0].mxu0
        %9840 = vdwg.mxu0
        %9841 = vmatprep.subr.bf16.mxu0 %v6793
        %9842 = vmatpush1.bf16.msra.mxu0 %v6792
        %9843 = vmatprep.subr.bf16.mxu0 %v6797
        %9844 = vmatpush1.bf16.msra.mxu0 %v6796
        %9845 = vmatprep.subr.bf16.mxu0 %v6801
        %9846 = vmatpush1.bf16.msra.mxu0 %v6800
        %9847 = vmatprep.subr.bf16.mxu0 %v6805
        %9848 = vmatpush1.bf16.msra.mxu0 %v6804
        %9849 = vmatprep.subr.bf16.mxu0 %v6809
        %9850 = vmatpush1.bf16.msra.mxu0 %v6808
        %9851 = vmatprep.subr.bf16.mxu0 %v6813
        %9852 = vmatpush1.bf16.msra.mxu0 %v6812
        %9853 = vmatprep.subr.bf16.mxu0 %v6817
        %9854 = vmatpush1.bf16.msra.mxu0 %v6816
        %9855 = vmatprep.subr.bf16.mxu0 %v6821
        %9856 = vmatpush1.bf16.msra.mxu0 %v6820
        %9857 = vmatprep.subr.bf16.mxu0 %v6825
        %9858 = vmatpush1.bf16.msra.mxu0 %v6824
        %9859 = vmatprep.subr.bf16.mxu0 %v6829
        %9860 = vmatpush1.bf16.msra.mxu0 %v6828
        %9861 = vmatprep.subr.bf16.mxu0 %v6833
        %9862 = vmatpush1.bf16.msra.mxu0 %v6832
        %9863 = vmatprep.subr.bf16.mxu0 %v6837
        %9864 = vmatpush1.bf16.msra.mxu0 %v6836
        %9865 = vmatprep.subr.bf16.mxu0 %v6841
        %9866 = vmatpush1.bf16.msra.mxu0 %v6840
        %9867 = vmatprep.subr.bf16.mxu0 %v6845
        %9868 = vmatpush1.bf16.msra.mxu0 %v6844
        %9869 = vmatprep.subr.bf16.mxu0 %v6849
        %9870 = vmatpush1.bf16.msra.mxu0 %v6848
        %9871 = vmatprep.subr.bf16.mxu0 %v6853
        %9872 = vmatpush1.bf16.msra.mxu0 %v6852
        %9873 = vmatprep.mubr.bf16.mxu0 %v1825
        %9874 = vmatmul.mubr.bf16.gmra.mrb[0].mxu0 %v1823
        %v9875 = vpop.f32.mrb[0].mxu0
        %v9876 = vadd.f32 %v9835, %v9875
        %v9877 = vpop.f32.mrb[0].mxu0
        %v9878 = vadd.f32 %v9837, %v9877
        %v9879 = vpop.f32.mrb[0].mxu0
        %v9880 = vpop.f32.mrb[0].mxu0
        %9881 = vdwg.mxu0
        %9882 = vmatprep.subr.bf16.mxu0 %v6857
        %9883 = vmatpush1.bf16.msra.mxu0 %v6856
        %9884 = vmatprep.subr.bf16.mxu0 %v6861
        %9885 = vmatpush1.bf16.msra.mxu0 %v6860
        %9886 = vmatprep.subr.bf16.mxu0 %v6865
        %9887 = vmatpush1.bf16.msra.mxu0 %v6864
        %9888 = vmatprep.subr.bf16.mxu0 %v6869
        %9889 = vmatpush1.bf16.msra.mxu0 %v6868
        %9890 = vmatprep.subr.bf16.mxu0 %v6873
        %9891 = vmatpush1.bf16.msra.mxu0 %v6872
        %9892 = vmatprep.subr.bf16.mxu0 %v6877
        %9893 = vmatpush1.bf16.msra.mxu0 %v6876
        %9894 = vmatprep.subr.bf16.mxu0 %v6881
        %9895 = vmatpush1.bf16.msra.mxu0 %v6880
        %9896 = vmatprep.subr.bf16.mxu0 %v6885
        %9897 = vmatpush1.bf16.msra.mxu0 %v6884
        %9898 = vmatprep.subr.bf16.mxu0 %v6889
        %9899 = vmatpush1.bf16.msra.mxu0 %v6888
        %9900 = vmatprep.subr.bf16.mxu0 %v6893
        %9901 = vmatpush1.bf16.msra.mxu0 %v6892
        %9902 = vmatprep.subr.bf16.mxu0 %v6897
        %9903 = vmatpush1.bf16.msra.mxu0 %v6896
        %9904 = vmatprep.subr.bf16.mxu0 %v6901
        %9905 = vmatpush1.bf16.msra.mxu0 %v6900
        %9906 = vmatprep.subr.bf16.mxu0 %v6905
        %9907 = vmatpush1.bf16.msra.mxu0 %v6904
        %9908 = vmatprep.subr.bf16.mxu0 %v6909
        %9909 = vmatpush1.bf16.msra.mxu0 %v6908
        %9910 = vmatprep.subr.bf16.mxu0 %v6913
        %9911 = vmatpush1.bf16.msra.mxu0 %v6912
        %9912 = vmatprep.subr.bf16.mxu0 %v6917
        %9913 = vmatpush1.bf16.msra.mxu0 %v6916
        %9914 = vmatprep.mubr.bf16.mxu0 %v1822
        %9915 = vmatmul.mubr.bf16.gmra.mrb[0].mxu0 %v1808
        %v9916 = vpop.f32.mrb[0].mxu0
        %v9917 = vadd.f32 %v9876, %v9916
        %v9918 = vpop.f32.mrb[0].mxu0
        %v9919 = vadd.f32 %v9878, %v9918
        %v9920 = vpop.f32.mrb[0].mxu0
        %v9921 = vpop.f32.mrb[0].mxu0
        %9922 = vdwg.mxu0
        %9923 = vmatprep.subr.bf16.mxu0 %v6921
        %9924 = vmatpush1.bf16.msra.mxu0 %v6920
        %9925 = vmatprep.subr.bf16.mxu0 %v6925
        %9926 = vmatpush1.bf16.msra.mxu0 %v6924
        %9927 = vmatprep.subr.bf16.mxu0 %v6929
        %9928 = vmatpush1.bf16.msra.mxu0 %v6928
        %9929 = vmatprep.subr.bf16.mxu0 %v6933
        %9930 = vmatpush1.bf16.msra.mxu0 %v6932
        %9931 = vmatprep.subr.bf16.mxu0 %v6937
        %9932 = vmatpush1.bf16.msra.mxu0 %v6936
        %9933 = vmatprep.subr.bf16.mxu0 %v6941
        %9934 = vmatpush1.bf16.msra.mxu0 %v6940
        %9935 = vmatprep.subr.bf16.mxu0 %v6945
        %9936 = vmatpush1.bf16.msra.mxu0 %v6944
        %9937 = vmatprep.subr.bf16.mxu0 %v6949
        %9938 = vmatpush1.bf16.msra.mxu0 %v6948
        %9939 = vmatprep.subr.bf16.mxu0 %v6953
        %9940 = vmatpush1.bf16.msra.mxu0 %v6952
        %9941 = vmatprep.subr.bf16.mxu0 %v6957
        %9942 = vmatpush1.bf16.msra.mxu0 %v6956
        %9943 = vmatprep.subr.bf16.mxu0 %v6961
        %9944 = vmatpush1.bf16.msra.mxu0 %v6960
        %9945 = vmatprep.subr.bf16.mxu0 %v6965
        %9946 = vmatpush1.bf16.msra.mxu0 %v6964
        %9947 = vmatprep.subr.bf16.mxu0 %v6969
        %9948 = vmatpush1.bf16.msra.mxu0 %v6968
        %9949 = vmatprep.subr.bf16.mxu0 %v6973
        %9950 = vmatpush1.bf16.msra.mxu0 %v6972
        %9951 = vmatprep.subr.bf16.mxu0 %v6977
        %9952 = vmatpush1.bf16.msra.mxu0 %v6976
        %9953 = vmatprep.subr.bf16.mxu0 %v6981
        %9954 = vmatpush1.bf16.msra.mxu0 %v6980
        %9955 = vmatprep.mubr.bf16.mxu0 %v1826
        %9956 = vmatmul.mubr.bf16.gmra.mrb[0].mxu0 %v1824
        %v9957 = vpop.f32.mrb[0].mxu0
        %v9958 = vadd.f32 %v9917, %v9957
        %v9959 = vpop.f32.mrb[0].mxu0
        %v9960 = vadd.f32 %v9919, %v9959
        %v9961 = vpop.f32.mrb[0].mxu0
        %v9962 = vpop.f32.mrb[0].mxu0
        %9963 = vdwg.mxu0
        %9964 = vmatprep.subr.bf16.mxu0 %v6985
        %9965 = vmatpush1.bf16.msra.mxu0 %v6984
        %9966 = vmatprep.subr.bf16.mxu0 %v6989
        %9967 = vmatpush1.bf16.msra.mxu0 %v6988
        %9968 = vmatprep.subr.bf16.mxu0 %v6993
        %9969 = vmatpush1.bf16.msra.mxu0 %v6992
        %9970 = vmatprep.subr.bf16.mxu0 %v6997
        %9971 = vmatpush1.bf16.msra.mxu0 %v6996
        %9972 = vmatprep.subr.bf16.mxu0 %v7001
        %9973 = vmatpush1.bf16.msra.mxu0 %v7000
        %9974 = vmatprep.subr.bf16.mxu0 %v7005
        %9975 = vmatpush1.bf16.msra.mxu0 %v7004
        %9976 = vmatprep.subr.bf16.mxu0 %v7009
        %9977 = vmatpush1.bf16.msra.mxu0 %v7008
        %9978 = vmatprep.subr.bf16.mxu0 %v7013
        %9979 = vmatpush1.bf16.msra.mxu0 %v7012
        %9980 = vmatprep.subr.bf16.mxu0 %v7017
        %9981 = vmatpush1.bf16.msra.mxu0 %v7016
        %9982 = vmatprep.subr.bf16.mxu0 %v7021
        %9983 = vmatpush1.bf16.msra.mxu0 %v7020
        %9984 = vmatprep.subr.bf16.mxu0 %v7025
        %9985 = vmatpush1.bf16.msra.mxu0 %v7024
        %9986 = vmatprep.subr.bf16.mxu0 %v7029
        %9987 = vmatpush1.bf16.msra.mxu0 %v7028
        %9988 = vmatprep.subr.bf16.mxu0 %v7033
        %9989 = vmatpush1.bf16.msra.mxu0 %v7032
        %9990 = vmatprep.subr.bf16.mxu0 %v7037
        %9991 = vmatpush1.bf16.msra.mxu0 %v7036
        %9992 = vmatprep.subr.bf16.mxu0 %v7041
        %9993 = vmatpush1.bf16.msra.mxu0 %v7040
        %9994 = vmatprep.subr.bf16.mxu0 %v7045
        %9995 = vmatpush1.bf16.msra.mxu0 %v7044
        %9996 = vmatprep.mubr.bf16.mxu0 %v1864
        %9997 = vmatmul.mubr.bf16.gmra.mrb[0].mxu0 %v1850
        %v9998 = vpop.f32.mrb[0].mxu0
        %v9999 = vadd.f32 %v9958, %v9998
        %v10000 = vpop.f32.mrb[0].mxu0
        %v10001 = vadd.f32 %v9960, %v10000
        %v10002 = vpop.f32.mrb[0].mxu0
        %v10003 = vpop.f32.mrb[0].mxu0
        %10004 = vdwg.mxu0
        %10005 = vmatprep.subr.bf16.mxu0 %v7049
        %10006 = vmatpush1.bf16.msra.mxu0 %v7048
        %10007 = vmatprep.subr.bf16.mxu0 %v7053
        %10008 = vmatpush1.bf16.msra.mxu0 %v7052
        %10009 = vmatprep.subr.bf16.mxu0 %v7057
        %10010 = vmatpush1.bf16.msra.mxu0 %v7056
        %10011 = vmatprep.subr.bf16.mxu0 %v7061
        %10012 = vmatpush1.bf16.msra.mxu0 %v7060
        %10013 = vmatprep.subr.bf16.mxu0 %v7065
        %10014 = vmatpush1.bf16.msra.mxu0 %v7064
        %10015 = vmatprep.subr.bf16.mxu0 %v7069
        %10016 = vmatpush1.bf16.msra.mxu0 %v7068
        %10017 = vmatprep.subr.bf16.mxu0 %v7073
        %10018 = vmatpush1.bf16.msra.mxu0 %v7072
        %10019 = vmatprep.subr.bf16.mxu0 %v7077
        %10020 = vmatpush1.bf16.msra.mxu0 %v7076
        %10021 = vmatprep.subr.bf16.mxu0 %v7081
        %10022 = vmatpush1.bf16.msra.mxu0 %v7080
        %10023 = vmatprep.subr.bf16.mxu0 %v7085
        %10024 = vmatpush1.bf16.msra.mxu0 %v7084
        %10025 = vmatprep.subr.bf16.mxu0 %v7089
        %10026 = vmatpush1.bf16.msra.mxu0 %v7088
        %10027 = vmatprep.subr.bf16.mxu0 %v7093
        %10028 = vmatpush1.bf16.msra.mxu0 %v7092
        %10029 = vmatprep.subr.bf16.mxu0 %v7097
        %10030 = vmatpush1.bf16.msra.mxu0 %v7096
        %10031 = vmatprep.subr.bf16.mxu0 %v7101
        %10032 = vmatpush1.bf16.msra.mxu0 %v7100
        %10033 = vmatprep.subr.bf16.mxu0 %v7105
        %10034 = vmatpush1.bf16.msra.mxu0 %v7104
        %10035 = vmatprep.subr.bf16.mxu0 %v7109
        %10036 = vmatpush1.bf16.msra.mxu0 %v7108
        %10037 = vmatprep.mubr.bf16.mxu0 %v1874
        %10038 = vmatmul.mubr.bf16.gmra.mrb[0].mxu0 %v1872
        %v10039 = vpop.f32.mrb[0].mxu0
        %v10040 = vadd.f32 %v9999, %v10039
        %v10041 = vpop.f32.mrb[0].mxu0
        %v10042 = vadd.f32 %v10001, %v10041
        %v10043 = vpop.f32.mrb[0].mxu0
        %v10044 = vpop.f32.mrb[0].mxu0
        %10045 = vdwg.mxu0
        %10046 = vmatprep.subr.bf16.mxu0 %v7113
        %10047 = vmatpush1.bf16.msra.mxu0 %v7112
        %10048 = vmatprep.subr.bf16.mxu0 %v7117
        %10049 = vmatpush1.bf16.msra.mxu0 %v7116
        %10050 = vmatprep.subr.bf16.mxu0 %v7121
        %10051 = vmatpush1.bf16.msra.mxu0 %v7120
        %10052 = vmatprep.subr.bf16.mxu0 %v7125
        %10053 = vmatpush1.bf16.msra.mxu0 %v7124
        %10054 = vmatprep.subr.bf16.mxu0 %v7129
        %10055 = vmatpush1.bf16.msra.mxu0 %v7128
        %10056 = vmatprep.subr.bf16.mxu0 %v7133
        %10057 = vmatpush1.bf16.msra.mxu0 %v7132
        %10058 = vmatprep.subr.bf16.mxu0 %v7137
        %10059 = vmatpush1.bf16.msra.mxu0 %v7136
        %10060 = vmatprep.subr.bf16.mxu0 %v7141
        %10061 = vmatpush1.bf16.msra.mxu0 %v7140
        %10062 = vmatprep.subr.bf16.mxu0 %v7145
        %10063 = vmatpush1.bf16.msra.mxu0 %v7144
        %10064 = vmatprep.subr.bf16.mxu0 %v7149
        %10065 = vmatpush1.bf16.msra.mxu0 %v7148
        %10066 = vmatprep.subr.bf16.mxu0 %v7153
        %10067 = vmatpush1.bf16.msra.mxu0 %v7152
        %10068 = vmatprep.subr.bf16.mxu0 %v7157
        %10069 = vmatpush1.bf16.msra.mxu0 %v7156
        %10070 = vmatprep.subr.bf16.mxu0 %v7161
        %10071 = vmatpush1.bf16.msra.mxu0 %v7160
        %10072 = vmatprep.subr.bf16.mxu0 %v7165
        %10073 = vmatpush1.bf16.msra.mxu0 %v7164
        %10074 = vmatprep.subr.bf16.mxu0 %v7169
        %10075 = vmatpush1.bf16.msra.mxu0 %v7168
        %10076 = vmatprep.subr.bf16.mxu0 %v7173
        %10077 = vmatpush1.bf16.msra.mxu0 %v7172
        %10078 = vmatprep.mubr.bf16.mxu0 %v1871
        %10079 = vmatmul.mubr.bf16.gmra.mrb[0].mxu0 %v1857
        %v10080 = vpop.f32.mrb[0].mxu0
        %v10081 = vadd.f32 %v10040, %v10080
        %v10082 = vpop.f32.mrb[0].mxu0
        %v10083 = vadd.f32 %v10042, %v10082
        %v10084 = vpop.f32.mrb[0].mxu0
        %v10085 = vpop.f32.mrb[0].mxu0
        %10086 = vdwg.mxu0
        %10087 = vmatprep.subr.bf16.mxu0 %v7177
        %10088 = vmatpush1.bf16.msra.mxu0 %v7176
        %10089 = vmatprep.subr.bf16.mxu0 %v7181
        %10090 = vmatpush1.bf16.msra.mxu0 %v7180
        %10091 = vmatprep.subr.bf16.mxu0 %v7185
        %10092 = vmatpush1.bf16.msra.mxu0 %v7184
        %10093 = vmatprep.subr.bf16.mxu0 %v7189
        %10094 = vmatpush1.bf16.msra.mxu0 %v7188
        %10095 = vmatprep.subr.bf16.mxu0 %v7193
        %10096 = vmatpush1.bf16.msra.mxu0 %v7192
        %10097 = vmatprep.subr.bf16.mxu0 %v7197
        %10098 = vmatpush1.bf16.msra.mxu0 %v7196
        %10099 = vmatprep.subr.bf16.mxu0 %v7201
        %10100 = vmatpush1.bf16.msra.mxu0 %v7200
        %10101 = vmatprep.subr.bf16.mxu0 %v7205
        %10102 = vmatpush1.bf16.msra.mxu0 %v7204
        %10103 = vmatprep.subr.bf16.mxu0 %v7209
        %10104 = vmatpush1.bf16.msra.mxu0 %v7208
        %10105 = vmatprep.subr.bf16.mxu0 %v7213
        %10106 = vmatpush1.bf16.msra.mxu0 %v7212
        %10107 = vmatprep.subr.bf16.mxu0 %v7217
        %10108 = vmatpush1.bf16.msra.mxu0 %v7216
        %10109 = vmatprep.subr.bf16.mxu0 %v7221
        %10110 = vmatpush1.bf16.msra.mxu0 %v7220
        %10111 = vmatprep.subr.bf16.mxu0 %v7225
        %10112 = vmatpush1.bf16.msra.mxu0 %v7224
        %10113 = vmatprep.subr.bf16.mxu0 %v7229
        %10114 = vmatpush1.bf16.msra.mxu0 %v7228
        %10115 = vmatprep.subr.bf16.mxu0 %v7233
        %10116 = vmatpush1.bf16.msra.mxu0 %v7232
        %10117 = vmatprep.subr.bf16.mxu0 %v7237
        %10118 = vmatpush1.bf16.msra.mxu0 %v7236
        %10119 = vmatprep.mubr.bf16.mxu0 %v1875
        %10120 = vmatmul.mubr.bf16.gmra.mrb[0].mxu0 %v1873
        %v10121 = vpop.f32.mrb[0].mxu0
        %v10122 = vadd.f32 %v10081, %v10121
        %v10123 = vpop.f32.mrb[0].mxu0
        %v10124 = vadd.f32 %v10083, %v10123
        %v10125 = vpop.f32.mrb[0].mxu0
        %v10126 = vpop.f32.mrb[0].mxu0
        %10127 = vdwg.mxu0
        %10128 = vmatprep.subr.bf16.mxu0 %v7241
        %10129 = vmatpush1.bf16.msra.mxu0 %v7240
        %10130 = vmatprep.subr.bf16.mxu0 %v7245
        %10131 = vmatpush1.bf16.msra.mxu0 %v7244
        %10132 = vmatprep.subr.bf16.mxu0 %v7249
        %10133 = vmatpush1.bf16.msra.mxu0 %v7248
        %10134 = vmatprep.subr.bf16.mxu0 %v7253
        %10135 = vmatpush1.bf16.msra.mxu0 %v7252
        %10136 = vmatprep.subr.bf16.mxu0 %v7257
        %10137 = vmatpush1.bf16.msra.mxu0 %v7256
        %10138 = vmatprep.subr.bf16.mxu0 %v7261
        %10139 = vmatpush1.bf16.msra.mxu0 %v7260
        %10140 = vmatprep.subr.bf16.mxu0 %v7265
        %10141 = vmatpush1.bf16.msra.mxu0 %v7264
        %10142 = vmatprep.subr.bf16.mxu0 %v7269
        %10143 = vmatpush1.bf16.msra.mxu0 %v7268
        %10144 = vmatprep.subr.bf16.mxu0 %v7273
        %10145 = vmatpush1.bf16.msra.mxu0 %v7272
        %10146 = vmatprep.subr.bf16.mxu0 %v7277
        %10147 = vmatpush1.bf16.msra.mxu0 %v7276
        %10148 = vmatprep.subr.bf16.mxu0 %v7281
        %10149 = vmatpush1.bf16.msra.mxu0 %v7280
        %10150 = vmatprep.subr.bf16.mxu0 %v7285
        %10151 = vmatpush1.bf16.msra.mxu0 %v7284
        %10152 = vmatprep.subr.bf16.mxu0 %v7289
        %10153 = vmatpush1.bf16.msra.mxu0 %v7288
        %10154 = vmatprep.subr.bf16.mxu0 %v7293
        %10155 = vmatpush1.bf16.msra.mxu0 %v7292
        %10156 = vmatprep.subr.bf16.mxu0 %v7297
        %10157 = vmatpush1.bf16.msra.mxu0 %v7296
        %10158 = vmatprep.subr.bf16.mxu0 %v7301
        %10159 = vmatpush1.bf16.msra.mxu0 %v7300
        %10160 = vmatprep.mubr.bf16.mxu0 %v1913
        %10161 = vmatmul.mubr.bf16.gmra.mrb[0].mxu0 %v1899
        %v10162 = vpop.f32.mrb[0].mxu0
        %v10163 = vadd.f32 %v10122, %v10162
        %v10164 = vpop.f32.mrb[0].mxu0
        %v10165 = vadd.f32 %v10124, %v10164
        %v10166 = vpop.f32.mrb[0].mxu0
        %v10167 = vpop.f32.mrb[0].mxu0
        %10168 = vdwg.mxu0
        %10169 = vmatprep.subr.bf16.mxu0 %v7305
        %10170 = vmatpush1.bf16.msra.mxu0 %v7304
        %10171 = vmatprep.subr.bf16.mxu0 %v7309
        %10172 = vmatpush1.bf16.msra.mxu0 %v7308
        %10173 = vmatprep.subr.bf16.mxu0 %v7313
        %10174 = vmatpush1.bf16.msra.mxu0 %v7312
        %10175 = vmatprep.subr.bf16.mxu0 %v7317
        %10176 = vmatpush1.bf16.msra.mxu0 %v7316
        %10177 = vmatprep.subr.bf16.mxu0 %v7321
        %10178 = vmatpush1.bf16.msra.mxu0 %v7320
        %10179 = vmatprep.subr.bf16.mxu0 %v7325
        %10180 = vmatpush1.bf16.msra.mxu0 %v7324
        %10181 = vmatprep.subr.bf16.mxu0 %v7329
        %10182 = vmatpush1.bf16.msra.mxu0 %v7328
        %10183 = vmatprep.subr.bf16.mxu0 %v7333
        %10184 = vmatpush1.bf16.msra.mxu0 %v7332
        %10185 = vmatprep.subr.bf16.mxu0 %v7337
        %10186 = vmatpush1.bf16.msra.mxu0 %v7336
        %10187 = vmatprep.subr.bf16.mxu0 %v7341
        %10188 = vmatpush1.bf16.msra.mxu0 %v7340
        %10189 = vmatprep.subr.bf16.mxu0 %v7345
        %10190 = vmatpush1.bf16.msra.mxu0 %v7344
        %10191 = vmatprep.subr.bf16.mxu0 %v7349
        %10192 = vmatpush1.bf16.msra.mxu0 %v7348
        %10193 = vmatprep.subr.bf16.mxu0 %v7353
        %10194 = vmatpush1.bf16.msra.mxu0 %v7352
        %10195 = vmatprep.subr.bf16.mxu0 %v7357
        %10196 = vmatpush1.bf16.msra.mxu0 %v7356
        %10197 = vmatprep.subr.bf16.mxu0 %v7361
        %10198 = vmatpush1.bf16.msra.mxu0 %v7360
        %10199 = vmatprep.subr.bf16.mxu0 %v7365
        %10200 = vmatpush1.bf16.msra.mxu0 %v7364
        %10201 = vmatprep.mubr.bf16.mxu0 %v1923
        %10202 = vmatmul.mubr.bf16.gmra.mrb[0].mxu0 %v1921
        %v10203 = vpop.f32.mrb[0].mxu0
        %v10204 = vadd.f32 %v10163, %v10203
        %v10205 = vpop.f32.mrb[0].mxu0
        %v10206 = vadd.f32 %v10165, %v10205
        %v10207 = vpop.f32.mrb[0].mxu0
        %v10208 = vpop.f32.mrb[0].mxu0
        %10209 = vdwg.mxu0
        %10210 = vmatprep.subr.bf16.mxu0 %v7369
        %10211 = vmatpush1.bf16.msra.mxu0 %v7368
        %10212 = vmatprep.subr.bf16.mxu0 %v7373
        %10213 = vmatpush1.bf16.msra.mxu0 %v7372
        %10214 = vmatprep.subr.bf16.mxu0 %v7377
        %10215 = vmatpush1.bf16.msra.mxu0 %v7376
        %10216 = vmatprep.subr.bf16.mxu0 %v7381
        %10217 = vmatpush1.bf16.msra.mxu0 %v7380
        %10218 = vmatprep.subr.bf16.mxu0 %v7385
        %10219 = vmatpush1.bf16.msra.mxu0 %v7384
        %10220 = vmatprep.subr.bf16.mxu0 %v7389
        %10221 = vmatpush1.bf16.msra.mxu0 %v7388
        %10222 = vmatprep.subr.bf16.mxu0 %v7393
        %10223 = vmatpush1.bf16.msra.mxu0 %v7392
        %10224 = vmatprep.subr.bf16.mxu0 %v7397
        %10225 = vmatpush1.bf16.msra.mxu0 %v7396
        %10226 = vmatprep.subr.bf16.mxu0 %v7401
        %10227 = vmatpush1.bf16.msra.mxu0 %v7400
        %10228 = vmatprep.subr.bf16.mxu0 %v7405
        %10229 = vmatpush1.bf16.msra.mxu0 %v7404
        %10230 = vmatprep.subr.bf16.mxu0 %v7409
        %10231 = vmatpush1.bf16.msra.mxu0 %v7408
        %10232 = vmatprep.subr.bf16.mxu0 %v7413
        %10233 = vmatpush1.bf16.msra.mxu0 %v7412
        %10234 = vmatprep.subr.bf16.mxu0 %v7417
        %10235 = vmatpush1.bf16.msra.mxu0 %v7416
        %10236 = vmatprep.subr.bf16.mxu0 %v7421
        %10237 = vmatpush1.bf16.msra.mxu0 %v7420
        %10238 = vmatprep.subr.bf16.mxu0 %v7425
        %10239 = vmatpush1.bf16.msra.mxu0 %v7424
        %10240 = vmatprep.subr.bf16.mxu0 %v7429
        %10241 = vmatpush1.bf16.msra.mxu0 %v7428
        %10242 = vmatprep.mubr.bf16.mxu0 %v1920
        %10243 = vmatmul.mubr.bf16.gmra.mrb[0].mxu0 %v1906
        %v10244 = vpop.f32.mrb[0].mxu0
        %v10245 = vadd.f32 %v10204, %v10244
        %v10246 = vpop.f32.mrb[0].mxu0
        %v10247 = vadd.f32 %v10206, %v10246
        %v10248 = vpop.f32.mrb[0].mxu0
        %v10249 = vpop.f32.mrb[0].mxu0
        %10250 = vdwg.mxu0
        %10251 = vmatprep.subr.bf16.mxu0 %v7433
        %10252 = vmatpush1.bf16.msra.mxu0 %v7432
        %10253 = vmatprep.subr.bf16.mxu0 %v7437
        %10254 = vmatpush1.bf16.msra.mxu0 %v7436
        %10255 = vmatprep.subr.bf16.mxu0 %v7441
        %10256 = vmatpush1.bf16.msra.mxu0 %v7440
        %10257 = vmatprep.subr.bf16.mxu0 %v7445
        %10258 = vmatpush1.bf16.msra.mxu0 %v7444
        %10259 = vmatprep.subr.bf16.mxu0 %v7449
        %10260 = vmatpush1.bf16.msra.mxu0 %v7448
        %10261 = vmatprep.subr.bf16.mxu0 %v7453
        %10262 = vmatpush1.bf16.msra.mxu0 %v7452
        %10263 = vmatprep.subr.bf16.mxu0 %v7457
        %10264 = vmatpush1.bf16.msra.mxu0 %v7456
        %10265 = vmatprep.subr.bf16.mxu0 %v7461
        %10266 = vmatpush1.bf16.msra.mxu0 %v7460
        %10267 = vmatprep.subr.bf16.mxu0 %v7465
        %10268 = vmatpush1.bf16.msra.mxu0 %v7464
        %10269 = vmatprep.subr.bf16.mxu0 %v7469
        %10270 = vmatpush1.bf16.msra.mxu0 %v7468
        %10271 = vmatprep.subr.bf16.mxu0 %v7473
        %10272 = vmatpush1.bf16.msra.mxu0 %v7472
        %10273 = vmatprep.subr.bf16.mxu0 %v7477
        %10274 = vmatpush1.bf16.msra.mxu0 %v7476
        %10275 = vmatprep.subr.bf16.mxu0 %v7481
        %10276 = vmatpush1.bf16.msra.mxu0 %v7480
        %10277 = vmatprep.subr.bf16.mxu0 %v7485
        %10278 = vmatpush1.bf16.msra.mxu0 %v7484
        %10279 = vmatprep.subr.bf16.mxu0 %v7489
        %10280 = vmatpush1.bf16.msra.mxu0 %v7488
        %10281 = vmatprep.subr.bf16.mxu0 %v7493
        %10282 = vmatpush1.bf16.msra.mxu0 %v7492
        %10283 = vmatprep.mubr.bf16.mxu0 %v1924
        %10284 = vmatmul.mubr.bf16.gmra.mrb[0].mxu0 %v1922
        %v10285 = vpop.f32.mrb[0].mxu0
        %v10286 = vadd.f32 %v10245, %v10285
        %v10287 = vpop.f32.mrb[0].mxu0
        %v10288 = vadd.f32 %v10247, %v10287
        %v10289 = vpop.f32.mrb[0].mxu0
        %v10290 = vpop.f32.mrb[0].mxu0
        %10291 = vdwg.mxu0
        %10292 = vmatprep.subr.bf16.mxu0 %v7497
        %10293 = vmatpush1.bf16.msra.mxu0 %v7496
        %10294 = vmatprep.subr.bf16.mxu0 %v7501
        %10295 = vmatpush1.bf16.msra.mxu0 %v7500
        %10296 = vmatprep.subr.bf16.mxu0 %v7505
        %10297 = vmatpush1.bf16.msra.mxu0 %v7504
        %10298 = vmatprep.subr.bf16.mxu0 %v7509
        %10299 = vmatpush1.bf16.msra.mxu0 %v7508
        %10300 = vmatprep.subr.bf16.mxu0 %v7513
        %10301 = vmatpush1.bf16.msra.mxu0 %v7512
        %10302 = vmatprep.subr.bf16.mxu0 %v7517
        %10303 = vmatpush1.bf16.msra.mxu0 %v7516
        %10304 = vmatprep.subr.bf16.mxu0 %v7521
        %10305 = vmatpush1.bf16.msra.mxu0 %v7520
        %10306 = vmatprep.subr.bf16.mxu0 %v7525
        %10307 = vmatpush1.bf16.msra.mxu0 %v7524
        %10308 = vmatprep.subr.bf16.mxu0 %v7529
        %10309 = vmatpush1.bf16.msra.mxu0 %v7528
        %10310 = vmatprep.subr.bf16.mxu0 %v7533
        %10311 = vmatpush1.bf16.msra.mxu0 %v7532
        %10312 = vmatprep.subr.bf16.mxu0 %v7537
        %10313 = vmatpush1.bf16.msra.mxu0 %v7536
        %10314 = vmatprep.subr.bf16.mxu0 %v7541
        %10315 = vmatpush1.bf16.msra.mxu0 %v7540
        %10316 = vmatprep.subr.bf16.mxu0 %v7545
        %10317 = vmatpush1.bf16.msra.mxu0 %v7544
        %10318 = vmatprep.subr.bf16.mxu0 %v7549
        %10319 = vmatpush1.bf16.msra.mxu0 %v7548
        %10320 = vmatprep.subr.bf16.mxu0 %v7553
        %10321 = vmatpush1.bf16.msra.mxu0 %v7552
        %10322 = vmatprep.subr.bf16.mxu0 %v7557
        %10323 = vmatpush1.bf16.msra.mxu0 %v7556
        %10324 = vmatprep.mubr.bf16.mxu0 %v1962
        %10325 = vmatmul.mubr.bf16.gmra.mrb[0].mxu0 %v1948
        %v10326 = vpop.f32.mrb[0].mxu0
        %v10327 = vadd.f32 %v10286, %v10326
        %v10328 = vpop.f32.mrb[0].mxu0
        %v10329 = vadd.f32 %v10288, %v10328
        %v10330 = vpop.f32.mrb[0].mxu0
        %v10331 = vpop.f32.mrb[0].mxu0
        %10332 = vdwg.mxu0
        %10333 = vmatprep.subr.bf16.mxu0 %v7561
        %10334 = vmatpush1.bf16.msra.mxu0 %v7560
        %10335 = vmatprep.subr.bf16.mxu0 %v7565
        %10336 = vmatpush1.bf16.msra.mxu0 %v7564
        %10337 = vmatprep.subr.bf16.mxu0 %v7569
        %10338 = vmatpush1.bf16.msra.mxu0 %v7568
        %10339 = vmatprep.subr.bf16.mxu0 %v7573
        %10340 = vmatpush1.bf16.msra.mxu0 %v7572
        %10341 = vmatprep.subr.bf16.mxu0 %v7577
        %10342 = vmatpush1.bf16.msra.mxu0 %v7576
        %10343 = vmatprep.subr.bf16.mxu0 %v7581
        %10344 = vmatpush1.bf16.msra.mxu0 %v7580
        %10345 = vmatprep.subr.bf16.mxu0 %v7585
        %10346 = vmatpush1.bf16.msra.mxu0 %v7584
        %10347 = vmatprep.subr.bf16.mxu0 %v7589
        %10348 = vmatpush1.bf16.msra.mxu0 %v7588
        %10349 = vmatprep.subr.bf16.mxu0 %v7593
        %10350 = vmatpush1.bf16.msra.mxu0 %v7592
        %10351 = vmatprep.subr.bf16.mxu0 %v7597
        %10352 = vmatpush1.bf16.msra.mxu0 %v7596
        %10353 = vmatprep.subr.bf16.mxu0 %v7601
        %10354 = vmatpush1.bf16.msra.mxu0 %v7600
        %10355 = vmatprep.subr.bf16.mxu0 %v7605
        %10356 = vmatpush1.bf16.msra.mxu0 %v7604
        %10357 = vmatprep.subr.bf16.mxu0 %v7609
        %10358 = vmatpush1.bf16.msra.mxu0 %v7608
        %10359 = vmatprep.subr.bf16.mxu0 %v7613
        %10360 = vmatpush1.bf16.msra.mxu0 %v7612
        %10361 = vmatprep.subr.bf16.mxu0 %v7617
        %10362 = vmatpush1.bf16.msra.mxu0 %v7616
        %10363 = vmatprep.subr.bf16.mxu0 %v7621
        %10364 = vmatpush1.bf16.msra.mxu0 %v7620
        %10365 = vmatprep.mubr.bf16.mxu0 %v1972
        %10366 = vmatmul.mubr.bf16.gmra.mrb[0].mxu0 %v1970
        %v10367 = vpop.f32.mrb[0].mxu0
        %v10368 = vadd.f32 %v10327, %v10367
        %v10369 = vpop.f32.mrb[0].mxu0
        %v10370 = vadd.f32 %v10329, %v10369
        %v10371 = vpop.f32.mrb[0].mxu0
        %v10372 = vpop.f32.mrb[0].mxu0
        %10373 = vdwg.mxu0
        %10374 = vmatprep.subr.bf16.mxu0 %v7625
        %10375 = vmatpush1.bf16.msra.mxu0 %v7624
        %10376 = vmatprep.subr.bf16.mxu0 %v7629
        %10377 = vmatpush1.bf16.msra.mxu0 %v7628
        %10378 = vmatprep.subr.bf16.mxu0 %v7633
        %10379 = vmatpush1.bf16.msra.mxu0 %v7632
        %10380 = vmatprep.subr.bf16.mxu0 %v7637
        %10381 = vmatpush1.bf16.msra.mxu0 %v7636
        %10382 = vmatprep.subr.bf16.mxu0 %v7641
        %10383 = vmatpush1.bf16.msra.mxu0 %v7640
        %10384 = vmatprep.subr.bf16.mxu0 %v7645
        %10385 = vmatpush1.bf16.msra.mxu0 %v7644
        %10386 = vmatprep.subr.bf16.mxu0 %v7649
        %10387 = vmatpush1.bf16.msra.mxu0 %v7648
        %10388 = vmatprep.subr.bf16.mxu0 %v7653
        %10389 = vmatpush1.bf16.msra.mxu0 %v7652
        %10390 = vmatprep.subr.bf16.mxu0 %v7657
        %10391 = vmatpush1.bf16.msra.mxu0 %v7656
        %10392 = vmatprep.subr.bf16.mxu0 %v7661
        %10393 = vmatpush1.bf16.msra.mxu0 %v7660
        %10394 = vmatprep.subr.bf16.mxu0 %v7665
        %10395 = vmatpush1.bf16.msra.mxu0 %v7664
        %10396 = vmatprep.subr.bf16.mxu0 %v7669
        %10397 = vmatpush1.bf16.msra.mxu0 %v7668
        %10398 = vmatprep.subr.bf16.mxu0 %v7673
        %10399 = vmatpush1.bf16.msra.mxu0 %v7672
        %10400 = vmatprep.subr.bf16.mxu0 %v7677
        %10401 = vmatpush1.bf16.msra.mxu0 %v7676
        %10402 = vmatprep.subr.bf16.mxu0 %v7681
        %10403 = vmatpush1.bf16.msra.mxu0 %v7680
        %10404 = vmatprep.subr.bf16.mxu0 %v7685
        %10405 = vmatpush1.bf16.msra.mxu0 %v7684
        %10406 = vmatprep.mubr.bf16.mxu0 %v1969
        %10407 = vmatmul.mubr.bf16.gmra.mrb[0].mxu0 %v1955
        %v10408 = vpop.f32.mrb[0].mxu0
        %v10409 = vadd.f32 %v10368, %v10408
        %v10410 = vpop.f32.mrb[0].mxu0
        %v10411 = vadd.f32 %v10370, %v10410
        %v10412 = vpop.f32.mrb[0].mxu0
        %v10413 = vpop.f32.mrb[0].mxu0
        %10414 = vdwg.mxu0
        %10415 = vmatprep.subr.bf16.mxu0 %v7689
        %10416 = vmatpush1.bf16.msra.mxu0 %v7688
        %10417 = vmatprep.subr.bf16.mxu0 %v7693
        %10418 = vmatpush1.bf16.msra.mxu0 %v7692
        %10419 = vmatprep.subr.bf16.mxu0 %v7697
        %10420 = vmatpush1.bf16.msra.mxu0 %v7696
        %10421 = vmatprep.subr.bf16.mxu0 %v7701
        %10422 = vmatpush1.bf16.msra.mxu0 %v7700
        %10423 = vmatprep.subr.bf16.mxu0 %v7705
        %10424 = vmatpush1.bf16.msra.mxu0 %v7704
        %10425 = vmatprep.subr.bf16.mxu0 %v7709
        %10426 = vmatpush1.bf16.msra.mxu0 %v7708
        %10427 = vmatprep.subr.bf16.mxu0 %v7713
        %10428 = vmatpush1.bf16.msra.mxu0 %v7712
        %10429 = vmatprep.subr.bf16.mxu0 %v7717
        %10430 = vmatpush1.bf16.msra.mxu0 %v7716
        %10431 = vmatprep.subr.bf16.mxu0 %v7721
        %10432 = vmatpush1.bf16.msra.mxu0 %v7720
        %10433 = vmatprep.subr.bf16.mxu0 %v7725
        %10434 = vmatpush1.bf16.msra.mxu0 %v7724
        %10435 = vmatprep.subr.bf16.mxu0 %v7729
        %10436 = vmatpush1.bf16.msra.mxu0 %v7728
        %10437 = vmatprep.subr.bf16.mxu0 %v7733
        %10438 = vmatpush1.bf16.msra.mxu0 %v7732
        %10439 = vmatprep.subr.bf16.mxu0 %v7737
        %10440 = vmatpush1.bf16.msra.mxu0 %v7736
        %10441 = vmatprep.subr.bf16.mxu0 %v7741
        %10442 = vmatpush1.bf16.msra.mxu0 %v7740
        %10443 = vmatprep.subr.bf16.mxu0 %v7745
        %10444 = vmatpush1.bf16.msra.mxu0 %v7744
        %10445 = vmatprep.subr.bf16.mxu0 %v7749
        %10446 = vmatpush1.bf16.msra.mxu0 %v7748
        %10447 = vmatprep.mubr.bf16.mxu0 %v1973
        %10448 = vmatmul.mubr.bf16.gmra.mrb[0].mxu0 %v1971
        %v10449 = vpop.f32.mrb[0].mxu0
        %v10450 = vadd.f32 %v10409, %v10449
        %v10451 = vpop.f32.mrb[0].mxu0
        %v10452 = vadd.f32 %v10411, %v10451
        %v10453 = vpop.f32.mrb[0].mxu0
        %v10454 = vpop.f32.mrb[0].mxu0
        %10455 = vdwg.mxu0
        %10456 = vmatprep.subr.bf16.mxu0 %v7753
        %10457 = vmatpush1.bf16.msra.mxu0 %v7752
        %10458 = vmatprep.subr.bf16.mxu0 %v7757
        %10459 = vmatpush1.bf16.msra.mxu0 %v7756
        %10460 = vmatprep.subr.bf16.mxu0 %v7761
        %10461 = vmatpush1.bf16.msra.mxu0 %v7760
        %10462 = vmatprep.subr.bf16.mxu0 %v7765
        %10463 = vmatpush1.bf16.msra.mxu0 %v7764
        %10464 = vmatprep.subr.bf16.mxu0 %v7769
        %10465 = vmatpush1.bf16.msra.mxu0 %v7768
        %10466 = vmatprep.subr.bf16.mxu0 %v7773
        %10467 = vmatpush1.bf16.msra.mxu0 %v7772
        %10468 = vmatprep.subr.bf16.mxu0 %v7777
        %10469 = vmatpush1.bf16.msra.mxu0 %v7776
        %10470 = vmatprep.subr.bf16.mxu0 %v7781
        %10471 = vmatpush1.bf16.msra.mxu0 %v7780
        %10472 = vmatprep.subr.bf16.mxu0 %v7785
        %10473 = vmatpush1.bf16.msra.mxu0 %v7784
        %10474 = vmatprep.subr.bf16.mxu0 %v7789
        %10475 = vmatpush1.bf16.msra.mxu0 %v7788
        %10476 = vmatprep.subr.bf16.mxu0 %v7793
        %10477 = vmatpush1.bf16.msra.mxu0 %v7792
        %10478 = vmatprep.subr.bf16.mxu0 %v7797
        %10479 = vmatpush1.bf16.msra.mxu0 %v7796
        %10480 = vmatprep.subr.bf16.mxu0 %v7801
        %10481 = vmatpush1.bf16.msra.mxu0 %v7800
        %10482 = vmatprep.subr.bf16.mxu0 %v7805
        %10483 = vmatpush1.bf16.msra.mxu0 %v7804
        %10484 = vmatprep.subr.bf16.mxu0 %v7809
        %10485 = vmatpush1.bf16.msra.mxu0 %v7808
        %10486 = vmatprep.subr.bf16.mxu0 %v7813
        %10487 = vmatpush1.bf16.msra.mxu0 %v7812
        %10488 = vmatprep.mubr.bf16.mxu0 %v2011
        %10489 = vmatmul.mubr.bf16.gmra.mrb[0].mxu0 %v1997
        %v10490 = vpop.f32.mrb[0].mxu0
        %v10491 = vadd.f32 %v10450, %v10490
        %v10492 = vpop.f32.mrb[0].mxu0
        %v10493 = vadd.f32 %v10452, %v10492
        %v10494 = vpop.f32.mrb[0].mxu0
        %v10495 = vpop.f32.mrb[0].mxu0
        %10496 = vdwg.mxu0
        %10497 = vmatprep.subr.bf16.mxu0 %v7817
        %10498 = vmatpush1.bf16.msra.mxu0 %v7816
        %10499 = vmatprep.subr.bf16.mxu0 %v7821
        %10500 = vmatpush1.bf16.msra.mxu0 %v7820
        %10501 = vmatprep.subr.bf16.mxu0 %v7825
        %10502 = vmatpush1.bf16.msra.mxu0 %v7824
        %10503 = vmatprep.subr.bf16.mxu0 %v7829
        %10504 = vmatpush1.bf16.msra.mxu0 %v7828
        %10505 = vmatprep.subr.bf16.mxu0 %v7833
        %10506 = vmatpush1.bf16.msra.mxu0 %v7832
        %10507 = vmatprep.subr.bf16.mxu0 %v7837
        %10508 = vmatpush1.bf16.msra.mxu0 %v7836
        %10509 = vmatprep.subr.bf16.mxu0 %v7841
        %10510 = vmatpush1.bf16.msra.mxu0 %v7840
        %10511 = vmatprep.subr.bf16.mxu0 %v7845
        %10512 = vmatpush1.bf16.msra.mxu0 %v7844
        %10513 = vmatprep.subr.bf16.mxu0 %v7849
        %10514 = vmatpush1.bf16.msra.mxu0 %v7848
        %10515 = vmatprep.subr.bf16.mxu0 %v7853
        %10516 = vmatpush1.bf16.msra.mxu0 %v7852
        %10517 = vmatprep.subr.bf16.mxu0 %v7857
        %10518 = vmatpush1.bf16.msra.mxu0 %v7856
        %10519 = vmatprep.subr.bf16.mxu0 %v7861
        %10520 = vmatpush1.bf16.msra.mxu0 %v7860
        %10521 = vmatprep.subr.bf16.mxu0 %v7865
        %10522 = vmatpush1.bf16.msra.mxu0 %v7864
        %10523 = vmatprep.subr.bf16.mxu0 %v7869
        %10524 = vmatpush1.bf16.msra.mxu0 %v7868
        %10525 = vmatprep.subr.bf16.mxu0 %v7873
        %10526 = vmatpush1.bf16.msra.mxu0 %v7872
        %10527 = vmatprep.subr.bf16.mxu0 %v7877
        %10528 = vmatpush1.bf16.msra.mxu0 %v7876
        %10529 = vmatprep.mubr.bf16.mxu0 %v2021
        %10530 = vmatmul.mubr.bf16.gmra.mrb[0].mxu0 %v2019
        %v10531 = vpop.f32.mrb[0].mxu0
        %v10532 = vadd.f32 %v10491, %v10531
        %v10533 = vpop.f32.mrb[0].mxu0
        %v10534 = vadd.f32 %v10493, %v10533
        %v10535 = vpop.f32.mrb[0].mxu0
        %v10536 = vpop.f32.mrb[0].mxu0
        %10537 = vdwg.mxu0
        %10538 = vmatprep.subr.bf16.mxu0 %v7881
        %10539 = vmatpush1.bf16.msra.mxu0 %v7880
        %10540 = vmatprep.subr.bf16.mxu0 %v7885
        %10541 = vmatpush1.bf16.msra.mxu0 %v7884
        %10542 = vmatprep.subr.bf16.mxu0 %v7889
        %10543 = vmatpush1.bf16.msra.mxu0 %v7888
        %10544 = vmatprep.subr.bf16.mxu0 %v7893
        %10545 = vmatpush1.bf16.msra.mxu0 %v7892
        %10546 = vmatprep.subr.bf16.mxu0 %v7897
        %10547 = vmatpush1.bf16.msra.mxu0 %v7896
        %10548 = vmatprep.subr.bf16.mxu0 %v7901
        %10549 = vmatpush1.bf16.msra.mxu0 %v7900
        %10550 = vmatprep.subr.bf16.mxu0 %v7905
        %10551 = vmatpush1.bf16.msra.mxu0 %v7904
        %10552 = vmatprep.subr.bf16.mxu0 %v7909
        %10553 = vmatpush1.bf16.msra.mxu0 %v7908
        %10554 = vmatprep.subr.bf16.mxu0 %v7913
        %10555 = vmatpush1.bf16.msra.mxu0 %v7912
        %10556 = vmatprep.subr.bf16.mxu0 %v7917
        %10557 = vmatpush1.bf16.msra.mxu0 %v7916
        %10558 = vmatprep.subr.bf16.mxu0 %v7921
        %10559 = vmatpush1.bf16.msra.mxu0 %v7920
        %10560 = vmatprep.subr.bf16.mxu0 %v7925
        %10561 = vmatpush1.bf16.msra.mxu0 %v7924
        %10562 = vmatprep.subr.bf16.mxu0 %v7929
        %10563 = vmatpush1.bf16.msra.mxu0 %v7928
        %10564 = vmatprep.subr.bf16.mxu0 %v7933
        %10565 = vmatpush1.bf16.msra.mxu0 %v7932
        %10566 = vmatprep.subr.bf16.mxu0 %v7937
        %10567 = vmatpush1.bf16.msra.mxu0 %v7936
        %10568 = vmatprep.subr.bf16.mxu0 %v7941
        %10569 = vmatpush1.bf16.msra.mxu0 %v7940
        %10570 = vmatprep.mubr.bf16.mxu0 %v2018
        %10571 = vmatmul.mubr.bf16.gmra.mrb[0].mxu0 %v2004
        %v10572 = vpop.f32.mrb[0].mxu0
        %v10573 = vadd.f32 %v10532, %v10572
        %v10574 = vpop.f32.mrb[0].mxu0
        %v10575 = vadd.f32 %v10534, %v10574
        %v10576 = vpop.f32.mrb[0].mxu0
        %v10577 = vpop.f32.mrb[0].mxu0
        %10578 = vdwg.mxu0
        %10579 = vmatprep.subr.bf16.mxu0 %v7945
        %10580 = vmatpush1.bf16.msra.mxu0 %v7944
        %10581 = vmatprep.subr.bf16.mxu0 %v7949
        %10582 = vmatpush1.bf16.msra.mxu0 %v7948
        %10583 = vmatprep.subr.bf16.mxu0 %v7953
        %10584 = vmatpush1.bf16.msra.mxu0 %v7952
        %10585 = vmatprep.subr.bf16.mxu0 %v7957
        %10586 = vmatpush1.bf16.msra.mxu0 %v7956
        %10587 = vmatprep.subr.bf16.mxu0 %v7961
        %10588 = vmatpush1.bf16.msra.mxu0 %v7960
        %10589 = vmatprep.subr.bf16.mxu0 %v7965
        %10590 = vmatpush1.bf16.msra.mxu0 %v7964
        %10591 = vmatprep.subr.bf16.mxu0 %v7969
        %10592 = vmatpush1.bf16.msra.mxu0 %v7968
        %10593 = vmatprep.subr.bf16.mxu0 %v7973
        %10594 = vmatpush1.bf16.msra.mxu0 %v7972
        %10595 = vmatprep.subr.bf16.mxu0 %v7977
        %10596 = vmatpush1.bf16.msra.mxu0 %v7976
        %10597 = vmatprep.subr.bf16.mxu0 %v7981
        %10598 = vmatpush1.bf16.msra.mxu0 %v7980
        %10599 = vmatprep.subr.bf16.mxu0 %v7985
        %10600 = vmatpush1.bf16.msra.mxu0 %v7984
        %10601 = vmatprep.subr.bf16.mxu0 %v7989
        %10602 = vmatpush1.bf16.msra.mxu0 %v7988
        %10603 = vmatprep.subr.bf16.mxu0 %v7993
        %10604 = vmatpush1.bf16.msra.mxu0 %v7992
        %10605 = vmatprep.subr.bf16.mxu0 %v7997
        %10606 = vmatpush1.bf16.msra.mxu0 %v7996
        %10607 = vmatprep.subr.bf16.mxu0 %v8001
        %10608 = vmatpush1.bf16.msra.mxu0 %v8000
        %10609 = vmatprep.subr.bf16.mxu0 %v8005
        %10610 = vmatpush1.bf16.msra.mxu0 %v8004
        %10611 = vmatprep.mubr.bf16.mxu0 %v2022
        %10612 = vmatmul.mubr.bf16.gmra.mrb[0].mxu0 %v2020
        %v10613 = vpop.f32.mrb[0].mxu0
        %v10614 = vadd.f32 %v10573, %v10613
        %v10615 = vpop.f32.mrb[0].mxu0
        %v10616 = vadd.f32 %v10575, %v10615
        %v10617 = vpop.f32.mrb[0].mxu0
        %v10618 = vpop.f32.mrb[0].mxu0
        %10619 = vdwg.mxu0
        %10620 = vmatprep.subr.bf16.mxu0 %v8009
        %10621 = vmatpush1.bf16.msra.mxu0 %v8008
        %10622 = vmatprep.subr.bf16.mxu0 %v8013
        %10623 = vmatpush1.bf16.msra.mxu0 %v8012
        %10624 = vmatprep.subr.bf16.mxu0 %v8017
        %10625 = vmatpush1.bf16.msra.mxu0 %v8016
        %10626 = vmatprep.subr.bf16.mxu0 %v8021
        %10627 = vmatpush1.bf16.msra.mxu0 %v8020
        %10628 = vmatprep.subr.bf16.mxu0 %v8025
        %10629 = vmatpush1.bf16.msra.mxu0 %v8024
        %10630 = vmatprep.subr.bf16.mxu0 %v8029
        %10631 = vmatpush1.bf16.msra.mxu0 %v8028
        %10632 = vmatprep.subr.bf16.mxu0 %v8033
        %10633 = vmatpush1.bf16.msra.mxu0 %v8032
        %10634 = vmatprep.subr.bf16.mxu0 %v8037
        %10635 = vmatpush1.bf16.msra.mxu0 %v8036
        %10636 = vmatprep.subr.bf16.mxu0 %v8041
        %10637 = vmatpush1.bf16.msra.mxu0 %v8040
        %10638 = vmatprep.subr.bf16.mxu0 %v8045
        %10639 = vmatpush1.bf16.msra.mxu0 %v8044
        %10640 = vmatprep.subr.bf16.mxu0 %v8049
        %10641 = vmatpush1.bf16.msra.mxu0 %v8048
        %10642 = vmatprep.subr.bf16.mxu0 %v8053
        %10643 = vmatpush1.bf16.msra.mxu0 %v8052
        %10644 = vmatprep.subr.bf16.mxu0 %v8057
        %10645 = vmatpush1.bf16.msra.mxu0 %v8056
        %10646 = vmatprep.subr.bf16.mxu0 %v8061
        %10647 = vmatpush1.bf16.msra.mxu0 %v8060
        %10648 = vmatprep.subr.bf16.mxu0 %v8065
        %10649 = vmatpush1.bf16.msra.mxu0 %v8064
        %10650 = vmatprep.subr.bf16.mxu0 %v8069
        %10651 = vmatpush1.bf16.msra.mxu0 %v8068
        %10652 = vmatprep.mubr.bf16.mxu0 %v2060
        %10653 = vmatmul.mubr.bf16.gmra.mrb[0].mxu0 %v2046
        %v10654 = vpop.f32.mrb[0].mxu0
        %v10655 = vadd.f32 %v10614, %v10654
        %v10656 = vpop.f32.mrb[0].mxu0
        %v10657 = vadd.f32 %v10616, %v10656
        %v10658 = vpop.f32.mrb[0].mxu0
        %v10659 = vpop.f32.mrb[0].mxu0
        %10660 = vdwg.mxu0
        %10661 = vmatprep.subr.bf16.mxu0 %v8073
        %10662 = vmatpush1.bf16.msra.mxu0 %v8072
        %10663 = vmatprep.subr.bf16.mxu0 %v8077
        %10664 = vmatpush1.bf16.msra.mxu0 %v8076
        %10665 = vmatprep.subr.bf16.mxu0 %v8081
        %10666 = vmatpush1.bf16.msra.mxu0 %v8080
        %10667 = vmatprep.subr.bf16.mxu0 %v8085
        %10668 = vmatpush1.bf16.msra.mxu0 %v8084
        %10669 = vmatprep.subr.bf16.mxu0 %v8089
        %10670 = vmatpush1.bf16.msra.mxu0 %v8088
        %10671 = vmatprep.subr.bf16.mxu0 %v8093
        %10672 = vmatpush1.bf16.msra.mxu0 %v8092
        %10673 = vmatprep.subr.bf16.mxu0 %v8097
        %10674 = vmatpush1.bf16.msra.mxu0 %v8096
        %10675 = vmatprep.subr.bf16.mxu0 %v8101
        %10676 = vmatpush1.bf16.msra.mxu0 %v8100
        %10677 = vmatprep.subr.bf16.mxu0 %v8105
        %10678 = vmatpush1.bf16.msra.mxu0 %v8104
        %10679 = vmatprep.subr.bf16.mxu0 %v8109
        %10680 = vmatpush1.bf16.msra.mxu0 %v8108
        %10681 = vmatprep.subr.bf16.mxu0 %v8113
        %10682 = vmatpush1.bf16.msra.mxu0 %v8112
        %10683 = vmatprep.subr.bf16.mxu0 %v8117
        %10684 = vmatpush1.bf16.msra.mxu0 %v8116
        %10685 = vmatprep.subr.bf16.mxu0 %v8121
        %10686 = vmatpush1.bf16.msra.mxu0 %v8120
        %10687 = vmatprep.subr.bf16.mxu0 %v8125
        %10688 = vmatpush1.bf16.msra.mxu0 %v8124
        %10689 = vmatprep.subr.bf16.mxu0 %v8129
        %10690 = vmatpush1.bf16.msra.mxu0 %v8128
        %10691 = vmatprep.subr.bf16.mxu0 %v8133
        %10692 = vmatpush1.bf16.msra.mxu0 %v8132
        %10693 = vmatprep.mubr.bf16.mxu0 %v2070
        %10694 = vmatmul.mubr.bf16.gmra.mrb[0].mxu0 %v2068
        %v10695 = vpop.f32.mrb[0].mxu0
        %v10696 = vadd.f32 %v10655, %v10695
        %v10697 = vpop.f32.mrb[0].mxu0
        %v10698 = vadd.f32 %v10657, %v10697
        %v10699 = vpop.f32.mrb[0].mxu0
        %v10700 = vpop.f32.mrb[0].mxu0
        %10701 = vdwg.mxu0
        %10702 = vmatprep.subr.bf16.mxu0 %v8137
        %10703 = vmatpush1.bf16.msra.mxu0 %v8136
        %10704 = vmatprep.subr.bf16.mxu0 %v8141
        %10705 = vmatpush1.bf16.msra.mxu0 %v8140
        %10706 = vmatprep.subr.bf16.mxu0 %v8145
        %10707 = vmatpush1.bf16.msra.mxu0 %v8144
        %10708 = vmatprep.subr.bf16.mxu0 %v8149
        %10709 = vmatpush1.bf16.msra.mxu0 %v8148
        %10710 = vmatprep.subr.bf16.mxu0 %v8153
        %10711 = vmatpush1.bf16.msra.mxu0 %v8152
        %10712 = vmatprep.subr.bf16.mxu0 %v8157
        %10713 = vmatpush1.bf16.msra.mxu0 %v8156
        %10714 = vmatprep.subr.bf16.mxu0 %v8161
        %10715 = vmatpush1.bf16.msra.mxu0 %v8160
        %10716 = vmatprep.subr.bf16.mxu0 %v8165
        %10717 = vmatpush1.bf16.msra.mxu0 %v8164
        %10718 = vmatprep.subr.bf16.mxu0 %v8169
        %10719 = vmatpush1.bf16.msra.mxu0 %v8168
        %10720 = vmatprep.subr.bf16.mxu0 %v8173
        %10721 = vmatpush1.bf16.msra.mxu0 %v8172
        %10722 = vmatprep.subr.bf16.mxu0 %v8177
        %10723 = vmatpush1.bf16.msra.mxu0 %v8176
        %10724 = vmatprep.subr.bf16.mxu0 %v8181
        %10725 = vmatpush1.bf16.msra.mxu0 %v8180
        %10726 = vmatprep.subr.bf16.mxu0 %v8185
        %10727 = vmatpush1.bf16.msra.mxu0 %v8184
        %10728 = vmatprep.subr.bf16.mxu0 %v8189
        %10729 = vmatpush1.bf16.msra.mxu0 %v8188
        %10730 = vmatprep.subr.bf16.mxu0 %v8193
        %10731 = vmatpush1.bf16.msra.mxu0 %v8192
        %10732 = vmatprep.subr.bf16.mxu0 %v8197
        %10733 = vmatpush1.bf16.msra.mxu0 %v8196
        %10734 = vmatprep.mubr.bf16.mxu0 %v2067
        %10735 = vmatmul.mubr.bf16.gmra.mrb[0].mxu0 %v2053
        %v10736 = vpop.f32.mrb[0].mxu0
        %v10737 = vadd.f32 %v10696, %v10736
        %v10738 = vpop.f32.mrb[0].mxu0
        %v10739 = vadd.f32 %v10698, %v10738
        %v10740 = vpop.f32.mrb[0].mxu0
        %v10741 = vpop.f32.mrb[0].mxu0
        %10742 = vdwg.mxu0
        %10743 = vmatprep.subr.bf16.mxu0 %v8201
        %10744 = vmatpush1.bf16.msra.mxu0 %v8200
        %10745 = vmatprep.subr.bf16.mxu0 %v8205
        %10746 = vmatpush1.bf16.msra.mxu0 %v8204
        %10747 = vmatprep.subr.bf16.mxu0 %v8209
        %10748 = vmatpush1.bf16.msra.mxu0 %v8208
        %10749 = vmatprep.subr.bf16.mxu0 %v8213
        %10750 = vmatpush1.bf16.msra.mxu0 %v8212
        %10751 = vmatprep.subr.bf16.mxu0 %v8217
        %10752 = vmatpush1.bf16.msra.mxu0 %v8216
        %10753 = vmatprep.subr.bf16.mxu0 %v8221
        %10754 = vmatpush1.bf16.msra.mxu0 %v8220
        %10755 = vmatprep.subr.bf16.mxu0 %v8225
        %10756 = vmatpush1.bf16.msra.mxu0 %v8224
        %10757 = vmatprep.subr.bf16.mxu0 %v8229
        %10758 = vmatpush1.bf16.msra.mxu0 %v8228
        %10759 = vmatprep.subr.bf16.mxu0 %v8233
        %10760 = vmatpush1.bf16.msra.mxu0 %v8232
        %10761 = vmatprep.subr.bf16.mxu0 %v8237
        %10762 = vmatpush1.bf16.msra.mxu0 %v8236
        %10763 = vmatprep.subr.bf16.mxu0 %v8241
        %10764 = vmatpush1.bf16.msra.mxu0 %v8240
        %10765 = vmatprep.subr.bf16.mxu0 %v8245
        %10766 = vmatpush1.bf16.msra.mxu0 %v8244
        %10767 = vmatprep.subr.bf16.mxu0 %v8249
        %10768 = vmatpush1.bf16.msra.mxu0 %v8248
        %10769 = vmatprep.subr.bf16.mxu0 %v8253
        %10770 = vmatpush1.bf16.msra.mxu0 %v8252
        %10771 = vmatprep.subr.bf16.mxu0 %v8257
        %10772 = vmatpush1.bf16.msra.mxu0 %v8256
        %10773 = vmatprep.subr.bf16.mxu0 %v8261
        %10774 = vmatpush1.bf16.msra.mxu0 %v8260
        %10775 = vmatprep.mubr.bf16.mxu0 %v2071
        %10776 = vmatmul.mubr.bf16.gmra.mrb[0].mxu0 %v2069
        %v10777 = vpop.f32.mrb[0].mxu0
        %v10778 = vadd.f32 %v10737, %v10777
        %v10779 = vpop.f32.mrb[0].mxu0
        %v10780 = vadd.f32 %v10739, %v10779
        %v10781 = vpop.f32.mrb[0].mxu0
        %v10782 = vpop.f32.mrb[0].mxu0
        %10783 = vdwg.mxu0
        %10784 = vmatprep.subr.bf16.mxu0 %v6731
        %10785 = vmatpush1.bf16.msra.mxu0 %v6730
        %10786 = vmatprep.subr.bf16.mxu0 %v6735
        %10787 = vmatpush1.bf16.msra.mxu0 %v6734
        %10788 = vmatprep.subr.bf16.mxu0 %v6739
        %10789 = vmatpush1.bf16.msra.mxu0 %v6738
        %10790 = vmatprep.subr.bf16.mxu0 %v6743
        %10791 = vmatpush1.bf16.msra.mxu0 %v6742
        %10792 = vmatprep.subr.bf16.mxu0 %v6747
        %10793 = vmatpush1.bf16.msra.mxu0 %v6746
        %10794 = vmatprep.subr.bf16.mxu0 %v6751
        %10795 = vmatpush1.bf16.msra.mxu0 %v6750
        %10796 = vmatprep.subr.bf16.mxu0 %v6755
        %10797 = vmatpush1.bf16.msra.mxu0 %v6754
        %10798 = vmatprep.subr.bf16.mxu0 %v6759
        %10799 = vmatpush1.bf16.msra.mxu0 %v6758
        %10800 = vmatprep.subr.bf16.mxu0 %v6763
        %10801 = vmatpush1.bf16.msra.mxu0 %v6762
        %10802 = vmatprep.subr.bf16.mxu0 %v6767
        %10803 = vmatpush1.bf16.msra.mxu0 %v6766
        %10804 = vmatprep.subr.bf16.mxu0 %v6771
        %10805 = vmatpush1.bf16.msra.mxu0 %v6770
        %10806 = vmatprep.subr.bf16.mxu0 %v6775
        %10807 = vmatpush1.bf16.msra.mxu0 %v6774
        %10808 = vmatprep.subr.bf16.mxu0 %v6779
        %10809 = vmatpush1.bf16.msra.mxu0 %v6778
        %10810 = vmatprep.subr.bf16.mxu0 %v6783
        %10811 = vmatpush1.bf16.msra.mxu0 %v6782
        %10812 = vmatprep.subr.bf16.mxu0 %v6787
        %10813 = vmatpush1.bf16.msra.mxu0 %v6786
        %10814 = vmatprep.subr.bf16.mxu0 %v6791
        %10815 = vmatpush1.bf16.msra.mxu0 %v6790
        %10816 = vmatprep.mubr.bf16.mxu0 %v1815
        %10817 = vmatmul.mubr.bf16.gmra.mrb[0].mxu0 %v1801
        %v10818 = vpop.f32.mrb[0].mxu0
        %v10819 = vadd.f32 0.0, %v10818
        %v10820 = vpop.f32.mrb[0].mxu0
        %v10821 = vadd.f32 0.0, %v10820
        %v10822 = vpop.f32.mrb[0].mxu0
        %v10823 = vpop.f32.mrb[0].mxu0
        %10824 = vdwg.mxu0
        %10825 = vmatprep.subr.bf16.mxu0 %v6795
        %10826 = vmatpush1.bf16.msra.mxu0 %v6794
        %10827 = vmatprep.subr.bf16.mxu0 %v6799
        %10828 = vmatpush1.bf16.msra.mxu0 %v6798
        %10829 = vmatprep.subr.bf16.mxu0 %v6803
        %10830 = vmatpush1.bf16.msra.mxu0 %v6802
        %10831 = vmatprep.subr.bf16.mxu0 %v6807
        %10832 = vmatpush1.bf16.msra.mxu0 %v6806
        %10833 = vmatprep.subr.bf16.mxu0 %v6811
        %10834 = vmatpush1.bf16.msra.mxu0 %v6810
        %10835 = vmatprep.subr.bf16.mxu0 %v6815
        %10836 = vmatpush1.bf16.msra.mxu0 %v6814
        %10837 = vmatprep.subr.bf16.mxu0 %v6819
        %10838 = vmatpush1.bf16.msra.mxu0 %v6818
        %10839 = vmatprep.subr.bf16.mxu0 %v6823
        %10840 = vmatpush1.bf16.msra.mxu0 %v6822
        %10841 = vmatprep.subr.bf16.mxu0 %v6827
        %10842 = vmatpush1.bf16.msra.mxu0 %v6826
        %10843 = vmatprep.subr.bf16.mxu0 %v6831
        %10844 = vmatpush1.bf16.msra.mxu0 %v6830
        %10845 = vmatprep.subr.bf16.mxu0 %v6835
        %10846 = vmatpush1.bf16.msra.mxu0 %v6834
        %10847 = vmatprep.subr.bf16.mxu0 %v6839
        %10848 = vmatpush1.bf16.msra.mxu0 %v6838
        %10849 = vmatprep.subr.bf16.mxu0 %v6843
        %10850 = vmatpush1.bf16.msra.mxu0 %v6842
        %10851 = vmatprep.subr.bf16.mxu0 %v6847
        %10852 = vmatpush1.bf16.msra.mxu0 %v6846
        %10853 = vmatprep.subr.bf16.mxu0 %v6851
        %10854 = vmatpush1.bf16.msra.mxu0 %v6850
        %10855 = vmatprep.subr.bf16.mxu0 %v6855
        %10856 = vmatpush1.bf16.msra.mxu0 %v6854
        %10857 = vmatprep.mubr.bf16.mxu0 %v1825
        %10858 = vmatmul.mubr.bf16.gmra.mrb[0].mxu0 %v1823
        %v10859 = vpop.f32.mrb[0].mxu0
        %v10860 = vadd.f32 %v10819, %v10859
        %v10861 = vpop.f32.mrb[0].mxu0
        %v10862 = vadd.f32 %v10821, %v10861
        %v10863 = vpop.f32.mrb[0].mxu0
        %v10864 = vpop.f32.mrb[0].mxu0
        %10865 = vdwg.mxu0
        %10866 = vmatprep.subr.bf16.mxu0 %v6859
        %10867 = vmatpush1.bf16.msra.mxu0 %v6858
        %10868 = vmatprep.subr.bf16.mxu0 %v6863
        %10869 = vmatpush1.bf16.msra.mxu0 %v6862
        %10870 = vmatprep.subr.bf16.mxu0 %v6867
        %10871 = vmatpush1.bf16.msra.mxu0 %v6866
        %10872 = vmatprep.subr.bf16.mxu0 %v6871
        %10873 = vmatpush1.bf16.msra.mxu0 %v6870
        %10874 = vmatprep.subr.bf16.mxu0 %v6875
        %10875 = vmatpush1.bf16.msra.mxu0 %v6874
        %10876 = vmatprep.subr.bf16.mxu0 %v6879
        %10877 = vmatpush1.bf16.msra.mxu0 %v6878
        %10878 = vmatprep.subr.bf16.mxu0 %v6883
        %10879 = vmatpush1.bf16.msra.mxu0 %v6882
        %10880 = vmatprep.subr.bf16.mxu0 %v6887
        %10881 = vmatpush1.bf16.msra.mxu0 %v6886
        %10882 = vmatprep.subr.bf16.mxu0 %v6891
        %10883 = vmatpush1.bf16.msra.mxu0 %v6890
        %10884 = vmatprep.subr.bf16.mxu0 %v6895
        %10885 = vmatpush1.bf16.msra.mxu0 %v6894
        %10886 = vmatprep.subr.bf16.mxu0 %v6899
        %10887 = vmatpush1.bf16.msra.mxu0 %v6898
        %10888 = vmatprep.subr.bf16.mxu0 %v6903
        %10889 = vmatpush1.bf16.msra.mxu0 %v6902
        %10890 = vmatprep.subr.bf16.mxu0 %v6907
        %10891 = vmatpush1.bf16.msra.mxu0 %v6906
        %10892 = vmatprep.subr.bf16.mxu0 %v6911
        %10893 = vmatpush1.bf16.msra.mxu0 %v6910
        %10894 = vmatprep.subr.bf16.mxu0 %v6915
        %10895 = vmatpush1.bf16.msra.mxu0 %v6914
        %10896 = vmatprep.subr.bf16.mxu0 %v6919
        %10897 = vmatpush1.bf16.msra.mxu0 %v6918
        %10898 = vmatprep.mubr.bf16.mxu0 %v1822
        %10899 = vmatmul.mubr.bf16.gmra.mrb[0].mxu0 %v1808
        %v10900 = vpop.f32.mrb[0].mxu0
        %v10901 = vadd.f32 %v10860, %v10900
        %v10902 = vpop.f32.mrb[0].mxu0
        %v10903 = vadd.f32 %v10862, %v10902
        %v10904 = vpop.f32.mrb[0].mxu0
        %v10905 = vpop.f32.mrb[0].mxu0
        %10906 = vdwg.mxu0
        %10907 = vmatprep.subr.bf16.mxu0 %v6923
        %10908 = vmatpush1.bf16.msra.mxu0 %v6922
        %10909 = vmatprep.subr.bf16.mxu0 %v6927
        %10910 = vmatpush1.bf16.msra.mxu0 %v6926
        %10911 = vmatprep.subr.bf16.mxu0 %v6931
        %10912 = vmatpush1.bf16.msra.mxu0 %v6930
        %10913 = vmatprep.subr.bf16.mxu0 %v6935
        %10914 = vmatpush1.bf16.msra.mxu0 %v6934
        %10915 = vmatprep.subr.bf16.mxu0 %v6939
        %10916 = vmatpush1.bf16.msra.mxu0 %v6938
        %10917 = vmatprep.subr.bf16.mxu0 %v6943
        %10918 = vmatpush1.bf16.msra.mxu0 %v6942
        %10919 = vmatprep.subr.bf16.mxu0 %v6947
        %10920 = vmatpush1.bf16.msra.mxu0 %v6946
        %10921 = vmatprep.subr.bf16.mxu0 %v6951
        %10922 = vmatpush1.bf16.msra.mxu0 %v6950
        %10923 = vmatprep.subr.bf16.mxu0 %v6955
        %10924 = vmatpush1.bf16.msra.mxu0 %v6954
        %10925 = vmatprep.subr.bf16.mxu0 %v6959
        %10926 = vmatpush1.bf16.msra.mxu0 %v6958
        %10927 = vmatprep.subr.bf16.mxu0 %v6963
        %10928 = vmatpush1.bf16.msra.mxu0 %v6962
        %10929 = vmatprep.subr.bf16.mxu0 %v6967
        %10930 = vmatpush1.bf16.msra.mxu0 %v6966
        %10931 = vmatprep.subr.bf16.mxu0 %v6971
        %10932 = vmatpush1.bf16.msra.mxu0 %v6970
        %10933 = vmatprep.subr.bf16.mxu0 %v6975
        %10934 = vmatpush1.bf16.msra.mxu0 %v6974
        %10935 = vmatprep.subr.bf16.mxu0 %v6979
        %10936 = vmatpush1.bf16.msra.mxu0 %v6978
        %10937 = vmatprep.subr.bf16.mxu0 %v6983
        %10938 = vmatpush1.bf16.msra.mxu0 %v6982
        %10939 = vmatprep.mubr.bf16.mxu0 %v1826
        %10940 = vmatmul.mubr.bf16.gmra.mrb[0].mxu0 %v1824
        %v10941 = vpop.f32.mrb[0].mxu0
        %v10942 = vadd.f32 %v10901, %v10941
        %v10943 = vpop.f32.mrb[0].mxu0
        %v10944 = vadd.f32 %v10903, %v10943
        %v10945 = vpop.f32.mrb[0].mxu0
        %v10946 = vpop.f32.mrb[0].mxu0
        %10947 = vdwg.mxu0
        %10948 = vmatprep.subr.bf16.mxu0 %v6987
        %10949 = vmatpush1.bf16.msra.mxu0 %v6986
        %10950 = vmatprep.subr.bf16.mxu0 %v6991
        %10951 = vmatpush1.bf16.msra.mxu0 %v6990
        %10952 = vmatprep.subr.bf16.mxu0 %v6995
        %10953 = vmatpush1.bf16.msra.mxu0 %v6994
        %10954 = vmatprep.subr.bf16.mxu0 %v6999
        %10955 = vmatpush1.bf16.msra.mxu0 %v6998
        %10956 = vmatprep.subr.bf16.mxu0 %v7003
        %10957 = vmatpush1.bf16.msra.mxu0 %v7002
        %10958 = vmatprep.subr.bf16.mxu0 %v7007
        %10959 = vmatpush1.bf16.msra.mxu0 %v7006
        %10960 = vmatprep.subr.bf16.mxu0 %v7011
        %10961 = vmatpush1.bf16.msra.mxu0 %v7010
        %10962 = vmatprep.subr.bf16.mxu0 %v7015
        %10963 = vmatpush1.bf16.msra.mxu0 %v7014
        %10964 = vmatprep.subr.bf16.mxu0 %v7019
        %10965 = vmatpush1.bf16.msra.mxu0 %v7018
        %10966 = vmatprep.subr.bf16.mxu0 %v7023
        %10967 = vmatpush1.bf16.msra.mxu0 %v7022
        %10968 = vmatprep.subr.bf16.mxu0 %v7027
        %10969 = vmatpush1.bf16.msra.mxu0 %v7026
        %10970 = vmatprep.subr.bf16.mxu0 %v7031
        %10971 = vmatpush1.bf16.msra.mxu0 %v7030
        %10972 = vmatprep.subr.bf16.mxu0 %v7035
        %10973 = vmatpush1.bf16.msra.mxu0 %v7034
        %10974 = vmatprep.subr.bf16.mxu0 %v7039
        %10975 = vmatpush1.bf16.msra.mxu0 %v7038
        %10976 = vmatprep.subr.bf16.mxu0 %v7043
        %10977 = vmatpush1.bf16.msra.mxu0 %v7042
        %10978 = vmatprep.subr.bf16.mxu0 %v7047
        %10979 = vmatpush1.bf16.msra.mxu0 %v7046
        %10980 = vmatprep.mubr.bf16.mxu0 %v1864
        %10981 = vmatmul.mubr.bf16.gmra.mrb[0].mxu0 %v1850
        %v10982 = vpop.f32.mrb[0].mxu0
        %v10983 = vadd.f32 %v10942, %v10982
        %v10984 = vpop.f32.mrb[0].mxu0
        %v10985 = vadd.f32 %v10944, %v10984
        %v10986 = vpop.f32.mrb[0].mxu0
        %v10987 = vpop.f32.mrb[0].mxu0
        %10988 = vdwg.mxu0
        %10989 = vmatprep.subr.bf16.mxu0 %v7051
        %10990 = vmatpush1.bf16.msra.mxu0 %v7050
        %10991 = vmatprep.subr.bf16.mxu0 %v7055
        %10992 = vmatpush1.bf16.msra.mxu0 %v7054
        %10993 = vmatprep.subr.bf16.mxu0 %v7059
        %10994 = vmatpush1.bf16.msra.mxu0 %v7058
        %10995 = vmatprep.subr.bf16.mxu0 %v7063
        %10996 = vmatpush1.bf16.msra.mxu0 %v7062
        %10997 = vmatprep.subr.bf16.mxu0 %v7067
        %10998 = vmatpush1.bf16.msra.mxu0 %v7066
        %10999 = vmatprep.subr.bf16.mxu0 %v7071
        %11000 = vmatpush1.bf16.msra.mxu0 %v7070
        %11001 = vmatprep.subr.bf16.mxu0 %v7075
        %11002 = vmatpush1.bf16.msra.mxu0 %v7074
        %11003 = vmatprep.subr.bf16.mxu0 %v7079
        %11004 = vmatpush1.bf16.msra.mxu0 %v7078
        %11005 = vmatprep.subr.bf16.mxu0 %v7083
        %11006 = vmatpush1.bf16.msra.mxu0 %v7082
        %11007 = vmatprep.subr.bf16.mxu0 %v7087
        %11008 = vmatpush1.bf16.msra.mxu0 %v7086
        %11009 = vmatprep.subr.bf16.mxu0 %v7091
        %11010 = vmatpush1.bf16.msra.mxu0 %v7090
        %11011 = vmatprep.subr.bf16.mxu0 %v7095
        %11012 = vmatpush1.bf16.msra.mxu0 %v7094
        %11013 = vmatprep.subr.bf16.mxu0 %v7099
        %11014 = vmatpush1.bf16.msra.mxu0 %v7098
        %11015 = vmatprep.subr.bf16.mxu0 %v7103
        %11016 = vmatpush1.bf16.msra.mxu0 %v7102
        %11017 = vmatprep.subr.bf16.mxu0 %v7107
        %11018 = vmatpush1.bf16.msra.mxu0 %v7106
        %11019 = vmatprep.subr.bf16.mxu0 %v7111
        %11020 = vmatpush1.bf16.msra.mxu0 %v7110
        %11021 = vmatprep.mubr.bf16.mxu0 %v1874
        %11022 = vmatmul.mubr.bf16.gmra.mrb[0].mxu0 %v1872
        %v11023 = vpop.f32.mrb[0].mxu0
        %v11024 = vadd.f32 %v10983, %v11023
        %v11025 = vpop.f32.mrb[0].mxu0
        %v11026 = vadd.f32 %v10985, %v11025
        %v11027 = vpop.f32.mrb[0].mxu0
        %v11028 = vpop.f32.mrb[0].mxu0
        %11029 = vdwg.mxu0
        %11030 = vmatprep.subr.bf16.mxu0 %v7115
        %11031 = vmatpush1.bf16.msra.mxu0 %v7114
        %11032 = vmatprep.subr.bf16.mxu0 %v7119
        %11033 = vmatpush1.bf16.msra.mxu0 %v7118
        %11034 = vmatprep.subr.bf16.mxu0 %v7123
        %11035 = vmatpush1.bf16.msra.mxu0 %v7122
        %11036 = vmatprep.subr.bf16.mxu0 %v7127
        %11037 = vmatpush1.bf16.msra.mxu0 %v7126
        %11038 = vmatprep.subr.bf16.mxu0 %v7131
        %11039 = vmatpush1.bf16.msra.mxu0 %v7130
        %11040 = vmatprep.subr.bf16.mxu0 %v7135
        %11041 = vmatpush1.bf16.msra.mxu0 %v7134
        %11042 = vmatprep.subr.bf16.mxu0 %v7139
        %11043 = vmatpush1.bf16.msra.mxu0 %v7138
        %11044 = vmatprep.subr.bf16.mxu0 %v7143
        %11045 = vmatpush1.bf16.msra.mxu0 %v7142
        %11046 = vmatprep.subr.bf16.mxu0 %v7147
        %11047 = vmatpush1.bf16.msra.mxu0 %v7146
        %11048 = vmatprep.subr.bf16.mxu0 %v7151
        %11049 = vmatpush1.bf16.msra.mxu0 %v7150
        %11050 = vmatprep.subr.bf16.mxu0 %v7155
        %11051 = vmatpush1.bf16.msra.mxu0 %v7154
        %11052 = vmatprep.subr.bf16.mxu0 %v7159
        %11053 = vmatpush1.bf16.msra.mxu0 %v7158
        %11054 = vmatprep.subr.bf16.mxu0 %v7163
        %11055 = vmatpush1.bf16.msra.mxu0 %v7162
        %11056 = vmatprep.subr.bf16.mxu0 %v7167
        %11057 = vmatpush1.bf16.msra.mxu0 %v7166
        %11058 = vmatprep.subr.bf16.mxu0 %v7171
        %11059 = vmatpush1.bf16.msra.mxu0 %v7170
        %11060 = vmatprep.subr.bf16.mxu0 %v7175
        %11061 = vmatpush1.bf16.msra.mxu0 %v7174
        %11062 = vmatprep.mubr.bf16.mxu0 %v1871
        %11063 = vmatmul.mubr.bf16.gmra.mrb[0].mxu0 %v1857
        %v11064 = vpop.f32.mrb[0].mxu0
        %v11065 = vadd.f32 %v11024, %v11064
        %v11066 = vpop.f32.mrb[0].mxu0
        %v11067 = vadd.f32 %v11026, %v11066
        %v11068 = vpop.f32.mrb[0].mxu0
        %v11069 = vpop.f32.mrb[0].mxu0
        %11070 = vdwg.mxu0
        %11071 = vmatprep.subr.bf16.mxu0 %v7179
        %11072 = vmatpush1.bf16.msra.mxu0 %v7178
        %11073 = vmatprep.subr.bf16.mxu0 %v7183
        %11074 = vmatpush1.bf16.msra.mxu0 %v7182
        %11075 = vmatprep.subr.bf16.mxu0 %v7187
        %11076 = vmatpush1.bf16.msra.mxu0 %v7186
        %11077 = vmatprep.subr.bf16.mxu0 %v7191
        %11078 = vmatpush1.bf16.msra.mxu0 %v7190
        %11079 = vmatprep.subr.bf16.mxu0 %v7195
        %11080 = vmatpush1.bf16.msra.mxu0 %v7194
        %11081 = vmatprep.subr.bf16.mxu0 %v7199
        %11082 = vmatpush1.bf16.msra.mxu0 %v7198
        %11083 = vmatprep.subr.bf16.mxu0 %v7203
        %11084 = vmatpush1.bf16.msra.mxu0 %v7202
        %11085 = vmatprep.subr.bf16.mxu0 %v7207
        %11086 = vmatpush1.bf16.msra.mxu0 %v7206
        %11087 = vmatprep.subr.bf16.mxu0 %v7211
        %11088 = vmatpush1.bf16.msra.mxu0 %v7210
        %11089 = vmatprep.subr.bf16.mxu0 %v7215
        %11090 = vmatpush1.bf16.msra.mxu0 %v7214
        %11091 = vmatprep.subr.bf16.mxu0 %v7219
        %11092 = vmatpush1.bf16.msra.mxu0 %v7218
        %11093 = vmatprep.subr.bf16.mxu0 %v7223
        %11094 = vmatpush1.bf16.msra.mxu0 %v7222
        %11095 = vmatprep.subr.bf16.mxu0 %v7227
        %11096 = vmatpush1.bf16.msra.mxu0 %v7226
        %11097 = vmatprep.subr.bf16.mxu0 %v7231
        %11098 = vmatpush1.bf16.msra.mxu0 %v7230
        %11099 = vmatprep.subr.bf16.mxu0 %v7235
        %11100 = vmatpush1.bf16.msra.mxu0 %v7234
        %11101 = vmatprep.subr.bf16.mxu0 %v7239
        %11102 = vmatpush1.bf16.msra.mxu0 %v7238
        %11103 = vmatprep.mubr.bf16.mxu0 %v1875
        %11104 = vmatmul.mubr.bf16.gmra.mrb[0].mxu0 %v1873
        %v11105 = vpop.f32.mrb[0].mxu0
        %v11106 = vadd.f32 %v11065, %v11105
        %v11107 = vpop.f32.mrb[0].mxu0
        %v11108 = vadd.f32 %v11067, %v11107
        %v11109 = vpop.f32.mrb[0].mxu0
        %v11110 = vpop.f32.mrb[0].mxu0
        %11111 = vdwg.mxu0
        %11112 = vmatprep.subr.bf16.mxu0 %v7243
        %11113 = vmatpush1.bf16.msra.mxu0 %v7242
        %11114 = vmatprep.subr.bf16.mxu0 %v7247
        %11115 = vmatpush1.bf16.msra.mxu0 %v7246
        %11116 = vmatprep.subr.bf16.mxu0 %v7251
        %11117 = vmatpush1.bf16.msra.mxu0 %v7250
        %11118 = vmatprep.subr.bf16.mxu0 %v7255
        %11119 = vmatpush1.bf16.msra.mxu0 %v7254
        %11120 = vmatprep.subr.bf16.mxu0 %v7259
        %11121 = vmatpush1.bf16.msra.mxu0 %v7258
        %11122 = vmatprep.subr.bf16.mxu0 %v7263
        %11123 = vmatpush1.bf16.msra.mxu0 %v7262
        %11124 = vmatprep.subr.bf16.mxu0 %v7267
        %11125 = vmatpush1.bf16.msra.mxu0 %v7266
        %11126 = vmatprep.subr.bf16.mxu0 %v7271
        %11127 = vmatpush1.bf16.msra.mxu0 %v7270
        %11128 = vmatprep.subr.bf16.mxu0 %v7275
        %11129 = vmatpush1.bf16.msra.mxu0 %v7274
        %11130 = vmatprep.subr.bf16.mxu0 %v7279
        %11131 = vmatpush1.bf16.msra.mxu0 %v7278
        %11132 = vmatprep.subr.bf16.mxu0 %v7283
        %11133 = vmatpush1.bf16.msra.mxu0 %v7282
        %11134 = vmatprep.subr.bf16.mxu0 %v7287
        %11135 = vmatpush1.bf16.msra.mxu0 %v7286
        %11136 = vmatprep.subr.bf16.mxu0 %v7291
        %11137 = vmatpush1.bf16.msra.mxu0 %v7290
        %11138 = vmatprep.subr.bf16.mxu0 %v7295
        %11139 = vmatpush1.bf16.msra.mxu0 %v7294
        %11140 = vmatprep.subr.bf16.mxu0 %v7299
        %11141 = vmatpush1.bf16.msra.mxu0 %v7298
        %11142 = vmatprep.subr.bf16.mxu0 %v7303
        %11143 = vmatpush1.bf16.msra.mxu0 %v7302
        %11144 = vmatprep.mubr.bf16.mxu0 %v1913
        %11145 = vmatmul.mubr.bf16.gmra.mrb[0].mxu0 %v1899
        %v11146 = vpop.f32.mrb[0].mxu0
        %v11147 = vadd.f32 %v11106, %v11146
        %v11148 = vpop.f32.mrb[0].mxu0
        %v11149 = vadd.f32 %v11108, %v11148
        %v11150 = vpop.f32.mrb[0].mxu0
        %v11151 = vpop.f32.mrb[0].mxu0
        %11152 = vdwg.mxu0
        %11153 = vmatprep.subr.bf16.mxu0 %v7307
        %11154 = vmatpush1.bf16.msra.mxu0 %v7306
        %11155 = vmatprep.subr.bf16.mxu0 %v7311
        %11156 = vmatpush1.bf16.msra.mxu0 %v7310
        %11157 = vmatprep.subr.bf16.mxu0 %v7315
        %11158 = vmatpush1.bf16.msra.mxu0 %v7314
        %11159 = vmatprep.subr.bf16.mxu0 %v7319
        %11160 = vmatpush1.bf16.msra.mxu0 %v7318
        %11161 = vmatprep.subr.bf16.mxu0 %v7323
        %11162 = vmatpush1.bf16.msra.mxu0 %v7322
        %11163 = vmatprep.subr.bf16.mxu0 %v7327
        %11164 = vmatpush1.bf16.msra.mxu0 %v7326
        %11165 = vmatprep.subr.bf16.mxu0 %v7331
        %11166 = vmatpush1.bf16.msra.mxu0 %v7330
        %11167 = vmatprep.subr.bf16.mxu0 %v7335
        %11168 = vmatpush1.bf16.msra.mxu0 %v7334
        %11169 = vmatprep.subr.bf16.mxu0 %v7339
        %11170 = vmatpush1.bf16.msra.mxu0 %v7338
        %11171 = vmatprep.subr.bf16.mxu0 %v7343
        %11172 = vmatpush1.bf16.msra.mxu0 %v7342
        %11173 = vmatprep.subr.bf16.mxu0 %v7347
        %11174 = vmatpush1.bf16.msra.mxu0 %v7346
        %11175 = vmatprep.subr.bf16.mxu0 %v7351
        %11176 = vmatpush1.bf16.msra.mxu0 %v7350
        %11177 = vmatprep.subr.bf16.mxu0 %v7355
        %11178 = vmatpush1.bf16.msra.mxu0 %v7354
        %11179 = vmatprep.subr.bf16.mxu0 %v7359
        %11180 = vmatpush1.bf16.msra.mxu0 %v7358
        %11181 = vmatprep.subr.bf16.mxu0 %v7363
        %11182 = vmatpush1.bf16.msra.mxu0 %v7362
        %11183 = vmatprep.subr.bf16.mxu0 %v7367
        %11184 = vmatpush1.bf16.msra.mxu0 %v7366
        %11185 = vmatprep.mubr.bf16.mxu0 %v1923
        %11186 = vmatmul.mubr.bf16.gmra.mrb[0].mxu0 %v1921
        %v11187 = vpop.f32.mrb[0].mxu0
        %v11188 = vadd.f32 %v11147, %v11187
        %v11189 = vpop.f32.mrb[0].mxu0
        %v11190 = vadd.f32 %v11149, %v11189
        %v11191 = vpop.f32.mrb[0].mxu0
        %v11192 = vpop.f32.mrb[0].mxu0
        %11193 = vdwg.mxu0
        %11194 = vmatprep.subr.bf16.mxu0 %v7371
        %11195 = vmatpush1.bf16.msra.mxu0 %v7370
        %11196 = vmatprep.subr.bf16.mxu0 %v7375
        %11197 = vmatpush1.bf16.msra.mxu0 %v7374
        %11198 = vmatprep.subr.bf16.mxu0 %v7379
        %11199 = vmatpush1.bf16.msra.mxu0 %v7378
        %11200 = vmatprep.subr.bf16.mxu0 %v7383
        %11201 = vmatpush1.bf16.msra.mxu0 %v7382
        %11202 = vmatprep.subr.bf16.mxu0 %v7387
        %11203 = vmatpush1.bf16.msra.mxu0 %v7386
        %11204 = vmatprep.subr.bf16.mxu0 %v7391
        %11205 = vmatpush1.bf16.msra.mxu0 %v7390
        %11206 = vmatprep.subr.bf16.mxu0 %v7395
        %11207 = vmatpush1.bf16.msra.mxu0 %v7394
        %11208 = vmatprep.subr.bf16.mxu0 %v7399
        %11209 = vmatpush1.bf16.msra.mxu0 %v7398
        %11210 = vmatprep.subr.bf16.mxu0 %v7403
        %11211 = vmatpush1.bf16.msra.mxu0 %v7402
        %11212 = vmatprep.subr.bf16.mxu0 %v7407
        %11213 = vmatpush1.bf16.msra.mxu0 %v7406
        %11214 = vmatprep.subr.bf16.mxu0 %v7411
        %11215 = vmatpush1.bf16.msra.mxu0 %v7410
        %11216 = vmatprep.subr.bf16.mxu0 %v7415
        %11217 = vmatpush1.bf16.msra.mxu0 %v7414
        %11218 = vmatprep.subr.bf16.mxu0 %v7419
        %11219 = vmatpush1.bf16.msra.mxu0 %v7418
        %11220 = vmatprep.subr.bf16.mxu0 %v7423
        %11221 = vmatpush1.bf16.msra.mxu0 %v7422
        %11222 = vmatprep.subr.bf16.mxu0 %v7427
        %11223 = vmatpush1.bf16.msra.mxu0 %v7426
        %11224 = vmatprep.subr.bf16.mxu0 %v7431
        %11225 = vmatpush1.bf16.msra.mxu0 %v7430
        %11226 = vmatprep.mubr.bf16.mxu0 %v1920
        %11227 = vmatmul.mubr.bf16.gmra.mrb[0].mxu0 %v1906
        %v11228 = vpop.f32.mrb[0].mxu0
        %v11229 = vadd.f32 %v11188, %v11228
        %v11230 = vpop.f32.mrb[0].mxu0
        %v11231 = vadd.f32 %v11190, %v11230
        %v11232 = vpop.f32.mrb[0].mxu0
        %v11233 = vpop.f32.mrb[0].mxu0
        %11234 = vdwg.mxu0
        %11235 = vmatprep.subr.bf16.mxu0 %v7435
        %11236 = vmatpush1.bf16.msra.mxu0 %v7434
        %11237 = vmatprep.subr.bf16.mxu0 %v7439
        %11238 = vmatpush1.bf16.msra.mxu0 %v7438
        %11239 = vmatprep.subr.bf16.mxu0 %v7443
        %11240 = vmatpush1.bf16.msra.mxu0 %v7442
        %11241 = vmatprep.subr.bf16.mxu0 %v7447
        %11242 = vmatpush1.bf16.msra.mxu0 %v7446
        %11243 = vmatprep.subr.bf16.mxu0 %v7451
        %11244 = vmatpush1.bf16.msra.mxu0 %v7450
        %11245 = vmatprep.subr.bf16.mxu0 %v7455
        %11246 = vmatpush1.bf16.msra.mxu0 %v7454
        %11247 = vmatprep.subr.bf16.mxu0 %v7459
        %11248 = vmatpush1.bf16.msra.mxu0 %v7458
        %11249 = vmatprep.subr.bf16.mxu0 %v7463
        %11250 = vmatpush1.bf16.msra.mxu0 %v7462
        %11251 = vmatprep.subr.bf16.mxu0 %v7467
        %11252 = vmatpush1.bf16.msra.mxu0 %v7466
        %11253 = vmatprep.subr.bf16.mxu0 %v7471
        %11254 = vmatpush1.bf16.msra.mxu0 %v7470
        %11255 = vmatprep.subr.bf16.mxu0 %v7475
        %11256 = vmatpush1.bf16.msra.mxu0 %v7474
        %11257 = vmatprep.subr.bf16.mxu0 %v7479
        %11258 = vmatpush1.bf16.msra.mxu0 %v7478
        %11259 = vmatprep.subr.bf16.mxu0 %v7483
        %11260 = vmatpush1.bf16.msra.mxu0 %v7482
        %11261 = vmatprep.subr.bf16.mxu0 %v7487
        %11262 = vmatpush1.bf16.msra.mxu0 %v7486
        %11263 = vmatprep.subr.bf16.mxu0 %v7491
        %11264 = vmatpush1.bf16.msra.mxu0 %v7490
        %11265 = vmatprep.subr.bf16.mxu0 %v7495
        %11266 = vmatpush1.bf16.msra.mxu0 %v7494
        %11267 = vmatprep.mubr.bf16.mxu0 %v1924
        %11268 = vmatmul.mubr.bf16.gmra.mrb[0].mxu0 %v1922
        %v11269 = vpop.f32.mrb[0].mxu0
        %v11270 = vadd.f32 %v11229, %v11269
        %v11271 = vpop.f32.mrb[0].mxu0
        %v11272 = vadd.f32 %v11231, %v11271
        %v11273 = vpop.f32.mrb[0].mxu0
        %v11274 = vpop.f32.mrb[0].mxu0
        %11275 = vdwg.mxu0
        %11276 = vmatprep.subr.bf16.mxu0 %v7499
        %11277 = vmatpush1.bf16.msra.mxu0 %v7498
        %11278 = vmatprep.subr.bf16.mxu0 %v7503
        %11279 = vmatpush1.bf16.msra.mxu0 %v7502
        %11280 = vmatprep.subr.bf16.mxu0 %v7507
        %11281 = vmatpush1.bf16.msra.mxu0 %v7506
        %11282 = vmatprep.subr.bf16.mxu0 %v7511
        %11283 = vmatpush1.bf16.msra.mxu0 %v7510
        %11284 = vmatprep.subr.bf16.mxu0 %v7515
        %11285 = vmatpush1.bf16.msra.mxu0 %v7514
        %11286 = vmatprep.subr.bf16.mxu0 %v7519
        %11287 = vmatpush1.bf16.msra.mxu0 %v7518
        %11288 = vmatprep.subr.bf16.mxu0 %v7523
        %11289 = vmatpush1.bf16.msra.mxu0 %v7522
        %11290 = vmatprep.subr.bf16.mxu0 %v7527
        %11291 = vmatpush1.bf16.msra.mxu0 %v7526
        %11292 = vmatprep.subr.bf16.mxu0 %v7531
        %11293 = vmatpush1.bf16.msra.mxu0 %v7530
        %11294 = vmatprep.subr.bf16.mxu0 %v7535
        %11295 = vmatpush1.bf16.msra.mxu0 %v7534
        %11296 = vmatprep.subr.bf16.mxu0 %v7539
        %11297 = vmatpush1.bf16.msra.mxu0 %v7538
        %11298 = vmatprep.subr.bf16.mxu0 %v7543
        %11299 = vmatpush1.bf16.msra.mxu0 %v7542
        %11300 = vmatprep.subr.bf16.mxu0 %v7547
        %11301 = vmatpush1.bf16.msra.mxu0 %v7546
        %11302 = vmatprep.subr.bf16.mxu0 %v7551
        %11303 = vmatpush1.bf16.msra.mxu0 %v7550
        %11304 = vmatprep.subr.bf16.mxu0 %v7555
        %11305 = vmatpush1.bf16.msra.mxu0 %v7554
        %11306 = vmatprep.subr.bf16.mxu0 %v7559
        %11307 = vmatpush1.bf16.msra.mxu0 %v7558
        %11308 = vmatprep.mubr.bf16.mxu0 %v1962
        %11309 = vmatmul.mubr.bf16.gmra.mrb[0].mxu0 %v1948
        %v11310 = vpop.f32.mrb[0].mxu0
        %v11311 = vadd.f32 %v11270, %v11310
        %v11312 = vpop.f32.mrb[0].mxu0
        %v11313 = vadd.f32 %v11272, %v11312
        %v11314 = vpop.f32.mrb[0].mxu0
        %v11315 = vpop.f32.mrb[0].mxu0
        %11316 = vdwg.mxu0
        %11317 = vmatprep.subr.bf16.mxu0 %v7563
        %11318 = vmatpush1.bf16.msra.mxu0 %v7562
        %11319 = vmatprep.subr.bf16.mxu0 %v7567
        %11320 = vmatpush1.bf16.msra.mxu0 %v7566
        %11321 = vmatprep.subr.bf16.mxu0 %v7571
        %11322 = vmatpush1.bf16.msra.mxu0 %v7570
        %11323 = vmatprep.subr.bf16.mxu0 %v7575
        %11324 = vmatpush1.bf16.msra.mxu0 %v7574
        %11325 = vmatprep.subr.bf16.mxu0 %v7579
        %11326 = vmatpush1.bf16.msra.mxu0 %v7578
        %11327 = vmatprep.subr.bf16.mxu0 %v7583
        %11328 = vmatpush1.bf16.msra.mxu0 %v7582
        %11329 = vmatprep.subr.bf16.mxu0 %v7587
        %11330 = vmatpush1.bf16.msra.mxu0 %v7586
        %11331 = vmatprep.subr.bf16.mxu0 %v7591
        %11332 = vmatpush1.bf16.msra.mxu0 %v7590
        %11333 = vmatprep.subr.bf16.mxu0 %v7595
        %11334 = vmatpush1.bf16.msra.mxu0 %v7594
        %11335 = vmatprep.subr.bf16.mxu0 %v7599
        %11336 = vmatpush1.bf16.msra.mxu0 %v7598
        %11337 = vmatprep.subr.bf16.mxu0 %v7603
        %11338 = vmatpush1.bf16.msra.mxu0 %v7602
        %11339 = vmatprep.subr.bf16.mxu0 %v7607
        %11340 = vmatpush1.bf16.msra.mxu0 %v7606
        %11341 = vmatprep.subr.bf16.mxu0 %v7611
        %11342 = vmatpush1.bf16.msra.mxu0 %v7610
        %11343 = vmatprep.subr.bf16.mxu0 %v7615
        %11344 = vmatpush1.bf16.msra.mxu0 %v7614
        %11345 = vmatprep.subr.bf16.mxu0 %v7619
        %11346 = vmatpush1.bf16.msra.mxu0 %v7618
        %11347 = vmatprep.subr.bf16.mxu0 %v7623
        %11348 = vmatpush1.bf16.msra.mxu0 %v7622
        %11349 = vmatprep.mubr.bf16.mxu0 %v1972
        %11350 = vmatmul.mubr.bf16.gmra.mrb[0].mxu0 %v1970
        %v11351 = vpop.f32.mrb[0].mxu0
        %v11352 = vadd.f32 %v11311, %v11351
        %v11353 = vpop.f32.mrb[0].mxu0
        %v11354 = vadd.f32 %v11313, %v11353
        %v11355 = vpop.f32.mrb[0].mxu0
        %v11356 = vpop.f32.mrb[0].mxu0
        %11357 = vdwg.mxu0
        %11358 = vmatprep.subr.bf16.mxu0 %v7627
        %11359 = vmatpush1.bf16.msra.mxu0 %v7626
        %11360 = vmatprep.subr.bf16.mxu0 %v7631
        %11361 = vmatpush1.bf16.msra.mxu0 %v7630
        %11362 = vmatprep.subr.bf16.mxu0 %v7635
        %11363 = vmatpush1.bf16.msra.mxu0 %v7634
        %11364 = vmatprep.subr.bf16.mxu0 %v7639
        %11365 = vmatpush1.bf16.msra.mxu0 %v7638
        %11366 = vmatprep.subr.bf16.mxu0 %v7643
        %11367 = vmatpush1.bf16.msra.mxu0 %v7642
        %11368 = vmatprep.subr.bf16.mxu0 %v7647
        %11369 = vmatpush1.bf16.msra.mxu0 %v7646
        %11370 = vmatprep.subr.bf16.mxu0 %v7651
        %11371 = vmatpush1.bf16.msra.mxu0 %v7650
        %11372 = vmatprep.subr.bf16.mxu0 %v7655
        %11373 = vmatpush1.bf16.msra.mxu0 %v7654
        %11374 = vmatprep.subr.bf16.mxu0 %v7659
        %11375 = vmatpush1.bf16.msra.mxu0 %v7658
        %11376 = vmatprep.subr.bf16.mxu0 %v7663
        %11377 = vmatpush1.bf16.msra.mxu0 %v7662
        %11378 = vmatprep.subr.bf16.mxu0 %v7667
        %11379 = vmatpush1.bf16.msra.mxu0 %v7666
        %11380 = vmatprep.subr.bf16.mxu0 %v7671
        %11381 = vmatpush1.bf16.msra.mxu0 %v7670
        %11382 = vmatprep.subr.bf16.mxu0 %v7675
        %11383 = vmatpush1.bf16.msra.mxu0 %v7674
        %11384 = vmatprep.subr.bf16.mxu0 %v7679
        %11385 = vmatpush1.bf16.msra.mxu0 %v7678
        %11386 = vmatprep.subr.bf16.mxu0 %v7683
        %11387 = vmatpush1.bf16.msra.mxu0 %v7682
        %11388 = vmatprep.subr.bf16.mxu0 %v7687
        %11389 = vmatpush1.bf16.msra.mxu0 %v7686
        %11390 = vmatprep.mubr.bf16.mxu0 %v1969
        %11391 = vmatmul.mubr.bf16.gmra.mrb[0].mxu0 %v1955
        %v11392 = vpop.f32.mrb[0].mxu0
        %v11393 = vadd.f32 %v11352, %v11392
        %v11394 = vpop.f32.mrb[0].mxu0
        %v11395 = vadd.f32 %v11354, %v11394
        %v11396 = vpop.f32.mrb[0].mxu0
        %v11397 = vpop.f32.mrb[0].mxu0
        %11398 = vdwg.mxu0
        %11399 = vmatprep.subr.bf16.mxu0 %v7691
        %11400 = vmatpush1.bf16.msra.mxu0 %v7690
        %11401 = vmatprep.subr.bf16.mxu0 %v7695
        %11402 = vmatpush1.bf16.msra.mxu0 %v7694
        %11403 = vmatprep.subr.bf16.mxu0 %v7699
        %11404 = vmatpush1.bf16.msra.mxu0 %v7698
        %11405 = vmatprep.subr.bf16.mxu0 %v7703
        %11406 = vmatpush1.bf16.msra.mxu0 %v7702
        %11407 = vmatprep.subr.bf16.mxu0 %v7707
        %11408 = vmatpush1.bf16.msra.mxu0 %v7706
        %11409 = vmatprep.subr.bf16.mxu0 %v7711
        %11410 = vmatpush1.bf16.msra.mxu0 %v7710
        %11411 = vmatprep.subr.bf16.mxu0 %v7715
        %11412 = vmatpush1.bf16.msra.mxu0 %v7714
        %11413 = vmatprep.subr.bf16.mxu0 %v7719
        %11414 = vmatpush1.bf16.msra.mxu0 %v7718
        %11415 = vmatprep.subr.bf16.mxu0 %v7723
        %11416 = vmatpush1.bf16.msra.mxu0 %v7722
        %11417 = vmatprep.subr.bf16.mxu0 %v7727
        %11418 = vmatpush1.bf16.msra.mxu0 %v7726
        %11419 = vmatprep.subr.bf16.mxu0 %v7731
        %11420 = vmatpush1.bf16.msra.mxu0 %v7730
        %11421 = vmatprep.subr.bf16.mxu0 %v7735
        %11422 = vmatpush1.bf16.msra.mxu0 %v7734
        %11423 = vmatprep.subr.bf16.mxu0 %v7739
        %11424 = vmatpush1.bf16.msra.mxu0 %v7738
        %11425 = vmatprep.subr.bf16.mxu0 %v7743
        %11426 = vmatpush1.bf16.msra.mxu0 %v7742
        %11427 = vmatprep.subr.bf16.mxu0 %v7747
        %11428 = vmatpush1.bf16.msra.mxu0 %v7746
        %11429 = vmatprep.subr.bf16.mxu0 %v7751
        %11430 = vmatpush1.bf16.msra.mxu0 %v7750
        %11431 = vmatprep.mubr.bf16.mxu0 %v1973
        %11432 = vmatmul.mubr.bf16.gmra.mrb[0].mxu0 %v1971
        %v11433 = vpop.f32.mrb[0].mxu0
        %v11434 = vadd.f32 %v11393, %v11433
        %v11435 = vpop.f32.mrb[0].mxu0
        %v11436 = vadd.f32 %v11395, %v11435
        %v11437 = vpop.f32.mrb[0].mxu0
        %v11438 = vpop.f32.mrb[0].mxu0
        %11439 = vdwg.mxu0
        %11440 = vmatprep.subr.bf16.mxu0 %v7755
        %11441 = vmatpush1.bf16.msra.mxu0 %v7754
        %11442 = vmatprep.subr.bf16.mxu0 %v7759
        %11443 = vmatpush1.bf16.msra.mxu0 %v7758
        %11444 = vmatprep.subr.bf16.mxu0 %v7763
        %11445 = vmatpush1.bf16.msra.mxu0 %v7762
        %11446 = vmatprep.subr.bf16.mxu0 %v7767
        %11447 = vmatpush1.bf16.msra.mxu0 %v7766
        %11448 = vmatprep.subr.bf16.mxu0 %v7771
        %11449 = vmatpush1.bf16.msra.mxu0 %v7770
        %11450 = vmatprep.subr.bf16.mxu0 %v7775
        %11451 = vmatpush1.bf16.msra.mxu0 %v7774
        %11452 = vmatprep.subr.bf16.mxu0 %v7779
        %11453 = vmatpush1.bf16.msra.mxu0 %v7778
        %11454 = vmatprep.subr.bf16.mxu0 %v7783
        %11455 = vmatpush1.bf16.msra.mxu0 %v7782
        %11456 = vmatprep.subr.bf16.mxu0 %v7787
        %11457 = vmatpush1.bf16.msra.mxu0 %v7786
        %11458 = vmatprep.subr.bf16.mxu0 %v7791
        %11459 = vmatpush1.bf16.msra.mxu0 %v7790
        %11460 = vmatprep.subr.bf16.mxu0 %v7795
        %11461 = vmatpush1.bf16.msra.mxu0 %v7794
        %11462 = vmatprep.subr.bf16.mxu0 %v7799
        %11463 = vmatpush1.bf16.msra.mxu0 %v7798
        %11464 = vmatprep.subr.bf16.mxu0 %v7803
        %11465 = vmatpush1.bf16.msra.mxu0 %v7802
        %11466 = vmatprep.subr.bf16.mxu0 %v7807
        %11467 = vmatpush1.bf16.msra.mxu0 %v7806
        %11468 = vmatprep.subr.bf16.mxu0 %v7811
        %11469 = vmatpush1.bf16.msra.mxu0 %v7810
        %11470 = vmatprep.subr.bf16.mxu0 %v7815
        %11471 = vmatpush1.bf16.msra.mxu0 %v7814
        %11472 = vmatprep.mubr.bf16.mxu0 %v2011
        %11473 = vmatmul.mubr.bf16.gmra.mrb[0].mxu0 %v1997
        %v11474 = vpop.f32.mrb[0].mxu0
        %v11475 = vadd.f32 %v11434, %v11474
        %v11476 = vpop.f32.mrb[0].mxu0
        %v11477 = vadd.f32 %v11436, %v11476
        %v11478 = vpop.f32.mrb[0].mxu0
        %v11479 = vpop.f32.mrb[0].mxu0
        %11480 = vdwg.mxu0
        %11481 = vmatprep.subr.bf16.mxu0 %v7819
        %11482 = vmatpush1.bf16.msra.mxu0 %v7818
        %11483 = vmatprep.subr.bf16.mxu0 %v7823
        %11484 = vmatpush1.bf16.msra.mxu0 %v7822
        %11485 = vmatprep.subr.bf16.mxu0 %v7827
        %11486 = vmatpush1.bf16.msra.mxu0 %v7826
        %11487 = vmatprep.subr.bf16.mxu0 %v7831
        %11488 = vmatpush1.bf16.msra.mxu0 %v7830
        %11489 = vmatprep.subr.bf16.mxu0 %v7835
        %11490 = vmatpush1.bf16.msra.mxu0 %v7834
        %11491 = vmatprep.subr.bf16.mxu0 %v7839
        %11492 = vmatpush1.bf16.msra.mxu0 %v7838
        %11493 = vmatprep.subr.bf16.mxu0 %v7843
        %11494 = vmatpush1.bf16.msra.mxu0 %v7842
        %11495 = vmatprep.subr.bf16.mxu0 %v7847
        %11496 = vmatpush1.bf16.msra.mxu0 %v7846
        %11497 = vmatprep.subr.bf16.mxu0 %v7851
        %11498 = vmatpush1.bf16.msra.mxu0 %v7850
        %11499 = vmatprep.subr.bf16.mxu0 %v7855
        %11500 = vmatpush1.bf16.msra.mxu0 %v7854
        %11501 = vmatprep.subr.bf16.mxu0 %v7859
        %11502 = vmatpush1.bf16.msra.mxu0 %v7858
        %11503 = vmatprep.subr.bf16.mxu0 %v7863
        %11504 = vmatpush1.bf16.msra.mxu0 %v7862
        %11505 = vmatprep.subr.bf16.mxu0 %v7867
        %11506 = vmatpush1.bf16.msra.mxu0 %v7866
        %11507 = vmatprep.subr.bf16.mxu0 %v7871
        %11508 = vmatpush1.bf16.msra.mxu0 %v7870
        %11509 = vmatprep.subr.bf16.mxu0 %v7875
        %11510 = vmatpush1.bf16.msra.mxu0 %v7874
        %11511 = vmatprep.subr.bf16.mxu0 %v7879
        %11512 = vmatpush1.bf16.msra.mxu0 %v7878
        %11513 = vmatprep.mubr.bf16.mxu0 %v2021
        %11514 = vmatmul.mubr.bf16.gmra.mrb[0].mxu0 %v2019
        %v11515 = vpop.f32.mrb[0].mxu0
        %v11516 = vadd.f32 %v11475, %v11515
        %v11517 = vpop.f32.mrb[0].mxu0
        %v11518 = vadd.f32 %v11477, %v11517
        %v11519 = vpop.f32.mrb[0].mxu0
        %v11520 = vpop.f32.mrb[0].mxu0
        %11521 = vdwg.mxu0
        %11522 = vmatprep.subr.bf16.mxu0 %v7883
        %11523 = vmatpush1.bf16.msra.mxu0 %v7882
        %11524 = vmatprep.subr.bf16.mxu0 %v7887
        %11525 = vmatpush1.bf16.msra.mxu0 %v7886
        %11526 = vmatprep.subr.bf16.mxu0 %v7891
        %11527 = vmatpush1.bf16.msra.mxu0 %v7890
        %11528 = vmatprep.subr.bf16.mxu0 %v7895
        %11529 = vmatpush1.bf16.msra.mxu0 %v7894
        %11530 = vmatprep.subr.bf16.mxu0 %v7899
        %11531 = vmatpush1.bf16.msra.mxu0 %v7898
        %11532 = vmatprep.subr.bf16.mxu0 %v7903
        %11533 = vmatpush1.bf16.msra.mxu0 %v7902
        %11534 = vmatprep.subr.bf16.mxu0 %v7907
        %11535 = vmatpush1.bf16.msra.mxu0 %v7906
        %11536 = vmatprep.subr.bf16.mxu0 %v7911
        %11537 = vmatpush1.bf16.msra.mxu0 %v7910
        %11538 = vmatprep.subr.bf16.mxu0 %v7915
        %11539 = vmatpush1.bf16.msra.mxu0 %v7914
        %11540 = vmatprep.subr.bf16.mxu0 %v7919
        %11541 = vmatpush1.bf16.msra.mxu0 %v7918
        %11542 = vmatprep.subr.bf16.mxu0 %v7923
        %11543 = vmatpush1.bf16.msra.mxu0 %v7922
        %11544 = vmatprep.subr.bf16.mxu0 %v7927
        %11545 = vmatpush1.bf16.msra.mxu0 %v7926
        %11546 = vmatprep.subr.bf16.mxu0 %v7931
        %11547 = vmatpush1.bf16.msra.mxu0 %v7930
        %11548 = vmatprep.subr.bf16.mxu0 %v7935
        %11549 = vmatpush1.bf16.msra.mxu0 %v7934
        %11550 = vmatprep.subr.bf16.mxu0 %v7939
        %11551 = vmatpush1.bf16.msra.mxu0 %v7938
        %11552 = vmatprep.subr.bf16.mxu0 %v7943
        %11553 = vmatpush1.bf16.msra.mxu0 %v7942
        %11554 = vmatprep.mubr.bf16.mxu0 %v2018
        %11555 = vmatmul.mubr.bf16.gmra.mrb[0].mxu0 %v2004
        %v11556 = vpop.f32.mrb[0].mxu0
        %v11557 = vadd.f32 %v11516, %v11556
        %v11558 = vpop.f32.mrb[0].mxu0
        %v11559 = vadd.f32 %v11518, %v11558
        %v11560 = vpop.f32.mrb[0].mxu0
        %v11561 = vpop.f32.mrb[0].mxu0
        %11562 = vdwg.mxu0
        %11563 = vmatprep.subr.bf16.mxu0 %v7947
        %11564 = vmatpush1.bf16.msra.mxu0 %v7946
        %11565 = vmatprep.subr.bf16.mxu0 %v7951
        %11566 = vmatpush1.bf16.msra.mxu0 %v7950
        %11567 = vmatprep.subr.bf16.mxu0 %v7955
        %11568 = vmatpush1.bf16.msra.mxu0 %v7954
        %11569 = vmatprep.subr.bf16.mxu0 %v7959
        %11570 = vmatpush1.bf16.msra.mxu0 %v7958
        %11571 = vmatprep.subr.bf16.mxu0 %v7963
        %11572 = vmatpush1.bf16.msra.mxu0 %v7962
        %11573 = vmatprep.subr.bf16.mxu0 %v7967
        %11574 = vmatpush1.bf16.msra.mxu0 %v7966
        %11575 = vmatprep.subr.bf16.mxu0 %v7971
        %11576 = vmatpush1.bf16.msra.mxu0 %v7970
        %11577 = vmatprep.subr.bf16.mxu0 %v7975
        %11578 = vmatpush1.bf16.msra.mxu0 %v7974
        %11579 = vmatprep.subr.bf16.mxu0 %v7979
        %11580 = vmatpush1.bf16.msra.mxu0 %v7978
        %11581 = vmatprep.subr.bf16.mxu0 %v7983
        %11582 = vmatpush1.bf16.msra.mxu0 %v7982
        %11583 = vmatprep.subr.bf16.mxu0 %v7987
        %11584 = vmatpush1.bf16.msra.mxu0 %v7986
        %11585 = vmatprep.subr.bf16.mxu0 %v7991
        %11586 = vmatpush1.bf16.msra.mxu0 %v7990
        %11587 = vmatprep.subr.bf16.mxu0 %v7995
        %11588 = vmatpush1.bf16.msra.mxu0 %v7994
        %11589 = vmatprep.subr.bf16.mxu0 %v7999
        %11590 = vmatpush1.bf16.msra.mxu0 %v7998
        %11591 = vmatprep.subr.bf16.mxu0 %v8003
        %11592 = vmatpush1.bf16.msra.mxu0 %v8002
        %11593 = vmatprep.subr.bf16.mxu0 %v8007
        %11594 = vmatpush1.bf16.msra.mxu0 %v8006
        %11595 = vmatprep.mubr.bf16.mxu0 %v2022
        %11596 = vmatmul.mubr.bf16.gmra.mrb[0].mxu0 %v2020
        %v11597 = vpop.f32.mrb[0].mxu0
        %v11598 = vadd.f32 %v11557, %v11597
        %v11599 = vpop.f32.mrb[0].mxu0
        %v11600 = vadd.f32 %v11559, %v11599
        %v11601 = vpop.f32.mrb[0].mxu0
        %v11602 = vpop.f32.mrb[0].mxu0
        %11603 = vdwg.mxu0
        %11604 = vmatprep.subr.bf16.mxu0 %v8011
        %11605 = vmatpush1.bf16.msra.mxu0 %v8010
        %11606 = vmatprep.subr.bf16.mxu0 %v8015
        %11607 = vmatpush1.bf16.msra.mxu0 %v8014
        %11608 = vmatprep.subr.bf16.mxu0 %v8019
        %11609 = vmatpush1.bf16.msra.mxu0 %v8018
        %11610 = vmatprep.subr.bf16.mxu0 %v8023
        %11611 = vmatpush1.bf16.msra.mxu0 %v8022
        %11612 = vmatprep.subr.bf16.mxu0 %v8027
        %11613 = vmatpush1.bf16.msra.mxu0 %v8026
        %11614 = vmatprep.subr.bf16.mxu0 %v8031
        %11615 = vmatpush1.bf16.msra.mxu0 %v8030
        %11616 = vmatprep.subr.bf16.mxu0 %v8035
        %11617 = vmatpush1.bf16.msra.mxu0 %v8034
        %11618 = vmatprep.subr.bf16.mxu0 %v8039
        %11619 = vmatpush1.bf16.msra.mxu0 %v8038
        %11620 = vmatprep.subr.bf16.mxu0 %v8043
        %11621 = vmatpush1.bf16.msra.mxu0 %v8042
        %11622 = vmatprep.subr.bf16.mxu0 %v8047
        %11623 = vmatpush1.bf16.msra.mxu0 %v8046
        %11624 = vmatprep.subr.bf16.mxu0 %v8051
        %11625 = vmatpush1.bf16.msra.mxu0 %v8050
        %11626 = vmatprep.subr.bf16.mxu0 %v8055
        %11627 = vmatpush1.bf16.msra.mxu0 %v8054
        %11628 = vmatprep.subr.bf16.mxu0 %v8059
        %11629 = vmatpush1.bf16.msra.mxu0 %v8058
        %11630 = vmatprep.subr.bf16.mxu0 %v8063
        %11631 = vmatpush1.bf16.msra.mxu0 %v8062
        %11632 = vmatprep.subr.bf16.mxu0 %v8067
        %11633 = vmatpush1.bf16.msra.mxu0 %v8066
        %11634 = vmatprep.subr.bf16.mxu0 %v8071
        %11635 = vmatpush1.bf16.msra.mxu0 %v8070
        %11636 = vmatprep.mubr.bf16.mxu0 %v2060
        %11637 = vmatmul.mubr.bf16.gmra.mrb[0].mxu0 %v2046
        %v11638 = vpop.f32.mrb[0].mxu0
        %v11639 = vadd.f32 %v11598, %v11638
        %v11640 = vpop.f32.mrb[0].mxu0
        %v11641 = vadd.f32 %v11600, %v11640
        %v11642 = vpop.f32.mrb[0].mxu0
        %v11643 = vpop.f32.mrb[0].mxu0
        %11644 = vdwg.mxu0
        %11645 = vmatprep.subr.bf16.mxu0 %v8075
        %11646 = vmatpush1.bf16.msra.mxu0 %v8074
        %11647 = vmatprep.subr.bf16.mxu0 %v8079
        %11648 = vmatpush1.bf16.msra.mxu0 %v8078
        %11649 = vmatprep.subr.bf16.mxu0 %v8083
        %11650 = vmatpush1.bf16.msra.mxu0 %v8082
        %11651 = vmatprep.subr.bf16.mxu0 %v8087
        %11652 = vmatpush1.bf16.msra.mxu0 %v8086
        %11653 = vmatprep.subr.bf16.mxu0 %v8091
        %11654 = vmatpush1.bf16.msra.mxu0 %v8090
        %11655 = vmatprep.subr.bf16.mxu0 %v8095
        %11656 = vmatpush1.bf16.msra.mxu0 %v8094
        %11657 = vmatprep.subr.bf16.mxu0 %v8099
        %11658 = vmatpush1.bf16.msra.mxu0 %v8098
        %11659 = vmatprep.subr.bf16.mxu0 %v8103
        %11660 = vmatpush1.bf16.msra.mxu0 %v8102
        %11661 = vmatprep.subr.bf16.mxu0 %v8107
        %11662 = vmatpush1.bf16.msra.mxu0 %v8106
        %11663 = vmatprep.subr.bf16.mxu0 %v8111
        %11664 = vmatpush1.bf16.msra.mxu0 %v8110
        %11665 = vmatprep.subr.bf16.mxu0 %v8115
        %11666 = vmatpush1.bf16.msra.mxu0 %v8114
        %11667 = vmatprep.subr.bf16.mxu0 %v8119
        %11668 = vmatpush1.bf16.msra.mxu0 %v8118
        %11669 = vmatprep.subr.bf16.mxu0 %v8123
        %11670 = vmatpush1.bf16.msra.mxu0 %v8122
        %11671 = vmatprep.subr.bf16.mxu0 %v8127
        %11672 = vmatpush1.bf16.msra.mxu0 %v8126
        %11673 = vmatprep.subr.bf16.mxu0 %v8131
        %11674 = vmatpush1.bf16.msra.mxu0 %v8130
        %11675 = vmatprep.subr.bf16.mxu0 %v8135
        %11676 = vmatpush1.bf16.msra.mxu0 %v8134
        %11677 = vmatprep.mubr.bf16.mxu0 %v2070
        %11678 = vmatmul.mubr.bf16.gmra.mrb[0].mxu0 %v2068
        %v11679 = vpop.f32.mrb[0].mxu0
        %v11680 = vadd.f32 %v11639, %v11679
        %v11681 = vpop.f32.mrb[0].mxu0
        %v11682 = vadd.f32 %v11641, %v11681
        %v11683 = vpop.f32.mrb[0].mxu0
        %v11684 = vpop.f32.mrb[0].mxu0
        %11685 = vdwg.mxu0
        %11686 = vmatprep.subr.bf16.mxu0 %v8139
        %11687 = vmatpush1.bf16.msra.mxu0 %v8138
        %11688 = vmatprep.subr.bf16.mxu0 %v8143
        %11689 = vmatpush1.bf16.msra.mxu0 %v8142
        %11690 = vmatprep.subr.bf16.mxu0 %v8147
        %11691 = vmatpush1.bf16.msra.mxu0 %v8146
        %11692 = vmatprep.subr.bf16.mxu0 %v8151
        %11693 = vmatpush1.bf16.msra.mxu0 %v8150
        %11694 = vmatprep.subr.bf16.mxu0 %v8155
        %11695 = vmatpush1.bf16.msra.mxu0 %v8154
        %11696 = vmatprep.subr.bf16.mxu0 %v8159
        %11697 = vmatpush1.bf16.msra.mxu0 %v8158
        %11698 = vmatprep.subr.bf16.mxu0 %v8163
        %11699 = vmatpush1.bf16.msra.mxu0 %v8162
        %11700 = vmatprep.subr.bf16.mxu0 %v8167
        %11701 = vmatpush1.bf16.msra.mxu0 %v8166
        %11702 = vmatprep.subr.bf16.mxu0 %v8171
        %11703 = vmatpush1.bf16.msra.mxu0 %v8170
        %11704 = vmatprep.subr.bf16.mxu0 %v8175
        %11705 = vmatpush1.bf16.msra.mxu0 %v8174
        %11706 = vmatprep.subr.bf16.mxu0 %v8179
        %11707 = vmatpush1.bf16.msra.mxu0 %v8178
        %11708 = vmatprep.subr.bf16.mxu0 %v8183
        %11709 = vmatpush1.bf16.msra.mxu0 %v8182
        %11710 = vmatprep.subr.bf16.mxu0 %v8187
        %11711 = vmatpush1.bf16.msra.mxu0 %v8186
        %11712 = vmatprep.subr.bf16.mxu0 %v8191
        %11713 = vmatpush1.bf16.msra.mxu0 %v8190
        %11714 = vmatprep.subr.bf16.mxu0 %v8195
        %11715 = vmatpush1.bf16.msra.mxu0 %v8194
        %11716 = vmatprep.subr.bf16.mxu0 %v8199
        %11717 = vmatpush1.bf16.msra.mxu0 %v8198
        %11718 = vmatprep.mubr.bf16.mxu0 %v2067
        %11719 = vmatmul.mubr.bf16.gmra.mrb[0].mxu0 %v2053
        %v11720 = vpop.f32.mrb[0].mxu0
        %v11721 = vadd.f32 %v11680, %v11720
        %v11722 = vpop.f32.mrb[0].mxu0
        %v11723 = vadd.f32 %v11682, %v11722
        %v11724 = vpop.f32.mrb[0].mxu0
        %v11725 = vpop.f32.mrb[0].mxu0
        %11726 = vdwg.mxu0
        %11727 = vmatprep.subr.bf16.mxu0 %v8203
        %11728 = vmatpush1.bf16.msra.mxu0 %v8202
        %11729 = vmatprep.subr.bf16.mxu0 %v8207
        %11730 = vmatpush1.bf16.msra.mxu0 %v8206
        %11731 = vmatprep.subr.bf16.mxu0 %v8211
        %11732 = vmatpush1.bf16.msra.mxu0 %v8210
        %11733 = vmatprep.subr.bf16.mxu0 %v8215
        %11734 = vmatpush1.bf16.msra.mxu0 %v8214
        %11735 = vmatprep.subr.bf16.mxu0 %v8219
        %11736 = vmatpush1.bf16.msra.mxu0 %v8218
        %11737 = vmatprep.subr.bf16.mxu0 %v8223
        %11738 = vmatpush1.bf16.msra.mxu0 %v8222
        %11739 = vmatprep.subr.bf16.mxu0 %v8227
        %11740 = vmatpush1.bf16.msra.mxu0 %v8226
        %11741 = vmatprep.subr.bf16.mxu0 %v8231
        %11742 = vmatpush1.bf16.msra.mxu0 %v8230
        %11743 = vmatprep.subr.bf16.mxu0 %v8235
        %11744 = vmatpush1.bf16.msra.mxu0 %v8234
        %11745 = vmatprep.subr.bf16.mxu0 %v8239
        %11746 = vmatpush1.bf16.msra.mxu0 %v8238
        %11747 = vmatprep.subr.bf16.mxu0 %v8243
        %11748 = vmatpush1.bf16.msra.mxu0 %v8242
        %11749 = vmatprep.subr.bf16.mxu0 %v8247
        %11750 = vmatpush1.bf16.msra.mxu0 %v8246
        %11751 = vmatprep.subr.bf16.mxu0 %v8251
        %11752 = vmatpush1.bf16.msra.mxu0 %v8250
        %11753 = vmatprep.subr.bf16.mxu0 %v8255
        %11754 = vmatpush1.bf16.msra.mxu0 %v8254
        %11755 = vmatprep.subr.bf16.mxu0 %v8259
        %11756 = vmatpush1.bf16.msra.mxu0 %v8258
        %11757 = vmatprep.subr.bf16.mxu0 %v8263
        %11758 = vmatpush1.bf16.msra.mxu0 %v8262
        %11759 = vmatprep.mubr.bf16.mxu0 %v2071
        %11760 = vmatmul.mubr.bf16.gmra.mrb[0].mxu0 %v2069
        %v11761 = vpop.f32.mrb[0].mxu0
        %v11762 = vadd.f32 %v11721, %v11761
        %v11763 = vpop.f32.mrb[0].mxu0
        %v11764 = vadd.f32 %v11723, %v11763
        %v11765 = vpop.f32.mrb[0].mxu0
        %v11766 = vpop.f32.mrb[0].mxu0
        %11767 = vdwg.mxu0
        %v11772 = vcombine.low %v10778, %v10780
        %v11773 = vcombine.low %v11762, %v11764
        %v11775 = vunpack.c.l.s4 1983009808
        %v11776 = vunpack.c.0.s8 %v11775
        %v11777 = vlaneseq
        %v11778 = vshrl.u32 %v11777, 7
        %v11779 = vsub.s32 %v11776, %v11778
        %v11780 = vrot.slane %v11772, %v11779
        %v11782 = vunpack.c.l.s4 1983009808
        %v11783 = vunpack.c.0.s8 %v11782
        %v11784 = vlaneseq
        %v11785 = vshrl.u32 %v11784, 7
        %v11786 = vsub.s32 %v11783, %v11785
        %v11787 = vrot.slane %v11773, %v11786
        %v11788 = vcombine.low %v11780, %v11787
        %v11790 = vadd.f32 %v229, %v11788
        %vm11791 = vcmask 1041408
        %vm11792 = vcmask 1043458
        %vm11793 = vmor %vm11792, %vm11791
        %vm11794 = vcmask 1045508
        %vm11795 = vmor %vm11794, %vm11793
        %vm11796 = vcmask 949254
        %vm11797 = vmor %vm11796, %vm11795
        %11798 = vst.msk [vmem:[#allocation2] sm:$0xff] %vm11797, %v11790
        %p11799 = scmp.eq.s32.totalorder %s24, 8
        // Predicated region
        $region37: #{tpu_custom_call.1} parent=27 // pred_check
          %p11800 = pneg %p11799
        $region38: #{tpu_custom_call.1} parent=27 // pred_check_branch
          %11802 = sbr.rel (%p11800) target = $region40
        $region39: #{tpu_custom_call.1} parent=27 // pred_region
          %v11803 = vld [vmem:[#allocation2] sm:$0xff]
          %11804 = vst.msk [vmem:[%s204] sm:$0xff] %vm11797, %v11803
        $region40: #{tpu_custom_call.1} parent=27 // pred_fallthru
          _
        %s11805 = sand.u32 %s99, 1
        %s11806 = scalar_lea.sflag [#allocation5], %s11805
        %s11807 = sand.u32 %s99, 1
        %s11808 = smul.addr %s11807, 8
        %s11809 = scalar_lea.vmem [#allocation6], %s11808
        // Predicated region
        $region41: #{tpu_custom_call.1} parent=27 // pred_check
          %p11810 = pneg %p109
        $region42: #{tpu_custom_call.1} parent=27 // pred_check_branch
          %11812 = sbr.rel (%p11810) target = $region44
        $region43: #{tpu_custom_call.1} parent=27 // pred_region
          %s11814 = ssub.s32 128, 128
          %11815 = vsyncadd %s11806, %s11814
          %s11816 = smul.addr %s23, 4
          %s11817 = smul.addr %s11816, 32
          %s11818 = scalar_lea.hbm %s2, %s11817
          %s11820 = sshll.u32 %s11809, 4
          %s11821 = int_to_ptr.vmem [resolvable:$true] %s11820
          %11823 = dma.vmem_to_hbm [thread:$0]  %s11821, 128, %s11818, %s11806
        $region44: #{tpu_custom_call.1} parent=27 // pred_fallthru
          _
      $region28: #{tpu_custom_call.1} parent=5 // pred_fallthru
        _
      %p11824 = scmp.le.s32.totalorder 2, %s14
      // Predicated region
      $region45: #{tpu_custom_call.1} parent=5 // pred_check
        %p11825 = pneg %p11824
      $region46: #{tpu_custom_call.1} parent=5 // pred_check_branch
        %11827 = sbr.rel (%p11825) target = $region48
      $region47: #{tpu_custom_call.1} parent=5 // pred_region
        %s11828 = ssub.s32 %s14, 2
        // Predicated region
        $region49: #{tpu_custom_call.1} parent=47 // pred_check
          %p11829 = pneg %p115
        $region50: #{tpu_custom_call.1} parent=47 // pred_check_branch
          %11831 = sbr.rel (%p11829) target = $region52
        $region51: #{tpu_custom_call.1} parent=47 // pred_region
          %s11832 = sand.u32 %s100, 1
          %s11833 = scalar_lea.sflag [#allocation5], %s11832
          %s11834 = sand.u32 %s100, 1
          %s11835 = smul.addr %s11834, 8
          %s11836 = scalar_lea.vmem [#allocation6], %s11835
          %11837 = dma.done %s11833, 128
        $region52: #{tpu_custom_call.1} parent=47 // pred_fallthru
          _
      $region48: #{tpu_custom_call.1} parent=5 // pred_fallthru
        _
    $region6: #{tpu_custom_call.1} parent=1 // loop_footer
      %s18 = sadd.s32 1, %s14
    $region7: #{tpu_custom_call.1} parent=1 // loop_footer_branch
      %13 = sbr.rel target = $region3
    $region8: #{tpu_custom_call.1} parent=1 // loop_exit
      _
    %11838 = vsyncpa [#allocation4], 1
    %s11839 = scalar_lea.sflag [#allocation4], 1
    %11840 = vsyncpa %s11839, 1
    %11841 = vsyncpa [#allocation5], 1
    %s11842 = scalar_lea.sflag [#allocation5], 1
    %11843 = vsyncpa %s11842, 1

</llo_original>
